<compile_context>
chip_gen: v7x
topology: tpu7x:2x2x1
jax: 0.10.0
libtpu: 0.0.40
codegen_flags: <defaults>
</compile_context>

<pallas_src>
import math
import numpy as np
import jax
import jax.numpy as jnp
from jax.experimental import pallas as pl
from jax.experimental.pallas import tpu as pltpu

# ---------------- small, module-consistent hyperparameters ----------------
B = 2            # batch
N_POS = 8        # n_positions (in-context examples)
D_IN = 4         # n_dims
N_EMBD = 32      # n_embd
N_HEAD = 4
N_LAYER = 2      # layer 0 == 'A', layer 1 == 'B'
FREQ = 2
T = FREQ * N_POS                  # backbone sequence length (2n = 16)
BLOCK_SIZE = FREQ * N_POS + 1     # GPT2Config.block_size
HEAD_DIM = N_EMBD // N_HEAD
LN_EPS = 1e-5


def _full(shape):
    """Full-array BlockSpec (block index constant across the grid)."""
    nd = len(shape)
    return pl.BlockSpec(shape, lambda b, _nd=nd: (0,) * _nd)


def _pick_n_prog(batch):
    """Split independent batches across TensorCores only on v7x (2 TCs/chip)."""
    try:
        kind = jax.devices()[0].device_kind.lower()
    except Exception:
        return 1
    return batch if ("v7" in kind) else 1


# ------------------------- fused forward kernel ---------------------------
def _make_fused_kernel(n_loop_start, n_loops, tp):
    inv_e = 1.0 / N_EMBD

    def _ln(x, w, b):
        # two independent cross-lane reductions (dual-issue on the XLUs)
        mu = jnp.sum(x, axis=-1, keepdims=True) * inv_e
        ex2 = jnp.sum(x * x, axis=-1, keepdims=True) * inv_e
        var = ex2 - mu * mu
        return (x - mu) * jax.lax.rsqrt(var + LN_EPS) * w + b

    def kernel(zs_ref, pos_ref, bias_ref, hmask_ref,
               w_in_ref, b_in_ref, lnfw_ref, lnfb_ref, w_out_ref, b_out_ref,
               lnv_ref, wq_ref, wk_ref, wv_ref, bq_ref, bk_ref, bv_ref,
               waproj_ref, baproj_ref, wfc_ref, bfc_ref, wmp_ref, bmp_ref,
               out_ref):
        # ---- hoisted (computed once for all loop iterations) ----
        attn_bias = bias_ref[0]                               # (tp, tp) additive mask
        hmasks = [hmask_ref[h] for h in range(N_HEAD)]        # (1, E) bf16 lane masks
        emb = jnp.dot(zs_ref[...].astype(jnp.bfloat16), w_in_ref[...],
                      preferred_element_type=jnp.float32) + b_in_ref[...]
        ep = emb + pos_ref[...]                                # read_in(zs) + pos, f32
        lnfw = lnfw_ref[...]
        lnfb = lnfb_ref[...]

        def block_step(z, which):
            # loop_func 'z=f(x+z)': inputs_embeds = output + embeds; + pos_emb
            x = z + ep
            # ---- causal self-attention (pre-LN) ----
            h1 = _ln(x, lnv_ref[which * 4 + 0], lnv_ref[which * 4 + 1])
            h1b = h1.astype(jnp.bfloat16)
            # fused all-head projections; attention scale pre-folded into wq/bq
            q = jnp.dot(h1b, wq_ref[which],
                        preferred_element_type=jnp.float32) + bq_ref[which]
            k = jnp.dot(h1b, wk_ref[which],
                        preferred_element_type=jnp.float32) + bk_ref[which]
            v = jnp.dot(h1b, wv_ref[which],
                        preferred_element_type=jnp.float32) + bv_ref[which]
            qb = q.astype(jnp.bfloat16)
            kb = k.astype(jnp.bfloat16)
            vb = v.astype(jnp.bfloat16)
            ho = jnp.zeros((tp, N_EMBD), jnp.float32)
            for hh in range(N_HEAD):
                mk = hmasks[hh]
                # one-operand lane masking: masked-out lanes contribute 0
                s = jax.lax.dot_general(qb * mk, kb, (((1,), (1,)), ((), ())),
                                        preferred_element_type=jnp.float32)
                s = s + attn_bias
                m = jnp.max(s, axis=-1, keepdims=True)
                e = jnp.exp(s - m)
                denom = jnp.sum(e, axis=-1, keepdims=True)
                p = (e * pl.reciprocal(denom, approx=True)).astype(jnp.bfloat16)
                # head output lands in its own HEAD_DIM lanes (v is lane-masked)
                ho = ho + jnp.dot(p, vb * mk, preferred_element_type=jnp.float32)
            # single fused c_proj over all heads
            y = jnp.dot(ho.astype(jnp.bfloat16), waproj_ref[which],
                        preferred_element_type=jnp.float32) + baproj_ref[which]
            x = x + y
            # ---- MLP ----
            h2 = _ln(x, lnv_ref[which * 4 + 2], lnv_ref[which * 4 + 3])
            m1 = jnp.dot(h2.astype(jnp.bfloat16), wfc_ref[which],
                         preferred_element_type=jnp.float32) + bfc_ref[which]
            # TODO(synk): PyTorch nn.GELU() is exact (erf) GELU; tanh approximation used.
            m1 = jax.nn.gelu(m1, approximate=True)
            m2 = jnp.dot(m1.astype(jnp.bfloat16), wmp_ref[which],
                         preferred_element_type=jnp.float32) + bmp_ref[which]
            x = x + m2
            # ---- backbone ln_f (applied every loop iteration, carried in z) ----
            return _ln(x, lnfw, lnfb)

        def read_out(z, p_idx):
            # (1,E) . (tp,E)^T -> lane-dense (1, tp) prediction row
            pred = jax.lax.dot_general(w_out_ref[...], z.astype(jnp.bfloat16),
                                       (((1,), (1,)), ((), ())),
                                       preferred_element_type=jnp.float32)
            out_ref[p_idx, 0] = pred + b_out_ref[...]

        # ---- unrolled A/B loop, loop state held on-chip ----
        z = jnp.zeros((tp, N_EMBD), jnp.float32)    # loop_func 'z=f(x+z)'
        which = 0        # 0 -> 'A' (h[0]), 1 -> 'B' (h[1])
        p_idx = 0
        for idx in range(n_loops):
            z = block_step(z, which)
            if idx >= n_loop_start:
                read_out(z, p_idx)
                p_idx += 1
            which = 1 - which
        if which == 1:   # which_layer == 'B' after the loop -> one extra 'B' pass
            z = block_step(z, 1)
            read_out(z, p_idx)

    return kernel


# ----------------------------- parameter init -----------------------------
def init_params(key):
    ks = jax.random.split(key, 9)
    std = 0.02
    proj_std = 0.02 / math.sqrt(2 * N_LAYER)   # c_proj special init
    E, L = N_EMBD, N_LAYER
    scale = 1.0 / math.sqrt(HEAD_DIM)
    ones_row = jnp.ones((1, 1, E), jnp.float32)
    zeros_row = jnp.zeros((1, 1, E), jnp.float32)
    # per-layer LN params packed: [ln1w, ln1b, ln2w, ln2b] per layer
    lnv = jnp.concatenate([ones_row, zeros_row, ones_row, zeros_row] * L, axis=0)
    wq = jax.random.normal(ks[3], (L, E, E), jnp.float32) * std
    wk = jax.random.normal(ks[4], (L, E, E), jnp.float32) * std
    wv = jax.random.normal(ks[5], (L, E, E), jnp.float32) * std
    return {
        'w_in': (jax.random.normal(ks[0], (D_IN, E), jnp.float32) * std).astype(jnp.bfloat16),
        'b_in': jnp.zeros((1, E), jnp.float32),
        'wpe': jax.random.normal(ks[1], (BLOCK_SIZE, E), jnp.float32) * std,
        'lnfw': jnp.ones((1, E), jnp.float32),
        'lnfb': jnp.zeros((1, E), jnp.float32),
        'w_out': (jax.random.normal(ks[2], (1, E), jnp.float32) * std).astype(jnp.bfloat16),
        'b_out': jnp.zeros((1, 1), jnp.float32),
        'lnv': lnv,                                                   # (4L, 1, E)
        # lane-dense all-head projections; 1/sqrt(head_dim) folded into q path
        'wq': (wq * scale).astype(jnp.bfloat16),                      # (L, E, E)
        'wk': wk.astype(jnp.bfloat16),
        'wv': wv.astype(jnp.bfloat16),
        'bq': jnp.zeros((L, 1, E), jnp.float32),                      # (zeros * scale)
        'bk': jnp.zeros((L, 1, E), jnp.float32),
        'bv': jnp.zeros((L, 1, E), jnp.float32),
        # fused attn c_proj: rows [h*HD:(h+1)*HD] are head h's projection
        'waproj': (jax.random.normal(ks[6], (L, E, E), jnp.float32) * proj_std).astype(jnp.bfloat16),
        'baproj': jnp.zeros((L, 1, E), jnp.float32),
        'wfc': (jax.random.normal(ks[7], (L, E, 4 * E), jnp.float32) * std).astype(jnp.bfloat16),
        'bfc': jnp.zeros((L, 1, 4 * E), jnp.float32),
        'wmp': (jax.random.normal(ks[8], (L, 4 * E, E), jnp.float32) * proj_std).astype(jnp.bfloat16),
        'bmp': jnp.zeros((L, 1, E), jnp.float32),
    }


# ------------------------------ forward pass ------------------------------
def combine(xs, ys):
    Bb, n, d = xs.shape
    ys_wide = jnp.concatenate(
        [ys[..., None], jnp.zeros((Bb, n, d - 1), xs.dtype)], axis=2)
    zs = jnp.stack([xs, ys_wide], axis=2)        # [B, n, 2, d]
    return zs.reshape(Bb, FREQ * n, d)           # [B, 2n, d]


def forward_looped_ab(params, xs, ys, n_loop_start, n_loops):
    Bb, n, d = xs.shape
    Tt = FREQ * n
    n_tok = Bb * Tt
    n_preds = max(n_loops - n_loop_start, 0) + (1 if (n_loops % 2 == 1) else 0)
    if n_preds == 0:
        return []

    n_prog = _pick_n_prog(Bb)
    if n_prog < 1 or (n_tok % n_prog) != 0 or ((n_tok // n_prog) % 8) != 0:
        n_prog = 1
    tp = n_tok // n_prog            # tokens handled per grid program

    zs_f = combine(xs, ys).reshape(n_tok, d)              # fold batch into sublanes
    pos_f = jnp.tile(params['wpe'][:Tt], (Bb, 1))          # [B*T, E]

    # host-baked additive attention mask (causal AND same-batch), per program
    r = np.arange(n_tok)
    allowed = ((r[:, None] // Tt) == (r[None, :] // Tt)) & (r[:, None] >= r[None, :])
    bias_full = np.where(allowed, 0.0, -1e30).astype(np.float32)
    bias = jnp.asarray(np.stack(
        [bias_full[p * tp:(p + 1) * tp, p * tp:(p + 1) * tp] for p in range(n_prog)]))

    # per-head lane masks: 1.0 on that head's HEAD_DIM lanes, 0 elsewhere
    lane = np.arange(N_EMBD)
    hmask_np = (lane[None, :] // HEAD_DIM == np.arange(N_HEAD)[:, None]).astype(np.float32)
    hmask = jnp.asarray(hmask_np.reshape(N_HEAD, 1, N_EMBD), dtype=jnp.bfloat16)

    args = (zs_f, pos_f, bias, hmask,
            params['w_in'], params['b_in'], params['lnfw'], params['lnfb'],
            params['w_out'], params['b_out'], params['lnv'],
            params['wq'], params['wk'], params['wv'],
            params['bq'], params['bk'], params['bv'],
            params['waproj'], params['baproj'],
            params['wfc'], params['bfc'], params['wmp'], params['bmp'])

    in_specs = [pl.BlockSpec((tp, d), lambda b: (b, 0)),
                pl.BlockSpec((tp, N_EMBD), lambda b: (b, 0)),
                pl.BlockSpec((1, tp, tp), lambda b: (b, 0, 0))]
    in_specs += [_full(tuple(a.shape)) for a in args[3:]]

    kernel = _make_fused_kernel(n_loop_start, n_loops, tp)
    out = pl.pallas_call(
        kernel,
        out_shape=jax.ShapeDtypeStruct((n_preds, n_prog, 1, tp), jnp.float32),
        grid=(n_prog,),
        in_specs=in_specs,
        out_specs=pl.BlockSpec((n_preds, 1, 1, tp), lambda b: (0, b, 0, 0)),
        compiler_params=pltpu.CompilerParams(
            dimension_semantics=("parallel",)),
    )(*args)

    # strided sample extraction (positions ind=0 :: freq) on tiny host-side array
    preds = out.reshape(n_preds, Bb, Tt)[:, :, 0::FREQ]    # [n_preds, B, n]
    return [preds[i] for i in range(n_preds)]


if __name__ == "__main__":
    key = jax.random.PRNGKey(0)
    kp, kx, ky = jax.random.split(key, 3)
    params = init_params(kp)
    xs = jax.random.normal(kx, (B, N_POS, D_IN), jnp.float32)
    ys = jax.random.normal(ky, (B, N_POS), jnp.float32)

    fwd = jax.jit(forward_looped_ab, static_argnums=(3, 4))
    preds = fwd(params, xs, ys, 1, 3)   # n_loop_start=1, n_loops=3 -> 3 predictions
    for p in preds:
        p.block_until_ready()
    assert len(preds) == 3 and all(p.shape == (B, N_POS) for p in preds)
    assert all(bool(jnp.all(jnp.isfinite(p))) for p in preds)
    print("KERNEL_OK")
</pallas_src>

<mosaic_0001>
module attributes {stable_mosaic.version = 11 : i64} {
  func.func @kernel(%arg0: i32, %arg1: memref<32x4xf32, #tpu.memory_space<vmem>>, %arg2: memref<32x32xf32, #tpu.memory_space<vmem>>, %arg3: memref<1x32x32xf32, #tpu.memory_space<vmem>>, %arg4: memref<4x1x32xbf16, #tpu.memory_space<vmem>>, %arg5: memref<4x32xbf16, #tpu.memory_space<vmem>>, %arg6: memref<1x32xf32, #tpu.memory_space<vmem>>, %arg7: memref<1x32xf32, #tpu.memory_space<vmem>>, %arg8: memref<1x32xf32, #tpu.memory_space<vmem>>, %arg9: memref<1x32xbf16, #tpu.memory_space<vmem>>, %arg10: memref<1x1xf32, #tpu.memory_space<vmem>>, %arg11: memref<8x1x32xf32, #tpu.memory_space<vmem>>, %arg12: memref<2x32x32xbf16, #tpu.memory_space<vmem>>, %arg13: memref<2x32x32xbf16, #tpu.memory_space<vmem>>, %arg14: memref<2x32x32xbf16, #tpu.memory_space<vmem>>, %arg15: memref<2x1x32xf32, #tpu.memory_space<vmem>>, %arg16: memref<2x1x32xf32, #tpu.memory_space<vmem>>, %arg17: memref<2x1x32xf32, #tpu.memory_space<vmem>>, %arg18: memref<2x32x32xbf16, #tpu.memory_space<vmem>>, %arg19: memref<2x1x32xf32, #tpu.memory_space<vmem>>, %arg20: memref<2x32x128xbf16, #tpu.memory_space<vmem>>, %arg21: memref<2x1x128xf32, #tpu.memory_space<vmem>>, %arg22: memref<2x128x32xbf16, #tpu.memory_space<vmem>>, %arg23: memref<2x1x32xf32, #tpu.memory_space<vmem>>, %arg24: memref<3x1x1x32xf32, #tpu.memory_space<vmem>>) attributes {dimension_semantics = [#tpu.dimension_semantics<parallel>], iteration_bounds = array<i64: 1>, scalar_prefetch = 0 : i64, scratch_operands = 0 : i64, tpu.core_type = #tpu.core_type<tc>, window_params = [{transform_indices = @transform_0, window_bounds = array<i64: 32, 4>}, {transform_indices = @transform_1, window_bounds = array<i64: 32, 32>}, {transform_indices = @transform_2, window_bounds = array<i64: 1, 32, 32>}, {pipeline_mode = #tpu.pipeline_mode<synchronous>, transform_indices = @transform_3, window_bounds = array<i64: 4, 1, 32>}, {pipeline_mode = #tpu.pipeline_mode<synchronous>, transform_indices = @transform_4, window_bounds = array<i64: 4, 32>}, {pipeline_mode = #tpu.pipeline_mode<synchronous>, transform_indices = @transform_5, window_bounds = array<i64: 1, 32>}, {pipeline_mode = #tpu.pipeline_mode<synchronous>, transform_indices = @transform_6, window_bounds = array<i64: 1, 32>}, {pipeline_mode = #tpu.pipeline_mode<synchronous>, transform_indices = @transform_7, window_bounds = array<i64: 1, 32>}, {pipeline_mode = #tpu.pipeline_mode<synchronous>, transform_indices = @transform_8, window_bounds = array<i64: 1, 32>}, {pipeline_mode = #tpu.pipeline_mode<synchronous>, transform_indices = @transform_9, window_bounds = array<i64: 1, 1>}, {pipeline_mode = #tpu.pipeline_mode<synchronous>, transform_indices = @transform_10, window_bounds = array<i64: 8, 1, 32>}, {pipeline_mode = #tpu.pipeline_mode<synchronous>, transform_indices = @transform_11, window_bounds = array<i64: 2, 32, 32>}, {pipeline_mode = #tpu.pipeline_mode<synchronous>, transform_indices = @transform_12, window_bounds = array<i64: 2, 32, 32>}, {pipeline_mode = #tpu.pipeline_mode<synchronous>, transform_indices = @transform_13, window_bounds = array<i64: 2, 32, 32>}, {pipeline_mode = #tpu.pipeline_mode<synchronous>, transform_indices = @transform_14, window_bounds = array<i64: 2, 1, 32>}, {pipeline_mode = #tpu.pipeline_mode<synchronous>, transform_indices = @transform_15, window_bounds = array<i64: 2, 1, 32>}, {pipeline_mode = #tpu.pipeline_mode<synchronous>, transform_indices = @transform_16, window_bounds = array<i64: 2, 1, 32>}, {pipeline_mode = #tpu.pipeline_mode<synchronous>, transform_indices = @transform_17, window_bounds = array<i64: 2, 32, 32>}, {pipeline_mode = #tpu.pipeline_mode<synchronous>, transform_indices = @transform_18, window_bounds = array<i64: 2, 1, 32>}, {pipeline_mode = #tpu.pipeline_mode<synchronous>, transform_indices = @transform_19, window_bounds = array<i64: 2, 32, 128>}, {pipeline_mode = #tpu.pipeline_mode<synchronous>, transform_indices = @transform_20, window_bounds = array<i64: 2, 1, 128>}, {pipeline_mode = #tpu.pipeline_mode<synchronous>, transform_indices = @transform_21, window_bounds = array<i64: 2, 128, 32>}, {pipeline_mode = #tpu.pipeline_mode<synchronous>, transform_indices = @transform_22, window_bounds = array<i64: 2, 1, 32>}, {transform_indices = @transform_23, window_bounds = array<i64: 3, 1, 1, 32>}]} {
    %c0 = arith.constant 0 : index
    %c0_0 = arith.constant 0 : index
    %c0_1 = arith.constant 0 : index
    %0 = vector.load %arg3[%c0, %c0_0, %c0_1] : memref<1x32x32xf32, #tpu.memory_space<vmem>>, vector<1x32x32xf32>
    %1 = vector.shape_cast %0 : vector<1x32x32xf32> to vector<32x32xf32>
    %c0_2 = arith.constant 0 : index
    %c0_3 = arith.constant 0 : index
    %c0_4 = arith.constant 0 : index
    %2 = vector.load %arg4[%c0_2, %c0_3, %c0_4] : memref<4x1x32xbf16, #tpu.memory_space<vmem>>, vector<1x1x32xbf16>
    %3 = vector.shape_cast %2 : vector<1x1x32xbf16> to vector<1x32xbf16>
    %c1 = arith.constant 1 : index
    %c0_5 = arith.constant 0 : index
    %c0_6 = arith.constant 0 : index
    %4 = vector.load %arg4[%c1, %c0_5, %c0_6] : memref<4x1x32xbf16, #tpu.memory_space<vmem>>, vector<1x1x32xbf16>
    %5 = vector.shape_cast %4 : vector<1x1x32xbf16> to vector<1x32xbf16>
    %c2 = arith.constant 2 : index
    %c0_7 = arith.constant 0 : index
    %c0_8 = arith.constant 0 : index
    %6 = vector.load %arg4[%c2, %c0_7, %c0_8] : memref<4x1x32xbf16, #tpu.memory_space<vmem>>, vector<1x1x32xbf16>
    %7 = vector.shape_cast %6 : vector<1x1x32xbf16> to vector<1x32xbf16>
    %c3 = arith.constant 3 : index
    %c0_9 = arith.constant 0 : index
    %c0_10 = arith.constant 0 : index
    %8 = vector.load %arg4[%c3, %c0_9, %c0_10] : memref<4x1x32xbf16, #tpu.memory_space<vmem>>, vector<1x1x32xbf16>
    %9 = vector.shape_cast %8 : vector<1x1x32xbf16> to vector<1x32xbf16>
    %c0_11 = arith.constant 0 : index
    %c0_12 = arith.constant 0 : index
    %10 = vector.load %arg1[%c0_11, %c0_12] : memref<32x4xf32, #tpu.memory_space<vmem>>, vector<32x4xf32>
    %11 = arith.truncf %10 : vector<32x4xf32> to vector<32x4xbf16>
    %c0_13 = arith.constant 0 : index
    %c0_14 = arith.constant 0 : index
    %12 = vector.load %arg5[%c0_13, %c0_14] : memref<4x32xbf16, #tpu.memory_space<vmem>>, vector<4x32xbf16>
    %cst = arith.constant dense<0.000000e+00> : vector<32x32xf32>
    %13 = tpu.matmul %11, %12, %cst {dimension_numbers = #tpu.dot_dimension_numbers<[1], [0], [0], [1], [0, 0, 1, 1], [], []>} : vector<32x4xbf16>, vector<4x32xbf16>, vector<32x32xf32> -> vector<32x32xf32>
    %c0_15 = arith.constant 0 : index
    %c0_16 = arith.constant 0 : index
    %14 = vector.load %arg6[%c0_15, %c0_16] : memref<1x32xf32, #tpu.memory_space<vmem>>, vector<1x32xf32>
    %15 = vector.broadcast %14 : vector<1x32xf32> to vector<32x32xf32>
    %16 = arith.addf %13, %15 : vector<32x32xf32>
    %c0_17 = arith.constant 0 : index
    %c0_18 = arith.constant 0 : index
    %17 = vector.load %arg2[%c0_17, %c0_18] : memref<32x32xf32, #tpu.memory_space<vmem>>, vector<32x32xf32>
    %18 = arith.addf %16, %17 : vector<32x32xf32>
    %c0_19 = arith.constant 0 : index
    %c0_20 = arith.constant 0 : index
    %19 = vector.load %arg7[%c0_19, %c0_20] : memref<1x32xf32, #tpu.memory_space<vmem>>, vector<1x32xf32>
    %c0_21 = arith.constant 0 : index
    %c0_22 = arith.constant 0 : index
    %20 = vector.load %arg8[%c0_21, %c0_22] : memref<1x32xf32, #tpu.memory_space<vmem>>, vector<1x32xf32>
    %cst_23 = arith.constant 0.000000e+00 : f32
    %21 = vector.broadcast %cst_23 : f32 to vector<32x32xf32>
    %22 = arith.addf %21, %18 : vector<32x32xf32>
    %c0_24 = arith.constant 0 : index
    %c0_25 = arith.constant 0 : index
    %c0_26 = arith.constant 0 : index
    %23 = vector.load %arg11[%c0_24, %c0_25, %c0_26] : memref<8x1x32xf32, #tpu.memory_space<vmem>>, vector<1x1x32xf32>
    %24 = vector.shape_cast %23 : vector<1x1x32xf32> to vector<1x32xf32>
    %c1_27 = arith.constant 1 : index
    %c0_28 = arith.constant 0 : index
    %c0_29 = arith.constant 0 : index
    %25 = vector.load %arg11[%c1_27, %c0_28, %c0_29] : memref<8x1x32xf32, #tpu.memory_space<vmem>>, vector<1x1x32xf32>
    %26 = vector.shape_cast %25 : vector<1x1x32xf32> to vector<1x32xf32>
    %cst_30 = arith.constant dense<0.000000e+00> : vector<32xf32>
    %27 = vector.multi_reduction <add>, %22, %cst_30 [1] : vector<32x32xf32> to vector<32xf32>
    %28 = vector.shape_cast %27 : vector<32xf32> to vector<32x1xf32>
    %cst_31 = arith.constant 3.125000e-02 : f32
    %29 = vector.broadcast %cst_31 : f32 to vector<32x1xf32>
    %30 = arith.mulf %28, %29 : vector<32x1xf32>
    %31 = arith.mulf %22, %22 : vector<32x32xf32>
    %cst_32 = arith.constant dense<0.000000e+00> : vector<32xf32>
    %32 = vector.multi_reduction <add>, %31, %cst_32 [1] : vector<32x32xf32> to vector<32xf32>
    %33 = vector.shape_cast %32 : vector<32xf32> to vector<32x1xf32>
    %cst_33 = arith.constant 3.125000e-02 : f32
    %34 = vector.broadcast %cst_33 : f32 to vector<32x1xf32>
    %35 = arith.mulf %33, %34 : vector<32x1xf32>
    %36 = arith.mulf %30, %30 : vector<32x1xf32>
    %37 = arith.subf %35, %36 : vector<32x1xf32>
    %38 = vector.broadcast %30 : vector<32x1xf32> to vector<32x32xf32>
    %39 = arith.subf %22, %38 : vector<32x32xf32>
    %cst_34 = arith.constant 9.99999974E-6 : f32
    %40 = vector.broadcast %cst_34 : f32 to vector<32x1xf32>
    %41 = arith.addf %37, %40 : vector<32x1xf32>
    %42 = math.rsqrt %41 : vector<32x1xf32>
    %43 = vector.broadcast %42 : vector<32x1xf32> to vector<32x32xf32>
    %44 = arith.mulf %39, %43 : vector<32x32xf32>
    %45 = vector.broadcast %24 : vector<1x32xf32> to vector<32x32xf32>
    %46 = arith.mulf %44, %45 : vector<32x32xf32>
    %47 = vector.broadcast %26 : vector<1x32xf32> to vector<32x32xf32>
    %48 = arith.addf %46, %47 : vector<32x32xf32>
    %49 = arith.truncf %48 : vector<32x32xf32> to vector<32x32xbf16>
    %c0_35 = arith.constant 0 : index
    %c0_36 = arith.constant 0 : index
    %c0_37 = arith.constant 0 : index
    %50 = vector.load %arg12[%c0_35, %c0_36, %c0_37] : memref<2x32x32xbf16, #tpu.memory_space<vmem>>, vector<1x32x32xbf16>
    %51 = vector.shape_cast %50 : vector<1x32x32xbf16> to vector<32x32xbf16>
    %cst_38 = arith.constant dense<0.000000e+00> : vector<32x32xf32>
    %52 = tpu.matmul %49, %51, %cst_38 {dimension_numbers = #tpu.dot_dimension_numbers<[1], [0], [0], [1], [0, 0, 1, 1], [], []>} : vector<32x32xbf16>, vector<32x32xbf16>, vector<32x32xf32> -> vector<32x32xf32>
    %c0_39 = arith.constant 0 : index
    %c0_40 = arith.constant 0 : index
    %c0_41 = arith.constant 0 : index
    %53 = vector.load %arg15[%c0_39, %c0_40, %c0_41] : memref<2x1x32xf32, #tpu.memory_space<vmem>>, vector<1x1x32xf32>
    %54 = vector.shape_cast %53 : vector<1x1x32xf32> to vector<1x32xf32>
    %55 = vector.broadcast %54 : vector<1x32xf32> to vector<32x32xf32>
    %56 = arith.addf %52, %55 : vector<32x32xf32>
    %c0_42 = arith.constant 0 : index
    %c0_43 = arith.constant 0 : index
    %c0_44 = arith.constant 0 : index
    %57 = vector.load %arg13[%c0_42, %c0_43, %c0_44] : memref<2x32x32xbf16, #tpu.memory_space<vmem>>, vector<1x32x32xbf16>
    %58 = vector.shape_cast %57 : vector<1x32x32xbf16> to vector<32x32xbf16>
    %cst_45 = arith.constant dense<0.000000e+00> : vector<32x32xf32>
    %59 = tpu.matmul %49, %58, %cst_45 {dimension_numbers = #tpu.dot_dimension_numbers<[1], [0], [0], [1], [0, 0, 1, 1], [], []>} : vector<32x32xbf16>, vector<32x32xbf16>, vector<32x32xf32> -> vector<32x32xf32>
    %c0_46 = arith.constant 0 : index
    %c0_47 = arith.constant 0 : index
    %c0_48 = arith.constant 0 : index
    %60 = vector.load %arg16[%c0_46, %c0_47, %c0_48] : memref<2x1x32xf32, #tpu.memory_space<vmem>>, vector<1x1x32xf32>
    %61 = vector.shape_cast %60 : vector<1x1x32xf32> to vector<1x32xf32>
    %62 = vector.broadcast %61 : vector<1x32xf32> to vector<32x32xf32>
    %63 = arith.addf %59, %62 : vector<32x32xf32>
    %c0_49 = arith.constant 0 : index
    %c0_50 = arith.constant 0 : index
    %c0_51 = arith.constant 0 : index
    %64 = vector.load %arg14[%c0_49, %c0_50, %c0_51] : memref<2x32x32xbf16, #tpu.memory_space<vmem>>, vector<1x32x32xbf16>
    %65 = vector.shape_cast %64 : vector<1x32x32xbf16> to vector<32x32xbf16>
    %cst_52 = arith.constant dense<0.000000e+00> : vector<32x32xf32>
    %66 = tpu.matmul %49, %65, %cst_52 {dimension_numbers = #tpu.dot_dimension_numbers<[1], [0], [0], [1], [0, 0, 1, 1], [], []>} : vector<32x32xbf16>, vector<32x32xbf16>, vector<32x32xf32> -> vector<32x32xf32>
    %c0_53 = arith.constant 0 : index
    %c0_54 = arith.constant 0 : index
    %c0_55 = arith.constant 0 : index
    %67 = vector.load %arg17[%c0_53, %c0_54, %c0_55] : memref<2x1x32xf32, #tpu.memory_space<vmem>>, vector<1x1x32xf32>
    %68 = vector.shape_cast %67 : vector<1x1x32xf32> to vector<1x32xf32>
    %69 = vector.broadcast %68 : vector<1x32xf32> to vector<32x32xf32>
    %70 = arith.addf %66, %69 : vector<32x32xf32>
    %71 = arith.truncf %56 : vector<32x32xf32> to vector<32x32xbf16>
    %72 = arith.truncf %63 : vector<32x32xf32> to vector<32x32xbf16>
    %73 = arith.truncf %70 : vector<32x32xf32> to vector<32x32xbf16>
    %cst_56 = arith.constant 0.000000e+00 : f32
    %74 = vector.broadcast %cst_56 : f32 to vector<32x32xf32>
    %75 = vector.broadcast %3 : vector<1x32xbf16> to vector<32x32xbf16>
    %76 = arith.mulf %71, %75 : vector<32x32xbf16>
    %cst_57 = arith.constant dense<0.000000e+00> : vector<32x32xf32>
    %77 = tpu.matmul %76, %72, %cst_57 {dimension_numbers = #tpu.dot_dimension_numbers<[1], [1], [0], [0], [0, 0, 1, 0], [], []>} : vector<32x32xbf16>, vector<32x32xbf16>, vector<32x32xf32> -> vector<32x32xf32>
    %78 = arith.addf %77, %1 : vector<32x32xf32>
    %cst_58 = arith.constant dense<0xFF800000> : vector<32xf32>
    %79 = vector.multi_reduction <maximumf>, %78, %cst_58 [1] : vector<32x32xf32> to vector<32xf32>
    %80 = vector.shape_cast %79 : vector<32xf32> to vector<32x1xf32>
    %81 = vector.broadcast %80 : vector<32x1xf32> to vector<32x32xf32>
    %82 = arith.subf %78, %81 : vector<32x32xf32>
    %83 = math.exp %82 : vector<32x32xf32>
    %cst_59 = arith.constant dense<0.000000e+00> : vector<32xf32>
    %84 = vector.multi_reduction <add>, %83, %cst_59 [1] : vector<32x32xf32> to vector<32xf32>
    %85 = vector.shape_cast %84 : vector<32xf32> to vector<32x1xf32>
    %86 = tpu.reciprocal %85 {approx = true} : vector<32x1xf32> -> vector<32x1xf32>
    %87 = vector.broadcast %86 : vector<32x1xf32> to vector<32x32xf32>
    %88 = arith.mulf %83, %87 : vector<32x32xf32>
    %89 = arith.truncf %88 : vector<32x32xf32> to vector<32x32xbf16>
    %90 = vector.broadcast %3 : vector<1x32xbf16> to vector<32x32xbf16>
    %91 = arith.mulf %73, %90 : vector<32x32xbf16>
    %cst_60 = arith.constant dense<0.000000e+00> : vector<32x32xf32>
    %92 = tpu.matmul %89, %91, %cst_60 {dimension_numbers = #tpu.dot_dimension_numbers<[1], [0], [0], [1], [0, 0, 1, 1], [], []>} : vector<32x32xbf16>, vector<32x32xbf16>, vector<32x32xf32> -> vector<32x32xf32>
    %93 = arith.addf %74, %92 : vector<32x32xf32>
    %94 = vector.broadcast %5 : vector<1x32xbf16> to vector<32x32xbf16>
    %95 = arith.mulf %71, %94 : vector<32x32xbf16>
    %cst_61 = arith.constant dense<0.000000e+00> : vector<32x32xf32>
    %96 = tpu.matmul %95, %72, %cst_61 {dimension_numbers = #tpu.dot_dimension_numbers<[1], [1], [0], [0], [0, 0, 1, 0], [], []>} : vector<32x32xbf16>, vector<32x32xbf16>, vector<32x32xf32> -> vector<32x32xf32>
    %97 = arith.addf %96, %1 : vector<32x32xf32>
    %cst_62 = arith.constant dense<0xFF800000> : vector<32xf32>
    %98 = vector.multi_reduction <maximumf>, %97, %cst_62 [1] : vector<32x32xf32> to vector<32xf32>
    %99 = vector.shape_cast %98 : vector<32xf32> to vector<32x1xf32>
    %100 = vector.broadcast %99 : vector<32x1xf32> to vector<32x32xf32>
    %101 = arith.subf %97, %100 : vector<32x32xf32>
    %102 = math.exp %101 : vector<32x32xf32>
    %cst_63 = arith.constant dense<0.000000e+00> : vector<32xf32>
    %103 = vector.multi_reduction <add>, %102, %cst_63 [1] : vector<32x32xf32> to vector<32xf32>
    %104 = vector.shape_cast %103 : vector<32xf32> to vector<32x1xf32>
    %105 = tpu.reciprocal %104 {approx = true} : vector<32x1xf32> -> vector<32x1xf32>
    %106 = vector.broadcast %105 : vector<32x1xf32> to vector<32x32xf32>
    %107 = arith.mulf %102, %106 : vector<32x32xf32>
    %108 = arith.truncf %107 : vector<32x32xf32> to vector<32x32xbf16>
    %109 = vector.broadcast %5 : vector<1x32xbf16> to vector<32x32xbf16>
    %110 = arith.mulf %73, %109 : vector<32x32xbf16>
    %cst_64 = arith.constant dense<0.000000e+00> : vector<32x32xf32>
    %111 = tpu.matmul %108, %110, %cst_64 {dimension_numbers = #tpu.dot_dimension_numbers<[1], [0], [0], [1], [0, 0, 1, 1], [], []>} : vector<32x32xbf16>, vector<32x32xbf16>, vector<32x32xf32> -> vector<32x32xf32>
    %112 = arith.addf %93, %111 : vector<32x32xf32>
    %113 = vector.broadcast %7 : vector<1x32xbf16> to vector<32x32xbf16>
    %114 = arith.mulf %71, %113 : vector<32x32xbf16>
    %cst_65 = arith.constant dense<0.000000e+00> : vector<32x32xf32>
    %115 = tpu.matmul %114, %72, %cst_65 {dimension_numbers = #tpu.dot_dimension_numbers<[1], [1], [0], [0], [0, 0, 1, 0], [], []>} : vector<32x32xbf16>, vector<32x32xbf16>, vector<32x32xf32> -> vector<32x32xf32>
    %116 = arith.addf %115, %1 : vector<32x32xf32>
    %cst_66 = arith.constant dense<0xFF800000> : vector<32xf32>
    %117 = vector.multi_reduction <maximumf>, %116, %cst_66 [1] : vector<32x32xf32> to vector<32xf32>
    %118 = vector.shape_cast %117 : vector<32xf32> to vector<32x1xf32>
    %119 = vector.broadcast %118 : vector<32x1xf32> to vector<32x32xf32>
    %120 = arith.subf %116, %119 : vector<32x32xf32>
    %121 = math.exp %120 : vector<32x32xf32>
    %cst_67 = arith.constant dense<0.000000e+00> : vector<32xf32>
    %122 = vector.multi_reduction <add>, %121, %cst_67 [1] : vector<32x32xf32> to vector<32xf32>
    %123 = vector.shape_cast %122 : vector<32xf32> to vector<32x1xf32>
    %124 = tpu.reciprocal %123 {approx = true} : vector<32x1xf32> -> vector<32x1xf32>
    %125 = vector.broadcast %124 : vector<32x1xf32> to vector<32x32xf32>
    %126 = arith.mulf %121, %125 : vector<32x32xf32>
    %127 = arith.truncf %126 : vector<32x32xf32> to vector<32x32xbf16>
    %128 = vector.broadcast %7 : vector<1x32xbf16> to vector<32x32xbf16>
    %129 = arith.mulf %73, %128 : vector<32x32xbf16>
    %cst_68 = arith.constant dense<0.000000e+00> : vector<32x32xf32>
    %130 = tpu.matmul %127, %129, %cst_68 {dimension_numbers = #tpu.dot_dimension_numbers<[1], [0], [0], [1], [0, 0, 1, 1], [], []>} : vector<32x32xbf16>, vector<32x32xbf16>, vector<32x32xf32> -> vector<32x32xf32>
    %131 = arith.addf %112, %130 : vector<32x32xf32>
    %132 = vector.broadcast %9 : vector<1x32xbf16> to vector<32x32xbf16>
    %133 = arith.mulf %71, %132 : vector<32x32xbf16>
    %cst_69 = arith.constant dense<0.000000e+00> : vector<32x32xf32>
    %134 = tpu.matmul %133, %72, %cst_69 {dimension_numbers = #tpu.dot_dimension_numbers<[1], [1], [0], [0], [0, 0, 1, 0], [], []>} : vector<32x32xbf16>, vector<32x32xbf16>, vector<32x32xf32> -> vector<32x32xf32>
    %135 = arith.addf %134, %1 : vector<32x32xf32>
    %cst_70 = arith.constant dense<0xFF800000> : vector<32xf32>
    %136 = vector.multi_reduction <maximumf>, %135, %cst_70 [1] : vector<32x32xf32> to vector<32xf32>
    %137 = vector.shape_cast %136 : vector<32xf32> to vector<32x1xf32>
    %138 = vector.broadcast %137 : vector<32x1xf32> to vector<32x32xf32>
    %139 = arith.subf %135, %138 : vector<32x32xf32>
    %140 = math.exp %139 : vector<32x32xf32>
    %cst_71 = arith.constant dense<0.000000e+00> : vector<32xf32>
    %141 = vector.multi_reduction <add>, %140, %cst_71 [1] : vector<32x32xf32> to vector<32xf32>
    %142 = vector.shape_cast %141 : vector<32xf32> to vector<32x1xf32>
    %143 = tpu.reciprocal %142 {approx = true} : vector<32x1xf32> -> vector<32x1xf32>
    %144 = vector.broadcast %143 : vector<32x1xf32> to vector<32x32xf32>
    %145 = arith.mulf %140, %144 : vector<32x32xf32>
    %146 = arith.truncf %145 : vector<32x32xf32> to vector<32x32xbf16>
    %147 = vector.broadcast %9 : vector<1x32xbf16> to vector<32x32xbf16>
    %148 = arith.mulf %73, %147 : vector<32x32xbf16>
    %cst_72 = arith.constant dense<0.000000e+00> : vector<32x32xf32>
    %149 = tpu.matmul %146, %148, %cst_72 {dimension_numbers = #tpu.dot_dimension_numbers<[1], [0], [0], [1], [0, 0, 1, 1], [], []>} : vector<32x32xbf16>, vector<32x32xbf16>, vector<32x32xf32> -> vector<32x32xf32>
    %150 = arith.addf %131, %149 : vector<32x32xf32>
    %151 = arith.truncf %150 : vector<32x32xf32> to vector<32x32xbf16>
    %c0_73 = arith.constant 0 : index
    %c0_74 = arith.constant 0 : index
    %c0_75 = arith.constant 0 : index
    %152 = vector.load %arg18[%c0_73, %c0_74, %c0_75] : memref<2x32x32xbf16, #tpu.memory_space<vmem>>, vector<1x32x32xbf16>
    %153 = vector.shape_cast %152 : vector<1x32x32xbf16> to vector<32x32xbf16>
    %cst_76 = arith.constant dense<0.000000e+00> : vector<32x32xf32>
    %154 = tpu.matmul %151, %153, %cst_76 {dimension_numbers = #tpu.dot_dimension_numbers<[1], [0], [0], [1], [0, 0, 1, 1], [], []>} : vector<32x32xbf16>, vector<32x32xbf16>, vector<32x32xf32> -> vector<32x32xf32>
    %c0_77 = arith.constant 0 : index
    %c0_78 = arith.constant 0 : index
    %c0_79 = arith.constant 0 : index
    %155 = vector.load %arg19[%c0_77, %c0_78, %c0_79] : memref<2x1x32xf32, #tpu.memory_space<vmem>>, vector<1x1x32xf32>
    %156 = vector.shape_cast %155 : vector<1x1x32xf32> to vector<1x32xf32>
    %157 = vector.broadcast %156 : vector<1x32xf32> to vector<32x32xf32>
    %158 = arith.addf %154, %157 : vector<32x32xf32>
    %159 = arith.addf %22, %158 : vector<32x32xf32>
    %c2_80 = arith.constant 2 : index
    %c0_81 = arith.constant 0 : index
    %c0_82 = arith.constant 0 : index
    %160 = vector.load %arg11[%c2_80, %c0_81, %c0_82] : memref<8x1x32xf32, #tpu.memory_space<vmem>>, vector<1x1x32xf32>
    %161 = vector.shape_cast %160 : vector<1x1x32xf32> to vector<1x32xf32>
    %c3_83 = arith.constant 3 : index
    %c0_84 = arith.constant 0 : index
    %c0_85 = arith.constant 0 : index
    %162 = vector.load %arg11[%c3_83, %c0_84, %c0_85] : memref<8x1x32xf32, #tpu.memory_space<vmem>>, vector<1x1x32xf32>
    %163 = vector.shape_cast %162 : vector<1x1x32xf32> to vector<1x32xf32>
    %cst_86 = arith.constant dense<0.000000e+00> : vector<32xf32>
    %164 = vector.multi_reduction <add>, %159, %cst_86 [1] : vector<32x32xf32> to vector<32xf32>
    %165 = vector.shape_cast %164 : vector<32xf32> to vector<32x1xf32>
    %cst_87 = arith.constant 3.125000e-02 : f32
    %166 = vector.broadcast %cst_87 : f32 to vector<32x1xf32>
    %167 = arith.mulf %165, %166 : vector<32x1xf32>
    %168 = arith.mulf %159, %159 : vector<32x32xf32>
    %cst_88 = arith.constant dense<0.000000e+00> : vector<32xf32>
    %169 = vector.multi_reduction <add>, %168, %cst_88 [1] : vector<32x32xf32> to vector<32xf32>
    %170 = vector.shape_cast %169 : vector<32xf32> to vector<32x1xf32>
    %cst_89 = arith.constant 3.125000e-02 : f32
    %171 = vector.broadcast %cst_89 : f32 to vector<32x1xf32>
    %172 = arith.mulf %170, %171 : vector<32x1xf32>
    %173 = arith.mulf %167, %167 : vector<32x1xf32>
    %174 = arith.subf %172, %173 : vector<32x1xf32>
    %175 = vector.broadcast %167 : vector<32x1xf32> to vector<32x32xf32>
    %176 = arith.subf %159, %175 : vector<32x32xf32>
    %cst_90 = arith.constant 9.99999974E-6 : f32
    %177 = vector.broadcast %cst_90 : f32 to vector<32x1xf32>
    %178 = arith.addf %174, %177 : vector<32x1xf32>
    %179 = math.rsqrt %178 : vector<32x1xf32>
    %180 = vector.broadcast %179 : vector<32x1xf32> to vector<32x32xf32>
    %181 = arith.mulf %176, %180 : vector<32x32xf32>
    %182 = vector.broadcast %161 : vector<1x32xf32> to vector<32x32xf32>
    %183 = arith.mulf %181, %182 : vector<32x32xf32>
    %184 = vector.broadcast %163 : vector<1x32xf32> to vector<32x32xf32>
    %185 = arith.addf %183, %184 : vector<32x32xf32>
    %186 = arith.truncf %185 : vector<32x32xf32> to vector<32x32xbf16>
    %c0_91 = arith.constant 0 : index
    %c0_92 = arith.constant 0 : index
    %c0_93 = arith.constant 0 : index
    %187 = vector.load %arg20[%c0_91, %c0_92, %c0_93] : memref<2x32x128xbf16, #tpu.memory_space<vmem>>, vector<1x32x128xbf16>
    %188 = vector.shape_cast %187 : vector<1x32x128xbf16> to vector<32x128xbf16>
    %cst_94 = arith.constant dense<0.000000e+00> : vector<32x128xf32>
    %189 = tpu.matmul %186, %188, %cst_94 {dimension_numbers = #tpu.dot_dimension_numbers<[1], [0], [0], [1], [0, 0, 1, 1], [], []>} : vector<32x32xbf16>, vector<32x128xbf16>, vector<32x128xf32> -> vector<32x128xf32>
    %c0_95 = arith.constant 0 : index
    %c0_96 = arith.constant 0 : index
    %c0_97 = arith.constant 0 : index
    %190 = vector.load %arg21[%c0_95, %c0_96, %c0_97] : memref<2x1x128xf32, #tpu.memory_space<vmem>>, vector<1x1x128xf32>
    %191 = vector.shape_cast %190 : vector<1x1x128xf32> to vector<1x128xf32>
    %192 = vector.broadcast %191 : vector<1x128xf32> to vector<32x128xf32>
    %193 = arith.addf %189, %192 : vector<32x128xf32>
    %194 = arith.mulf %193, %193 : vector<32x128xf32>
    %195 = arith.mulf %193, %194 : vector<32x128xf32>
    %cst_98 = arith.constant 4.471500e-02 : f32
    %196 = vector.broadcast %cst_98 : f32 to vector<32x128xf32>
    %197 = arith.mulf %196, %195 : vector<32x128xf32>
    %198 = arith.addf %193, %197 : vector<32x128xf32>
    %cst_99 = arith.constant 0.797884583 : f32
    %199 = vector.broadcast %cst_99 : f32 to vector<32x128xf32>
    %200 = arith.mulf %199, %198 : vector<32x128xf32>
    %201 = math.tanh %200 : vector<32x128xf32>
    %cst_100 = arith.constant 1.000000e+00 : f32
    %202 = vector.broadcast %cst_100 : f32 to vector<32x128xf32>
    %203 = arith.addf %202, %201 : vector<32x128xf32>
    %cst_101 = arith.constant 5.000000e-01 : f32
    %204 = vector.broadcast %cst_101 : f32 to vector<32x128xf32>
    %205 = arith.mulf %204, %203 : vector<32x128xf32>
    %206 = arith.mulf %193, %205 : vector<32x128xf32>
    %207 = arith.truncf %206 : vector<32x128xf32> to vector<32x128xbf16>
    %c0_102 = arith.constant 0 : index
    %c0_103 = arith.constant 0 : index
    %c0_104 = arith.constant 0 : index
    %208 = vector.load %arg22[%c0_102, %c0_103, %c0_104] : memref<2x128x32xbf16, #tpu.memory_space<vmem>>, vector<1x128x32xbf16>
    %209 = vector.shape_cast %208 : vector<1x128x32xbf16> to vector<128x32xbf16>
    %cst_105 = arith.constant dense<0.000000e+00> : vector<32x32xf32>
    %210 = tpu.matmul %207, %209, %cst_105 {dimension_numbers = #tpu.dot_dimension_numbers<[1], [0], [0], [1], [0, 0, 1, 1], [], []>} : vector<32x128xbf16>, vector<128x32xbf16>, vector<32x32xf32> -> vector<32x32xf32>
    %c0_106 = arith.constant 0 : index
    %c0_107 = arith.constant 0 : index
    %c0_108 = arith.constant 0 : index
    %211 = vector.load %arg23[%c0_106, %c0_107, %c0_108] : memref<2x1x32xf32, #tpu.memory_space<vmem>>, vector<1x1x32xf32>
    %212 = vector.shape_cast %211 : vector<1x1x32xf32> to vector<1x32xf32>
    %213 = vector.broadcast %212 : vector<1x32xf32> to vector<32x32xf32>
    %214 = arith.addf %210, %213 : vector<32x32xf32>
    %215 = arith.addf %159, %214 : vector<32x32xf32>
    %cst_109 = arith.constant dense<0.000000e+00> : vector<32xf32>
    %216 = vector.multi_reduction <add>, %215, %cst_109 [1] : vector<32x32xf32> to vector<32xf32>
    %217 = vector.shape_cast %216 : vector<32xf32> to vector<32x1xf32>
    %cst_110 = arith.constant 3.125000e-02 : f32
    %218 = vector.broadcast %cst_110 : f32 to vector<32x1xf32>
    %219 = arith.mulf %217, %218 : vector<32x1xf32>
    %220 = arith.mulf %215, %215 : vector<32x32xf32>
    %cst_111 = arith.constant dense<0.000000e+00> : vector<32xf32>
    %221 = vector.multi_reduction <add>, %220, %cst_111 [1] : vector<32x32xf32> to vector<32xf32>
    %222 = vector.shape_cast %221 : vector<32xf32> to vector<32x1xf32>
    %cst_112 = arith.constant 3.125000e-02 : f32
    %223 = vector.broadcast %cst_112 : f32 to vector<32x1xf32>
    %224 = arith.mulf %222, %223 : vector<32x1xf32>
    %225 = arith.mulf %219, %219 : vector<32x1xf32>
    %226 = arith.subf %224, %225 : vector<32x1xf32>
    %227 = vector.broadcast %219 : vector<32x1xf32> to vector<32x32xf32>
    %228 = arith.subf %215, %227 : vector<32x32xf32>
    %cst_113 = arith.constant 9.99999974E-6 : f32
    %229 = vector.broadcast %cst_113 : f32 to vector<32x1xf32>
    %230 = arith.addf %226, %229 : vector<32x1xf32>
    %231 = math.rsqrt %230 : vector<32x1xf32>
    %232 = vector.broadcast %231 : vector<32x1xf32> to vector<32x32xf32>
    %233 = arith.mulf %228, %232 : vector<32x32xf32>
    %234 = vector.broadcast %19 : vector<1x32xf32> to vector<32x32xf32>
    %235 = arith.mulf %233, %234 : vector<32x32xf32>
    %236 = vector.broadcast %20 : vector<1x32xf32> to vector<32x32xf32>
    %237 = arith.addf %235, %236 : vector<32x32xf32>
    %238 = arith.addf %237, %18 : vector<32x32xf32>
    %c4 = arith.constant 4 : index
    %c0_114 = arith.constant 0 : index
    %c0_115 = arith.constant 0 : index
    %239 = vector.load %arg11[%c4, %c0_114, %c0_115] : memref<8x1x32xf32, #tpu.memory_space<vmem>>, vector<1x1x32xf32>
    %240 = vector.shape_cast %239 : vector<1x1x32xf32> to vector<1x32xf32>
    %c5 = arith.constant 5 : index
    %c0_116 = arith.constant 0 : index
    %c0_117 = arith.constant 0 : index
    %241 = vector.load %arg11[%c5, %c0_116, %c0_117] : memref<8x1x32xf32, #tpu.memory_space<vmem>>, vector<1x1x32xf32>
    %242 = vector.shape_cast %241 : vector<1x1x32xf32> to vector<1x32xf32>
    %cst_118 = arith.constant dense<0.000000e+00> : vector<32xf32>
    %243 = vector.multi_reduction <add>, %238, %cst_118 [1] : vector<32x32xf32> to vector<32xf32>
    %244 = vector.shape_cast %243 : vector<32xf32> to vector<32x1xf32>
    %cst_119 = arith.constant 3.125000e-02 : f32
    %245 = vector.broadcast %cst_119 : f32 to vector<32x1xf32>
    %246 = arith.mulf %244, %245 : vector<32x1xf32>
    %247 = arith.mulf %238, %238 : vector<32x32xf32>
    %cst_120 = arith.constant dense<0.000000e+00> : vector<32xf32>
    %248 = vector.multi_reduction <add>, %247, %cst_120 [1] : vector<32x32xf32> to vector<32xf32>
    %249 = vector.shape_cast %248 : vector<32xf32> to vector<32x1xf32>
    %cst_121 = arith.constant 3.125000e-02 : f32
    %250 = vector.broadcast %cst_121 : f32 to vector<32x1xf32>
    %251 = arith.mulf %249, %250 : vector<32x1xf32>
    %252 = arith.mulf %246, %246 : vector<32x1xf32>
    %253 = arith.subf %251, %252 : vector<32x1xf32>
    %254 = vector.broadcast %246 : vector<32x1xf32> to vector<32x32xf32>
    %255 = arith.subf %238, %254 : vector<32x32xf32>
    %cst_122 = arith.constant 9.99999974E-6 : f32
    %256 = vector.broadcast %cst_122 : f32 to vector<32x1xf32>
    %257 = arith.addf %253, %256 : vector<32x1xf32>
    %258 = math.rsqrt %257 : vector<32x1xf32>
    %259 = vector.broadcast %258 : vector<32x1xf32> to vector<32x32xf32>
    %260 = arith.mulf %255, %259 : vector<32x32xf32>
    %261 = vector.broadcast %240 : vector<1x32xf32> to vector<32x32xf32>
    %262 = arith.mulf %260, %261 : vector<32x32xf32>
    %263 = vector.broadcast %242 : vector<1x32xf32> to vector<32x32xf32>
    %264 = arith.addf %262, %263 : vector<32x32xf32>
    %265 = arith.truncf %264 : vector<32x32xf32> to vector<32x32xbf16>
    %c1_123 = arith.constant 1 : index
    %c0_124 = arith.constant 0 : index
    %c0_125 = arith.constant 0 : index
    %266 = vector.load %arg12[%c1_123, %c0_124, %c0_125] : memref<2x32x32xbf16, #tpu.memory_space<vmem>>, vector<1x32x32xbf16>
    %267 = vector.shape_cast %266 : vector<1x32x32xbf16> to vector<32x32xbf16>
    %cst_126 = arith.constant dense<0.000000e+00> : vector<32x32xf32>
    %268 = tpu.matmul %265, %267, %cst_126 {dimension_numbers = #tpu.dot_dimension_numbers<[1], [0], [0], [1], [0, 0, 1, 1], [], []>} : vector<32x32xbf16>, vector<32x32xbf16>, vector<32x32xf32> -> vector<32x32xf32>
    %c1_127 = arith.constant 1 : index
    %c0_128 = arith.constant 0 : index
    %c0_129 = arith.constant 0 : index
    %269 = vector.load %arg15[%c1_127, %c0_128, %c0_129] : memref<2x1x32xf32, #tpu.memory_space<vmem>>, vector<1x1x32xf32>
    %270 = vector.shape_cast %269 : vector<1x1x32xf32> to vector<1x32xf32>
    %271 = vector.broadcast %270 : vector<1x32xf32> to vector<32x32xf32>
    %272 = arith.addf %268, %271 : vector<32x32xf32>
    %c1_130 = arith.constant 1 : index
    %c0_131 = arith.constant 0 : index
    %c0_132 = arith.constant 0 : index
    %273 = vector.load %arg13[%c1_130, %c0_131, %c0_132] : memref<2x32x32xbf16, #tpu.memory_space<vmem>>, vector<1x32x32xbf16>
    %274 = vector.shape_cast %273 : vector<1x32x32xbf16> to vector<32x32xbf16>
    %cst_133 = arith.constant dense<0.000000e+00> : vector<32x32xf32>
    %275 = tpu.matmul %265, %274, %cst_133 {dimension_numbers = #tpu.dot_dimension_numbers<[1], [0], [0], [1], [0, 0, 1, 1], [], []>} : vector<32x32xbf16>, vector<32x32xbf16>, vector<32x32xf32> -> vector<32x32xf32>
    %c1_134 = arith.constant 1 : index
    %c0_135 = arith.constant 0 : index
    %c0_136 = arith.constant 0 : index
    %276 = vector.load %arg16[%c1_134, %c0_135, %c0_136] : memref<2x1x32xf32, #tpu.memory_space<vmem>>, vector<1x1x32xf32>
    %277 = vector.shape_cast %276 : vector<1x1x32xf32> to vector<1x32xf32>
    %278 = vector.broadcast %277 : vector<1x32xf32> to vector<32x32xf32>
    %279 = arith.addf %275, %278 : vector<32x32xf32>
    %c1_137 = arith.constant 1 : index
    %c0_138 = arith.constant 0 : index
    %c0_139 = arith.constant 0 : index
    %280 = vector.load %arg14[%c1_137, %c0_138, %c0_139] : memref<2x32x32xbf16, #tpu.memory_space<vmem>>, vector<1x32x32xbf16>
    %281 = vector.shape_cast %280 : vector<1x32x32xbf16> to vector<32x32xbf16>
    %cst_140 = arith.constant dense<0.000000e+00> : vector<32x32xf32>
    %282 = tpu.matmul %265, %281, %cst_140 {dimension_numbers = #tpu.dot_dimension_numbers<[1], [0], [0], [1], [0, 0, 1, 1], [], []>} : vector<32x32xbf16>, vector<32x32xbf16>, vector<32x32xf32> -> vector<32x32xf32>
    %c1_141 = arith.constant 1 : index
    %c0_142 = arith.constant 0 : index
    %c0_143 = arith.constant 0 : index
    %283 = vector.load %arg17[%c1_141, %c0_142, %c0_143] : memref<2x1x32xf32, #tpu.memory_space<vmem>>, vector<1x1x32xf32>
    %284 = vector.shape_cast %283 : vector<1x1x32xf32> to vector<1x32xf32>
    %285 = vector.broadcast %284 : vector<1x32xf32> to vector<32x32xf32>
    %286 = arith.addf %282, %285 : vector<32x32xf32>
    %287 = arith.truncf %272 : vector<32x32xf32> to vector<32x32xbf16>
    %288 = arith.truncf %279 : vector<32x32xf32> to vector<32x32xbf16>
    %289 = arith.truncf %286 : vector<32x32xf32> to vector<32x32xbf16>
    %cst_144 = arith.constant 0.000000e+00 : f32
    %290 = vector.broadcast %cst_144 : f32 to vector<32x32xf32>
    %291 = vector.broadcast %3 : vector<1x32xbf16> to vector<32x32xbf16>
    %292 = arith.mulf %287, %291 : vector<32x32xbf16>
    %cst_145 = arith.constant dense<0.000000e+00> : vector<32x32xf32>
    %293 = tpu.matmul %292, %288, %cst_145 {dimension_numbers = #tpu.dot_dimension_numbers<[1], [1], [0], [0], [0, 0, 1, 0], [], []>} : vector<32x32xbf16>, vector<32x32xbf16>, vector<32x32xf32> -> vector<32x32xf32>
    %294 = arith.addf %293, %1 : vector<32x32xf32>
    %cst_146 = arith.constant dense<0xFF800000> : vector<32xf32>
    %295 = vector.multi_reduction <maximumf>, %294, %cst_146 [1] : vector<32x32xf32> to vector<32xf32>
    %296 = vector.shape_cast %295 : vector<32xf32> to vector<32x1xf32>
    %297 = vector.broadcast %296 : vector<32x1xf32> to vector<32x32xf32>
    %298 = arith.subf %294, %297 : vector<32x32xf32>
    %299 = math.exp %298 : vector<32x32xf32>
    %cst_147 = arith.constant dense<0.000000e+00> : vector<32xf32>
    %300 = vector.multi_reduction <add>, %299, %cst_147 [1] : vector<32x32xf32> to vector<32xf32>
    %301 = vector.shape_cast %300 : vector<32xf32> to vector<32x1xf32>
    %302 = tpu.reciprocal %301 {approx = true} : vector<32x1xf32> -> vector<32x1xf32>
    %303 = vector.broadcast %302 : vector<32x1xf32> to vector<32x32xf32>
    %304 = arith.mulf %299, %303 : vector<32x32xf32>
    %305 = arith.truncf %304 : vector<32x32xf32> to vector<32x32xbf16>
    %306 = vector.broadcast %3 : vector<1x32xbf16> to vector<32x32xbf16>
    %307 = arith.mulf %289, %306 : vector<32x32xbf16>
    %cst_148 = arith.constant dense<0.000000e+00> : vector<32x32xf32>
    %308 = tpu.matmul %305, %307, %cst_148 {dimension_numbers = #tpu.dot_dimension_numbers<[1], [0], [0], [1], [0, 0, 1, 1], [], []>} : vector<32x32xbf16>, vector<32x32xbf16>, vector<32x32xf32> -> vector<32x32xf32>
    %309 = arith.addf %290, %308 : vector<32x32xf32>
    %310 = vector.broadcast %5 : vector<1x32xbf16> to vector<32x32xbf16>
    %311 = arith.mulf %287, %310 : vector<32x32xbf16>
    %cst_149 = arith.constant dense<0.000000e+00> : vector<32x32xf32>
    %312 = tpu.matmul %311, %288, %cst_149 {dimension_numbers = #tpu.dot_dimension_numbers<[1], [1], [0], [0], [0, 0, 1, 0], [], []>} : vector<32x32xbf16>, vector<32x32xbf16>, vector<32x32xf32> -> vector<32x32xf32>
    %313 = arith.addf %312, %1 : vector<32x32xf32>
    %cst_150 = arith.constant dense<0xFF800000> : vector<32xf32>
    %314 = vector.multi_reduction <maximumf>, %313, %cst_150 [1] : vector<32x32xf32> to vector<32xf32>
    %315 = vector.shape_cast %314 : vector<32xf32> to vector<32x1xf32>
    %316 = vector.broadcast %315 : vector<32x1xf32> to vector<32x32xf32>
    %317 = arith.subf %313, %316 : vector<32x32xf32>
    %318 = math.exp %317 : vector<32x32xf32>
    %cst_151 = arith.constant dense<0.000000e+00> : vector<32xf32>
    %319 = vector.multi_reduction <add>, %318, %cst_151 [1] : vector<32x32xf32> to vector<32xf32>
    %320 = vector.shape_cast %319 : vector<32xf32> to vector<32x1xf32>
    %321 = tpu.reciprocal %320 {approx = true} : vector<32x1xf32> -> vector<32x1xf32>
    %322 = vector.broadcast %321 : vector<32x1xf32> to vector<32x32xf32>
    %323 = arith.mulf %318, %322 : vector<32x32xf32>
    %324 = arith.truncf %323 : vector<32x32xf32> to vector<32x32xbf16>
    %325 = vector.broadcast %5 : vector<1x32xbf16> to vector<32x32xbf16>
    %326 = arith.mulf %289, %325 : vector<32x32xbf16>
    %cst_152 = arith.constant dense<0.000000e+00> : vector<32x32xf32>
    %327 = tpu.matmul %324, %326, %cst_152 {dimension_numbers = #tpu.dot_dimension_numbers<[1], [0], [0], [1], [0, 0, 1, 1], [], []>} : vector<32x32xbf16>, vector<32x32xbf16>, vector<32x32xf32> -> vector<32x32xf32>
    %328 = arith.addf %309, %327 : vector<32x32xf32>
    %329 = vector.broadcast %7 : vector<1x32xbf16> to vector<32x32xbf16>
    %330 = arith.mulf %287, %329 : vector<32x32xbf16>
    %cst_153 = arith.constant dense<0.000000e+00> : vector<32x32xf32>
    %331 = tpu.matmul %330, %288, %cst_153 {dimension_numbers = #tpu.dot_dimension_numbers<[1], [1], [0], [0], [0, 0, 1, 0], [], []>} : vector<32x32xbf16>, vector<32x32xbf16>, vector<32x32xf32> -> vector<32x32xf32>
    %332 = arith.addf %331, %1 : vector<32x32xf32>
    %cst_154 = arith.constant dense<0xFF800000> : vector<32xf32>
    %333 = vector.multi_reduction <maximumf>, %332, %cst_154 [1] : vector<32x32xf32> to vector<32xf32>
    %334 = vector.shape_cast %333 : vector<32xf32> to vector<32x1xf32>
    %335 = vector.broadcast %334 : vector<32x1xf32> to vector<32x32xf32>
    %336 = arith.subf %332, %335 : vector<32x32xf32>
    %337 = math.exp %336 : vector<32x32xf32>
    %cst_155 = arith.constant dense<0.000000e+00> : vector<32xf32>
    %338 = vector.multi_reduction <add>, %337, %cst_155 [1] : vector<32x32xf32> to vector<32xf32>
    %339 = vector.shape_cast %338 : vector<32xf32> to vector<32x1xf32>
    %340 = tpu.reciprocal %339 {approx = true} : vector<32x1xf32> -> vector<32x1xf32>
    %341 = vector.broadcast %340 : vector<32x1xf32> to vector<32x32xf32>
    %342 = arith.mulf %337, %341 : vector<32x32xf32>
    %343 = arith.truncf %342 : vector<32x32xf32> to vector<32x32xbf16>
    %344 = vector.broadcast %7 : vector<1x32xbf16> to vector<32x32xbf16>
    %345 = arith.mulf %289, %344 : vector<32x32xbf16>
    %cst_156 = arith.constant dense<0.000000e+00> : vector<32x32xf32>
    %346 = tpu.matmul %343, %345, %cst_156 {dimension_numbers = #tpu.dot_dimension_numbers<[1], [0], [0], [1], [0, 0, 1, 1], [], []>} : vector<32x32xbf16>, vector<32x32xbf16>, vector<32x32xf32> -> vector<32x32xf32>
    %347 = arith.addf %328, %346 : vector<32x32xf32>
    %348 = vector.broadcast %9 : vector<1x32xbf16> to vector<32x32xbf16>
    %349 = arith.mulf %287, %348 : vector<32x32xbf16>
    %cst_157 = arith.constant dense<0.000000e+00> : vector<32x32xf32>
    %350 = tpu.matmul %349, %288, %cst_157 {dimension_numbers = #tpu.dot_dimension_numbers<[1], [1], [0], [0], [0, 0, 1, 0], [], []>} : vector<32x32xbf16>, vector<32x32xbf16>, vector<32x32xf32> -> vector<32x32xf32>
    %351 = arith.addf %350, %1 : vector<32x32xf32>
    %cst_158 = arith.constant dense<0xFF800000> : vector<32xf32>
    %352 = vector.multi_reduction <maximumf>, %351, %cst_158 [1] : vector<32x32xf32> to vector<32xf32>
    %353 = vector.shape_cast %352 : vector<32xf32> to vector<32x1xf32>
    %354 = vector.broadcast %353 : vector<32x1xf32> to vector<32x32xf32>
    %355 = arith.subf %351, %354 : vector<32x32xf32>
    %356 = math.exp %355 : vector<32x32xf32>
    %cst_159 = arith.constant dense<0.000000e+00> : vector<32xf32>
    %357 = vector.multi_reduction <add>, %356, %cst_159 [1] : vector<32x32xf32> to vector<32xf32>
    %358 = vector.shape_cast %357 : vector<32xf32> to vector<32x1xf32>
    %359 = tpu.reciprocal %358 {approx = true} : vector<32x1xf32> -> vector<32x1xf32>
    %360 = vector.broadcast %359 : vector<32x1xf32> to vector<32x32xf32>
    %361 = arith.mulf %356, %360 : vector<32x32xf32>
    %362 = arith.truncf %361 : vector<32x32xf32> to vector<32x32xbf16>
    %363 = vector.broadcast %9 : vector<1x32xbf16> to vector<32x32xbf16>
    %364 = arith.mulf %289, %363 : vector<32x32xbf16>
    %cst_160 = arith.constant dense<0.000000e+00> : vector<32x32xf32>
    %365 = tpu.matmul %362, %364, %cst_160 {dimension_numbers = #tpu.dot_dimension_numbers<[1], [0], [0], [1], [0, 0, 1, 1], [], []>} : vector<32x32xbf16>, vector<32x32xbf16>, vector<32x32xf32> -> vector<32x32xf32>
    %366 = arith.addf %347, %365 : vector<32x32xf32>
    %367 = arith.truncf %366 : vector<32x32xf32> to vector<32x32xbf16>
    %c1_161 = arith.constant 1 : index
    %c0_162 = arith.constant 0 : index
    %c0_163 = arith.constant 0 : index
    %368 = vector.load %arg18[%c1_161, %c0_162, %c0_163] : memref<2x32x32xbf16, #tpu.memory_space<vmem>>, vector<1x32x32xbf16>
    %369 = vector.shape_cast %368 : vector<1x32x32xbf16> to vector<32x32xbf16>
    %cst_164 = arith.constant dense<0.000000e+00> : vector<32x32xf32>
    %370 = tpu.matmul %367, %369, %cst_164 {dimension_numbers = #tpu.dot_dimension_numbers<[1], [0], [0], [1], [0, 0, 1, 1], [], []>} : vector<32x32xbf16>, vector<32x32xbf16>, vector<32x32xf32> -> vector<32x32xf32>
    %c1_165 = arith.constant 1 : index
    %c0_166 = arith.constant 0 : index
    %c0_167 = arith.constant 0 : index
    %371 = vector.load %arg19[%c1_165, %c0_166, %c0_167] : memref<2x1x32xf32, #tpu.memory_space<vmem>>, vector<1x1x32xf32>
    %372 = vector.shape_cast %371 : vector<1x1x32xf32> to vector<1x32xf32>
    %373 = vector.broadcast %372 : vector<1x32xf32> to vector<32x32xf32>
    %374 = arith.addf %370, %373 : vector<32x32xf32>
    %375 = arith.addf %238, %374 : vector<32x32xf32>
    %c6 = arith.constant 6 : index
    %c0_168 = arith.constant 0 : index
    %c0_169 = arith.constant 0 : index
    %376 = vector.load %arg11[%c6, %c0_168, %c0_169] : memref<8x1x32xf32, #tpu.memory_space<vmem>>, vector<1x1x32xf32>
    %377 = vector.shape_cast %376 : vector<1x1x32xf32> to vector<1x32xf32>
    %c7 = arith.constant 7 : index
    %c0_170 = arith.constant 0 : index
    %c0_171 = arith.constant 0 : index
    %378 = vector.load %arg11[%c7, %c0_170, %c0_171] : memref<8x1x32xf32, #tpu.memory_space<vmem>>, vector<1x1x32xf32>
    %379 = vector.shape_cast %378 : vector<1x1x32xf32> to vector<1x32xf32>
    %cst_172 = arith.constant dense<0.000000e+00> : vector<32xf32>
    %380 = vector.multi_reduction <add>, %375, %cst_172 [1] : vector<32x32xf32> to vector<32xf32>
    %381 = vector.shape_cast %380 : vector<32xf32> to vector<32x1xf32>
    %cst_173 = arith.constant 3.125000e-02 : f32
    %382 = vector.broadcast %cst_173 : f32 to vector<32x1xf32>
    %383 = arith.mulf %381, %382 : vector<32x1xf32>
    %384 = arith.mulf %375, %375 : vector<32x32xf32>
    %cst_174 = arith.constant dense<0.000000e+00> : vector<32xf32>
    %385 = vector.multi_reduction <add>, %384, %cst_174 [1] : vector<32x32xf32> to vector<32xf32>
    %386 = vector.shape_cast %385 : vector<32xf32> to vector<32x1xf32>
    %cst_175 = arith.constant 3.125000e-02 : f32
    %387 = vector.broadcast %cst_175 : f32 to vector<32x1xf32>
    %388 = arith.mulf %386, %387 : vector<32x1xf32>
    %389 = arith.mulf %383, %383 : vector<32x1xf32>
    %390 = arith.subf %388, %389 : vector<32x1xf32>
    %391 = vector.broadcast %383 : vector<32x1xf32> to vector<32x32xf32>
    %392 = arith.subf %375, %391 : vector<32x32xf32>
    %cst_176 = arith.constant 9.99999974E-6 : f32
    %393 = vector.broadcast %cst_176 : f32 to vector<32x1xf32>
    %394 = arith.addf %390, %393 : vector<32x1xf32>
    %395 = math.rsqrt %394 : vector<32x1xf32>
    %396 = vector.broadcast %395 : vector<32x1xf32> to vector<32x32xf32>
    %397 = arith.mulf %392, %396 : vector<32x32xf32>
    %398 = vector.broadcast %377 : vector<1x32xf32> to vector<32x32xf32>
    %399 = arith.mulf %397, %398 : vector<32x32xf32>
    %400 = vector.broadcast %379 : vector<1x32xf32> to vector<32x32xf32>
    %401 = arith.addf %399, %400 : vector<32x32xf32>
    %402 = arith.truncf %401 : vector<32x32xf32> to vector<32x32xbf16>
    %c1_177 = arith.constant 1 : index
    %c0_178 = arith.constant 0 : index
    %c0_179 = arith.constant 0 : index
    %403 = vector.load %arg20[%c1_177, %c0_178, %c0_179] : memref<2x32x128xbf16, #tpu.memory_space<vmem>>, vector<1x32x128xbf16>
    %404 = vector.shape_cast %403 : vector<1x32x128xbf16> to vector<32x128xbf16>
    %cst_180 = arith.constant dense<0.000000e+00> : vector<32x128xf32>
    %405 = tpu.matmul %402, %404, %cst_180 {dimension_numbers = #tpu.dot_dimension_numbers<[1], [0], [0], [1], [0, 0, 1, 1], [], []>} : vector<32x32xbf16>, vector<32x128xbf16>, vector<32x128xf32> -> vector<32x128xf32>
    %c1_181 = arith.constant 1 : index
    %c0_182 = arith.constant 0 : index
    %c0_183 = arith.constant 0 : index
    %406 = vector.load %arg21[%c1_181, %c0_182, %c0_183] : memref<2x1x128xf32, #tpu.memory_space<vmem>>, vector<1x1x128xf32>
    %407 = vector.shape_cast %406 : vector<1x1x128xf32> to vector<1x128xf32>
    %408 = vector.broadcast %407 : vector<1x128xf32> to vector<32x128xf32>
    %409 = arith.addf %405, %408 : vector<32x128xf32>
    %410 = arith.mulf %409, %409 : vector<32x128xf32>
    %411 = arith.mulf %409, %410 : vector<32x128xf32>
    %cst_184 = arith.constant 4.471500e-02 : f32
    %412 = vector.broadcast %cst_184 : f32 to vector<32x128xf32>
    %413 = arith.mulf %412, %411 : vector<32x128xf32>
    %414 = arith.addf %409, %413 : vector<32x128xf32>
    %cst_185 = arith.constant 0.797884583 : f32
    %415 = vector.broadcast %cst_185 : f32 to vector<32x128xf32>
    %416 = arith.mulf %415, %414 : vector<32x128xf32>
    %417 = math.tanh %416 : vector<32x128xf32>
    %cst_186 = arith.constant 1.000000e+00 : f32
    %418 = vector.broadcast %cst_186 : f32 to vector<32x128xf32>
    %419 = arith.addf %418, %417 : vector<32x128xf32>
    %cst_187 = arith.constant 5.000000e-01 : f32
    %420 = vector.broadcast %cst_187 : f32 to vector<32x128xf32>
    %421 = arith.mulf %420, %419 : vector<32x128xf32>
    %422 = arith.mulf %409, %421 : vector<32x128xf32>
    %423 = arith.truncf %422 : vector<32x128xf32> to vector<32x128xbf16>
    %c1_188 = arith.constant 1 : index
    %c0_189 = arith.constant 0 : index
    %c0_190 = arith.constant 0 : index
    %424 = vector.load %arg22[%c1_188, %c0_189, %c0_190] : memref<2x128x32xbf16, #tpu.memory_space<vmem>>, vector<1x128x32xbf16>
    %425 = vector.shape_cast %424 : vector<1x128x32xbf16> to vector<128x32xbf16>
    %cst_191 = arith.constant dense<0.000000e+00> : vector<32x32xf32>
    %426 = tpu.matmul %423, %425, %cst_191 {dimension_numbers = #tpu.dot_dimension_numbers<[1], [0], [0], [1], [0, 0, 1, 1], [], []>} : vector<32x128xbf16>, vector<128x32xbf16>, vector<32x32xf32> -> vector<32x32xf32>
    %c1_192 = arith.constant 1 : index
    %c0_193 = arith.constant 0 : index
    %c0_194 = arith.constant 0 : index
    %427 = vector.load %arg23[%c1_192, %c0_193, %c0_194] : memref<2x1x32xf32, #tpu.memory_space<vmem>>, vector<1x1x32xf32>
    %428 = vector.shape_cast %427 : vector<1x1x32xf32> to vector<1x32xf32>
    %429 = vector.broadcast %428 : vector<1x32xf32> to vector<32x32xf32>
    %430 = arith.addf %426, %429 : vector<32x32xf32>
    %431 = arith.addf %375, %430 : vector<32x32xf32>
    %cst_195 = arith.constant dense<0.000000e+00> : vector<32xf32>
    %432 = vector.multi_reduction <add>, %431, %cst_195 [1] : vector<32x32xf32> to vector<32xf32>
    %433 = vector.shape_cast %432 : vector<32xf32> to vector<32x1xf32>
    %cst_196 = arith.constant 3.125000e-02 : f32
    %434 = vector.broadcast %cst_196 : f32 to vector<32x1xf32>
    %435 = arith.mulf %433, %434 : vector<32x1xf32>
    %436 = arith.mulf %431, %431 : vector<32x32xf32>
    %cst_197 = arith.constant dense<0.000000e+00> : vector<32xf32>
    %437 = vector.multi_reduction <add>, %436, %cst_197 [1] : vector<32x32xf32> to vector<32xf32>
    %438 = vector.shape_cast %437 : vector<32xf32> to vector<32x1xf32>
    %cst_198 = arith.constant 3.125000e-02 : f32
    %439 = vector.broadcast %cst_198 : f32 to vector<32x1xf32>
    %440 = arith.mulf %438, %439 : vector<32x1xf32>
    %441 = arith.mulf %435, %435 : vector<32x1xf32>
    %442 = arith.subf %440, %441 : vector<32x1xf32>
    %443 = vector.broadcast %435 : vector<32x1xf32> to vector<32x32xf32>
    %444 = arith.subf %431, %443 : vector<32x32xf32>
    %cst_199 = arith.constant 9.99999974E-6 : f32
    %445 = vector.broadcast %cst_199 : f32 to vector<32x1xf32>
    %446 = arith.addf %442, %445 : vector<32x1xf32>
    %447 = math.rsqrt %446 : vector<32x1xf32>
    %448 = vector.broadcast %447 : vector<32x1xf32> to vector<32x32xf32>
    %449 = arith.mulf %444, %448 : vector<32x32xf32>
    %450 = vector.broadcast %19 : vector<1x32xf32> to vector<32x32xf32>
    %451 = arith.mulf %449, %450 : vector<32x32xf32>
    %452 = vector.broadcast %20 : vector<1x32xf32> to vector<32x32xf32>
    %453 = arith.addf %451, %452 : vector<32x32xf32>
    %c0_200 = arith.constant 0 : index
    %c0_201 = arith.constant 0 : index
    %454 = vector.load %arg9[%c0_200, %c0_201] : memref<1x32xbf16, #tpu.memory_space<vmem>>, vector<1x32xbf16>
    %455 = arith.truncf %453 : vector<32x32xf32> to vector<32x32xbf16>
    %cst_202 = arith.constant dense<0.000000e+00> : vector<1x32xf32>
    %456 = tpu.matmul %454, %455, %cst_202 {dimension_numbers = #tpu.dot_dimension_numbers<[1], [1], [0], [0], [0, 0, 1, 0], [], []>} : vector<1x32xbf16>, vector<32x32xbf16>, vector<1x32xf32> -> vector<1x32xf32>
    %c0_203 = arith.constant 0 : index
    %c0_204 = arith.constant 0 : index
    %457 = vector.load %arg10[%c0_203, %c0_204] : memref<1x1xf32, #tpu.memory_space<vmem>>, vector<1x1xf32>
    %458 = vector.broadcast %457 : vector<1x1xf32> to vector<1x32xf32>
    %459 = arith.addf %456, %458 : vector<1x32xf32>
    %c0_205 = arith.constant 0 : index
    %c0_206 = arith.constant 0 : index
    %c0_207 = arith.constant 0 : index
    %c0_208 = arith.constant 0 : index
    %460 = vector.load %arg24[%c0_205, %c0_206, %c0_207, %c0_208] : memref<3x1x1x32xf32, #tpu.memory_space<vmem>>, vector<1x1x1x32xf32>
    %461 = vector.shape_cast %460 : vector<1x1x1x32xf32> to vector<1x32xf32>
    %462 = vector.shape_cast %459 : vector<1x32xf32> to vector<1x1x1x32xf32>
    tpu.vector_store %arg24[%c0_205, %c0_206, %c0_207, %c0_208], %462 {strides = array<i32>} : memref<3x1x1x32xf32, #tpu.memory_space<vmem>>, vector<1x1x1x32xf32>,
    %463 = arith.addf %453, %18 : vector<32x32xf32>
    %c0_209 = arith.constant 0 : index
    %c0_210 = arith.constant 0 : index
    %c0_211 = arith.constant 0 : index
    %464 = vector.load %arg11[%c0_209, %c0_210, %c0_211] : memref<8x1x32xf32, #tpu.memory_space<vmem>>, vector<1x1x32xf32>
    %465 = vector.shape_cast %464 : vector<1x1x32xf32> to vector<1x32xf32>
    %c1_212 = arith.constant 1 : index
    %c0_213 = arith.constant 0 : index
    %c0_214 = arith.constant 0 : index
    %466 = vector.load %arg11[%c1_212, %c0_213, %c0_214] : memref<8x1x32xf32, #tpu.memory_space<vmem>>, vector<1x1x32xf32>
    %467 = vector.shape_cast %466 : vector<1x1x32xf32> to vector<1x32xf32>
    %cst_215 = arith.constant dense<0.000000e+00> : vector<32xf32>
    %468 = vector.multi_reduction <add>, %463, %cst_215 [1] : vector<32x32xf32> to vector<32xf32>
    %469 = vector.shape_cast %468 : vector<32xf32> to vector<32x1xf32>
    %cst_216 = arith.constant 3.125000e-02 : f32
    %470 = vector.broadcast %cst_216 : f32 to vector<32x1xf32>
    %471 = arith.mulf %469, %470 : vector<32x1xf32>
    %472 = arith.mulf %463, %463 : vector<32x32xf32>
    %cst_217 = arith.constant dense<0.000000e+00> : vector<32xf32>
    %473 = vector.multi_reduction <add>, %472, %cst_217 [1] : vector<32x32xf32> to vector<32xf32>
    %474 = vector.shape_cast %473 : vector<32xf32> to vector<32x1xf32>
    %cst_218 = arith.constant 3.125000e-02 : f32
    %475 = vector.broadcast %cst_218 : f32 to vector<32x1xf32>
    %476 = arith.mulf %474, %475 : vector<32x1xf32>
    %477 = arith.mulf %471, %471 : vector<32x1xf32>
    %478 = arith.subf %476, %477 : vector<32x1xf32>
    %479 = vector.broadcast %471 : vector<32x1xf32> to vector<32x32xf32>
    %480 = arith.subf %463, %479 : vector<32x32xf32>
    %cst_219 = arith.constant 9.99999974E-6 : f32
    %481 = vector.broadcast %cst_219 : f32 to vector<32x1xf32>
    %482 = arith.addf %478, %481 : vector<32x1xf32>
    %483 = math.rsqrt %482 : vector<32x1xf32>
    %484 = vector.broadcast %483 : vector<32x1xf32> to vector<32x32xf32>
    %485 = arith.mulf %480, %484 : vector<32x32xf32>
    %486 = vector.broadcast %465 : vector<1x32xf32> to vector<32x32xf32>
    %487 = arith.mulf %485, %486 : vector<32x32xf32>
    %488 = vector.broadcast %467 : vector<1x32xf32> to vector<32x32xf32>
    %489 = arith.addf %487, %488 : vector<32x32xf32>
    %490 = arith.truncf %489 : vector<32x32xf32> to vector<32x32xbf16>
    %c0_220 = arith.constant 0 : index
    %c0_221 = arith.constant 0 : index
    %c0_222 = arith.constant 0 : index
    %491 = vector.load %arg12[%c0_220, %c0_221, %c0_222] : memref<2x32x32xbf16, #tpu.memory_space<vmem>>, vector<1x32x32xbf16>
    %492 = vector.shape_cast %491 : vector<1x32x32xbf16> to vector<32x32xbf16>
    %cst_223 = arith.constant dense<0.000000e+00> : vector<32x32xf32>
    %493 = tpu.matmul %490, %492, %cst_223 {dimension_numbers = #tpu.dot_dimension_numbers<[1], [0], [0], [1], [0, 0, 1, 1], [], []>} : vector<32x32xbf16>, vector<32x32xbf16>, vector<32x32xf32> -> vector<32x32xf32>
    %c0_224 = arith.constant 0 : index
    %c0_225 = arith.constant 0 : index
    %c0_226 = arith.constant 0 : index
    %494 = vector.load %arg15[%c0_224, %c0_225, %c0_226] : memref<2x1x32xf32, #tpu.memory_space<vmem>>, vector<1x1x32xf32>
    %495 = vector.shape_cast %494 : vector<1x1x32xf32> to vector<1x32xf32>
    %496 = vector.broadcast %495 : vector<1x32xf32> to vector<32x32xf32>
    %497 = arith.addf %493, %496 : vector<32x32xf32>
    %c0_227 = arith.constant 0 : index
    %c0_228 = arith.constant 0 : index
    %c0_229 = arith.constant 0 : index
    %498 = vector.load %arg13[%c0_227, %c0_228, %c0_229] : memref<2x32x32xbf16, #tpu.memory_space<vmem>>, vector<1x32x32xbf16>
    %499 = vector.shape_cast %498 : vector<1x32x32xbf16> to vector<32x32xbf16>
    %cst_230 = arith.constant dense<0.000000e+00> : vector<32x32xf32>
    %500 = tpu.matmul %490, %499, %cst_230 {dimension_numbers = #tpu.dot_dimension_numbers<[1], [0], [0], [1], [0, 0, 1, 1], [], []>} : vector<32x32xbf16>, vector<32x32xbf16>, vector<32x32xf32> -> vector<32x32xf32>
    %c0_231 = arith.constant 0 : index
    %c0_232 = arith.constant 0 : index
    %c0_233 = arith.constant 0 : index
    %501 = vector.load %arg16[%c0_231, %c0_232, %c0_233] : memref<2x1x32xf32, #tpu.memory_space<vmem>>, vector<1x1x32xf32>
    %502 = vector.shape_cast %501 : vector<1x1x32xf32> to vector<1x32xf32>
    %503 = vector.broadcast %502 : vector<1x32xf32> to vector<32x32xf32>
    %504 = arith.addf %500, %503 : vector<32x32xf32>
    %c0_234 = arith.constant 0 : index
    %c0_235 = arith.constant 0 : index
    %c0_236 = arith.constant 0 : index
    %505 = vector.load %arg14[%c0_234, %c0_235, %c0_236] : memref<2x32x32xbf16, #tpu.memory_space<vmem>>, vector<1x32x32xbf16>
    %506 = vector.shape_cast %505 : vector<1x32x32xbf16> to vector<32x32xbf16>
    %cst_237 = arith.constant dense<0.000000e+00> : vector<32x32xf32>
    %507 = tpu.matmul %490, %506, %cst_237 {dimension_numbers = #tpu.dot_dimension_numbers<[1], [0], [0], [1], [0, 0, 1, 1], [], []>} : vector<32x32xbf16>, vector<32x32xbf16>, vector<32x32xf32> -> vector<32x32xf32>
    %c0_238 = arith.constant 0 : index
    %c0_239 = arith.constant 0 : index
    %c0_240 = arith.constant 0 : index
    %508 = vector.load %arg17[%c0_238, %c0_239, %c0_240] : memref<2x1x32xf32, #tpu.memory_space<vmem>>, vector<1x1x32xf32>
    %509 = vector.shape_cast %508 : vector<1x1x32xf32> to vector<1x32xf32>
    %510 = vector.broadcast %509 : vector<1x32xf32> to vector<32x32xf32>
    %511 = arith.addf %507, %510 : vector<32x32xf32>
    %512 = arith.truncf %497 : vector<32x32xf32> to vector<32x32xbf16>
    %513 = arith.truncf %504 : vector<32x32xf32> to vector<32x32xbf16>
    %514 = arith.truncf %511 : vector<32x32xf32> to vector<32x32xbf16>
    %cst_241 = arith.constant 0.000000e+00 : f32
    %515 = vector.broadcast %cst_241 : f32 to vector<32x32xf32>
    %516 = vector.broadcast %3 : vector<1x32xbf16> to vector<32x32xbf16>
    %517 = arith.mulf %512, %516 : vector<32x32xbf16>
    %cst_242 = arith.constant dense<0.000000e+00> : vector<32x32xf32>
    %518 = tpu.matmul %517, %513, %cst_242 {dimension_numbers = #tpu.dot_dimension_numbers<[1], [1], [0], [0], [0, 0, 1, 0], [], []>} : vector<32x32xbf16>, vector<32x32xbf16>, vector<32x32xf32> -> vector<32x32xf32>
    %519 = arith.addf %518, %1 : vector<32x32xf32>
    %cst_243 = arith.constant dense<0xFF800000> : vector<32xf32>
    %520 = vector.multi_reduction <maximumf>, %519, %cst_243 [1] : vector<32x32xf32> to vector<32xf32>
    %521 = vector.shape_cast %520 : vector<32xf32> to vector<32x1xf32>
    %522 = vector.broadcast %521 : vector<32x1xf32> to vector<32x32xf32>
    %523 = arith.subf %519, %522 : vector<32x32xf32>
    %524 = math.exp %523 : vector<32x32xf32>
    %cst_244 = arith.constant dense<0.000000e+00> : vector<32xf32>
    %525 = vector.multi_reduction <add>, %524, %cst_244 [1] : vector<32x32xf32> to vector<32xf32>
    %526 = vector.shape_cast %525 : vector<32xf32> to vector<32x1xf32>
    %527 = tpu.reciprocal %526 {approx = true} : vector<32x1xf32> -> vector<32x1xf32>
    %528 = vector.broadcast %527 : vector<32x1xf32> to vector<32x32xf32>
    %529 = arith.mulf %524, %528 : vector<32x32xf32>
    %530 = arith.truncf %529 : vector<32x32xf32> to vector<32x32xbf16>
    %531 = vector.broadcast %3 : vector<1x32xbf16> to vector<32x32xbf16>
    %532 = arith.mulf %514, %531 : vector<32x32xbf16>
    %cst_245 = arith.constant dense<0.000000e+00> : vector<32x32xf32>
    %533 = tpu.matmul %530, %532, %cst_245 {dimension_numbers = #tpu.dot_dimension_numbers<[1], [0], [0], [1], [0, 0, 1, 1], [], []>} : vector<32x32xbf16>, vector<32x32xbf16>, vector<32x32xf32> -> vector<32x32xf32>
    %534 = arith.addf %515, %533 : vector<32x32xf32>
    %535 = vector.broadcast %5 : vector<1x32xbf16> to vector<32x32xbf16>
    %536 = arith.mulf %512, %535 : vector<32x32xbf16>
    %cst_246 = arith.constant dense<0.000000e+00> : vector<32x32xf32>
    %537 = tpu.matmul %536, %513, %cst_246 {dimension_numbers = #tpu.dot_dimension_numbers<[1], [1], [0], [0], [0, 0, 1, 0], [], []>} : vector<32x32xbf16>, vector<32x32xbf16>, vector<32x32xf32> -> vector<32x32xf32>
    %538 = arith.addf %537, %1 : vector<32x32xf32>
    %cst_247 = arith.constant dense<0xFF800000> : vector<32xf32>
    %539 = vector.multi_reduction <maximumf>, %538, %cst_247 [1] : vector<32x32xf32> to vector<32xf32>
    %540 = vector.shape_cast %539 : vector<32xf32> to vector<32x1xf32>
    %541 = vector.broadcast %540 : vector<32x1xf32> to vector<32x32xf32>
    %542 = arith.subf %538, %541 : vector<32x32xf32>
    %543 = math.exp %542 : vector<32x32xf32>
    %cst_248 = arith.constant dense<0.000000e+00> : vector<32xf32>
    %544 = vector.multi_reduction <add>, %543, %cst_248 [1] : vector<32x32xf32> to vector<32xf32>
    %545 = vector.shape_cast %544 : vector<32xf32> to vector<32x1xf32>
    %546 = tpu.reciprocal %545 {approx = true} : vector<32x1xf32> -> vector<32x1xf32>
    %547 = vector.broadcast %546 : vector<32x1xf32> to vector<32x32xf32>
    %548 = arith.mulf %543, %547 : vector<32x32xf32>
    %549 = arith.truncf %548 : vector<32x32xf32> to vector<32x32xbf16>
    %550 = vector.broadcast %5 : vector<1x32xbf16> to vector<32x32xbf16>
    %551 = arith.mulf %514, %550 : vector<32x32xbf16>
    %cst_249 = arith.constant dense<0.000000e+00> : vector<32x32xf32>
    %552 = tpu.matmul %549, %551, %cst_249 {dimension_numbers = #tpu.dot_dimension_numbers<[1], [0], [0], [1], [0, 0, 1, 1], [], []>} : vector<32x32xbf16>, vector<32x32xbf16>, vector<32x32xf32> -> vector<32x32xf32>
    %553 = arith.addf %534, %552 : vector<32x32xf32>
    %554 = vector.broadcast %7 : vector<1x32xbf16> to vector<32x32xbf16>
    %555 = arith.mulf %512, %554 : vector<32x32xbf16>
    %cst_250 = arith.constant dense<0.000000e+00> : vector<32x32xf32>
    %556 = tpu.matmul %555, %513, %cst_250 {dimension_numbers = #tpu.dot_dimension_numbers<[1], [1], [0], [0], [0, 0, 1, 0], [], []>} : vector<32x32xbf16>, vector<32x32xbf16>, vector<32x32xf32> -> vector<32x32xf32>
    %557 = arith.addf %556, %1 : vector<32x32xf32>
    %cst_251 = arith.constant dense<0xFF800000> : vector<32xf32>
    %558 = vector.multi_reduction <maximumf>, %557, %cst_251 [1] : vector<32x32xf32> to vector<32xf32>
    %559 = vector.shape_cast %558 : vector<32xf32> to vector<32x1xf32>
    %560 = vector.broadcast %559 : vector<32x1xf32> to vector<32x32xf32>
    %561 = arith.subf %557, %560 : vector<32x32xf32>
    %562 = math.exp %561 : vector<32x32xf32>
    %cst_252 = arith.constant dense<0.000000e+00> : vector<32xf32>
    %563 = vector.multi_reduction <add>, %562, %cst_252 [1] : vector<32x32xf32> to vector<32xf32>
    %564 = vector.shape_cast %563 : vector<32xf32> to vector<32x1xf32>
    %565 = tpu.reciprocal %564 {approx = true} : vector<32x1xf32> -> vector<32x1xf32>
    %566 = vector.broadcast %565 : vector<32x1xf32> to vector<32x32xf32>
    %567 = arith.mulf %562, %566 : vector<32x32xf32>
    %568 = arith.truncf %567 : vector<32x32xf32> to vector<32x32xbf16>
    %569 = vector.broadcast %7 : vector<1x32xbf16> to vector<32x32xbf16>
    %570 = arith.mulf %514, %569 : vector<32x32xbf16>
    %cst_253 = arith.constant dense<0.000000e+00> : vector<32x32xf32>
    %571 = tpu.matmul %568, %570, %cst_253 {dimension_numbers = #tpu.dot_dimension_numbers<[1], [0], [0], [1], [0, 0, 1, 1], [], []>} : vector<32x32xbf16>, vector<32x32xbf16>, vector<32x32xf32> -> vector<32x32xf32>
    %572 = arith.addf %553, %571 : vector<32x32xf32>
    %573 = vector.broadcast %9 : vector<1x32xbf16> to vector<32x32xbf16>
    %574 = arith.mulf %512, %573 : vector<32x32xbf16>
    %cst_254 = arith.constant dense<0.000000e+00> : vector<32x32xf32>
    %575 = tpu.matmul %574, %513, %cst_254 {dimension_numbers = #tpu.dot_dimension_numbers<[1], [1], [0], [0], [0, 0, 1, 0], [], []>} : vector<32x32xbf16>, vector<32x32xbf16>, vector<32x32xf32> -> vector<32x32xf32>
    %576 = arith.addf %575, %1 : vector<32x32xf32>
    %cst_255 = arith.constant dense<0xFF800000> : vector<32xf32>
    %577 = vector.multi_reduction <maximumf>, %576, %cst_255 [1] : vector<32x32xf32> to vector<32xf32>
    %578 = vector.shape_cast %577 : vector<32xf32> to vector<32x1xf32>
    %579 = vector.broadcast %578 : vector<32x1xf32> to vector<32x32xf32>
    %580 = arith.subf %576, %579 : vector<32x32xf32>
    %581 = math.exp %580 : vector<32x32xf32>
    %cst_256 = arith.constant dense<0.000000e+00> : vector<32xf32>
    %582 = vector.multi_reduction <add>, %581, %cst_256 [1] : vector<32x32xf32> to vector<32xf32>
    %583 = vector.shape_cast %582 : vector<32xf32> to vector<32x1xf32>
    %584 = tpu.reciprocal %583 {approx = true} : vector<32x1xf32> -> vector<32x1xf32>
    %585 = vector.broadcast %584 : vector<32x1xf32> to vector<32x32xf32>
    %586 = arith.mulf %581, %585 : vector<32x32xf32>
    %587 = arith.truncf %586 : vector<32x32xf32> to vector<32x32xbf16>
    %588 = vector.broadcast %9 : vector<1x32xbf16> to vector<32x32xbf16>
    %589 = arith.mulf %514, %588 : vector<32x32xbf16>
    %cst_257 = arith.constant dense<0.000000e+00> : vector<32x32xf32>
    %590 = tpu.matmul %587, %589, %cst_257 {dimension_numbers = #tpu.dot_dimension_numbers<[1], [0], [0], [1], [0, 0, 1, 1], [], []>} : vector<32x32xbf16>, vector<32x32xbf16>, vector<32x32xf32> -> vector<32x32xf32>
    %591 = arith.addf %572, %590 : vector<32x32xf32>
    %592 = arith.truncf %591 : vector<32x32xf32> to vector<32x32xbf16>
    %c0_258 = arith.constant 0 : index
    %c0_259 = arith.constant 0 : index
    %c0_260 = arith.constant 0 : index
    %593 = vector.load %arg18[%c0_258, %c0_259, %c0_260] : memref<2x32x32xbf16, #tpu.memory_space<vmem>>, vector<1x32x32xbf16>
    %594 = vector.shape_cast %593 : vector<1x32x32xbf16> to vector<32x32xbf16>
    %cst_261 = arith.constant dense<0.000000e+00> : vector<32x32xf32>
    %595 = tpu.matmul %592, %594, %cst_261 {dimension_numbers = #tpu.dot_dimension_numbers<[1], [0], [0], [1], [0, 0, 1, 1], [], []>} : vector<32x32xbf16>, vector<32x32xbf16>, vector<32x32xf32> -> vector<32x32xf32>
    %c0_262 = arith.constant 0 : index
    %c0_263 = arith.constant 0 : index
    %c0_264 = arith.constant 0 : index
    %596 = vector.load %arg19[%c0_262, %c0_263, %c0_264] : memref<2x1x32xf32, #tpu.memory_space<vmem>>, vector<1x1x32xf32>
    %597 = vector.shape_cast %596 : vector<1x1x32xf32> to vector<1x32xf32>
    %598 = vector.broadcast %597 : vector<1x32xf32> to vector<32x32xf32>
    %599 = arith.addf %595, %598 : vector<32x32xf32>
    %600 = arith.addf %463, %599 : vector<32x32xf32>
    %c2_265 = arith.constant 2 : index
    %c0_266 = arith.constant 0 : index
    %c0_267 = arith.constant 0 : index
    %601 = vector.load %arg11[%c2_265, %c0_266, %c0_267] : memref<8x1x32xf32, #tpu.memory_space<vmem>>, vector<1x1x32xf32>
    %602 = vector.shape_cast %601 : vector<1x1x32xf32> to vector<1x32xf32>
    %c3_268 = arith.constant 3 : index
    %c0_269 = arith.constant 0 : index
    %c0_270 = arith.constant 0 : index
    %603 = vector.load %arg11[%c3_268, %c0_269, %c0_270] : memref<8x1x32xf32, #tpu.memory_space<vmem>>, vector<1x1x32xf32>
    %604 = vector.shape_cast %603 : vector<1x1x32xf32> to vector<1x32xf32>
    %cst_271 = arith.constant dense<0.000000e+00> : vector<32xf32>
    %605 = vector.multi_reduction <add>, %600, %cst_271 [1] : vector<32x32xf32> to vector<32xf32>
    %606 = vector.shape_cast %605 : vector<32xf32> to vector<32x1xf32>
    %cst_272 = arith.constant 3.125000e-02 : f32
    %607 = vector.broadcast %cst_272 : f32 to vector<32x1xf32>
    %608 = arith.mulf %606, %607 : vector<32x1xf32>
    %609 = arith.mulf %600, %600 : vector<32x32xf32>
    %cst_273 = arith.constant dense<0.000000e+00> : vector<32xf32>
    %610 = vector.multi_reduction <add>, %609, %cst_273 [1] : vector<32x32xf32> to vector<32xf32>
    %611 = vector.shape_cast %610 : vector<32xf32> to vector<32x1xf32>
    %cst_274 = arith.constant 3.125000e-02 : f32
    %612 = vector.broadcast %cst_274 : f32 to vector<32x1xf32>
    %613 = arith.mulf %611, %612 : vector<32x1xf32>
    %614 = arith.mulf %608, %608 : vector<32x1xf32>
    %615 = arith.subf %613, %614 : vector<32x1xf32>
    %616 = vector.broadcast %608 : vector<32x1xf32> to vector<32x32xf32>
    %617 = arith.subf %600, %616 : vector<32x32xf32>
    %cst_275 = arith.constant 9.99999974E-6 : f32
    %618 = vector.broadcast %cst_275 : f32 to vector<32x1xf32>
    %619 = arith.addf %615, %618 : vector<32x1xf32>
    %620 = math.rsqrt %619 : vector<32x1xf32>
    %621 = vector.broadcast %620 : vector<32x1xf32> to vector<32x32xf32>
    %622 = arith.mulf %617, %621 : vector<32x32xf32>
    %623 = vector.broadcast %602 : vector<1x32xf32> to vector<32x32xf32>
    %624 = arith.mulf %622, %623 : vector<32x32xf32>
    %625 = vector.broadcast %604 : vector<1x32xf32> to vector<32x32xf32>
    %626 = arith.addf %624, %625 : vector<32x32xf32>
    %627 = arith.truncf %626 : vector<32x32xf32> to vector<32x32xbf16>
    %c0_276 = arith.constant 0 : index
    %c0_277 = arith.constant 0 : index
    %c0_278 = arith.constant 0 : index
    %628 = vector.load %arg20[%c0_276, %c0_277, %c0_278] : memref<2x32x128xbf16, #tpu.memory_space<vmem>>, vector<1x32x128xbf16>
    %629 = vector.shape_cast %628 : vector<1x32x128xbf16> to vector<32x128xbf16>
    %cst_279 = arith.constant dense<0.000000e+00> : vector<32x128xf32>
    %630 = tpu.matmul %627, %629, %cst_279 {dimension_numbers = #tpu.dot_dimension_numbers<[1], [0], [0], [1], [0, 0, 1, 1], [], []>} : vector<32x32xbf16>, vector<32x128xbf16>, vector<32x128xf32> -> vector<32x128xf32>
    %c0_280 = arith.constant 0 : index
    %c0_281 = arith.constant 0 : index
    %c0_282 = arith.constant 0 : index
    %631 = vector.load %arg21[%c0_280, %c0_281, %c0_282] : memref<2x1x128xf32, #tpu.memory_space<vmem>>, vector<1x1x128xf32>
    %632 = vector.shape_cast %631 : vector<1x1x128xf32> to vector<1x128xf32>
    %633 = vector.broadcast %632 : vector<1x128xf32> to vector<32x128xf32>
    %634 = arith.addf %630, %633 : vector<32x128xf32>
    %635 = arith.mulf %634, %634 : vector<32x128xf32>
    %636 = arith.mulf %634, %635 : vector<32x128xf32>
    %cst_283 = arith.constant 4.471500e-02 : f32
    %637 = vector.broadcast %cst_283 : f32 to vector<32x128xf32>
    %638 = arith.mulf %637, %636 : vector<32x128xf32>
    %639 = arith.addf %634, %638 : vector<32x128xf32>
    %cst_284 = arith.constant 0.797884583 : f32
    %640 = vector.broadcast %cst_284 : f32 to vector<32x128xf32>
    %641 = arith.mulf %640, %639 : vector<32x128xf32>
    %642 = math.tanh %641 : vector<32x128xf32>
    %cst_285 = arith.constant 1.000000e+00 : f32
    %643 = vector.broadcast %cst_285 : f32 to vector<32x128xf32>
    %644 = arith.addf %643, %642 : vector<32x128xf32>
    %cst_286 = arith.constant 5.000000e-01 : f32
    %645 = vector.broadcast %cst_286 : f32 to vector<32x128xf32>
    %646 = arith.mulf %645, %644 : vector<32x128xf32>
    %647 = arith.mulf %634, %646 : vector<32x128xf32>
    %648 = arith.truncf %647 : vector<32x128xf32> to vector<32x128xbf16>
    %c0_287 = arith.constant 0 : index
    %c0_288 = arith.constant 0 : index
    %c0_289 = arith.constant 0 : index
    %649 = vector.load %arg22[%c0_287, %c0_288, %c0_289] : memref<2x128x32xbf16, #tpu.memory_space<vmem>>, vector<1x128x32xbf16>
    %650 = vector.shape_cast %649 : vector<1x128x32xbf16> to vector<128x32xbf16>
    %cst_290 = arith.constant dense<0.000000e+00> : vector<32x32xf32>
    %651 = tpu.matmul %648, %650, %cst_290 {dimension_numbers = #tpu.dot_dimension_numbers<[1], [0], [0], [1], [0, 0, 1, 1], [], []>} : vector<32x128xbf16>, vector<128x32xbf16>, vector<32x32xf32> -> vector<32x32xf32>
    %c0_291 = arith.constant 0 : index
    %c0_292 = arith.constant 0 : index
    %c0_293 = arith.constant 0 : index
    %652 = vector.load %arg23[%c0_291, %c0_292, %c0_293] : memref<2x1x32xf32, #tpu.memory_space<vmem>>, vector<1x1x32xf32>
    %653 = vector.shape_cast %652 : vector<1x1x32xf32> to vector<1x32xf32>
    %654 = vector.broadcast %653 : vector<1x32xf32> to vector<32x32xf32>
    %655 = arith.addf %651, %654 : vector<32x32xf32>
    %656 = arith.addf %600, %655 : vector<32x32xf32>
    %cst_294 = arith.constant dense<0.000000e+00> : vector<32xf32>
    %657 = vector.multi_reduction <add>, %656, %cst_294 [1] : vector<32x32xf32> to vector<32xf32>
    %658 = vector.shape_cast %657 : vector<32xf32> to vector<32x1xf32>
    %cst_295 = arith.constant 3.125000e-02 : f32
    %659 = vector.broadcast %cst_295 : f32 to vector<32x1xf32>
    %660 = arith.mulf %658, %659 : vector<32x1xf32>
    %661 = arith.mulf %656, %656 : vector<32x32xf32>
    %cst_296 = arith.constant dense<0.000000e+00> : vector<32xf32>
    %662 = vector.multi_reduction <add>, %661, %cst_296 [1] : vector<32x32xf32> to vector<32xf32>
    %663 = vector.shape_cast %662 : vector<32xf32> to vector<32x1xf32>
    %cst_297 = arith.constant 3.125000e-02 : f32
    %664 = vector.broadcast %cst_297 : f32 to vector<32x1xf32>
    %665 = arith.mulf %663, %664 : vector<32x1xf32>
    %666 = arith.mulf %660, %660 : vector<32x1xf32>
    %667 = arith.subf %665, %666 : vector<32x1xf32>
    %668 = vector.broadcast %660 : vector<32x1xf32> to vector<32x32xf32>
    %669 = arith.subf %656, %668 : vector<32x32xf32>
    %cst_298 = arith.constant 9.99999974E-6 : f32
    %670 = vector.broadcast %cst_298 : f32 to vector<32x1xf32>
    %671 = arith.addf %667, %670 : vector<32x1xf32>
    %672 = math.rsqrt %671 : vector<32x1xf32>
    %673 = vector.broadcast %672 : vector<32x1xf32> to vector<32x32xf32>
    %674 = arith.mulf %669, %673 : vector<32x32xf32>
    %675 = vector.broadcast %19 : vector<1x32xf32> to vector<32x32xf32>
    %676 = arith.mulf %674, %675 : vector<32x32xf32>
    %677 = vector.broadcast %20 : vector<1x32xf32> to vector<32x32xf32>
    %678 = arith.addf %676, %677 : vector<32x32xf32>
    %c0_299 = arith.constant 0 : index
    %c0_300 = arith.constant 0 : index
    %679 = vector.load %arg9[%c0_299, %c0_300] : memref<1x32xbf16, #tpu.memory_space<vmem>>, vector<1x32xbf16>
    %680 = arith.truncf %678 : vector<32x32xf32> to vector<32x32xbf16>
    %cst_301 = arith.constant dense<0.000000e+00> : vector<1x32xf32>
    %681 = tpu.matmul %679, %680, %cst_301 {dimension_numbers = #tpu.dot_dimension_numbers<[1], [1], [0], [0], [0, 0, 1, 0], [], []>} : vector<1x32xbf16>, vector<32x32xbf16>, vector<1x32xf32> -> vector<1x32xf32>
    %c0_302 = arith.constant 0 : index
    %c0_303 = arith.constant 0 : index
    %682 = vector.load %arg10[%c0_302, %c0_303] : memref<1x1xf32, #tpu.memory_space<vmem>>, vector<1x1xf32>
    %683 = vector.broadcast %682 : vector<1x1xf32> to vector<1x32xf32>
    %684 = arith.addf %681, %683 : vector<1x32xf32>
    %c1_304 = arith.constant 1 : index
    %c0_305 = arith.constant 0 : index
    %c0_306 = arith.constant 0 : index
    %c0_307 = arith.constant 0 : index
    %685 = vector.load %arg24[%c1_304, %c0_305, %c0_306, %c0_307] : memref<3x1x1x32xf32, #tpu.memory_space<vmem>>, vector<1x1x1x32xf32>
    %686 = vector.shape_cast %685 : vector<1x1x1x32xf32> to vector<1x32xf32>
    %687 = vector.shape_cast %684 : vector<1x32xf32> to vector<1x1x1x32xf32>
    tpu.vector_store %arg24[%c1_304, %c0_305, %c0_306, %c0_307], %687 {strides = array<i32>} : memref<3x1x1x32xf32, #tpu.memory_space<vmem>>, vector<1x1x1x32xf32>,
    %688 = arith.addf %678, %18 : vector<32x32xf32>
    %c4_308 = arith.constant 4 : index
    %c0_309 = arith.constant 0 : index
    %c0_310 = arith.constant 0 : index
    %689 = vector.load %arg11[%c4_308, %c0_309, %c0_310] : memref<8x1x32xf32, #tpu.memory_space<vmem>>, vector<1x1x32xf32>
    %690 = vector.shape_cast %689 : vector<1x1x32xf32> to vector<1x32xf32>
    %c5_311 = arith.constant 5 : index
    %c0_312 = arith.constant 0 : index
    %c0_313 = arith.constant 0 : index
    %691 = vector.load %arg11[%c5_311, %c0_312, %c0_313] : memref<8x1x32xf32, #tpu.memory_space<vmem>>, vector<1x1x32xf32>
    %692 = vector.shape_cast %691 : vector<1x1x32xf32> to vector<1x32xf32>
    %cst_314 = arith.constant dense<0.000000e+00> : vector<32xf32>
    %693 = vector.multi_reduction <add>, %688, %cst_314 [1] : vector<32x32xf32> to vector<32xf32>
    %694 = vector.shape_cast %693 : vector<32xf32> to vector<32x1xf32>
    %cst_315 = arith.constant 3.125000e-02 : f32
    %695 = vector.broadcast %cst_315 : f32 to vector<32x1xf32>
    %696 = arith.mulf %694, %695 : vector<32x1xf32>
    %697 = arith.mulf %688, %688 : vector<32x32xf32>
    %cst_316 = arith.constant dense<0.000000e+00> : vector<32xf32>
    %698 = vector.multi_reduction <add>, %697, %cst_316 [1] : vector<32x32xf32> to vector<32xf32>
    %699 = vector.shape_cast %698 : vector<32xf32> to vector<32x1xf32>
    %cst_317 = arith.constant 3.125000e-02 : f32
    %700 = vector.broadcast %cst_317 : f32 to vector<32x1xf32>
    %701 = arith.mulf %699, %700 : vector<32x1xf32>
    %702 = arith.mulf %696, %696 : vector<32x1xf32>
    %703 = arith.subf %701, %702 : vector<32x1xf32>
    %704 = vector.broadcast %696 : vector<32x1xf32> to vector<32x32xf32>
    %705 = arith.subf %688, %704 : vector<32x32xf32>
    %cst_318 = arith.constant 9.99999974E-6 : f32
    %706 = vector.broadcast %cst_318 : f32 to vector<32x1xf32>
    %707 = arith.addf %703, %706 : vector<32x1xf32>
    %708 = math.rsqrt %707 : vector<32x1xf32>
    %709 = vector.broadcast %708 : vector<32x1xf32> to vector<32x32xf32>
    %710 = arith.mulf %705, %709 : vector<32x32xf32>
    %711 = vector.broadcast %690 : vector<1x32xf32> to vector<32x32xf32>
    %712 = arith.mulf %710, %711 : vector<32x32xf32>
    %713 = vector.broadcast %692 : vector<1x32xf32> to vector<32x32xf32>
    %714 = arith.addf %712, %713 : vector<32x32xf32>
    %715 = arith.truncf %714 : vector<32x32xf32> to vector<32x32xbf16>
    %c1_319 = arith.constant 1 : index
    %c0_320 = arith.constant 0 : index
    %c0_321 = arith.constant 0 : index
    %716 = vector.load %arg12[%c1_319, %c0_320, %c0_321] : memref<2x32x32xbf16, #tpu.memory_space<vmem>>, vector<1x32x32xbf16>
    %717 = vector.shape_cast %716 : vector<1x32x32xbf16> to vector<32x32xbf16>
    %cst_322 = arith.constant dense<0.000000e+00> : vector<32x32xf32>
    %718 = tpu.matmul %715, %717, %cst_322 {dimension_numbers = #tpu.dot_dimension_numbers<[1], [0], [0], [1], [0, 0, 1, 1], [], []>} : vector<32x32xbf16>, vector<32x32xbf16>, vector<32x32xf32> -> vector<32x32xf32>
    %c1_323 = arith.constant 1 : index
    %c0_324 = arith.constant 0 : index
    %c0_325 = arith.constant 0 : index
    %719 = vector.load %arg15[%c1_323, %c0_324, %c0_325] : memref<2x1x32xf32, #tpu.memory_space<vmem>>, vector<1x1x32xf32>
    %720 = vector.shape_cast %719 : vector<1x1x32xf32> to vector<1x32xf32>
    %721 = vector.broadcast %720 : vector<1x32xf32> to vector<32x32xf32>
    %722 = arith.addf %718, %721 : vector<32x32xf32>
    %c1_326 = arith.constant 1 : index
    %c0_327 = arith.constant 0 : index
    %c0_328 = arith.constant 0 : index
    %723 = vector.load %arg13[%c1_326, %c0_327, %c0_328] : memref<2x32x32xbf16, #tpu.memory_space<vmem>>, vector<1x32x32xbf16>
    %724 = vector.shape_cast %723 : vector<1x32x32xbf16> to vector<32x32xbf16>
    %cst_329 = arith.constant dense<0.000000e+00> : vector<32x32xf32>
    %725 = tpu.matmul %715, %724, %cst_329 {dimension_numbers = #tpu.dot_dimension_numbers<[1], [0], [0], [1], [0, 0, 1, 1], [], []>} : vector<32x32xbf16>, vector<32x32xbf16>, vector<32x32xf32> -> vector<32x32xf32>
    %c1_330 = arith.constant 1 : index
    %c0_331 = arith.constant 0 : index
    %c0_332 = arith.constant 0 : index
    %726 = vector.load %arg16[%c1_330, %c0_331, %c0_332] : memref<2x1x32xf32, #tpu.memory_space<vmem>>, vector<1x1x32xf32>
    %727 = vector.shape_cast %726 : vector<1x1x32xf32> to vector<1x32xf32>
    %728 = vector.broadcast %727 : vector<1x32xf32> to vector<32x32xf32>
    %729 = arith.addf %725, %728 : vector<32x32xf32>
    %c1_333 = arith.constant 1 : index
    %c0_334 = arith.constant 0 : index
    %c0_335 = arith.constant 0 : index
    %730 = vector.load %arg14[%c1_333, %c0_334, %c0_335] : memref<2x32x32xbf16, #tpu.memory_space<vmem>>, vector<1x32x32xbf16>
    %731 = vector.shape_cast %730 : vector<1x32x32xbf16> to vector<32x32xbf16>
    %cst_336 = arith.constant dense<0.000000e+00> : vector<32x32xf32>
    %732 = tpu.matmul %715, %731, %cst_336 {dimension_numbers = #tpu.dot_dimension_numbers<[1], [0], [0], [1], [0, 0, 1, 1], [], []>} : vector<32x32xbf16>, vector<32x32xbf16>, vector<32x32xf32> -> vector<32x32xf32>
    %c1_337 = arith.constant 1 : index
    %c0_338 = arith.constant 0 : index
    %c0_339 = arith.constant 0 : index
    %733 = vector.load %arg17[%c1_337, %c0_338, %c0_339] : memref<2x1x32xf32, #tpu.memory_space<vmem>>, vector<1x1x32xf32>
    %734 = vector.shape_cast %733 : vector<1x1x32xf32> to vector<1x32xf32>
    %735 = vector.broadcast %734 : vector<1x32xf32> to vector<32x32xf32>
    %736 = arith.addf %732, %735 : vector<32x32xf32>
    %737 = arith.truncf %722 : vector<32x32xf32> to vector<32x32xbf16>
    %738 = arith.truncf %729 : vector<32x32xf32> to vector<32x32xbf16>
    %739 = arith.truncf %736 : vector<32x32xf32> to vector<32x32xbf16>
    %cst_340 = arith.constant 0.000000e+00 : f32
    %740 = vector.broadcast %cst_340 : f32 to vector<32x32xf32>
    %741 = vector.broadcast %3 : vector<1x32xbf16> to vector<32x32xbf16>
    %742 = arith.mulf %737, %741 : vector<32x32xbf16>
    %cst_341 = arith.constant dense<0.000000e+00> : vector<32x32xf32>
    %743 = tpu.matmul %742, %738, %cst_341 {dimension_numbers = #tpu.dot_dimension_numbers<[1], [1], [0], [0], [0, 0, 1, 0], [], []>} : vector<32x32xbf16>, vector<32x32xbf16>, vector<32x32xf32> -> vector<32x32xf32>
    %744 = arith.addf %743, %1 : vector<32x32xf32>
    %cst_342 = arith.constant dense<0xFF800000> : vector<32xf32>
    %745 = vector.multi_reduction <maximumf>, %744, %cst_342 [1] : vector<32x32xf32> to vector<32xf32>
    %746 = vector.shape_cast %745 : vector<32xf32> to vector<32x1xf32>
    %747 = vector.broadcast %746 : vector<32x1xf32> to vector<32x32xf32>
    %748 = arith.subf %744, %747 : vector<32x32xf32>
    %749 = math.exp %748 : vector<32x32xf32>
    %cst_343 = arith.constant dense<0.000000e+00> : vector<32xf32>
    %750 = vector.multi_reduction <add>, %749, %cst_343 [1] : vector<32x32xf32> to vector<32xf32>
    %751 = vector.shape_cast %750 : vector<32xf32> to vector<32x1xf32>
    %752 = tpu.reciprocal %751 {approx = true} : vector<32x1xf32> -> vector<32x1xf32>
    %753 = vector.broadcast %752 : vector<32x1xf32> to vector<32x32xf32>
    %754 = arith.mulf %749, %753 : vector<32x32xf32>
    %755 = arith.truncf %754 : vector<32x32xf32> to vector<32x32xbf16>
    %756 = vector.broadcast %3 : vector<1x32xbf16> to vector<32x32xbf16>
    %757 = arith.mulf %739, %756 : vector<32x32xbf16>
    %cst_344 = arith.constant dense<0.000000e+00> : vector<32x32xf32>
    %758 = tpu.matmul %755, %757, %cst_344 {dimension_numbers = #tpu.dot_dimension_numbers<[1], [0], [0], [1], [0, 0, 1, 1], [], []>} : vector<32x32xbf16>, vector<32x32xbf16>, vector<32x32xf32> -> vector<32x32xf32>
    %759 = arith.addf %740, %758 : vector<32x32xf32>
    %760 = vector.broadcast %5 : vector<1x32xbf16> to vector<32x32xbf16>
    %761 = arith.mulf %737, %760 : vector<32x32xbf16>
    %cst_345 = arith.constant dense<0.000000e+00> : vector<32x32xf32>
    %762 = tpu.matmul %761, %738, %cst_345 {dimension_numbers = #tpu.dot_dimension_numbers<[1], [1], [0], [0], [0, 0, 1, 0], [], []>} : vector<32x32xbf16>, vector<32x32xbf16>, vector<32x32xf32> -> vector<32x32xf32>
    %763 = arith.addf %762, %1 : vector<32x32xf32>
    %cst_346 = arith.constant dense<0xFF800000> : vector<32xf32>
    %764 = vector.multi_reduction <maximumf>, %763, %cst_346 [1] : vector<32x32xf32> to vector<32xf32>
    %765 = vector.shape_cast %764 : vector<32xf32> to vector<32x1xf32>
    %766 = vector.broadcast %765 : vector<32x1xf32> to vector<32x32xf32>
    %767 = arith.subf %763, %766 : vector<32x32xf32>
    %768 = math.exp %767 : vector<32x32xf32>
    %cst_347 = arith.constant dense<0.000000e+00> : vector<32xf32>
    %769 = vector.multi_reduction <add>, %768, %cst_347 [1] : vector<32x32xf32> to vector<32xf32>
    %770 = vector.shape_cast %769 : vector<32xf32> to vector<32x1xf32>
    %771 = tpu.reciprocal %770 {approx = true} : vector<32x1xf32> -> vector<32x1xf32>
    %772 = vector.broadcast %771 : vector<32x1xf32> to vector<32x32xf32>
    %773 = arith.mulf %768, %772 : vector<32x32xf32>
    %774 = arith.truncf %773 : vector<32x32xf32> to vector<32x32xbf16>
    %775 = vector.broadcast %5 : vector<1x32xbf16> to vector<32x32xbf16>
    %776 = arith.mulf %739, %775 : vector<32x32xbf16>
    %cst_348 = arith.constant dense<0.000000e+00> : vector<32x32xf32>
    %777 = tpu.matmul %774, %776, %cst_348 {dimension_numbers = #tpu.dot_dimension_numbers<[1], [0], [0], [1], [0, 0, 1, 1], [], []>} : vector<32x32xbf16>, vector<32x32xbf16>, vector<32x32xf32> -> vector<32x32xf32>
    %778 = arith.addf %759, %777 : vector<32x32xf32>
    %779 = vector.broadcast %7 : vector<1x32xbf16> to vector<32x32xbf16>
    %780 = arith.mulf %737, %779 : vector<32x32xbf16>
    %cst_349 = arith.constant dense<0.000000e+00> : vector<32x32xf32>
    %781 = tpu.matmul %780, %738, %cst_349 {dimension_numbers = #tpu.dot_dimension_numbers<[1], [1], [0], [0], [0, 0, 1, 0], [], []>} : vector<32x32xbf16>, vector<32x32xbf16>, vector<32x32xf32> -> vector<32x32xf32>
    %782 = arith.addf %781, %1 : vector<32x32xf32>
    %cst_350 = arith.constant dense<0xFF800000> : vector<32xf32>
    %783 = vector.multi_reduction <maximumf>, %782, %cst_350 [1] : vector<32x32xf32> to vector<32xf32>
    %784 = vector.shape_cast %783 : vector<32xf32> to vector<32x1xf32>
    %785 = vector.broadcast %784 : vector<32x1xf32> to vector<32x32xf32>
    %786 = arith.subf %782, %785 : vector<32x32xf32>
    %787 = math.exp %786 : vector<32x32xf32>
    %cst_351 = arith.constant dense<0.000000e+00> : vector<32xf32>
    %788 = vector.multi_reduction <add>, %787, %cst_351 [1] : vector<32x32xf32> to vector<32xf32>
    %789 = vector.shape_cast %788 : vector<32xf32> to vector<32x1xf32>
    %790 = tpu.reciprocal %789 {approx = true} : vector<32x1xf32> -> vector<32x1xf32>
    %791 = vector.broadcast %790 : vector<32x1xf32> to vector<32x32xf32>
    %792 = arith.mulf %787, %791 : vector<32x32xf32>
    %793 = arith.truncf %792 : vector<32x32xf32> to vector<32x32xbf16>
    %794 = vector.broadcast %7 : vector<1x32xbf16> to vector<32x32xbf16>
    %795 = arith.mulf %739, %794 : vector<32x32xbf16>
    %cst_352 = arith.constant dense<0.000000e+00> : vector<32x32xf32>
    %796 = tpu.matmul %793, %795, %cst_352 {dimension_numbers = #tpu.dot_dimension_numbers<[1], [0], [0], [1], [0, 0, 1, 1], [], []>} : vector<32x32xbf16>, vector<32x32xbf16>, vector<32x32xf32> -> vector<32x32xf32>
    %797 = arith.addf %778, %796 : vector<32x32xf32>
    %798 = vector.broadcast %9 : vector<1x32xbf16> to vector<32x32xbf16>
    %799 = arith.mulf %737, %798 : vector<32x32xbf16>
    %cst_353 = arith.constant dense<0.000000e+00> : vector<32x32xf32>
    %800 = tpu.matmul %799, %738, %cst_353 {dimension_numbers = #tpu.dot_dimension_numbers<[1], [1], [0], [0], [0, 0, 1, 0], [], []>} : vector<32x32xbf16>, vector<32x32xbf16>, vector<32x32xf32> -> vector<32x32xf32>
    %801 = arith.addf %800, %1 : vector<32x32xf32>
    %cst_354 = arith.constant dense<0xFF800000> : vector<32xf32>
    %802 = vector.multi_reduction <maximumf>, %801, %cst_354 [1] : vector<32x32xf32> to vector<32xf32>
    %803 = vector.shape_cast %802 : vector<32xf32> to vector<32x1xf32>
    %804 = vector.broadcast %803 : vector<32x1xf32> to vector<32x32xf32>
    %805 = arith.subf %801, %804 : vector<32x32xf32>
    %806 = math.exp %805 : vector<32x32xf32>
    %cst_355 = arith.constant dense<0.000000e+00> : vector<32xf32>
    %807 = vector.multi_reduction <add>, %806, %cst_355 [1] : vector<32x32xf32> to vector<32xf32>
    %808 = vector.shape_cast %807 : vector<32xf32> to vector<32x1xf32>
    %809 = tpu.reciprocal %808 {approx = true} : vector<32x1xf32> -> vector<32x1xf32>
    %810 = vector.broadcast %809 : vector<32x1xf32> to vector<32x32xf32>
    %811 = arith.mulf %806, %810 : vector<32x32xf32>
    %812 = arith.truncf %811 : vector<32x32xf32> to vector<32x32xbf16>
    %813 = vector.broadcast %9 : vector<1x32xbf16> to vector<32x32xbf16>
    %814 = arith.mulf %739, %813 : vector<32x32xbf16>
    %cst_356 = arith.constant dense<0.000000e+00> : vector<32x32xf32>
    %815 = tpu.matmul %812, %814, %cst_356 {dimension_numbers = #tpu.dot_dimension_numbers<[1], [0], [0], [1], [0, 0, 1, 1], [], []>} : vector<32x32xbf16>, vector<32x32xbf16>, vector<32x32xf32> -> vector<32x32xf32>
    %816 = arith.addf %797, %815 : vector<32x32xf32>
    %817 = arith.truncf %816 : vector<32x32xf32> to vector<32x32xbf16>
    %c1_357 = arith.constant 1 : index
    %c0_358 = arith.constant 0 : index
    %c0_359 = arith.constant 0 : index
    %818 = vector.load %arg18[%c1_357, %c0_358, %c0_359] : memref<2x32x32xbf16, #tpu.memory_space<vmem>>, vector<1x32x32xbf16>
    %819 = vector.shape_cast %818 : vector<1x32x32xbf16> to vector<32x32xbf16>
    %cst_360 = arith.constant dense<0.000000e+00> : vector<32x32xf32>
    %820 = tpu.matmul %817, %819, %cst_360 {dimension_numbers = #tpu.dot_dimension_numbers<[1], [0], [0], [1], [0, 0, 1, 1], [], []>} : vector<32x32xbf16>, vector<32x32xbf16>, vector<32x32xf32> -> vector<32x32xf32>
    %c1_361 = arith.constant 1 : index
    %c0_362 = arith.constant 0 : index
    %c0_363 = arith.constant 0 : index
    %821 = vector.load %arg19[%c1_361, %c0_362, %c0_363] : memref<2x1x32xf32, #tpu.memory_space<vmem>>, vector<1x1x32xf32>
    %822 = vector.shape_cast %821 : vector<1x1x32xf32> to vector<1x32xf32>
    %823 = vector.broadcast %822 : vector<1x32xf32> to vector<32x32xf32>
    %824 = arith.addf %820, %823 : vector<32x32xf32>
    %825 = arith.addf %688, %824 : vector<32x32xf32>
    %c6_364 = arith.constant 6 : index
    %c0_365 = arith.constant 0 : index
    %c0_366 = arith.constant 0 : index
    %826 = vector.load %arg11[%c6_364, %c0_365, %c0_366] : memref<8x1x32xf32, #tpu.memory_space<vmem>>, vector<1x1x32xf32>
    %827 = vector.shape_cast %826 : vector<1x1x32xf32> to vector<1x32xf32>
    %c7_367 = arith.constant 7 : index
    %c0_368 = arith.constant 0 : index
    %c0_369 = arith.constant 0 : index
    %828 = vector.load %arg11[%c7_367, %c0_368, %c0_369] : memref<8x1x32xf32, #tpu.memory_space<vmem>>, vector<1x1x32xf32>
    %829 = vector.shape_cast %828 : vector<1x1x32xf32> to vector<1x32xf32>
    %cst_370 = arith.constant dense<0.000000e+00> : vector<32xf32>
    %830 = vector.multi_reduction <add>, %825, %cst_370 [1] : vector<32x32xf32> to vector<32xf32>
    %831 = vector.shape_cast %830 : vector<32xf32> to vector<32x1xf32>
    %cst_371 = arith.constant 3.125000e-02 : f32
    %832 = vector.broadcast %cst_371 : f32 to vector<32x1xf32>
    %833 = arith.mulf %831, %832 : vector<32x1xf32>
    %834 = arith.mulf %825, %825 : vector<32x32xf32>
    %cst_372 = arith.constant dense<0.000000e+00> : vector<32xf32>
    %835 = vector.multi_reduction <add>, %834, %cst_372 [1] : vector<32x32xf32> to vector<32xf32>
    %836 = vector.shape_cast %835 : vector<32xf32> to vector<32x1xf32>
    %cst_373 = arith.constant 3.125000e-02 : f32
    %837 = vector.broadcast %cst_373 : f32 to vector<32x1xf32>
    %838 = arith.mulf %836, %837 : vector<32x1xf32>
    %839 = arith.mulf %833, %833 : vector<32x1xf32>
    %840 = arith.subf %838, %839 : vector<32x1xf32>
    %841 = vector.broadcast %833 : vector<32x1xf32> to vector<32x32xf32>
    %842 = arith.subf %825, %841 : vector<32x32xf32>
    %cst_374 = arith.constant 9.99999974E-6 : f32
    %843 = vector.broadcast %cst_374 : f32 to vector<32x1xf32>
    %844 = arith.addf %840, %843 : vector<32x1xf32>
    %845 = math.rsqrt %844 : vector<32x1xf32>
    %846 = vector.broadcast %845 : vector<32x1xf32> to vector<32x32xf32>
    %847 = arith.mulf %842, %846 : vector<32x32xf32>
    %848 = vector.broadcast %827 : vector<1x32xf32> to vector<32x32xf32>
    %849 = arith.mulf %847, %848 : vector<32x32xf32>
    %850 = vector.broadcast %829 : vector<1x32xf32> to vector<32x32xf32>
    %851 = arith.addf %849, %850 : vector<32x32xf32>
    %852 = arith.truncf %851 : vector<32x32xf32> to vector<32x32xbf16>
    %c1_375 = arith.constant 1 : index
    %c0_376 = arith.constant 0 : index
    %c0_377 = arith.constant 0 : index
    %853 = vector.load %arg20[%c1_375, %c0_376, %c0_377] : memref<2x32x128xbf16, #tpu.memory_space<vmem>>, vector<1x32x128xbf16>
    %854 = vector.shape_cast %853 : vector<1x32x128xbf16> to vector<32x128xbf16>
    %cst_378 = arith.constant dense<0.000000e+00> : vector<32x128xf32>
    %855 = tpu.matmul %852, %854, %cst_378 {dimension_numbers = #tpu.dot_dimension_numbers<[1], [0], [0], [1], [0, 0, 1, 1], [], []>} : vector<32x32xbf16>, vector<32x128xbf16>, vector<32x128xf32> -> vector<32x128xf32>
    %c1_379 = arith.constant 1 : index
    %c0_380 = arith.constant 0 : index
    %c0_381 = arith.constant 0 : index
    %856 = vector.load %arg21[%c1_379, %c0_380, %c0_381] : memref<2x1x128xf32, #tpu.memory_space<vmem>>, vector<1x1x128xf32>
    %857 = vector.shape_cast %856 : vector<1x1x128xf32> to vector<1x128xf32>
    %858 = vector.broadcast %857 : vector<1x128xf32> to vector<32x128xf32>
    %859 = arith.addf %855, %858 : vector<32x128xf32>
    %860 = arith.mulf %859, %859 : vector<32x128xf32>
    %861 = arith.mulf %859, %860 : vector<32x128xf32>
    %cst_382 = arith.constant 4.471500e-02 : f32
    %862 = vector.broadcast %cst_382 : f32 to vector<32x128xf32>
    %863 = arith.mulf %862, %861 : vector<32x128xf32>
    %864 = arith.addf %859, %863 : vector<32x128xf32>
    %cst_383 = arith.constant 0.797884583 : f32
    %865 = vector.broadcast %cst_383 : f32 to vector<32x128xf32>
    %866 = arith.mulf %865, %864 : vector<32x128xf32>
    %867 = math.tanh %866 : vector<32x128xf32>
    %cst_384 = arith.constant 1.000000e+00 : f32
    %868 = vector.broadcast %cst_384 : f32 to vector<32x128xf32>
    %869 = arith.addf %868, %867 : vector<32x128xf32>
    %cst_385 = arith.constant 5.000000e-01 : f32
    %870 = vector.broadcast %cst_385 : f32 to vector<32x128xf32>
    %871 = arith.mulf %870, %869 : vector<32x128xf32>
    %872 = arith.mulf %859, %871 : vector<32x128xf32>
    %873 = arith.truncf %872 : vector<32x128xf32> to vector<32x128xbf16>
    %c1_386 = arith.constant 1 : index
    %c0_387 = arith.constant 0 : index
    %c0_388 = arith.constant 0 : index
    %874 = vector.load %arg22[%c1_386, %c0_387, %c0_388] : memref<2x128x32xbf16, #tpu.memory_space<vmem>>, vector<1x128x32xbf16>
    %875 = vector.shape_cast %874 : vector<1x128x32xbf16> to vector<128x32xbf16>
    %cst_389 = arith.constant dense<0.000000e+00> : vector<32x32xf32>
    %876 = tpu.matmul %873, %875, %cst_389 {dimension_numbers = #tpu.dot_dimension_numbers<[1], [0], [0], [1], [0, 0, 1, 1], [], []>} : vector<32x128xbf16>, vector<128x32xbf16>, vector<32x32xf32> -> vector<32x32xf32>
    %c1_390 = arith.constant 1 : index
    %c0_391 = arith.constant 0 : index
    %c0_392 = arith.constant 0 : index
    %877 = vector.load %arg23[%c1_390, %c0_391, %c0_392] : memref<2x1x32xf32, #tpu.memory_space<vmem>>, vector<1x1x32xf32>
    %878 = vector.shape_cast %877 : vector<1x1x32xf32> to vector<1x32xf32>
    %879 = vector.broadcast %878 : vector<1x32xf32> to vector<32x32xf32>
    %880 = arith.addf %876, %879 : vector<32x32xf32>
    %881 = arith.addf %825, %880 : vector<32x32xf32>
    %cst_393 = arith.constant dense<0.000000e+00> : vector<32xf32>
    %882 = vector.multi_reduction <add>, %881, %cst_393 [1] : vector<32x32xf32> to vector<32xf32>
    %883 = vector.shape_cast %882 : vector<32xf32> to vector<32x1xf32>
    %cst_394 = arith.constant 3.125000e-02 : f32
    %884 = vector.broadcast %cst_394 : f32 to vector<32x1xf32>
    %885 = arith.mulf %883, %884 : vector<32x1xf32>
    %886 = arith.mulf %881, %881 : vector<32x32xf32>
    %cst_395 = arith.constant dense<0.000000e+00> : vector<32xf32>
    %887 = vector.multi_reduction <add>, %886, %cst_395 [1] : vector<32x32xf32> to vector<32xf32>
    %888 = vector.shape_cast %887 : vector<32xf32> to vector<32x1xf32>
    %cst_396 = arith.constant 3.125000e-02 : f32
    %889 = vector.broadcast %cst_396 : f32 to vector<32x1xf32>
    %890 = arith.mulf %888, %889 : vector<32x1xf32>
    %891 = arith.mulf %885, %885 : vector<32x1xf32>
    %892 = arith.subf %890, %891 : vector<32x1xf32>
    %893 = vector.broadcast %885 : vector<32x1xf32> to vector<32x32xf32>
    %894 = arith.subf %881, %893 : vector<32x32xf32>
    %cst_397 = arith.constant 9.99999974E-6 : f32
    %895 = vector.broadcast %cst_397 : f32 to vector<32x1xf32>
    %896 = arith.addf %892, %895 : vector<32x1xf32>
    %897 = math.rsqrt %896 : vector<32x1xf32>
    %898 = vector.broadcast %897 : vector<32x1xf32> to vector<32x32xf32>
    %899 = arith.mulf %894, %898 : vector<32x32xf32>
    %900 = vector.broadcast %19 : vector<1x32xf32> to vector<32x32xf32>
    %901 = arith.mulf %899, %900 : vector<32x32xf32>
    %902 = vector.broadcast %20 : vector<1x32xf32> to vector<32x32xf32>
    %903 = arith.addf %901, %902 : vector<32x32xf32>
    %c0_398 = arith.constant 0 : index
    %c0_399 = arith.constant 0 : index
    %904 = vector.load %arg9[%c0_398, %c0_399] : memref<1x32xbf16, #tpu.memory_space<vmem>>, vector<1x32xbf16>
    %905 = arith.truncf %903 : vector<32x32xf32> to vector<32x32xbf16>
    %cst_400 = arith.constant dense<0.000000e+00> : vector<1x32xf32>
    %906 = tpu.matmul %904, %905, %cst_400 {dimension_numbers = #tpu.dot_dimension_numbers<[1], [1], [0], [0], [0, 0, 1, 0], [], []>} : vector<1x32xbf16>, vector<32x32xbf16>, vector<1x32xf32> -> vector<1x32xf32>
    %c0_401 = arith.constant 0 : index
    %c0_402 = arith.constant 0 : index
    %907 = vector.load %arg10[%c0_401, %c0_402] : memref<1x1xf32, #tpu.memory_space<vmem>>, vector<1x1xf32>
    %908 = vector.broadcast %907 : vector<1x1xf32> to vector<1x32xf32>
    %909 = arith.addf %906, %908 : vector<1x32xf32>
    %c2_403 = arith.constant 2 : index
    %c0_404 = arith.constant 0 : index
    %c0_405 = arith.constant 0 : index
    %c0_406 = arith.constant 0 : index
    %910 = vector.load %arg24[%c2_403, %c0_404, %c0_405, %c0_406] : memref<3x1x1x32xf32, #tpu.memory_space<vmem>>, vector<1x1x1x32xf32>
    %911 = vector.shape_cast %910 : vector<1x1x1x32xf32> to vector<1x32xf32>
    %912 = vector.shape_cast %909 : vector<1x32xf32> to vector<1x1x1x32xf32>
    tpu.vector_store %arg24[%c2_403, %c0_404, %c0_405, %c0_406], %912 {strides = array<i32>} : memref<3x1x1x32xf32, #tpu.memory_space<vmem>>, vector<1x1x1x32xf32>,
    return
  }
  func.func @transform_0(%arg0: i32) -> (i32, i32) {
    %c0_i32 = arith.constant 0 : i32
    %c0_i32_0 = arith.constant 0 : i32
    return %arg0, %c0_i32 : i32, i32
  }
  func.func @transform_1(%arg0: i32) -> (i32, i32) {
    %c0_i32 = arith.constant 0 : i32
    %c0_i32_0 = arith.constant 0 : i32
    return %arg0, %c0_i32 : i32, i32
  }
  func.func @transform_2(%arg0: i32) -> (i32, i32, i32) {
    %c0_i32 = arith.constant 0 : i32
    %c0_i32_0 = arith.constant 0 : i32
    %c0_i32_1 = arith.constant 0 : i32
    return %arg0, %c0_i32, %c0_i32_0 : i32, i32, i32
  }
  func.func @transform_3(%arg0: i32) -> (i32, i32, i32) {
    %c0_i32 = arith.constant 0 : i32
    %c0_i32_0 = arith.constant 0 : i32
    %c0_i32_1 = arith.constant 0 : i32
    %c0_i32_2 = arith.constant 0 : i32
    return %c0_i32, %c0_i32_0, %c0_i32_1 : i32, i32, i32
  }
  func.func @transform_4(%arg0: i32) -> (i32, i32) {
    %c0_i32 = arith.constant 0 : i32
    %c0_i32_0 = arith.constant 0 : i32
    %c0_i32_1 = arith.constant 0 : i32
    return %c0_i32, %c0_i32_0 : i32, i32
  }
  func.func @transform_5(%arg0: i32) -> (i32, i32) {
    %c0_i32 = arith.constant 0 : i32
    %c0_i32_0 = arith.constant 0 : i32
    %c0_i32_1 = arith.constant 0 : i32
    return %c0_i32, %c0_i32_0 : i32, i32
  }
  func.func @transform_6(%arg0: i32) -> (i32, i32) {
    %c0_i32 = arith.constant 0 : i32
    %c0_i32_0 = arith.constant 0 : i32
    %c0_i32_1 = arith.constant 0 : i32
    return %c0_i32, %c0_i32_0 : i32, i32
  }
  func.func @transform_7(%arg0: i32) -> (i32, i32) {
    %c0_i32 = arith.constant 0 : i32
    %c0_i32_0 = arith.constant 0 : i32
    %c0_i32_1 = arith.constant 0 : i32
    return %c0_i32, %c0_i32_0 : i32, i32
  }
  func.func @transform_8(%arg0: i32) -> (i32, i32) {
    %c0_i32 = arith.constant 0 : i32
    %c0_i32_0 = arith.constant 0 : i32
    %c0_i32_1 = arith.constant 0 : i32
    return %c0_i32, %c0_i32_0 : i32, i32
  }
  func.func @transform_9(%arg0: i32) -> (i32, i32) {
    %c0_i32 = arith.constant 0 : i32
    %c0_i32_0 = arith.constant 0 : i32
    %c0_i32_1 = arith.constant 0 : i32
    return %c0_i32, %c0_i32_0 : i32, i32
  }
  func.func @transform_10(%arg0: i32) -> (i32, i32, i32) {
    %c0_i32 = arith.constant 0 : i32
    %c0_i32_0 = arith.constant 0 : i32
    %c0_i32_1 = arith.constant 0 : i32
    %c0_i32_2 = arith.constant 0 : i32
    return %c0_i32, %c0_i32_0, %c0_i32_1 : i32, i32, i32
  }
  func.func @transform_11(%arg0: i32) -> (i32, i32, i32) {
    %c0_i32 = arith.constant 0 : i32
    %c0_i32_0 = arith.constant 0 : i32
    %c0_i32_1 = arith.constant 0 : i32
    %c0_i32_2 = arith.constant 0 : i32
    return %c0_i32, %c0_i32_0, %c0_i32_1 : i32, i32, i32
  }
  func.func @transform_12(%arg0: i32) -> (i32, i32, i32) {
    %c0_i32 = arith.constant 0 : i32
    %c0_i32_0 = arith.constant 0 : i32
    %c0_i32_1 = arith.constant 0 : i32
    %c0_i32_2 = arith.constant 0 : i32
    return %c0_i32, %c0_i32_0, %c0_i32_1 : i32, i32, i32
  }
  func.func @transform_13(%arg0: i32) -> (i32, i32, i32) {
    %c0_i32 = arith.constant 0 : i32
    %c0_i32_0 = arith.constant 0 : i32
    %c0_i32_1 = arith.constant 0 : i32
    %c0_i32_2 = arith.constant 0 : i32
    return %c0_i32, %c0_i32_0, %c0_i32_1 : i32, i32, i32
  }
  func.func @transform_14(%arg0: i32) -> (i32, i32, i32) {
    %c0_i32 = arith.constant 0 : i32
    %c0_i32_0 = arith.constant 0 : i32
    %c0_i32_1 = arith.constant 0 : i32
    %c0_i32_2 = arith.constant 0 : i32
    return %c0_i32, %c0_i32_0, %c0_i32_1 : i32, i32, i32
  }
  func.func @transform_15(%arg0: i32) -> (i32, i32, i32) {
    %c0_i32 = arith.constant 0 : i32
    %c0_i32_0 = arith.constant 0 : i32
    %c0_i32_1 = arith.constant 0 : i32
    %c0_i32_2 = arith.constant 0 : i32
    return %c0_i32, %c0_i32_0, %c0_i32_1 : i32, i32, i32
  }
  func.func @transform_16(%arg0: i32) -> (i32, i32, i32) {
    %c0_i32 = arith.constant 0 : i32
    %c0_i32_0 = arith.constant 0 : i32
    %c0_i32_1 = arith.constant 0 : i32
    %c0_i32_2 = arith.constant 0 : i32
    return %c0_i32, %c0_i32_0, %c0_i32_1 : i32, i32, i32
  }
  func.func @transform_17(%arg0: i32) -> (i32, i32, i32) {
    %c0_i32 = arith.constant 0 : i32
    %c0_i32_0 = arith.constant 0 : i32
    %c0_i32_1 = arith.constant 0 : i32
    %c0_i32_2 = arith.constant 0 : i32
    return %c0_i32, %c0_i32_0, %c0_i32_1 : i32, i32, i32
  }
  func.func @transform_18(%arg0: i32) -> (i32, i32, i32) {
    %c0_i32 = arith.constant 0 : i32
    %c0_i32_0 = arith.constant 0 : i32
    %c0_i32_1 = arith.constant 0 : i32
    %c0_i32_2 = arith.constant 0 : i32
    return %c0_i32, %c0_i32_0, %c0_i32_1 : i32, i32, i32
  }
  func.func @transform_19(%arg0: i32) -> (i32, i32, i32) {
    %c0_i32 = arith.constant 0 : i32
    %c0_i32_0 = arith.constant 0 : i32
    %c0_i32_1 = arith.constant 0 : i32
    %c0_i32_2 = arith.constant 0 : i32
    return %c0_i32, %c0_i32_0, %c0_i32_1 : i32, i32, i32
  }
  func.func @transform_20(%arg0: i32) -> (i32, i32, i32) {
    %c0_i32 = arith.constant 0 : i32
    %c0_i32_0 = arith.constant 0 : i32
    %c0_i32_1 = arith.constant 0 : i32
    %c0_i32_2 = arith.constant 0 : i32
    return %c0_i32, %c0_i32_0, %c0_i32_1 : i32, i32, i32
  }
  func.func @transform_21(%arg0: i32) -> (i32, i32, i32) {
    %c0_i32 = arith.constant 0 : i32
    %c0_i32_0 = arith.constant 0 : i32
    %c0_i32_1 = arith.constant 0 : i32
    %c0_i32_2 = arith.constant 0 : i32
    return %c0_i32, %c0_i32_0, %c0_i32_1 : i32, i32, i32
  }
  func.func @transform_22(%arg0: i32) -> (i32, i32, i32) {
    %c0_i32 = arith.constant 0 : i32
    %c0_i32_0 = arith.constant 0 : i32
    %c0_i32_1 = arith.constant 0 : i32
    %c0_i32_2 = arith.constant 0 : i32
    return %c0_i32, %c0_i32_0, %c0_i32_1 : i32, i32, i32
  }
  func.func @transform_23(%arg0: i32) -> (i32, i32, i32, i32) {
    %c0_i32 = arith.constant 0 : i32
    %c0_i32_0 = arith.constant 0 : i32
    %c0_i32_1 = arith.constant 0 : i32
    %c0_i32_2 = arith.constant 0 : i32
    return %c0_i32, %arg0, %c0_i32_0, %c0_i32_1 : i32, i32, i32, i32
  }
}

</mosaic_0001>

<llo_original>
// kernel: forward_looped_ab.1
$region0: #{forward_looped_ab.1}
  #allocation0 [shape = 'u32[]', space=smem, size = 0x4, offset = 0x4, fixed_abs, tag = 'smem constant byte address 0x4 - core index']
  #allocation1 [shape = 'u32[144,128]{1,0:T(1,128)}', space=vmem, size = 0x12000, scoped, tag = 'internal scratch']
  #allocation2 [shape = 'f32[1,1]{1,0:T(1,128)S(1)}', space=vmem, size = 0x200, scoped, tag = 'scoped memory for forward_looped_ab.1']
  %s0 = inlined_call_operand.vmem [shape: f32[32,4], index: 0, kind: input, shape index: {}]
  %s1 = inlined_call_operand.vmem [shape: f32[32,32], index: 1, kind: input, shape index: {}]
  %s2 = inlined_call_operand.vmem [shape: f32[1,32,32], index: 2, kind: input, shape index: {}]
  %s3 = inlined_call_operand.vmem [shape: bf16[4,1,32], index: 3, kind: input, shape index: {}]
  %s4 = inlined_call_operand.vmem [shape: bf16[4,32], index: 4, kind: input, shape index: {}]
  %s5 = inlined_call_operand.vmem [shape: f32[1,32], index: 5, kind: input, shape index: {}]
  %s6 = inlined_call_operand.vmem [shape: f32[1,32], index: 6, kind: input, shape index: {}]
  %s7 = inlined_call_operand.vmem [shape: f32[1,32], index: 7, kind: input, shape index: {}]
  %s8 = inlined_call_operand.vmem [shape: bf16[1,32], index: 8, kind: input, shape index: {}]
  %s9 = inlined_call_operand.<no memory space> [shape: f32[1,1], index: 9, kind: input, shape index: {}]
  %s10 = inlined_call_operand.vmem [shape: f32[8,1,32], index: 10, kind: input, shape index: {}]
  %s11 = inlined_call_operand.vmem [shape: bf16[2,32,32], index: 11, kind: input, shape index: {}]
  %s12 = inlined_call_operand.vmem [shape: bf16[2,32,32], index: 12, kind: input, shape index: {}]
  %s13 = inlined_call_operand.vmem [shape: bf16[2,32,32], index: 13, kind: input, shape index: {}]
  %s14 = inlined_call_operand.vmem [shape: f32[2,1,32], index: 14, kind: input, shape index: {}]
  %s15 = inlined_call_operand.vmem [shape: f32[2,1,32], index: 15, kind: input, shape index: {}]
  %s16 = inlined_call_operand.vmem [shape: f32[2,1,32], index: 16, kind: input, shape index: {}]
  %s17 = inlined_call_operand.vmem [shape: bf16[2,32,32], index: 17, kind: input, shape index: {}]
  %s18 = inlined_call_operand.vmem [shape: f32[2,1,32], index: 18, kind: input, shape index: {}]
  %s19 = inlined_call_operand.vmem [shape: bf16[2,32,128], index: 19, kind: input, shape index: {}]
  %s20 = inlined_call_operand.vmem [shape: f32[2,1,128], index: 20, kind: input, shape index: {}]
  %s21 = inlined_call_operand.vmem [shape: bf16[2,128,32], index: 21, kind: input, shape index: {}]
  %s22 = inlined_call_operand.vmem [shape: f32[2,1,32], index: 22, kind: input, shape index: {}]
  %s23 = inlined_call_operand.vmem [shape: f32[3,1,1,32], index: 23, kind: output, shape index: {}]
  %s24 = sld [smem:[#allocation0]]
  $region102: #{forward_looped_ab.1} parent=0
    _
  %s26 = ssub.s32 1, %s24
  %s27 = scalar_select 0, %s26, %s24
  %v28 = vstv %s9
  %29 = vst [vmem:[#allocation2] sm:$0x1] %v28
  // Predicated region
  $region2: #{forward_looped_ab.1} parent=0 // pred_check
    _
  $region3: #{forward_looped_ab.1} parent=0 // pred_check_branch
    %31 = sbr.rel (0) target = $region5
  $region4: #{forward_looped_ab.1} parent=0 // pred_region
    _
  $region5: #{forward_looped_ab.1} parent=0 // pred_fallthru
    _
  // Predicated region
  $region6: #{forward_looped_ab.1} parent=0 // pred_check
    _
  $region7: #{forward_looped_ab.1} parent=0 // pred_check_branch
    %33 = sbr.rel (0) target = $region9
  $region8: #{forward_looped_ab.1} parent=0 // pred_region
    _
  $region9: #{forward_looped_ab.1} parent=0 // pred_fallthru
    _
  // Predicated region
  $region10: #{forward_looped_ab.1} parent=0 // pred_check
    _
  $region11: #{forward_looped_ab.1} parent=0 // pred_check_branch
    %35 = sbr.rel (0) target = $region13
  $region12: #{forward_looped_ab.1} parent=0 // pred_region
    _
  $region13: #{forward_looped_ab.1} parent=0 // pred_fallthru
    _
  // Predicated region
  $region14: #{forward_looped_ab.1} parent=0 // pred_check
    _
  $region15: #{forward_looped_ab.1} parent=0 // pred_check_branch
    %37 = sbr.rel (0) target = $region17
  $region16: #{forward_looped_ab.1} parent=0 // pred_region
    _
  $region17: #{forward_looped_ab.1} parent=0 // pred_fallthru
    _
  // Predicated region
  $region18: #{forward_looped_ab.1} parent=0 // pred_check
    _
  $region19: #{forward_looped_ab.1} parent=0 // pred_check_branch
    %39 = sbr.rel (0) target = $region21
  $region20: #{forward_looped_ab.1} parent=0 // pred_region
    _
  $region21: #{forward_looped_ab.1} parent=0 // pred_fallthru
    _
  // Predicated region
  $region22: #{forward_looped_ab.1} parent=0 // pred_check
    _
  $region23: #{forward_looped_ab.1} parent=0 // pred_check_branch
    %41 = sbr.rel (0) target = $region25
  $region24: #{forward_looped_ab.1} parent=0 // pred_region
    _
  $region25: #{forward_looped_ab.1} parent=0 // pred_fallthru
    _
  // Predicated region
  $region26: #{forward_looped_ab.1} parent=0 // pred_check
    _
  $region27: #{forward_looped_ab.1} parent=0 // pred_check_branch
    %43 = sbr.rel (0) target = $region29
  $region28: #{forward_looped_ab.1} parent=0 // pred_region
    _
  $region29: #{forward_looped_ab.1} parent=0 // pred_fallthru
    _
  // Predicated region
  $region30: #{forward_looped_ab.1} parent=0 // pred_check
    _
  $region31: #{forward_looped_ab.1} parent=0 // pred_check_branch
    %45 = sbr.rel (0) target = $region33
  $region32: #{forward_looped_ab.1} parent=0 // pred_region
    _
  $region33: #{forward_looped_ab.1} parent=0 // pred_fallthru
    _
  // Predicated region
  $region34: #{forward_looped_ab.1} parent=0 // pred_check
    _
  $region35: #{forward_looped_ab.1} parent=0 // pred_check_branch
    %47 = sbr.rel (0) target = $region37
  $region36: #{forward_looped_ab.1} parent=0 // pred_region
    _
  $region37: #{forward_looped_ab.1} parent=0 // pred_fallthru
    _
  // Predicated region
  $region38: #{forward_looped_ab.1} parent=0 // pred_check
    _
  $region39: #{forward_looped_ab.1} parent=0 // pred_check_branch
    %49 = sbr.rel (0) target = $region41
  $region40: #{forward_looped_ab.1} parent=0 // pred_region
    _
  $region41: #{forward_looped_ab.1} parent=0 // pred_fallthru
    _
  // Predicated region
  $region42: #{forward_looped_ab.1} parent=0 // pred_check
    _
  $region43: #{forward_looped_ab.1} parent=0 // pred_check_branch
    %51 = sbr.rel (0) target = $region45
  $region44: #{forward_looped_ab.1} parent=0 // pred_region
    _
  $region45: #{forward_looped_ab.1} parent=0 // pred_fallthru
    _
  // Predicated region
  $region46: #{forward_looped_ab.1} parent=0 // pred_check
    _
  $region47: #{forward_looped_ab.1} parent=0 // pred_check_branch
    %53 = sbr.rel (0) target = $region49
  $region48: #{forward_looped_ab.1} parent=0 // pred_region
    _
  $region49: #{forward_looped_ab.1} parent=0 // pred_fallthru
    _
  // Predicated region
  $region50: #{forward_looped_ab.1} parent=0 // pred_check
    _
  $region51: #{forward_looped_ab.1} parent=0 // pred_check_branch
    %55 = sbr.rel (0) target = $region53
  $region52: #{forward_looped_ab.1} parent=0 // pred_region
    _
  $region53: #{forward_looped_ab.1} parent=0 // pred_fallthru
    _
  // Predicated region
  $region54: #{forward_looped_ab.1} parent=0 // pred_check
    _
  $region55: #{forward_looped_ab.1} parent=0 // pred_check_branch
    %57 = sbr.rel (0) target = $region57
  $region56: #{forward_looped_ab.1} parent=0 // pred_region
    _
  $region57: #{forward_looped_ab.1} parent=0 // pred_fallthru
    _
  // Predicated region
  $region58: #{forward_looped_ab.1} parent=0 // pred_check
    _
  $region59: #{forward_looped_ab.1} parent=0 // pred_check_branch
    %59 = sbr.rel (0) target = $region61
  $region60: #{forward_looped_ab.1} parent=0 // pred_region
    _
  $region61: #{forward_looped_ab.1} parent=0 // pred_fallthru
    _
  // Predicated region
  $region62: #{forward_looped_ab.1} parent=0 // pred_check
    _
  $region63: #{forward_looped_ab.1} parent=0 // pred_check_branch
    %61 = sbr.rel (0) target = $region65
  $region64: #{forward_looped_ab.1} parent=0 // pred_region
    _
  $region65: #{forward_looped_ab.1} parent=0 // pred_fallthru
    _
  // Predicated region
  $region66: #{forward_looped_ab.1} parent=0 // pred_check
    _
  $region67: #{forward_looped_ab.1} parent=0 // pred_check_branch
    %63 = sbr.rel (0) target = $region69
  $region68: #{forward_looped_ab.1} parent=0 // pred_region
    _
  $region69: #{forward_looped_ab.1} parent=0 // pred_fallthru
    _
  // Predicated region
  $region70: #{forward_looped_ab.1} parent=0 // pred_check
    _
  $region71: #{forward_looped_ab.1} parent=0 // pred_check_branch
    %65 = sbr.rel (0) target = $region73
  $region72: #{forward_looped_ab.1} parent=0 // pred_region
    _
  $region73: #{forward_looped_ab.1} parent=0 // pred_fallthru
    _
  // Predicated region
  $region74: #{forward_looped_ab.1} parent=0 // pred_check
    _
  $region75: #{forward_looped_ab.1} parent=0 // pred_check_branch
    %67 = sbr.rel (0) target = $region77
  $region76: #{forward_looped_ab.1} parent=0 // pred_region
    _
  $region77: #{forward_looped_ab.1} parent=0 // pred_fallthru
    _
  // Predicated region
  $region78: #{forward_looped_ab.1} parent=0 // pred_check
    _
  $region79: #{forward_looped_ab.1} parent=0 // pred_check_branch
    %69 = sbr.rel (0) target = $region81
  $region80: #{forward_looped_ab.1} parent=0 // pred_region
    _
  $region81: #{forward_looped_ab.1} parent=0 // pred_fallthru
    _
  // Predicated region
  $region82: #{forward_looped_ab.1} parent=0 // pred_check
    _
  $region83: #{forward_looped_ab.1} parent=0 // pred_check_branch
    %71 = sbr.rel (0) target = $region85
  $region84: #{forward_looped_ab.1} parent=0 // pred_region
    _
  $region85: #{forward_looped_ab.1} parent=0 // pred_fallthru
    _
  // Predicated region
  $region86: #{forward_looped_ab.1} parent=0 // pred_check
    _
  $region87: #{forward_looped_ab.1} parent=0 // pred_check_branch
    %73 = sbr.rel (0) target = $region89
  $region88: #{forward_looped_ab.1} parent=0 // pred_region
    _
  $region89: #{forward_looped_ab.1} parent=0 // pred_fallthru
    _
  // Predicated region
  $region90: #{forward_looped_ab.1} parent=0 // pred_check
    _
  $region91: #{forward_looped_ab.1} parent=0 // pred_check_branch
    %75 = sbr.rel (0) target = $region93
  $region92: #{forward_looped_ab.1} parent=0 // pred_region
    _
  $region93: #{forward_looped_ab.1} parent=0 // pred_fallthru
    _
  %v77 = vld [vmem:[%s2] sm:$0xff]
  %v78 = vld [vmem:[%s2 + $0x8] sm:$0xff]
  %v79 = vld [vmem:[%s2 + $0x10] sm:$0xff]
  %v80 = vld [vmem:[%s2 + $0x18] sm:$0xff]
  %v81 = vld [vmem:[%s3] sm:$0x1]
  %s82 = scalar_lea.vmem %s3, 1
  %v83 = vld [vmem:[%s82] sm:$0x1]
  %s84 = scalar_lea.vmem %s3, 2
  %v85 = vld [vmem:[%s84] sm:$0x1]
  %s86 = scalar_lea.vmem %s3, 3
  %v87 = vld [vmem:[%s86] sm:$0x1]
  %v88 = vld [vmem:[%s0] sm:$0xff]
  %v89 = vld [vmem:[%s0 + $0x8] sm:$0xff]
  %v90 = vld [vmem:[%s0 + $0x10] sm:$0xff]
  %v91 = vld [vmem:[%s0 + $0x18] sm:$0xff]
  %v92 = vpack.c.bf16 %v89, %v88
  %v93 = vpack.c.bf16 %v91, %v90
  %v94 = vld [vmem:[%s4] sm:$0x3]
  %v95 = vld [vmem:[%s5] sm:$0x1]
  %v97 = vlaneseq
  %v98 = vshrl.u32 %v97, 7
  %v99 = vsub.s32 0, %v98
  %v100 = vrot.slane %v95, %v99
  %vm102 = vcmask 31744
  %v104 = vsel %vm102, %v92, 0
  %v107 = vsel %vm102, %v93, 0
  %vm109 = vcmask 1041408
  %v111 = vsel %vm109, %v94, 0
  %113 = vmatprep.subr.bf16.mxu0 0
  %114 = vmatpush1.bf16.msra.mxu0 %v111
  %115 = vmatprep.subr.bf16.mxu0 0
  %116 = vmatpush1.bf16.msra.mxu0 0
  %117 = vmatprep.subr.bf16.mxu0 0
  %118 = vmatpush1.bf16.msra.mxu0 0
  %119 = vmatprep.subr.bf16.mxu0 0
  %120 = vmatpush1.bf16.msra.mxu0 0
  %121 = vmatprep.subr.bf16.mxu0 0
  %122 = vmatpush1.bf16.msra.mxu0 0
  %123 = vmatprep.subr.bf16.mxu0 0
  %124 = vmatpush1.bf16.msra.mxu0 0
  %125 = vmatprep.subr.bf16.mxu0 0
  %126 = vmatpush1.bf16.msra.mxu0 0
  %127 = vmatprep.subr.bf16.mxu0 0
  %128 = vmatpush1.bf16.msra.mxu0 0
  %129 = vmatprep.subr.bf16.mxu0 0
  %130 = vmatpush1.bf16.msra.mxu0 0
  %131 = vmatprep.subr.bf16.mxu0 0
  %132 = vmatpush1.bf16.msra.mxu0 0
  %133 = vmatprep.subr.bf16.mxu0 0
  %134 = vmatpush1.bf16.msra.mxu0 0
  %135 = vmatprep.subr.bf16.mxu0 0
  %136 = vmatpush1.bf16.msra.mxu0 0
  %137 = vmatprep.subr.bf16.mxu0 0
  %138 = vmatpush1.bf16.msra.mxu0 0
  %139 = vmatprep.subr.bf16.mxu0 0
  %140 = vmatpush1.bf16.msra.mxu0 0
  %141 = vmatprep.subr.bf16.mxu0 0
  %142 = vmatpush1.bf16.msra.mxu0 0
  %143 = vmatprep.subr.bf16.mxu0 0
  %144 = vmatpush1.bf16.msra.mxu0 0
  %145 = vmatprep.mubr.bf16.mxu0 0
  %146 = vmatmul.mubr.bf16.gmra.mrb[0].mxu0 %v104
  %v147 = vpop.f32.mrb[0].mxu0
  %v148 = vadd.f32 %v100, %v147
  %v149 = vpop.f32.mrb[0].mxu0
  %v150 = vpop.f32.mrb[0].mxu0
  %v151 = vadd.f32 %v100, %v150
  %v152 = vpop.f32.mrb[0].mxu0
  %153 = vmatprep.mubr.bf16.mxu0 0
  %154 = vmatmul.mubr.bf16.gmra.mrb[0].mxu0 %v107
  %v155 = vpop.f32.mrb[0].mxu0
  %v156 = vadd.f32 %v100, %v155
  %v157 = vpop.f32.mrb[0].mxu0
  %v158 = vpop.f32.mrb[0].mxu0
  %v159 = vadd.f32 %v100, %v158
  %v160 = vpop.f32.mrb[0].mxu0
  %161 = vdwg.mxu0
  %v162 = vld [vmem:[%s1] sm:$0xff]
  %v163 = vld [vmem:[%s1 + $0x8] sm:$0xff]
  %v164 = vld [vmem:[%s1 + $0x10] sm:$0xff]
  %v165 = vld [vmem:[%s1 + $0x18] sm:$0xff]
  %v166 = vadd.f32 %v148, %v162
  %v167 = vadd.f32 %v151, %v163
  %v168 = vadd.f32 %v156, %v164
  %v169 = vadd.f32 %v159, %v165
  %v170 = vld [vmem:[%s6] sm:$0x1]
  %v171 = vld [vmem:[%s7] sm:$0x1]
  %v172 = vadd.f32 %v166, 0.0
  %v173 = vadd.f32 %v167, 0.0
  %v174 = vadd.f32 %v168, 0.0
  %v175 = vadd.f32 %v169, 0.0
  %v176 = vld [vmem:[%s10] sm:$0x1]
  %s177 = scalar_lea.vmem %s10, 1
  %v178 = vld [vmem:[%s177] sm:$0x1]
  %vm179 = vcmask 261120
  %v180 = vsel %vm179, %v172, 0.0
  %181 = vadd.xlane.f32.xlu0 %v180
  %v182 = vpop.xlane.xlu0 %181
  %v183 = vsel %vm179, %v173, 0.0
  %184 = vadd.xlane.f32.xlu0 %v183
  %v185 = vpop.xlane.xlu0 %184
  %v186 = vsel %vm179, %v174, 0.0
  %187 = vadd.xlane.f32.xlu0 %v186
  %v188 = vpop.xlane.xlu0 %187
  %v189 = vsel %vm179, %v175, 0.0
  %190 = vadd.xlane.f32.xlu0 %v189
  %v191 = vpop.xlane.xlu0 %190
  %v192 = vmul.f32 %v182, 0.03125
  %v193 = vmul.f32 %v185, 0.03125
  %v194 = vmul.f32 %v188, 0.03125
  %v195 = vmul.f32 %v191, 0.03125
  %v196 = vmul.f32 %v172, %v172
  %v197 = vmul.f32 %v173, %v173
  %v198 = vmul.f32 %v174, %v174
  %v199 = vmul.f32 %v175, %v175
  %v200 = vsel %vm179, %v196, 0.0
  %201 = vadd.xlane.f32.xlu0 %v200
  %v202 = vpop.xlane.xlu0 %201
  %v203 = vsel %vm179, %v197, 0.0
  %204 = vadd.xlane.f32.xlu0 %v203
  %v205 = vpop.xlane.xlu0 %204
  %v206 = vsel %vm179, %v198, 0.0
  %207 = vadd.xlane.f32.xlu0 %v206
  %v208 = vpop.xlane.xlu0 %207
  %v209 = vsel %vm179, %v199, 0.0
  %210 = vadd.xlane.f32.xlu0 %v209
  %v211 = vpop.xlane.xlu0 %210
  %v212 = vmul.f32 %v202, 0.03125
  %v213 = vmul.f32 %v205, 0.03125
  %v214 = vmul.f32 %v208, 0.03125
  %v215 = vmul.f32 %v211, 0.03125
  %v216 = vmul.f32 %v192, %v192
  %v217 = vmul.f32 %v193, %v193
  %v218 = vmul.f32 %v194, %v194
  %v219 = vmul.f32 %v195, %v195
  %v220 = vsub.f32 %v212, %v216
  %v221 = vsub.f32 %v213, %v217
  %v222 = vsub.f32 %v214, %v218
  %v223 = vsub.f32 %v215, %v219
  %v224 = vsub.f32 %v172, %v192
  %v225 = vsub.f32 %v173, %v193
  %v226 = vsub.f32 %v174, %v194
  %v227 = vsub.f32 %v175, %v195
  %v228 = vadd.f32 %v220, 1e-05
  %v229 = vadd.f32 %v221, 1e-05
  %v230 = vadd.f32 %v222, 1e-05
  %v231 = vadd.f32 %v223, 1e-05
  %v232 = vrsqrt.pop %v228
  %v233 = vrsqrt.pop %v229
  %v234 = vrsqrt.pop %v230
  %v235 = vrsqrt.pop %v231
  %v236 = vmul.f32 %v224, %v232
  %v237 = vmul.f32 %v225, %v233
  %v238 = vmul.f32 %v226, %v234
  %v239 = vmul.f32 %v227, %v235
  %v241 = vlaneseq
  %v242 = vshrl.u32 %v241, 7
  %v243 = vsub.s32 0, %v242
  %v244 = vrot.slane %v176, %v243
  %v246 = vmul.f32 %v236, %v244
  %v247 = vmul.f32 %v237, %v244
  %v248 = vmul.f32 %v238, %v244
  %v249 = vmul.f32 %v239, %v244
  %v251 = vlaneseq
  %v252 = vshrl.u32 %v251, 7
  %v253 = vsub.s32 0, %v252
  %v254 = vrot.slane %v178, %v253
  %v256 = vadd.f32 %v246, %v254
  %v257 = vadd.f32 %v247, %v254
  %v258 = vadd.f32 %v248, %v254
  %v259 = vadd.f32 %v249, %v254
  %v260 = vpack.c.bf16 %v257, %v256
  %v261 = vpack.c.bf16 %v259, %v258
  %v262 = vld [vmem:[%s11] sm:$0xf]
  %v263 = vld [vmem:[%s11 + $0x4] sm:$0xf]
  %v264 = vld [vmem:[%s11 + $0x8] sm:$0xf]
  %v265 = vld [vmem:[%s11 + $0xc] sm:$0xf]
  %v266 = vld [vmem:[%s14] sm:$0x1]
  %v268 = vlaneseq
  %v269 = vshrl.u32 %v268, 7
  %v270 = vsub.s32 0, %v269
  %v271 = vrot.slane %v266, %v270
  %v277 = vunpack.c.l.b16 %v262
  %v278 = vunpack.c.l.b16 %v263
  %v279 = vunpack.c.l.b16 %v264
  %v280 = vunpack.c.l.b16 %v265
  %v281 = vpack.c.b16 %v278, %v277
  %v282 = vpack.c.b16 %v280, %v279
  %v286 = vsel %vm179, %v260, 0
  %v289 = vsel %vm179, %v261, 0
  %291 = vmatprep.subr.bf16.mxu0 0
  %292 = vmatpush1.bf16.msra.mxu0 %v281
  %293 = vmatprep.subr.bf16.mxu0 0
  %294 = vmatpush1.bf16.msra.mxu0 %v282
  %295 = vmatprep.subr.bf16.mxu0 0
  %296 = vmatpush1.bf16.msra.mxu0 0
  %297 = vmatprep.subr.bf16.mxu0 0
  %298 = vmatpush1.bf16.msra.mxu0 0
  %299 = vmatprep.subr.bf16.mxu0 0
  %300 = vmatpush1.bf16.msra.mxu0 0
  %301 = vmatprep.subr.bf16.mxu0 0
  %302 = vmatpush1.bf16.msra.mxu0 0
  %303 = vmatprep.subr.bf16.mxu0 0
  %304 = vmatpush1.bf16.msra.mxu0 0
  %305 = vmatprep.subr.bf16.mxu0 0
  %306 = vmatpush1.bf16.msra.mxu0 0
  %307 = vmatprep.subr.bf16.mxu0 0
  %308 = vmatpush1.bf16.msra.mxu0 0
  %309 = vmatprep.subr.bf16.mxu0 0
  %310 = vmatpush1.bf16.msra.mxu0 0
  %311 = vmatprep.subr.bf16.mxu0 0
  %312 = vmatpush1.bf16.msra.mxu0 0
  %313 = vmatprep.subr.bf16.mxu0 0
  %314 = vmatpush1.bf16.msra.mxu0 0
  %315 = vmatprep.subr.bf16.mxu0 0
  %316 = vmatpush1.bf16.msra.mxu0 0
  %317 = vmatprep.subr.bf16.mxu0 0
  %318 = vmatpush1.bf16.msra.mxu0 0
  %319 = vmatprep.subr.bf16.mxu0 0
  %320 = vmatpush1.bf16.msra.mxu0 0
  %321 = vmatprep.subr.bf16.mxu0 0
  %322 = vmatpush1.bf16.msra.mxu0 0
  %323 = vmatprep.mubr.bf16.mxu0 0
  %324 = vmatmul.mubr.bf16.gmra.mrb[0].mxu0 %v286
  %v325 = vpop.f32.mrb[0].mxu0
  %v326 = vadd.f32 %v271, %v325
  %v327 = vpop.f32.mrb[0].mxu0
  %v328 = vpop.f32.mrb[0].mxu0
  %v329 = vadd.f32 %v271, %v328
  %v330 = vpop.f32.mrb[0].mxu0
  %331 = vmatprep.mubr.bf16.mxu0 0
  %332 = vmatmul.mubr.bf16.gmra.mrb[0].mxu0 %v289
  %v333 = vpop.f32.mrb[0].mxu0
  %v334 = vadd.f32 %v271, %v333
  %v335 = vpop.f32.mrb[0].mxu0
  %v336 = vpop.f32.mrb[0].mxu0
  %v337 = vadd.f32 %v271, %v336
  %v338 = vpop.f32.mrb[0].mxu0
  %339 = vdwg.mxu0
  %v340 = vld [vmem:[%s12] sm:$0xf]
  %v341 = vld [vmem:[%s12 + $0x4] sm:$0xf]
  %v342 = vld [vmem:[%s12 + $0x8] sm:$0xf]
  %v343 = vld [vmem:[%s12 + $0xc] sm:$0xf]
  %v344 = vld [vmem:[%s15] sm:$0x1]
  %v346 = vlaneseq
  %v347 = vshrl.u32 %v346, 7
  %v348 = vsub.s32 0, %v347
  %v349 = vrot.slane %v344, %v348
  %v355 = vunpack.c.l.b16 %v340
  %v356 = vunpack.c.l.b16 %v341
  %v357 = vunpack.c.l.b16 %v342
  %v358 = vunpack.c.l.b16 %v343
  %v359 = vpack.c.b16 %v356, %v355
  %v360 = vpack.c.b16 %v358, %v357
  %363 = vmatprep.subr.bf16.mxu0 0
  %364 = vmatpush1.bf16.msra.mxu0 %v359
  %365 = vmatprep.subr.bf16.mxu0 0
  %366 = vmatpush1.bf16.msra.mxu0 %v360
  %367 = vmatprep.subr.bf16.mxu0 0
  %368 = vmatpush1.bf16.msra.mxu0 0
  %369 = vmatprep.subr.bf16.mxu0 0
  %370 = vmatpush1.bf16.msra.mxu0 0
  %371 = vmatprep.subr.bf16.mxu0 0
  %372 = vmatpush1.bf16.msra.mxu0 0
  %373 = vmatprep.subr.bf16.mxu0 0
  %374 = vmatpush1.bf16.msra.mxu0 0
  %375 = vmatprep.subr.bf16.mxu0 0
  %376 = vmatpush1.bf16.msra.mxu0 0
  %377 = vmatprep.subr.bf16.mxu0 0
  %378 = vmatpush1.bf16.msra.mxu0 0
  %379 = vmatprep.subr.bf16.mxu0 0
  %380 = vmatpush1.bf16.msra.mxu0 0
  %381 = vmatprep.subr.bf16.mxu0 0
  %382 = vmatpush1.bf16.msra.mxu0 0
  %383 = vmatprep.subr.bf16.mxu0 0
  %384 = vmatpush1.bf16.msra.mxu0 0
  %385 = vmatprep.subr.bf16.mxu0 0
  %386 = vmatpush1.bf16.msra.mxu0 0
  %387 = vmatprep.subr.bf16.mxu0 0
  %388 = vmatpush1.bf16.msra.mxu0 0
  %389 = vmatprep.subr.bf16.mxu0 0
  %390 = vmatpush1.bf16.msra.mxu0 0
  %391 = vmatprep.subr.bf16.mxu0 0
  %392 = vmatpush1.bf16.msra.mxu0 0
  %393 = vmatprep.subr.bf16.mxu0 0
  %394 = vmatpush1.bf16.msra.mxu0 0
  %395 = vmatprep.mubr.bf16.mxu0 0
  %396 = vmatmul.mubr.bf16.gmra.mrb[0].mxu0 %v286
  %v397 = vpop.f32.mrb[0].mxu0
  %v398 = vadd.f32 %v349, %v397
  %v399 = vpop.f32.mrb[0].mxu0
  %v400 = vpop.f32.mrb[0].mxu0
  %v401 = vadd.f32 %v349, %v400
  %v402 = vpop.f32.mrb[0].mxu0
  %403 = vmatprep.mubr.bf16.mxu0 0
  %404 = vmatmul.mubr.bf16.gmra.mrb[0].mxu0 %v289
  %v405 = vpop.f32.mrb[0].mxu0
  %v406 = vadd.f32 %v349, %v405
  %v407 = vpop.f32.mrb[0].mxu0
  %v408 = vpop.f32.mrb[0].mxu0
  %v409 = vadd.f32 %v349, %v408
  %v410 = vpop.f32.mrb[0].mxu0
  %411 = vdwg.mxu0
  %v412 = vld [vmem:[%s13] sm:$0xf]
  %v413 = vld [vmem:[%s13 + $0x4] sm:$0xf]
  %v414 = vld [vmem:[%s13 + $0x8] sm:$0xf]
  %v415 = vld [vmem:[%s13 + $0xc] sm:$0xf]
  %v416 = vld [vmem:[%s16] sm:$0x1]
  %v418 = vlaneseq
  %v419 = vshrl.u32 %v418, 7
  %v420 = vsub.s32 0, %v419
  %v421 = vrot.slane %v416, %v420
  %v427 = vunpack.c.l.b16 %v412
  %v428 = vunpack.c.l.b16 %v413
  %v429 = vunpack.c.l.b16 %v414
  %v430 = vunpack.c.l.b16 %v415
  %v431 = vpack.c.b16 %v428, %v427
  %v432 = vpack.c.b16 %v430, %v429
  %435 = vmatprep.subr.bf16.mxu0 0
  %436 = vmatpush1.bf16.msra.mxu0 %v431
  %437 = vmatprep.subr.bf16.mxu0 0
  %438 = vmatpush1.bf16.msra.mxu0 %v432
  %439 = vmatprep.subr.bf16.mxu0 0
  %440 = vmatpush1.bf16.msra.mxu0 0
  %441 = vmatprep.subr.bf16.mxu0 0
  %442 = vmatpush1.bf16.msra.mxu0 0
  %443 = vmatprep.subr.bf16.mxu0 0
  %444 = vmatpush1.bf16.msra.mxu0 0
  %445 = vmatprep.subr.bf16.mxu0 0
  %446 = vmatpush1.bf16.msra.mxu0 0
  %447 = vmatprep.subr.bf16.mxu0 0
  %448 = vmatpush1.bf16.msra.mxu0 0
  %449 = vmatprep.subr.bf16.mxu0 0
  %450 = vmatpush1.bf16.msra.mxu0 0
  %451 = vmatprep.subr.bf16.mxu0 0
  %452 = vmatpush1.bf16.msra.mxu0 0
  %453 = vmatprep.subr.bf16.mxu0 0
  %454 = vmatpush1.bf16.msra.mxu0 0
  %455 = vmatprep.subr.bf16.mxu0 0
  %456 = vmatpush1.bf16.msra.mxu0 0
  %457 = vmatprep.subr.bf16.mxu0 0
  %458 = vmatpush1.bf16.msra.mxu0 0
  %459 = vmatprep.subr.bf16.mxu0 0
  %460 = vmatpush1.bf16.msra.mxu0 0
  %461 = vmatprep.subr.bf16.mxu0 0
  %462 = vmatpush1.bf16.msra.mxu0 0
  %463 = vmatprep.subr.bf16.mxu0 0
  %464 = vmatpush1.bf16.msra.mxu0 0
  %465 = vmatprep.subr.bf16.mxu0 0
  %466 = vmatpush1.bf16.msra.mxu0 0
  %467 = vmatprep.mubr.bf16.mxu0 0
  %468 = vmatmul.mubr.bf16.gmra.mrb[0].mxu0 %v286
  %v469 = vpop.f32.mrb[0].mxu0
  %v470 = vadd.f32 %v421, %v469
  %v471 = vpop.f32.mrb[0].mxu0
  %v472 = vpop.f32.mrb[0].mxu0
  %v473 = vadd.f32 %v421, %v472
  %v474 = vpop.f32.mrb[0].mxu0
  %475 = vmatprep.mubr.bf16.mxu0 0
  %476 = vmatmul.mubr.bf16.gmra.mrb[0].mxu0 %v289
  %v477 = vpop.f32.mrb[0].mxu0
  %v478 = vadd.f32 %v421, %v477
  %v479 = vpop.f32.mrb[0].mxu0
  %v480 = vpop.f32.mrb[0].mxu0
  %v481 = vadd.f32 %v421, %v480
  %v482 = vpop.f32.mrb[0].mxu0
  %483 = vdwg.mxu0
  %v484 = vpack.c.bf16 %v329, %v326
  %v485 = vpack.c.bf16 %v337, %v334
  %v486 = vpack.c.bf16 %v401, %v398
  %v487 = vpack.c.bf16 %v409, %v406
  %v488 = vpack.c.bf16 %v473, %v470
  %v489 = vpack.c.bf16 %v481, %v478
  %v491 = vpack.i.b16 %v81, %v81
  %v493 = vlaneseq
  %v494 = vshrl.u32 %v493, 7
  %v495 = vsub.s32 0, %v494
  %v496 = vrot.slane %v491, %v495
  %v497 = vmul.bf16 %v484, %v496
  %v498 = vmul.bf16 %v485, %v496
  %v500 = vsel %vm179, %v497, 0
  %v503 = vsel %vm179, %v498, 0
  %v506 = vsel %vm179, %v486, 0
  %v509 = vsel %vm179, %v487, 0
  %511 = vmatprep.subr.bf16.mxu0 0
  %512 = vmatpush1.bf16.xpose.msra.mxu0 %v506
  %513 = vmatprep.subr.bf16.mxu0 0
  %514 = vmatpush1.bf16.xpose.msra.mxu0 %v509
  %515 = vmatprep.subr.bf16.mxu0 0
  %516 = vmatpush1.bf16.xpose.msra.mxu0 0
  %517 = vmatprep.subr.bf16.mxu0 0
  %518 = vmatpush1.bf16.xpose.msra.mxu0 0
  %519 = vmatprep.subr.bf16.mxu0 0
  %520 = vmatpush1.bf16.xpose.msra.mxu0 0
  %521 = vmatprep.subr.bf16.mxu0 0
  %522 = vmatpush1.bf16.xpose.msra.mxu0 0
  %523 = vmatprep.subr.bf16.mxu0 0
  %524 = vmatpush1.bf16.xpose.msra.mxu0 0
  %525 = vmatprep.subr.bf16.mxu0 0
  %526 = vmatpush1.bf16.xpose.msra.mxu0 0
  %527 = vmatprep.subr.bf16.mxu0 0
  %528 = vmatpush1.bf16.xpose.msra.mxu0 0
  %529 = vmatprep.subr.bf16.mxu0 0
  %530 = vmatpush1.bf16.xpose.msra.mxu0 0
  %531 = vmatprep.subr.bf16.mxu0 0
  %532 = vmatpush1.bf16.xpose.msra.mxu0 0
  %533 = vmatprep.subr.bf16.mxu0 0
  %534 = vmatpush1.bf16.xpose.msra.mxu0 0
  %535 = vmatprep.subr.bf16.mxu0 0
  %536 = vmatpush1.bf16.xpose.msra.mxu0 0
  %537 = vmatprep.subr.bf16.mxu0 0
  %538 = vmatpush1.bf16.xpose.msra.mxu0 0
  %539 = vmatprep.subr.bf16.mxu0 0
  %540 = vmatpush1.bf16.xpose.msra.mxu0 0
  %541 = vmatprep.subr.bf16.mxu0 0
  %542 = vmatpush1.bf16.xpose.msra.mxu0 0
  %543 = vmatprep.mubr.bf16.mxu0 0
  %544 = vmatmul.mubr.bf16.gmra.mrb[0].mxu0 %v500
  %v545 = vpop.f32.mrb[0].mxu0
  %v546 = vadd.f32 %v77, %v545
  %v547 = vpop.f32.mrb[0].mxu0
  %v548 = vpop.f32.mrb[0].mxu0
  %v549 = vadd.f32 %v78, %v548
  %v550 = vpop.f32.mrb[0].mxu0
  %551 = vmatprep.mubr.bf16.mxu0 0
  %552 = vmatmul.mubr.bf16.gmra.mrb[0].mxu0 %v503
  %v553 = vpop.f32.mrb[0].mxu0
  %v554 = vadd.f32 %v79, %v553
  %v555 = vpop.f32.mrb[0].mxu0
  %v556 = vpop.f32.mrb[0].mxu0
  %v557 = vadd.f32 %v80, %v556
  %v558 = vpop.f32.mrb[0].mxu0
  %559 = vdwg.mxu0
  %v560 = vsel %vm179, %v546, -inf
  %561 = vmax.xlane.f32.xlu0 %v560
  %v562 = vpop.xlane.xlu0 %561
  %v563 = vsel %vm179, %v549, -inf
  %564 = vmax.xlane.f32.xlu0 %v563
  %v565 = vpop.xlane.xlu0 %564
  %v566 = vsel %vm179, %v554, -inf
  %567 = vmax.xlane.f32.xlu0 %v566
  %v568 = vpop.xlane.xlu0 %567
  %v569 = vsel %vm179, %v557, -inf
  %570 = vmax.xlane.f32.xlu0 %v569
  %v571 = vpop.xlane.xlu0 %570
  %v572 = vsub.f32 %v546, %v562
  %v573 = vsub.f32 %v549, %v565
  %v574 = vsub.f32 %v554, %v568
  %v575 = vsub.f32 %v557, %v571
  %v576 = vmul.f32 %v572, 1.442695
  %v577 = vpow.pop %v576
  %v578 = vmul.f32 %v573, 1.442695
  %v579 = vpow.pop %v578
  %v580 = vmul.f32 %v574, 1.442695
  %v581 = vpow.pop %v580
  %v582 = vmul.f32 %v575, 1.442695
  %v583 = vpow.pop %v582
  %v584 = vsel %vm179, %v577, 0.0
  %585 = vadd.xlane.f32.xlu0 %v584
  %v586 = vpop.xlane.xlu0 %585
  %v587 = vsel %vm179, %v579, 0.0
  %588 = vadd.xlane.f32.xlu0 %v587
  %v589 = vpop.xlane.xlu0 %588
  %v590 = vsel %vm179, %v581, 0.0
  %591 = vadd.xlane.f32.xlu0 %v590
  %v592 = vpop.xlane.xlu0 %591
  %v593 = vsel %vm179, %v583, 0.0
  %594 = vadd.xlane.f32.xlu0 %v593
  %v595 = vpop.xlane.xlu0 %594
  %v596 = vrcp.pop %v586
  %v597 = vrcp.pop %v589
  %v598 = vrcp.pop %v592
  %v599 = vrcp.pop %v595
  %v600 = vmul.f32 %v577, %v596
  %v601 = vmul.f32 %v579, %v597
  %v602 = vmul.f32 %v581, %v598
  %v603 = vmul.f32 %v583, %v599
  %v604 = vpack.c.bf16 %v601, %v600
  %v605 = vpack.c.bf16 %v603, %v602
  %v606 = vmul.bf16 %v488, %v496
  %v607 = vmul.bf16 %v489, %v496
  %v609 = vpack.i.b16 %v83, %v83
  %v611 = vlaneseq
  %v612 = vshrl.u32 %v611, 7
  %v613 = vsub.s32 0, %v612
  %v614 = vrot.slane %v609, %v613
  %v615 = vmul.bf16 %v484, %v614
  %v616 = vmul.bf16 %v485, %v614
  %v618 = vsel %vm179, %v615, 0
  %v621 = vsel %vm179, %v616, 0
  %623 = vmatprep.subr.bf16.mxu0 0
  %624 = vmatpush1.bf16.xpose.msra.mxu0 %v506
  %625 = vmatprep.subr.bf16.mxu0 0
  %626 = vmatpush1.bf16.xpose.msra.mxu0 %v509
  %627 = vmatprep.subr.bf16.mxu0 0
  %628 = vmatpush1.bf16.xpose.msra.mxu0 0
  %629 = vmatprep.subr.bf16.mxu0 0
  %630 = vmatpush1.bf16.xpose.msra.mxu0 0
  %631 = vmatprep.subr.bf16.mxu0 0
  %632 = vmatpush1.bf16.xpose.msra.mxu0 0
  %633 = vmatprep.subr.bf16.mxu0 0
  %634 = vmatpush1.bf16.xpose.msra.mxu0 0
  %635 = vmatprep.subr.bf16.mxu0 0
  %636 = vmatpush1.bf16.xpose.msra.mxu0 0
  %637 = vmatprep.subr.bf16.mxu0 0
  %638 = vmatpush1.bf16.xpose.msra.mxu0 0
  %639 = vmatprep.subr.bf16.mxu0 0
  %640 = vmatpush1.bf16.xpose.msra.mxu0 0
  %641 = vmatprep.subr.bf16.mxu0 0
  %642 = vmatpush1.bf16.xpose.msra.mxu0 0
  %643 = vmatprep.subr.bf16.mxu0 0
  %644 = vmatpush1.bf16.xpose.msra.mxu0 0
  %645 = vmatprep.subr.bf16.mxu0 0
  %646 = vmatpush1.bf16.xpose.msra.mxu0 0
  %647 = vmatprep.subr.bf16.mxu0 0
  %648 = vmatpush1.bf16.xpose.msra.mxu0 0
  %649 = vmatprep.subr.bf16.mxu0 0
  %650 = vmatpush1.bf16.xpose.msra.mxu0 0
  %651 = vmatprep.subr.bf16.mxu0 0
  %652 = vmatpush1.bf16.xpose.msra.mxu0 0
  %653 = vmatprep.subr.bf16.mxu0 0
  %654 = vmatpush1.bf16.xpose.msra.mxu0 0
  %655 = vmatprep.mubr.bf16.mxu0 0
  %656 = vmatmul.mubr.bf16.gmra.mrb[0].mxu0 %v618
  %v657 = vpop.f32.mrb[0].mxu0
  %v658 = vadd.f32 %v77, %v657
  %v659 = vpop.f32.mrb[0].mxu0
  %v660 = vpop.f32.mrb[0].mxu0
  %v661 = vadd.f32 %v78, %v660
  %v662 = vpop.f32.mrb[0].mxu0
  %663 = vmatprep.mubr.bf16.mxu0 0
  %664 = vmatmul.mubr.bf16.gmra.mrb[0].mxu0 %v621
  %v665 = vpop.f32.mrb[0].mxu0
  %v666 = vadd.f32 %v79, %v665
  %v667 = vpop.f32.mrb[0].mxu0
  %v668 = vpop.f32.mrb[0].mxu0
  %v669 = vadd.f32 %v80, %v668
  %v670 = vpop.f32.mrb[0].mxu0
  %671 = vdwg.mxu0
  %v672 = vsel %vm179, %v658, -inf
  %673 = vmax.xlane.f32.xlu0 %v672
  %v674 = vpop.xlane.xlu0 %673
  %v675 = vsel %vm179, %v661, -inf
  %676 = vmax.xlane.f32.xlu0 %v675
  %v677 = vpop.xlane.xlu0 %676
  %v678 = vsel %vm179, %v666, -inf
  %679 = vmax.xlane.f32.xlu0 %v678
  %v680 = vpop.xlane.xlu0 %679
  %v681 = vsel %vm179, %v669, -inf
  %682 = vmax.xlane.f32.xlu0 %v681
  %v683 = vpop.xlane.xlu0 %682
  %v684 = vsub.f32 %v658, %v674
  %v685 = vsub.f32 %v661, %v677
  %v686 = vsub.f32 %v666, %v680
  %v687 = vsub.f32 %v669, %v683
  %v688 = vmul.f32 %v684, 1.442695
  %v689 = vpow.pop %v688
  %v690 = vmul.f32 %v685, 1.442695
  %v691 = vpow.pop %v690
  %v692 = vmul.f32 %v686, 1.442695
  %v693 = vpow.pop %v692
  %v694 = vmul.f32 %v687, 1.442695
  %v695 = vpow.pop %v694
  %v696 = vsel %vm179, %v689, 0.0
  %697 = vadd.xlane.f32.xlu0 %v696
  %v698 = vpop.xlane.xlu0 %697
  %v699 = vsel %vm179, %v691, 0.0
  %700 = vadd.xlane.f32.xlu0 %v699
  %v701 = vpop.xlane.xlu0 %700
  %v702 = vsel %vm179, %v693, 0.0
  %703 = vadd.xlane.f32.xlu0 %v702
  %v704 = vpop.xlane.xlu0 %703
  %v705 = vsel %vm179, %v695, 0.0
  %706 = vadd.xlane.f32.xlu0 %v705
  %v707 = vpop.xlane.xlu0 %706
  %v708 = vrcp.pop %v698
  %v709 = vrcp.pop %v701
  %v710 = vrcp.pop %v704
  %v711 = vrcp.pop %v707
  %v712 = vmul.f32 %v689, %v708
  %v713 = vmul.f32 %v691, %v709
  %v714 = vmul.f32 %v693, %v710
  %v715 = vmul.f32 %v695, %v711
  %v716 = vpack.c.bf16 %v713, %v712
  %v717 = vpack.c.bf16 %v715, %v714
  %v718 = vmul.bf16 %v488, %v614
  %v719 = vmul.bf16 %v489, %v614
  %v721 = vsel %vm179, %v716, 0
  %v724 = vsel %vm179, %v717, 0
  %726 = vmatprep.subr.bf16.mxu0 0
  %727 = vmatpush1.bf16.msra.mxu0 %v718
  %728 = vmatprep.subr.bf16.mxu0 0
  %729 = vmatpush1.bf16.msra.mxu0 %v719
  %730 = vmatprep.subr.bf16.mxu0 0
  %731 = vmatpush1.bf16.msra.mxu0 0
  %732 = vmatprep.subr.bf16.mxu0 0
  %733 = vmatpush1.bf16.msra.mxu0 0
  %734 = vmatprep.subr.bf16.mxu0 0
  %735 = vmatpush1.bf16.msra.mxu0 0
  %736 = vmatprep.subr.bf16.mxu0 0
  %737 = vmatpush1.bf16.msra.mxu0 0
  %738 = vmatprep.subr.bf16.mxu0 0
  %739 = vmatpush1.bf16.msra.mxu0 0
  %740 = vmatprep.subr.bf16.mxu0 0
  %741 = vmatpush1.bf16.msra.mxu0 0
  %742 = vmatprep.subr.bf16.mxu0 0
  %743 = vmatpush1.bf16.msra.mxu0 0
  %744 = vmatprep.subr.bf16.mxu0 0
  %745 = vmatpush1.bf16.msra.mxu0 0
  %746 = vmatprep.subr.bf16.mxu0 0
  %747 = vmatpush1.bf16.msra.mxu0 0
  %748 = vmatprep.subr.bf16.mxu0 0
  %749 = vmatpush1.bf16.msra.mxu0 0
  %750 = vmatprep.subr.bf16.mxu0 0
  %751 = vmatpush1.bf16.msra.mxu0 0
  %752 = vmatprep.subr.bf16.mxu0 0
  %753 = vmatpush1.bf16.msra.mxu0 0
  %754 = vmatprep.subr.bf16.mxu0 0
  %755 = vmatpush1.bf16.msra.mxu0 0
  %756 = vmatprep.subr.bf16.mxu0 0
  %757 = vmatpush1.bf16.msra.mxu0 0
  %758 = vmatprep.mubr.bf16.mxu0 0
  %759 = vmatmul.mubr.bf16.gmra.mrb[0].mxu0 %v721
  %v760 = vpop.f32.mrb[0].mxu0
  %v761 = vadd.f32 0.0, %v760
  %v762 = vpop.f32.mrb[0].mxu0
  %v763 = vpop.f32.mrb[0].mxu0
  %v764 = vadd.f32 0.0, %v763
  %v765 = vpop.f32.mrb[0].mxu0
  %766 = vmatprep.mubr.bf16.mxu0 0
  %767 = vmatmul.mubr.bf16.gmra.mrb[0].mxu0 %v724
  %v768 = vpop.f32.mrb[0].mxu0
  %v769 = vadd.f32 0.0, %v768
  %v770 = vpop.f32.mrb[0].mxu0
  %v771 = vpop.f32.mrb[0].mxu0
  %v772 = vadd.f32 0.0, %v771
  %v773 = vpop.f32.mrb[0].mxu0
  %774 = vdwg.mxu0
  %v776 = vsel %vm179, %v604, 0
  %v779 = vsel %vm179, %v605, 0
  %781 = vmatprep.subr.bf16.mxu0 0
  %782 = vmatpush1.bf16.msra.mxu0 %v606
  %783 = vmatprep.subr.bf16.mxu0 0
  %784 = vmatpush1.bf16.msra.mxu0 %v607
  %785 = vmatprep.subr.bf16.mxu0 0
  %786 = vmatpush1.bf16.msra.mxu0 0
  %787 = vmatprep.subr.bf16.mxu0 0
  %788 = vmatpush1.bf16.msra.mxu0 0
  %789 = vmatprep.subr.bf16.mxu0 0
  %790 = vmatpush1.bf16.msra.mxu0 0
  %791 = vmatprep.subr.bf16.mxu0 0
  %792 = vmatpush1.bf16.msra.mxu0 0
  %793 = vmatprep.subr.bf16.mxu0 0
  %794 = vmatpush1.bf16.msra.mxu0 0
  %795 = vmatprep.subr.bf16.mxu0 0
  %796 = vmatpush1.bf16.msra.mxu0 0
  %797 = vmatprep.subr.bf16.mxu0 0
  %798 = vmatpush1.bf16.msra.mxu0 0
  %799 = vmatprep.subr.bf16.mxu0 0
  %800 = vmatpush1.bf16.msra.mxu0 0
  %801 = vmatprep.subr.bf16.mxu0 0
  %802 = vmatpush1.bf16.msra.mxu0 0
  %803 = vmatprep.subr.bf16.mxu0 0
  %804 = vmatpush1.bf16.msra.mxu0 0
  %805 = vmatprep.subr.bf16.mxu0 0
  %806 = vmatpush1.bf16.msra.mxu0 0
  %807 = vmatprep.subr.bf16.mxu0 0
  %808 = vmatpush1.bf16.msra.mxu0 0
  %809 = vmatprep.subr.bf16.mxu0 0
  %810 = vmatpush1.bf16.msra.mxu0 0
  %811 = vmatprep.subr.bf16.mxu0 0
  %812 = vmatpush1.bf16.msra.mxu0 0
  %813 = vmatprep.mubr.bf16.mxu0 0
  %814 = vmatmul.mubr.bf16.gmra.mrb[0].mxu0 %v776
  %v815 = vpop.f32.mrb[0].mxu0
  %v816 = vadd.f32 %v761, %v815
  %v817 = vpop.f32.mrb[0].mxu0
  %v818 = vpop.f32.mrb[0].mxu0
  %v819 = vadd.f32 %v764, %v818
  %v820 = vpop.f32.mrb[0].mxu0
  %821 = vmatprep.mubr.bf16.mxu0 0
  %822 = vmatmul.mubr.bf16.gmra.mrb[0].mxu0 %v779
  %v823 = vpop.f32.mrb[0].mxu0
  %v824 = vadd.f32 %v769, %v823
  %v825 = vpop.f32.mrb[0].mxu0
  %v826 = vpop.f32.mrb[0].mxu0
  %v827 = vadd.f32 %v772, %v826
  %v828 = vpop.f32.mrb[0].mxu0
  %829 = vdwg.mxu0
  %v831 = vpack.i.b16 %v85, %v85
  %v833 = vlaneseq
  %v834 = vshrl.u32 %v833, 7
  %v835 = vsub.s32 0, %v834
  %v836 = vrot.slane %v831, %v835
  %v837 = vmul.bf16 %v484, %v836
  %v838 = vmul.bf16 %v485, %v836
  %v840 = vsel %vm179, %v837, 0
  %v843 = vsel %vm179, %v838, 0
  %845 = vmatprep.subr.bf16.mxu0 0
  %846 = vmatpush1.bf16.xpose.msra.mxu0 %v506
  %847 = vmatprep.subr.bf16.mxu0 0
  %848 = vmatpush1.bf16.xpose.msra.mxu0 %v509
  %849 = vmatprep.subr.bf16.mxu0 0
  %850 = vmatpush1.bf16.xpose.msra.mxu0 0
  %851 = vmatprep.subr.bf16.mxu0 0
  %852 = vmatpush1.bf16.xpose.msra.mxu0 0
  %853 = vmatprep.subr.bf16.mxu0 0
  %854 = vmatpush1.bf16.xpose.msra.mxu0 0
  %855 = vmatprep.subr.bf16.mxu0 0
  %856 = vmatpush1.bf16.xpose.msra.mxu0 0
  %857 = vmatprep.subr.bf16.mxu0 0
  %858 = vmatpush1.bf16.xpose.msra.mxu0 0
  %859 = vmatprep.subr.bf16.mxu0 0
  %860 = vmatpush1.bf16.xpose.msra.mxu0 0
  %861 = vmatprep.subr.bf16.mxu0 0
  %862 = vmatpush1.bf16.xpose.msra.mxu0 0
  %863 = vmatprep.subr.bf16.mxu0 0
  %864 = vmatpush1.bf16.xpose.msra.mxu0 0
  %865 = vmatprep.subr.bf16.mxu0 0
  %866 = vmatpush1.bf16.xpose.msra.mxu0 0
  %867 = vmatprep.subr.bf16.mxu0 0
  %868 = vmatpush1.bf16.xpose.msra.mxu0 0
  %869 = vmatprep.subr.bf16.mxu0 0
  %870 = vmatpush1.bf16.xpose.msra.mxu0 0
  %871 = vmatprep.subr.bf16.mxu0 0
  %872 = vmatpush1.bf16.xpose.msra.mxu0 0
  %873 = vmatprep.subr.bf16.mxu0 0
  %874 = vmatpush1.bf16.xpose.msra.mxu0 0
  %875 = vmatprep.subr.bf16.mxu0 0
  %876 = vmatpush1.bf16.xpose.msra.mxu0 0
  %877 = vmatprep.mubr.bf16.mxu0 0
  %878 = vmatmul.mubr.bf16.gmra.mrb[0].mxu0 %v840
  %v879 = vpop.f32.mrb[0].mxu0
  %v880 = vadd.f32 %v77, %v879
  %v881 = vpop.f32.mrb[0].mxu0
  %v882 = vpop.f32.mrb[0].mxu0
  %v883 = vadd.f32 %v78, %v882
  %v884 = vpop.f32.mrb[0].mxu0
  %885 = vmatprep.mubr.bf16.mxu0 0
  %886 = vmatmul.mubr.bf16.gmra.mrb[0].mxu0 %v843
  %v887 = vpop.f32.mrb[0].mxu0
  %v888 = vadd.f32 %v79, %v887
  %v889 = vpop.f32.mrb[0].mxu0
  %v890 = vpop.f32.mrb[0].mxu0
  %v891 = vadd.f32 %v80, %v890
  %v892 = vpop.f32.mrb[0].mxu0
  %893 = vdwg.mxu0
  %v894 = vsel %vm179, %v880, -inf
  %895 = vmax.xlane.f32.xlu0 %v894
  %v896 = vpop.xlane.xlu0 %895
  %v897 = vsel %vm179, %v883, -inf
  %898 = vmax.xlane.f32.xlu0 %v897
  %v899 = vpop.xlane.xlu0 %898
  %v900 = vsel %vm179, %v888, -inf
  %901 = vmax.xlane.f32.xlu0 %v900
  %v902 = vpop.xlane.xlu0 %901
  %v903 = vsel %vm179, %v891, -inf
  %904 = vmax.xlane.f32.xlu0 %v903
  %v905 = vpop.xlane.xlu0 %904
  %v906 = vsub.f32 %v880, %v896
  %v907 = vsub.f32 %v883, %v899
  %v908 = vsub.f32 %v888, %v902
  %v909 = vsub.f32 %v891, %v905
  %v910 = vmul.f32 %v906, 1.442695
  %v911 = vpow.pop %v910
  %v912 = vmul.f32 %v907, 1.442695
  %v913 = vpow.pop %v912
  %v914 = vmul.f32 %v908, 1.442695
  %v915 = vpow.pop %v914
  %v916 = vmul.f32 %v909, 1.442695
  %v917 = vpow.pop %v916
  %v918 = vsel %vm179, %v911, 0.0
  %919 = vadd.xlane.f32.xlu0 %v918
  %v920 = vpop.xlane.xlu0 %919
  %v921 = vsel %vm179, %v913, 0.0
  %922 = vadd.xlane.f32.xlu0 %v921
  %v923 = vpop.xlane.xlu0 %922
  %v924 = vsel %vm179, %v915, 0.0
  %925 = vadd.xlane.f32.xlu0 %v924
  %v926 = vpop.xlane.xlu0 %925
  %v927 = vsel %vm179, %v917, 0.0
  %928 = vadd.xlane.f32.xlu0 %v927
  %v929 = vpop.xlane.xlu0 %928
  %v930 = vrcp.pop %v920
  %v931 = vrcp.pop %v923
  %v932 = vrcp.pop %v926
  %v933 = vrcp.pop %v929
  %v934 = vmul.f32 %v911, %v930
  %v935 = vmul.f32 %v913, %v931
  %v936 = vmul.f32 %v915, %v932
  %v937 = vmul.f32 %v917, %v933
  %v938 = vpack.c.bf16 %v935, %v934
  %v939 = vpack.c.bf16 %v937, %v936
  %v940 = vmul.bf16 %v488, %v836
  %v941 = vmul.bf16 %v489, %v836
  %v943 = vsel %vm179, %v938, 0
  %v946 = vsel %vm179, %v939, 0
  %948 = vmatprep.subr.bf16.mxu0 0
  %949 = vmatpush1.bf16.msra.mxu0 %v940
  %950 = vmatprep.subr.bf16.mxu0 0
  %951 = vmatpush1.bf16.msra.mxu0 %v941
  %952 = vmatprep.subr.bf16.mxu0 0
  %953 = vmatpush1.bf16.msra.mxu0 0
  %954 = vmatprep.subr.bf16.mxu0 0
  %955 = vmatpush1.bf16.msra.mxu0 0
  %956 = vmatprep.subr.bf16.mxu0 0
  %957 = vmatpush1.bf16.msra.mxu0 0
  %958 = vmatprep.subr.bf16.mxu0 0
  %959 = vmatpush1.bf16.msra.mxu0 0
  %960 = vmatprep.subr.bf16.mxu0 0
  %961 = vmatpush1.bf16.msra.mxu0 0
  %962 = vmatprep.subr.bf16.mxu0 0
  %963 = vmatpush1.bf16.msra.mxu0 0
  %964 = vmatprep.subr.bf16.mxu0 0
  %965 = vmatpush1.bf16.msra.mxu0 0
  %966 = vmatprep.subr.bf16.mxu0 0
  %967 = vmatpush1.bf16.msra.mxu0 0
  %968 = vmatprep.subr.bf16.mxu0 0
  %969 = vmatpush1.bf16.msra.mxu0 0
  %970 = vmatprep.subr.bf16.mxu0 0
  %971 = vmatpush1.bf16.msra.mxu0 0
  %972 = vmatprep.subr.bf16.mxu0 0
  %973 = vmatpush1.bf16.msra.mxu0 0
  %974 = vmatprep.subr.bf16.mxu0 0
  %975 = vmatpush1.bf16.msra.mxu0 0
  %976 = vmatprep.subr.bf16.mxu0 0
  %977 = vmatpush1.bf16.msra.mxu0 0
  %978 = vmatprep.subr.bf16.mxu0 0
  %979 = vmatpush1.bf16.msra.mxu0 0
  %980 = vmatprep.mubr.bf16.mxu0 0
  %981 = vmatmul.mubr.bf16.gmra.mrb[0].mxu0 %v943
  %v982 = vpop.f32.mrb[0].mxu0
  %v983 = vadd.f32 0.0, %v982
  %v984 = vpop.f32.mrb[0].mxu0
  %v985 = vpop.f32.mrb[0].mxu0
  %v986 = vadd.f32 0.0, %v985
  %v987 = vpop.f32.mrb[0].mxu0
  %988 = vmatprep.mubr.bf16.mxu0 0
  %989 = vmatmul.mubr.bf16.gmra.mrb[0].mxu0 %v946
  %v990 = vpop.f32.mrb[0].mxu0
  %v991 = vadd.f32 0.0, %v990
  %v992 = vpop.f32.mrb[0].mxu0
  %v993 = vpop.f32.mrb[0].mxu0
  %v994 = vadd.f32 0.0, %v993
  %v995 = vpop.f32.mrb[0].mxu0
  %996 = vdwg.mxu0
  %v997 = vadd.f32 %v816, %v983
  %v998 = vadd.f32 %v819, %v986
  %v999 = vadd.f32 %v824, %v991
  %v1000 = vadd.f32 %v827, %v994
  %v1002 = vpack.i.b16 %v87, %v87
  %v1004 = vlaneseq
  %v1005 = vshrl.u32 %v1004, 7
  %v1006 = vsub.s32 0, %v1005
  %v1007 = vrot.slane %v1002, %v1006
  %v1008 = vmul.bf16 %v484, %v1007
  %v1009 = vmul.bf16 %v485, %v1007
  %v1011 = vsel %vm179, %v1008, 0
  %v1014 = vsel %vm179, %v1009, 0
  %1016 = vmatprep.subr.bf16.mxu0 0
  %1017 = vmatpush1.bf16.xpose.msra.mxu0 %v506
  %1018 = vmatprep.subr.bf16.mxu0 0
  %1019 = vmatpush1.bf16.xpose.msra.mxu0 %v509
  %1020 = vmatprep.subr.bf16.mxu0 0
  %1021 = vmatpush1.bf16.xpose.msra.mxu0 0
  %1022 = vmatprep.subr.bf16.mxu0 0
  %1023 = vmatpush1.bf16.xpose.msra.mxu0 0
  %1024 = vmatprep.subr.bf16.mxu0 0
  %1025 = vmatpush1.bf16.xpose.msra.mxu0 0
  %1026 = vmatprep.subr.bf16.mxu0 0
  %1027 = vmatpush1.bf16.xpose.msra.mxu0 0
  %1028 = vmatprep.subr.bf16.mxu0 0
  %1029 = vmatpush1.bf16.xpose.msra.mxu0 0
  %1030 = vmatprep.subr.bf16.mxu0 0
  %1031 = vmatpush1.bf16.xpose.msra.mxu0 0
  %1032 = vmatprep.subr.bf16.mxu0 0
  %1033 = vmatpush1.bf16.xpose.msra.mxu0 0
  %1034 = vmatprep.subr.bf16.mxu0 0
  %1035 = vmatpush1.bf16.xpose.msra.mxu0 0
  %1036 = vmatprep.subr.bf16.mxu0 0
  %1037 = vmatpush1.bf16.xpose.msra.mxu0 0
  %1038 = vmatprep.subr.bf16.mxu0 0
  %1039 = vmatpush1.bf16.xpose.msra.mxu0 0
  %1040 = vmatprep.subr.bf16.mxu0 0
  %1041 = vmatpush1.bf16.xpose.msra.mxu0 0
  %1042 = vmatprep.subr.bf16.mxu0 0
  %1043 = vmatpush1.bf16.xpose.msra.mxu0 0
  %1044 = vmatprep.subr.bf16.mxu0 0
  %1045 = vmatpush1.bf16.xpose.msra.mxu0 0
  %1046 = vmatprep.subr.bf16.mxu0 0
  %1047 = vmatpush1.bf16.xpose.msra.mxu0 0
  %1048 = vmatprep.mubr.bf16.mxu0 0
  %1049 = vmatmul.mubr.bf16.gmra.mrb[0].mxu0 %v1011
  %v1050 = vpop.f32.mrb[0].mxu0
  %v1051 = vadd.f32 %v77, %v1050
  %v1052 = vpop.f32.mrb[0].mxu0
  %v1053 = vpop.f32.mrb[0].mxu0
  %v1054 = vadd.f32 %v78, %v1053
  %v1055 = vpop.f32.mrb[0].mxu0
  %1056 = vmatprep.mubr.bf16.mxu0 0
  %1057 = vmatmul.mubr.bf16.gmra.mrb[0].mxu0 %v1014
  %v1058 = vpop.f32.mrb[0].mxu0
  %v1059 = vadd.f32 %v79, %v1058
  %v1060 = vpop.f32.mrb[0].mxu0
  %v1061 = vpop.f32.mrb[0].mxu0
  %v1062 = vadd.f32 %v80, %v1061
  %v1063 = vpop.f32.mrb[0].mxu0
  %1064 = vdwg.mxu0
  %v1065 = vsel %vm179, %v1051, -inf
  %1066 = vmax.xlane.f32.xlu0 %v1065
  %v1067 = vpop.xlane.xlu0 %1066
  %v1068 = vsel %vm179, %v1054, -inf
  %1069 = vmax.xlane.f32.xlu0 %v1068
  %v1070 = vpop.xlane.xlu0 %1069
  %v1071 = vsel %vm179, %v1059, -inf
  %1072 = vmax.xlane.f32.xlu0 %v1071
  %v1073 = vpop.xlane.xlu0 %1072
  %v1074 = vsel %vm179, %v1062, -inf
  %1075 = vmax.xlane.f32.xlu0 %v1074
  %v1076 = vpop.xlane.xlu0 %1075
  %v1077 = vsub.f32 %v1051, %v1067
  %v1078 = vsub.f32 %v1054, %v1070
  %v1079 = vsub.f32 %v1059, %v1073
  %v1080 = vsub.f32 %v1062, %v1076
  %v1081 = vmul.f32 %v1077, 1.442695
  %v1082 = vpow.pop %v1081
  %v1083 = vmul.f32 %v1078, 1.442695
  %v1084 = vpow.pop %v1083
  %v1085 = vmul.f32 %v1079, 1.442695
  %v1086 = vpow.pop %v1085
  %v1087 = vmul.f32 %v1080, 1.442695
  %v1088 = vpow.pop %v1087
  %v1089 = vsel %vm179, %v1082, 0.0
  %1090 = vadd.xlane.f32.xlu0 %v1089
  %v1091 = vpop.xlane.xlu0 %1090
  %v1092 = vsel %vm179, %v1084, 0.0
  %1093 = vadd.xlane.f32.xlu0 %v1092
  %v1094 = vpop.xlane.xlu0 %1093
  %v1095 = vsel %vm179, %v1086, 0.0
  %1096 = vadd.xlane.f32.xlu0 %v1095
  %v1097 = vpop.xlane.xlu0 %1096
  %v1098 = vsel %vm179, %v1088, 0.0
  %1099 = vadd.xlane.f32.xlu0 %v1098
  %v1100 = vpop.xlane.xlu0 %1099
  %v1101 = vrcp.pop %v1091
  %v1102 = vrcp.pop %v1094
  %v1103 = vrcp.pop %v1097
  %v1104 = vrcp.pop %v1100
  %v1105 = vmul.f32 %v1082, %v1101
  %v1106 = vmul.f32 %v1084, %v1102
  %v1107 = vmul.f32 %v1086, %v1103
  %v1108 = vmul.f32 %v1088, %v1104
  %v1109 = vpack.c.bf16 %v1106, %v1105
  %v1110 = vpack.c.bf16 %v1108, %v1107
  %v1111 = vmul.bf16 %v488, %v1007
  %v1112 = vmul.bf16 %v489, %v1007
  %v1114 = vsel %vm179, %v1109, 0
  %v1117 = vsel %vm179, %v1110, 0
  %1119 = vmatprep.subr.bf16.mxu0 0
  %1120 = vmatpush1.bf16.msra.mxu0 %v1111
  %1121 = vmatprep.subr.bf16.mxu0 0
  %1122 = vmatpush1.bf16.msra.mxu0 %v1112
  %1123 = vmatprep.subr.bf16.mxu0 0
  %1124 = vmatpush1.bf16.msra.mxu0 0
  %1125 = vmatprep.subr.bf16.mxu0 0
  %1126 = vmatpush1.bf16.msra.mxu0 0
  %1127 = vmatprep.subr.bf16.mxu0 0
  %1128 = vmatpush1.bf16.msra.mxu0 0
  %1129 = vmatprep.subr.bf16.mxu0 0
  %1130 = vmatpush1.bf16.msra.mxu0 0
  %1131 = vmatprep.subr.bf16.mxu0 0
  %1132 = vmatpush1.bf16.msra.mxu0 0
  %1133 = vmatprep.subr.bf16.mxu0 0
  %1134 = vmatpush1.bf16.msra.mxu0 0
  %1135 = vmatprep.subr.bf16.mxu0 0
  %1136 = vmatpush1.bf16.msra.mxu0 0
  %1137 = vmatprep.subr.bf16.mxu0 0
  %1138 = vmatpush1.bf16.msra.mxu0 0
  %1139 = vmatprep.subr.bf16.mxu0 0
  %1140 = vmatpush1.bf16.msra.mxu0 0
  %1141 = vmatprep.subr.bf16.mxu0 0
  %1142 = vmatpush1.bf16.msra.mxu0 0
  %1143 = vmatprep.subr.bf16.mxu0 0
  %1144 = vmatpush1.bf16.msra.mxu0 0
  %1145 = vmatprep.subr.bf16.mxu0 0
  %1146 = vmatpush1.bf16.msra.mxu0 0
  %1147 = vmatprep.subr.bf16.mxu0 0
  %1148 = vmatpush1.bf16.msra.mxu0 0
  %1149 = vmatprep.subr.bf16.mxu0 0
  %1150 = vmatpush1.bf16.msra.mxu0 0
  %1151 = vmatprep.mubr.bf16.mxu0 0
  %1152 = vmatmul.mubr.bf16.gmra.mrb[0].mxu0 %v1114
  %v1153 = vpop.f32.mrb[0].mxu0
  %v1154 = vadd.f32 0.0, %v1153
  %v1155 = vpop.f32.mrb[0].mxu0
  %v1156 = vpop.f32.mrb[0].mxu0
  %v1157 = vadd.f32 0.0, %v1156
  %v1158 = vpop.f32.mrb[0].mxu0
  %1159 = vmatprep.mubr.bf16.mxu0 0
  %1160 = vmatmul.mubr.bf16.gmra.mrb[0].mxu0 %v1117
  %v1161 = vpop.f32.mrb[0].mxu0
  %v1162 = vadd.f32 0.0, %v1161
  %v1163 = vpop.f32.mrb[0].mxu0
  %v1164 = vpop.f32.mrb[0].mxu0
  %v1165 = vadd.f32 0.0, %v1164
  %v1166 = vpop.f32.mrb[0].mxu0
  %1167 = vdwg.mxu0
  %v1168 = vadd.f32 %v997, %v1154
  %v1169 = vadd.f32 %v998, %v1157
  %v1170 = vadd.f32 %v999, %v1162
  %v1171 = vadd.f32 %v1000, %v1165
  %v1172 = vpack.c.bf16 %v1169, %v1168
  %v1173 = vpack.c.bf16 %v1171, %v1170
  %v1174 = vld [vmem:[%s17] sm:$0xf]
  %v1175 = vld [vmem:[%s17 + $0x4] sm:$0xf]
  %v1176 = vld [vmem:[%s17 + $0x8] sm:$0xf]
  %v1177 = vld [vmem:[%s17 + $0xc] sm:$0xf]
  %v1178 = vld [vmem:[%s18] sm:$0x1]
  %v1180 = vlaneseq
  %v1181 = vshrl.u32 %v1180, 7
  %v1182 = vsub.s32 0, %v1181
  %v1183 = vrot.slane %v1178, %v1182
  %v1189 = vunpack.c.l.b16 %v1174
  %v1190 = vunpack.c.l.b16 %v1175
  %v1191 = vunpack.c.l.b16 %v1176
  %v1192 = vunpack.c.l.b16 %v1177
  %v1193 = vpack.c.b16 %v1190, %v1189
  %v1194 = vpack.c.b16 %v1192, %v1191
  %v1198 = vsel %vm179, %v1172, 0
  %v1201 = vsel %vm179, %v1173, 0
  %1203 = vmatprep.subr.bf16.mxu0 0
  %1204 = vmatpush1.bf16.msra.mxu0 %v1193
  %1205 = vmatprep.subr.bf16.mxu0 0
  %1206 = vmatpush1.bf16.msra.mxu0 %v1194
  %1207 = vmatprep.subr.bf16.mxu0 0
  %1208 = vmatpush1.bf16.msra.mxu0 0
  %1209 = vmatprep.subr.bf16.mxu0 0
  %1210 = vmatpush1.bf16.msra.mxu0 0
  %1211 = vmatprep.subr.bf16.mxu0 0
  %1212 = vmatpush1.bf16.msra.mxu0 0
  %1213 = vmatprep.subr.bf16.mxu0 0
  %1214 = vmatpush1.bf16.msra.mxu0 0
  %1215 = vmatprep.subr.bf16.mxu0 0
  %1216 = vmatpush1.bf16.msra.mxu0 0
  %1217 = vmatprep.subr.bf16.mxu0 0
  %1218 = vmatpush1.bf16.msra.mxu0 0
  %1219 = vmatprep.subr.bf16.mxu0 0
  %1220 = vmatpush1.bf16.msra.mxu0 0
  %1221 = vmatprep.subr.bf16.mxu0 0
  %1222 = vmatpush1.bf16.msra.mxu0 0
  %1223 = vmatprep.subr.bf16.mxu0 0
  %1224 = vmatpush1.bf16.msra.mxu0 0
  %1225 = vmatprep.subr.bf16.mxu0 0
  %1226 = vmatpush1.bf16.msra.mxu0 0
  %1227 = vmatprep.subr.bf16.mxu0 0
  %1228 = vmatpush1.bf16.msra.mxu0 0
  %1229 = vmatprep.subr.bf16.mxu0 0
  %1230 = vmatpush1.bf16.msra.mxu0 0
  %1231 = vmatprep.subr.bf16.mxu0 0
  %1232 = vmatpush1.bf16.msra.mxu0 0
  %1233 = vmatprep.subr.bf16.mxu0 0
  %1234 = vmatpush1.bf16.msra.mxu0 0
  %1235 = vmatprep.mubr.bf16.mxu0 0
  %1236 = vmatmul.mubr.bf16.gmra.mrb[0].mxu0 %v1198
  %v1237 = vpop.f32.mrb[0].mxu0
  %v1238 = vadd.f32 %v1183, %v1237
  %v1239 = vpop.f32.mrb[0].mxu0
  %v1240 = vpop.f32.mrb[0].mxu0
  %v1241 = vadd.f32 %v1183, %v1240
  %v1242 = vpop.f32.mrb[0].mxu0
  %1243 = vmatprep.mubr.bf16.mxu0 0
  %1244 = vmatmul.mubr.bf16.gmra.mrb[0].mxu0 %v1201
  %v1245 = vpop.f32.mrb[0].mxu0
  %v1246 = vadd.f32 %v1183, %v1245
  %v1247 = vpop.f32.mrb[0].mxu0
  %v1248 = vpop.f32.mrb[0].mxu0
  %v1249 = vadd.f32 %v1183, %v1248
  %v1250 = vpop.f32.mrb[0].mxu0
  %1251 = vdwg.mxu0
  %v1252 = vadd.f32 %v172, %v1238
  %v1253 = vadd.f32 %v173, %v1241
  %v1254 = vadd.f32 %v174, %v1246
  %v1255 = vadd.f32 %v175, %v1249
  %s1256 = scalar_lea.vmem %s10, 2
  %v1257 = vld [vmem:[%s1256] sm:$0x1]
  %s1258 = scalar_lea.vmem %s10, 3
  %v1259 = vld [vmem:[%s1258] sm:$0x1]
  %v1260 = vsel %vm179, %v1252, 0.0
  %1261 = vadd.xlane.f32.xlu0 %v1260
  %v1262 = vpop.xlane.xlu0 %1261
  %v1263 = vsel %vm179, %v1253, 0.0
  %1264 = vadd.xlane.f32.xlu0 %v1263
  %v1265 = vpop.xlane.xlu0 %1264
  %v1266 = vsel %vm179, %v1254, 0.0
  %1267 = vadd.xlane.f32.xlu0 %v1266
  %v1268 = vpop.xlane.xlu0 %1267
  %v1269 = vsel %vm179, %v1255, 0.0
  %1270 = vadd.xlane.f32.xlu0 %v1269
  %v1271 = vpop.xlane.xlu0 %1270
  %v1272 = vmul.f32 %v1262, 0.03125
  %v1273 = vmul.f32 %v1265, 0.03125
  %v1274 = vmul.f32 %v1268, 0.03125
  %v1275 = vmul.f32 %v1271, 0.03125
  %v1276 = vmul.f32 %v1252, %v1252
  %v1277 = vmul.f32 %v1253, %v1253
  %v1278 = vmul.f32 %v1254, %v1254
  %v1279 = vmul.f32 %v1255, %v1255
  %v1280 = vsel %vm179, %v1276, 0.0
  %1281 = vadd.xlane.f32.xlu0 %v1280
  %v1282 = vpop.xlane.xlu0 %1281
  %v1283 = vsel %vm179, %v1277, 0.0
  %1284 = vadd.xlane.f32.xlu0 %v1283
  %v1285 = vpop.xlane.xlu0 %1284
  %v1286 = vsel %vm179, %v1278, 0.0
  %1287 = vadd.xlane.f32.xlu0 %v1286
  %v1288 = vpop.xlane.xlu0 %1287
  %v1289 = vsel %vm179, %v1279, 0.0
  %1290 = vadd.xlane.f32.xlu0 %v1289
  %v1291 = vpop.xlane.xlu0 %1290
  %v1292 = vmul.f32 %v1282, 0.03125
  %v1293 = vmul.f32 %v1285, 0.03125
  %v1294 = vmul.f32 %v1288, 0.03125
  %v1295 = vmul.f32 %v1291, 0.03125
  %v1296 = vmul.f32 %v1272, %v1272
  %v1297 = vmul.f32 %v1273, %v1273
  %v1298 = vmul.f32 %v1274, %v1274
  %v1299 = vmul.f32 %v1275, %v1275
  %v1300 = vsub.f32 %v1292, %v1296
  %v1301 = vsub.f32 %v1293, %v1297
  %v1302 = vsub.f32 %v1294, %v1298
  %v1303 = vsub.f32 %v1295, %v1299
  %v1304 = vsub.f32 %v1252, %v1272
  %v1305 = vsub.f32 %v1253, %v1273
  %v1306 = vsub.f32 %v1254, %v1274
  %v1307 = vsub.f32 %v1255, %v1275
  %v1308 = vadd.f32 %v1300, 1e-05
  %v1309 = vadd.f32 %v1301, 1e-05
  %v1310 = vadd.f32 %v1302, 1e-05
  %v1311 = vadd.f32 %v1303, 1e-05
  %v1312 = vrsqrt.pop %v1308
  %v1313 = vrsqrt.pop %v1309
  %v1314 = vrsqrt.pop %v1310
  %v1315 = vrsqrt.pop %v1311
  %v1316 = vmul.f32 %v1304, %v1312
  %v1317 = vmul.f32 %v1305, %v1313
  %v1318 = vmul.f32 %v1306, %v1314
  %v1319 = vmul.f32 %v1307, %v1315
  %v1321 = vlaneseq
  %v1322 = vshrl.u32 %v1321, 7
  %v1323 = vsub.s32 0, %v1322
  %v1324 = vrot.slane %v1257, %v1323
  %v1326 = vmul.f32 %v1316, %v1324
  %v1327 = vmul.f32 %v1317, %v1324
  %v1328 = vmul.f32 %v1318, %v1324
  %v1329 = vmul.f32 %v1319, %v1324
  %v1331 = vlaneseq
  %v1332 = vshrl.u32 %v1331, 7
  %v1333 = vsub.s32 0, %v1332
  %v1334 = vrot.slane %v1259, %v1333
  %v1336 = vadd.f32 %v1326, %v1334
  %v1337 = vadd.f32 %v1327, %v1334
  %v1338 = vadd.f32 %v1328, %v1334
  %v1339 = vadd.f32 %v1329, %v1334
  %v1340 = vpack.c.bf16 %v1337, %v1336
  %v1341 = vpack.c.bf16 %v1339, %v1338
  %v1342 = vld [vmem:[%s19] sm:$0xf]
  %v1343 = vld [vmem:[%s19 + $0x4] sm:$0xf]
  %v1344 = vld [vmem:[%s19 + $0x8] sm:$0xf]
  %v1345 = vld [vmem:[%s19 + $0xc] sm:$0xf]
  %v1346 = vld [vmem:[%s20] sm:$0x1]
  %v1348 = vlaneseq
  %v1349 = vshrl.u32 %v1348, 7
  %v1350 = vsub.s32 0, %v1349
  %v1351 = vrot.slane %v1346, %v1350
  %v1357 = vunpack.c.l.b16 %v1342
  %v1358 = vunpack.c.l.b16 %v1343
  %v1359 = vunpack.c.l.b16 %v1344
  %v1360 = vunpack.c.l.b16 %v1345
  %v1361 = vpack.c.b16 %v1358, %v1357
  %v1362 = vpack.c.b16 %v1360, %v1359
  %v1366 = vsel %vm179, %v1340, 0
  %v1369 = vsel %vm179, %v1341, 0
  %1371 = vmatprep.subr.bf16.mxu0 0
  %1372 = vmatpush1.bf16.msra.mxu0 %v1361
  %1373 = vmatprep.subr.bf16.mxu0 0
  %1374 = vmatpush1.bf16.msra.mxu0 %v1362
  %1375 = vmatprep.subr.bf16.mxu0 0
  %1376 = vmatpush1.bf16.msra.mxu0 0
  %1377 = vmatprep.subr.bf16.mxu0 0
  %1378 = vmatpush1.bf16.msra.mxu0 0
  %1379 = vmatprep.subr.bf16.mxu0 0
  %1380 = vmatpush1.bf16.msra.mxu0 0
  %1381 = vmatprep.subr.bf16.mxu0 0
  %1382 = vmatpush1.bf16.msra.mxu0 0
  %1383 = vmatprep.subr.bf16.mxu0 0
  %1384 = vmatpush1.bf16.msra.mxu0 0
  %1385 = vmatprep.subr.bf16.mxu0 0
  %1386 = vmatpush1.bf16.msra.mxu0 0
  %1387 = vmatprep.subr.bf16.mxu0 0
  %1388 = vmatpush1.bf16.msra.mxu0 0
  %1389 = vmatprep.subr.bf16.mxu0 0
  %1390 = vmatpush1.bf16.msra.mxu0 0
  %1391 = vmatprep.subr.bf16.mxu0 0
  %1392 = vmatpush1.bf16.msra.mxu0 0
  %1393 = vmatprep.subr.bf16.mxu0 0
  %1394 = vmatpush1.bf16.msra.mxu0 0
  %1395 = vmatprep.subr.bf16.mxu0 0
  %1396 = vmatpush1.bf16.msra.mxu0 0
  %1397 = vmatprep.subr.bf16.mxu0 0
  %1398 = vmatpush1.bf16.msra.mxu0 0
  %1399 = vmatprep.subr.bf16.mxu0 0
  %1400 = vmatpush1.bf16.msra.mxu0 0
  %1401 = vmatprep.subr.bf16.mxu0 0
  %1402 = vmatpush1.bf16.msra.mxu0 0
  %1403 = vmatprep.mubr.bf16.mxu0 0
  %1404 = vmatmul.mubr.bf16.gmra.mrb[0].mxu0 %v1366
  %v1405 = vpop.f32.mrb[0].mxu0
  %v1406 = vadd.f32 %v1351, %v1405
  %v1407 = vpop.f32.mrb[0].mxu0
  %v1408 = vpop.f32.mrb[0].mxu0
  %v1409 = vadd.f32 %v1351, %v1408
  %v1410 = vpop.f32.mrb[0].mxu0
  %1411 = vmatprep.mubr.bf16.mxu0 0
  %1412 = vmatmul.mubr.bf16.gmra.mrb[0].mxu0 %v1369
  %v1413 = vpop.f32.mrb[0].mxu0
  %v1414 = vadd.f32 %v1351, %v1413
  %v1415 = vpop.f32.mrb[0].mxu0
  %v1416 = vpop.f32.mrb[0].mxu0
  %v1417 = vadd.f32 %v1351, %v1416
  %v1418 = vpop.f32.mrb[0].mxu0
  %1419 = vdwg.mxu0
  %v1420 = vmul.f32 %v1406, %v1406
  %v1421 = vmul.f32 %v1409, %v1409
  %v1422 = vmul.f32 %v1414, %v1414
  %v1423 = vmul.f32 %v1417, %v1417
  %v1424 = vmul.f32 %v1406, %v1420
  %v1425 = vmul.f32 %v1409, %v1421
  %v1426 = vmul.f32 %v1414, %v1422
  %v1427 = vmul.f32 %v1417, %v1423
  %v1428 = vmul.f32 %v1424, 0.044715
  %v1429 = vmul.f32 %v1425, 0.044715
  %v1430 = vmul.f32 %v1426, 0.044715
  %v1431 = vmul.f32 %v1427, 0.044715
  %v1432 = vadd.f32 %v1406, %v1428
  %v1433 = vadd.f32 %v1409, %v1429
  %v1434 = vadd.f32 %v1414, %v1430
  %v1435 = vadd.f32 %v1417, %v1431
  %v1436 = vmul.f32 %v1432, 0.7978846
  %v1437 = vmul.f32 %v1433, 0.7978846
  %v1438 = vmul.f32 %v1434, 0.7978846
  %v1439 = vmul.f32 %v1435, 0.7978846
  %v1440 = vtanh.pop %v1436
  %v1441 = vtanh.pop %v1437
  %v1442 = vtanh.pop %v1438
  %v1443 = vtanh.pop %v1439
  %v1444 = vadd.f32 %v1440, 1.0
  %v1445 = vadd.f32 %v1441, 1.0
  %v1446 = vadd.f32 %v1442, 1.0
  %v1447 = vadd.f32 %v1443, 1.0
  %v1448 = vmul.f32 %v1444, 0.5
  %v1449 = vmul.f32 %v1445, 0.5
  %v1450 = vmul.f32 %v1446, 0.5
  %v1451 = vmul.f32 %v1447, 0.5
  %v1452 = vmul.f32 %v1406, %v1448
  %v1453 = vmul.f32 %v1409, %v1449
  %v1454 = vmul.f32 %v1414, %v1450
  %v1455 = vmul.f32 %v1417, %v1451
  %v1456 = vpack.c.bf16 %v1453, %v1452
  %v1457 = vpack.c.bf16 %v1455, %v1454
  %v1458 = vld [vmem:[%s21] sm:$0xf]
  %v1459 = vld [vmem:[%s21 + $0x4] sm:$0xf]
  %v1460 = vld [vmem:[%s21 + $0x8] sm:$0xf]
  %v1461 = vld [vmem:[%s21 + $0xc] sm:$0xf]
  %v1462 = vld [vmem:[%s21 + $0x10] sm:$0xf]
  %v1463 = vld [vmem:[%s21 + $0x14] sm:$0xf]
  %v1464 = vld [vmem:[%s21 + $0x18] sm:$0xf]
  %v1465 = vld [vmem:[%s21 + $0x1c] sm:$0xf]
  %v1466 = vld [vmem:[%s21 + $0x20] sm:$0xf]
  %v1467 = vld [vmem:[%s21 + $0x24] sm:$0xf]
  %v1468 = vld [vmem:[%s21 + $0x28] sm:$0xf]
  %v1469 = vld [vmem:[%s21 + $0x2c] sm:$0xf]
  %v1470 = vld [vmem:[%s21 + $0x30] sm:$0xf]
  %v1471 = vld [vmem:[%s21 + $0x34] sm:$0xf]
  %v1472 = vld [vmem:[%s21 + $0x38] sm:$0xf]
  %v1473 = vld [vmem:[%s21 + $0x3c] sm:$0xf]
  %v1474 = vld [vmem:[%s22] sm:$0x1]
  %v1476 = vlaneseq
  %v1477 = vshrl.u32 %v1476, 7
  %v1478 = vsub.s32 0, %v1477
  %v1479 = vrot.slane %v1474, %v1478
  %v1497 = vunpack.c.l.b16 %v1458
  %v1498 = vunpack.c.l.b16 %v1459
  %v1499 = vunpack.c.l.b16 %v1460
  %v1500 = vunpack.c.l.b16 %v1461
  %v1501 = vunpack.c.l.b16 %v1462
  %v1502 = vunpack.c.l.b16 %v1463
  %v1503 = vunpack.c.l.b16 %v1464
  %v1504 = vunpack.c.l.b16 %v1465
  %v1505 = vunpack.c.l.b16 %v1466
  %v1506 = vunpack.c.l.b16 %v1467
  %v1507 = vunpack.c.l.b16 %v1468
  %v1508 = vunpack.c.l.b16 %v1469
  %v1509 = vunpack.c.l.b16 %v1470
  %v1510 = vunpack.c.l.b16 %v1471
  %v1511 = vunpack.c.l.b16 %v1472
  %v1512 = vunpack.c.l.b16 %v1473
  %v1513 = vpack.c.b16 %v1498, %v1497
  %v1514 = vpack.c.b16 %v1500, %v1499
  %v1515 = vpack.c.b16 %v1502, %v1501
  %v1516 = vpack.c.b16 %v1504, %v1503
  %v1517 = vpack.c.b16 %v1506, %v1505
  %v1518 = vpack.c.b16 %v1508, %v1507
  %v1519 = vpack.c.b16 %v1510, %v1509
  %v1520 = vpack.c.b16 %v1512, %v1511
  %1529 = vmatprep.subr.bf16.mxu0 0
  %1530 = vmatpush1.bf16.msra.mxu0 %v1513
  %1531 = vmatprep.subr.bf16.mxu0 0
  %1532 = vmatpush1.bf16.msra.mxu0 %v1514
  %1533 = vmatprep.subr.bf16.mxu0 0
  %1534 = vmatpush1.bf16.msra.mxu0 %v1515
  %1535 = vmatprep.subr.bf16.mxu0 0
  %1536 = vmatpush1.bf16.msra.mxu0 %v1516
  %1537 = vmatprep.subr.bf16.mxu0 0
  %1538 = vmatpush1.bf16.msra.mxu0 %v1517
  %1539 = vmatprep.subr.bf16.mxu0 0
  %1540 = vmatpush1.bf16.msra.mxu0 %v1518
  %1541 = vmatprep.subr.bf16.mxu0 0
  %1542 = vmatpush1.bf16.msra.mxu0 %v1519
  %1543 = vmatprep.subr.bf16.mxu0 0
  %1544 = vmatpush1.bf16.msra.mxu0 %v1520
  %1545 = vmatprep.subr.bf16.mxu0 0
  %1546 = vmatpush1.bf16.msra.mxu0 0
  %1547 = vmatprep.subr.bf16.mxu0 0
  %1548 = vmatpush1.bf16.msra.mxu0 0
  %1549 = vmatprep.subr.bf16.mxu0 0
  %1550 = vmatpush1.bf16.msra.mxu0 0
  %1551 = vmatprep.subr.bf16.mxu0 0
  %1552 = vmatpush1.bf16.msra.mxu0 0
  %1553 = vmatprep.subr.bf16.mxu0 0
  %1554 = vmatpush1.bf16.msra.mxu0 0
  %1555 = vmatprep.subr.bf16.mxu0 0
  %1556 = vmatpush1.bf16.msra.mxu0 0
  %1557 = vmatprep.subr.bf16.mxu0 0
  %1558 = vmatpush1.bf16.msra.mxu0 0
  %1559 = vmatprep.subr.bf16.mxu0 0
  %1560 = vmatpush1.bf16.msra.mxu0 0
  %1561 = vmatprep.mubr.bf16.mxu0 0
  %1562 = vmatmul.mubr.bf16.gmra.mrb[0].mxu0 %v1456
  %v1563 = vpop.f32.mrb[0].mxu0
  %v1564 = vadd.f32 %v1479, %v1563
  %v1565 = vpop.f32.mrb[0].mxu0
  %v1566 = vpop.f32.mrb[0].mxu0
  %v1567 = vadd.f32 %v1479, %v1566
  %v1568 = vpop.f32.mrb[0].mxu0
  %1569 = vmatprep.mubr.bf16.mxu0 0
  %1570 = vmatmul.mubr.bf16.gmra.mrb[0].mxu0 %v1457
  %v1571 = vpop.f32.mrb[0].mxu0
  %v1572 = vadd.f32 %v1479, %v1571
  %v1573 = vpop.f32.mrb[0].mxu0
  %v1574 = vpop.f32.mrb[0].mxu0
  %v1575 = vadd.f32 %v1479, %v1574
  %v1576 = vpop.f32.mrb[0].mxu0
  %1577 = vdwg.mxu0
  %v1578 = vadd.f32 %v1252, %v1564
  %v1579 = vadd.f32 %v1253, %v1567
  %v1580 = vadd.f32 %v1254, %v1572
  %v1581 = vadd.f32 %v1255, %v1575
  %v1582 = vsel %vm179, %v1578, 0.0
  %1583 = vadd.xlane.f32.xlu0 %v1582
  %v1584 = vpop.xlane.xlu0 %1583
  %v1585 = vsel %vm179, %v1579, 0.0
  %1586 = vadd.xlane.f32.xlu0 %v1585
  %v1587 = vpop.xlane.xlu0 %1586
  %v1588 = vsel %vm179, %v1580, 0.0
  %1589 = vadd.xlane.f32.xlu0 %v1588
  %v1590 = vpop.xlane.xlu0 %1589
  %v1591 = vsel %vm179, %v1581, 0.0
  %1592 = vadd.xlane.f32.xlu0 %v1591
  %v1593 = vpop.xlane.xlu0 %1592
  %v1594 = vmul.f32 %v1584, 0.03125
  %v1595 = vmul.f32 %v1587, 0.03125
  %v1596 = vmul.f32 %v1590, 0.03125
  %v1597 = vmul.f32 %v1593, 0.03125
  %v1598 = vmul.f32 %v1578, %v1578
  %v1599 = vmul.f32 %v1579, %v1579
  %v1600 = vmul.f32 %v1580, %v1580
  %v1601 = vmul.f32 %v1581, %v1581
  %v1602 = vsel %vm179, %v1598, 0.0
  %1603 = vadd.xlane.f32.xlu0 %v1602
  %v1604 = vpop.xlane.xlu0 %1603
  %v1605 = vsel %vm179, %v1599, 0.0
  %1606 = vadd.xlane.f32.xlu0 %v1605
  %v1607 = vpop.xlane.xlu0 %1606
  %v1608 = vsel %vm179, %v1600, 0.0
  %1609 = vadd.xlane.f32.xlu0 %v1608
  %v1610 = vpop.xlane.xlu0 %1609
  %v1611 = vsel %vm179, %v1601, 0.0
  %1612 = vadd.xlane.f32.xlu0 %v1611
  %v1613 = vpop.xlane.xlu0 %1612
  %v1614 = vmul.f32 %v1604, 0.03125
  %v1615 = vmul.f32 %v1607, 0.03125
  %v1616 = vmul.f32 %v1610, 0.03125
  %v1617 = vmul.f32 %v1613, 0.03125
  %v1618 = vmul.f32 %v1594, %v1594
  %v1619 = vmul.f32 %v1595, %v1595
  %v1620 = vmul.f32 %v1596, %v1596
  %v1621 = vmul.f32 %v1597, %v1597
  %v1622 = vsub.f32 %v1614, %v1618
  %v1623 = vsub.f32 %v1615, %v1619
  %v1624 = vsub.f32 %v1616, %v1620
  %v1625 = vsub.f32 %v1617, %v1621
  %v1626 = vsub.f32 %v1578, %v1594
  %v1627 = vsub.f32 %v1579, %v1595
  %v1628 = vsub.f32 %v1580, %v1596
  %v1629 = vsub.f32 %v1581, %v1597
  %v1630 = vadd.f32 %v1622, 1e-05
  %v1631 = vadd.f32 %v1623, 1e-05
  %v1632 = vadd.f32 %v1624, 1e-05
  %v1633 = vadd.f32 %v1625, 1e-05
  %v1634 = vrsqrt.pop %v1630
  %v1635 = vrsqrt.pop %v1631
  %v1636 = vrsqrt.pop %v1632
  %v1637 = vrsqrt.pop %v1633
  %v1638 = vmul.f32 %v1626, %v1634
  %v1639 = vmul.f32 %v1627, %v1635
  %v1640 = vmul.f32 %v1628, %v1636
  %v1641 = vmul.f32 %v1629, %v1637
  %v1643 = vlaneseq
  %v1644 = vshrl.u32 %v1643, 7
  %v1645 = vsub.s32 0, %v1644
  %v1646 = vrot.slane %v170, %v1645
  %v1648 = vmul.f32 %v1638, %v1646
  %v1649 = vmul.f32 %v1639, %v1646
  %v1650 = vmul.f32 %v1640, %v1646
  %v1651 = vmul.f32 %v1641, %v1646
  %v1653 = vlaneseq
  %v1654 = vshrl.u32 %v1653, 7
  %v1655 = vsub.s32 0, %v1654
  %v1656 = vrot.slane %v171, %v1655
  %v1658 = vadd.f32 %v1648, %v1656
  %v1659 = vadd.f32 %v1649, %v1656
  %v1660 = vadd.f32 %v1650, %v1656
  %v1661 = vadd.f32 %v1651, %v1656
  %v1662 = vadd.f32 %v1658, %v166
  %v1663 = vadd.f32 %v1659, %v167
  %v1664 = vadd.f32 %v1660, %v168
  %v1665 = vadd.f32 %v1661, %v169
  %s1666 = scalar_lea.vmem %s10, 4
  %v1667 = vld [vmem:[%s1666] sm:$0x1]
  %s1668 = scalar_lea.vmem %s10, 5
  %v1669 = vld [vmem:[%s1668] sm:$0x1]
  %v1670 = vsel %vm179, %v1662, 0.0
  %1671 = vadd.xlane.f32.xlu0 %v1670
  %v1672 = vpop.xlane.xlu0 %1671
  %v1673 = vsel %vm179, %v1663, 0.0
  %1674 = vadd.xlane.f32.xlu0 %v1673
  %v1675 = vpop.xlane.xlu0 %1674
  %v1676 = vsel %vm179, %v1664, 0.0
  %1677 = vadd.xlane.f32.xlu0 %v1676
  %v1678 = vpop.xlane.xlu0 %1677
  %v1679 = vsel %vm179, %v1665, 0.0
  %1680 = vadd.xlane.f32.xlu0 %v1679
  %v1681 = vpop.xlane.xlu0 %1680
  %v1682 = vmul.f32 %v1672, 0.03125
  %v1683 = vmul.f32 %v1675, 0.03125
  %v1684 = vmul.f32 %v1678, 0.03125
  %v1685 = vmul.f32 %v1681, 0.03125
  %v1686 = vmul.f32 %v1662, %v1662
  %v1687 = vmul.f32 %v1663, %v1663
  %v1688 = vmul.f32 %v1664, %v1664
  %v1689 = vmul.f32 %v1665, %v1665
  %v1690 = vsel %vm179, %v1686, 0.0
  %1691 = vadd.xlane.f32.xlu0 %v1690
  %v1692 = vpop.xlane.xlu0 %1691
  %v1693 = vsel %vm179, %v1687, 0.0
  %1694 = vadd.xlane.f32.xlu0 %v1693
  %v1695 = vpop.xlane.xlu0 %1694
  %v1696 = vsel %vm179, %v1688, 0.0
  %1697 = vadd.xlane.f32.xlu0 %v1696
  %v1698 = vpop.xlane.xlu0 %1697
  %v1699 = vsel %vm179, %v1689, 0.0
  %1700 = vadd.xlane.f32.xlu0 %v1699
  %v1701 = vpop.xlane.xlu0 %1700
  %v1702 = vmul.f32 %v1692, 0.03125
  %v1703 = vmul.f32 %v1695, 0.03125
  %v1704 = vmul.f32 %v1698, 0.03125
  %v1705 = vmul.f32 %v1701, 0.03125
  %v1706 = vmul.f32 %v1682, %v1682
  %v1707 = vmul.f32 %v1683, %v1683
  %v1708 = vmul.f32 %v1684, %v1684
  %v1709 = vmul.f32 %v1685, %v1685
  %v1710 = vsub.f32 %v1702, %v1706
  %v1711 = vsub.f32 %v1703, %v1707
  %v1712 = vsub.f32 %v1704, %v1708
  %v1713 = vsub.f32 %v1705, %v1709
  %v1714 = vsub.f32 %v1662, %v1682
  %v1715 = vsub.f32 %v1663, %v1683
  %v1716 = vsub.f32 %v1664, %v1684
  %v1717 = vsub.f32 %v1665, %v1685
  %v1718 = vadd.f32 %v1710, 1e-05
  %v1719 = vadd.f32 %v1711, 1e-05
  %v1720 = vadd.f32 %v1712, 1e-05
  %v1721 = vadd.f32 %v1713, 1e-05
  %v1722 = vrsqrt.pop %v1718
  %v1723 = vrsqrt.pop %v1719
  %v1724 = vrsqrt.pop %v1720
  %v1725 = vrsqrt.pop %v1721
  %v1726 = vmul.f32 %v1714, %v1722
  %v1727 = vmul.f32 %v1715, %v1723
  %v1728 = vmul.f32 %v1716, %v1724
  %v1729 = vmul.f32 %v1717, %v1725
  %v1731 = vlaneseq
  %v1732 = vshrl.u32 %v1731, 7
  %v1733 = vsub.s32 0, %v1732
  %v1734 = vrot.slane %v1667, %v1733
  %v1736 = vmul.f32 %v1726, %v1734
  %v1737 = vmul.f32 %v1727, %v1734
  %v1738 = vmul.f32 %v1728, %v1734
  %v1739 = vmul.f32 %v1729, %v1734
  %v1741 = vlaneseq
  %v1742 = vshrl.u32 %v1741, 7
  %v1743 = vsub.s32 0, %v1742
  %v1744 = vrot.slane %v1669, %v1743
  %v1746 = vadd.f32 %v1736, %v1744
  %v1747 = vadd.f32 %v1737, %v1744
  %v1748 = vadd.f32 %v1738, %v1744
  %v1749 = vadd.f32 %v1739, %v1744
  %v1750 = vpack.c.bf16 %v1747, %v1746
  %v1751 = vpack.c.bf16 %v1749, %v1748
  %s1752 = scalar_lea.vmem %s11, 16
  %v1753 = vld [vmem:[%s1752] sm:$0xf]
  %v1754 = vld [vmem:[%s1752 + $0x4] sm:$0xf]
  %v1755 = vld [vmem:[%s1752 + $0x8] sm:$0xf]
  %v1756 = vld [vmem:[%s1752 + $0xc] sm:$0xf]
  %s1757 = scalar_lea.vmem %s14, 1
  %v1758 = vld [vmem:[%s1757] sm:$0x1]
  %v1760 = vlaneseq
  %v1761 = vshrl.u32 %v1760, 7
  %v1762 = vsub.s32 0, %v1761
  %v1763 = vrot.slane %v1758, %v1762
  %v1769 = vunpack.c.l.b16 %v1753
  %v1770 = vunpack.c.l.b16 %v1754
  %v1771 = vunpack.c.l.b16 %v1755
  %v1772 = vunpack.c.l.b16 %v1756
  %v1773 = vpack.c.b16 %v1770, %v1769
  %v1774 = vpack.c.b16 %v1772, %v1771
  %v1778 = vsel %vm179, %v1750, 0
  %v1781 = vsel %vm179, %v1751, 0
  %1783 = vmatprep.subr.bf16.mxu0 0
  %1784 = vmatpush1.bf16.msra.mxu0 %v1773
  %1785 = vmatprep.subr.bf16.mxu0 0
  %1786 = vmatpush1.bf16.msra.mxu0 %v1774
  %1787 = vmatprep.subr.bf16.mxu0 0
  %1788 = vmatpush1.bf16.msra.mxu0 0
  %1789 = vmatprep.subr.bf16.mxu0 0
  %1790 = vmatpush1.bf16.msra.mxu0 0
  %1791 = vmatprep.subr.bf16.mxu0 0
  %1792 = vmatpush1.bf16.msra.mxu0 0
  %1793 = vmatprep.subr.bf16.mxu0 0
  %1794 = vmatpush1.bf16.msra.mxu0 0
  %1795 = vmatprep.subr.bf16.mxu0 0
  %1796 = vmatpush1.bf16.msra.mxu0 0
  %1797 = vmatprep.subr.bf16.mxu0 0
  %1798 = vmatpush1.bf16.msra.mxu0 0
  %1799 = vmatprep.subr.bf16.mxu0 0
  %1800 = vmatpush1.bf16.msra.mxu0 0
  %1801 = vmatprep.subr.bf16.mxu0 0
  %1802 = vmatpush1.bf16.msra.mxu0 0
  %1803 = vmatprep.subr.bf16.mxu0 0
  %1804 = vmatpush1.bf16.msra.mxu0 0
  %1805 = vmatprep.subr.bf16.mxu0 0
  %1806 = vmatpush1.bf16.msra.mxu0 0
  %1807 = vmatprep.subr.bf16.mxu0 0
  %1808 = vmatpush1.bf16.msra.mxu0 0
  %1809 = vmatprep.subr.bf16.mxu0 0
  %1810 = vmatpush1.bf16.msra.mxu0 0
  %1811 = vmatprep.subr.bf16.mxu0 0
  %1812 = vmatpush1.bf16.msra.mxu0 0
  %1813 = vmatprep.subr.bf16.mxu0 0
  %1814 = vmatpush1.bf16.msra.mxu0 0
  %1815 = vmatprep.mubr.bf16.mxu0 0
  %1816 = vmatmul.mubr.bf16.gmra.mrb[0].mxu0 %v1778
  %v1817 = vpop.f32.mrb[0].mxu0
  %v1818 = vadd.f32 %v1763, %v1817
  %v1819 = vpop.f32.mrb[0].mxu0
  %v1820 = vpop.f32.mrb[0].mxu0
  %v1821 = vadd.f32 %v1763, %v1820
  %v1822 = vpop.f32.mrb[0].mxu0
  %1823 = vmatprep.mubr.bf16.mxu0 0
  %1824 = vmatmul.mubr.bf16.gmra.mrb[0].mxu0 %v1781
  %v1825 = vpop.f32.mrb[0].mxu0
  %v1826 = vadd.f32 %v1763, %v1825
  %v1827 = vpop.f32.mrb[0].mxu0
  %v1828 = vpop.f32.mrb[0].mxu0
  %v1829 = vadd.f32 %v1763, %v1828
  %v1830 = vpop.f32.mrb[0].mxu0
  %1831 = vdwg.mxu0
  %s1832 = scalar_lea.vmem %s12, 16
  %v1833 = vld [vmem:[%s1832] sm:$0xf]
  %v1834 = vld [vmem:[%s1832 + $0x4] sm:$0xf]
  %v1835 = vld [vmem:[%s1832 + $0x8] sm:$0xf]
  %v1836 = vld [vmem:[%s1832 + $0xc] sm:$0xf]
  %s1837 = scalar_lea.vmem %s15, 1
  %v1838 = vld [vmem:[%s1837] sm:$0x1]
  %v1840 = vlaneseq
  %v1841 = vshrl.u32 %v1840, 7
  %v1842 = vsub.s32 0, %v1841
  %v1843 = vrot.slane %v1838, %v1842
  %v1849 = vunpack.c.l.b16 %v1833
  %v1850 = vunpack.c.l.b16 %v1834
  %v1851 = vunpack.c.l.b16 %v1835
  %v1852 = vunpack.c.l.b16 %v1836
  %v1853 = vpack.c.b16 %v1850, %v1849
  %v1854 = vpack.c.b16 %v1852, %v1851
  %1857 = vmatprep.subr.bf16.mxu0 0
  %1858 = vmatpush1.bf16.msra.mxu0 %v1853
  %1859 = vmatprep.subr.bf16.mxu0 0
  %1860 = vmatpush1.bf16.msra.mxu0 %v1854
  %1861 = vmatprep.subr.bf16.mxu0 0
  %1862 = vmatpush1.bf16.msra.mxu0 0
  %1863 = vmatprep.subr.bf16.mxu0 0
  %1864 = vmatpush1.bf16.msra.mxu0 0
  %1865 = vmatprep.subr.bf16.mxu0 0
  %1866 = vmatpush1.bf16.msra.mxu0 0
  %1867 = vmatprep.subr.bf16.mxu0 0
  %1868 = vmatpush1.bf16.msra.mxu0 0
  %1869 = vmatprep.subr.bf16.mxu0 0
  %1870 = vmatpush1.bf16.msra.mxu0 0
  %1871 = vmatprep.subr.bf16.mxu0 0
  %1872 = vmatpush1.bf16.msra.mxu0 0
  %1873 = vmatprep.subr.bf16.mxu0 0
  %1874 = vmatpush1.bf16.msra.mxu0 0
  %1875 = vmatprep.subr.bf16.mxu0 0
  %1876 = vmatpush1.bf16.msra.mxu0 0
  %1877 = vmatprep.subr.bf16.mxu0 0
  %1878 = vmatpush1.bf16.msra.mxu0 0
  %1879 = vmatprep.subr.bf16.mxu0 0
  %1880 = vmatpush1.bf16.msra.mxu0 0
  %1881 = vmatprep.subr.bf16.mxu0 0
  %1882 = vmatpush1.bf16.msra.mxu0 0
  %1883 = vmatprep.subr.bf16.mxu0 0
  %1884 = vmatpush1.bf16.msra.mxu0 0
  %1885 = vmatprep.subr.bf16.mxu0 0
  %1886 = vmatpush1.bf16.msra.mxu0 0
  %1887 = vmatprep.subr.bf16.mxu0 0
  %1888 = vmatpush1.bf16.msra.mxu0 0
  %1889 = vmatprep.mubr.bf16.mxu0 0
  %1890 = vmatmul.mubr.bf16.gmra.mrb[0].mxu0 %v1778
  %v1891 = vpop.f32.mrb[0].mxu0
  %v1892 = vadd.f32 %v1843, %v1891
  %v1893 = vpop.f32.mrb[0].mxu0
  %v1894 = vpop.f32.mrb[0].mxu0
  %v1895 = vadd.f32 %v1843, %v1894
  %v1896 = vpop.f32.mrb[0].mxu0
  %1897 = vmatprep.mubr.bf16.mxu0 0
  %1898 = vmatmul.mubr.bf16.gmra.mrb[0].mxu0 %v1781
  %v1899 = vpop.f32.mrb[0].mxu0
  %v1900 = vadd.f32 %v1843, %v1899
  %v1901 = vpop.f32.mrb[0].mxu0
  %v1902 = vpop.f32.mrb[0].mxu0
  %v1903 = vadd.f32 %v1843, %v1902
  %v1904 = vpop.f32.mrb[0].mxu0
  %1905 = vdwg.mxu0
  %s1906 = scalar_lea.vmem %s13, 16
  %v1907 = vld [vmem:[%s1906] sm:$0xf]
  %v1908 = vld [vmem:[%s1906 + $0x4] sm:$0xf]
  %v1909 = vld [vmem:[%s1906 + $0x8] sm:$0xf]
  %v1910 = vld [vmem:[%s1906 + $0xc] sm:$0xf]
  %s1911 = scalar_lea.vmem %s16, 1
  %v1912 = vld [vmem:[%s1911] sm:$0x1]
  %v1914 = vlaneseq
  %v1915 = vshrl.u32 %v1914, 7
  %v1916 = vsub.s32 0, %v1915
  %v1917 = vrot.slane %v1912, %v1916
  %v1923 = vunpack.c.l.b16 %v1907
  %v1924 = vunpack.c.l.b16 %v1908
  %v1925 = vunpack.c.l.b16 %v1909
  %v1926 = vunpack.c.l.b16 %v1910
  %v1927 = vpack.c.b16 %v1924, %v1923
  %v1928 = vpack.c.b16 %v1926, %v1925
  %1931 = vmatprep.subr.bf16.mxu0 0
  %1932 = vmatpush1.bf16.msra.mxu0 %v1927
  %1933 = vmatprep.subr.bf16.mxu0 0
  %1934 = vmatpush1.bf16.msra.mxu0 %v1928
  %1935 = vmatprep.subr.bf16.mxu0 0
  %1936 = vmatpush1.bf16.msra.mxu0 0
  %1937 = vmatprep.subr.bf16.mxu0 0
  %1938 = vmatpush1.bf16.msra.mxu0 0
  %1939 = vmatprep.subr.bf16.mxu0 0
  %1940 = vmatpush1.bf16.msra.mxu0 0
  %1941 = vmatprep.subr.bf16.mxu0 0
  %1942 = vmatpush1.bf16.msra.mxu0 0
  %1943 = vmatprep.subr.bf16.mxu0 0
  %1944 = vmatpush1.bf16.msra.mxu0 0
  %1945 = vmatprep.subr.bf16.mxu0 0
  %1946 = vmatpush1.bf16.msra.mxu0 0
  %1947 = vmatprep.subr.bf16.mxu0 0
  %1948 = vmatpush1.bf16.msra.mxu0 0
  %1949 = vmatprep.subr.bf16.mxu0 0
  %1950 = vmatpush1.bf16.msra.mxu0 0
  %1951 = vmatprep.subr.bf16.mxu0 0
  %1952 = vmatpush1.bf16.msra.mxu0 0
  %1953 = vmatprep.subr.bf16.mxu0 0
  %1954 = vmatpush1.bf16.msra.mxu0 0
  %1955 = vmatprep.subr.bf16.mxu0 0
  %1956 = vmatpush1.bf16.msra.mxu0 0
  %1957 = vmatprep.subr.bf16.mxu0 0
  %1958 = vmatpush1.bf16.msra.mxu0 0
  %1959 = vmatprep.subr.bf16.mxu0 0
  %1960 = vmatpush1.bf16.msra.mxu0 0
  %1961 = vmatprep.subr.bf16.mxu0 0
  %1962 = vmatpush1.bf16.msra.mxu0 0
  %1963 = vmatprep.mubr.bf16.mxu0 0
  %1964 = vmatmul.mubr.bf16.gmra.mrb[0].mxu0 %v1778
  %v1965 = vpop.f32.mrb[0].mxu0
  %v1966 = vadd.f32 %v1917, %v1965
  %v1967 = vpop.f32.mrb[0].mxu0
  %v1968 = vpop.f32.mrb[0].mxu0
  %v1969 = vadd.f32 %v1917, %v1968
  %v1970 = vpop.f32.mrb[0].mxu0
  %1971 = vmatprep.mubr.bf16.mxu0 0
  %1972 = vmatmul.mubr.bf16.gmra.mrb[0].mxu0 %v1781
  %v1973 = vpop.f32.mrb[0].mxu0
  %v1974 = vadd.f32 %v1917, %v1973
  %v1975 = vpop.f32.mrb[0].mxu0
  %v1976 = vpop.f32.mrb[0].mxu0
  %v1977 = vadd.f32 %v1917, %v1976
  %v1978 = vpop.f32.mrb[0].mxu0
  %1979 = vdwg.mxu0
  %v1980 = vpack.c.bf16 %v1821, %v1818
  %v1981 = vpack.c.bf16 %v1829, %v1826
  %v1982 = vpack.c.bf16 %v1895, %v1892
  %v1983 = vpack.c.bf16 %v1903, %v1900
  %v1984 = vpack.c.bf16 %v1969, %v1966
  %v1985 = vpack.c.bf16 %v1977, %v1974
  %v1986 = vmul.bf16 %v1980, %v496
  %v1987 = vmul.bf16 %v1981, %v496
  %v1989 = vsel %vm179, %v1986, 0
  %v1992 = vsel %vm179, %v1987, 0
  %v1995 = vsel %vm179, %v1982, 0
  %v1998 = vsel %vm179, %v1983, 0
  %2000 = vmatprep.subr.bf16.mxu0 0
  %2001 = vmatpush1.bf16.xpose.msra.mxu0 %v1995
  %2002 = vmatprep.subr.bf16.mxu0 0
  %2003 = vmatpush1.bf16.xpose.msra.mxu0 %v1998
  %2004 = vmatprep.subr.bf16.mxu0 0
  %2005 = vmatpush1.bf16.xpose.msra.mxu0 0
  %2006 = vmatprep.subr.bf16.mxu0 0
  %2007 = vmatpush1.bf16.xpose.msra.mxu0 0
  %2008 = vmatprep.subr.bf16.mxu0 0
  %2009 = vmatpush1.bf16.xpose.msra.mxu0 0
  %2010 = vmatprep.subr.bf16.mxu0 0
  %2011 = vmatpush1.bf16.xpose.msra.mxu0 0
  %2012 = vmatprep.subr.bf16.mxu0 0
  %2013 = vmatpush1.bf16.xpose.msra.mxu0 0
  %2014 = vmatprep.subr.bf16.mxu0 0
  %2015 = vmatpush1.bf16.xpose.msra.mxu0 0
  %2016 = vmatprep.subr.bf16.mxu0 0
  %2017 = vmatpush1.bf16.xpose.msra.mxu0 0
  %2018 = vmatprep.subr.bf16.mxu0 0
  %2019 = vmatpush1.bf16.xpose.msra.mxu0 0
  %2020 = vmatprep.subr.bf16.mxu0 0
  %2021 = vmatpush1.bf16.xpose.msra.mxu0 0
  %2022 = vmatprep.subr.bf16.mxu0 0
  %2023 = vmatpush1.bf16.xpose.msra.mxu0 0
  %2024 = vmatprep.subr.bf16.mxu0 0
  %2025 = vmatpush1.bf16.xpose.msra.mxu0 0
  %2026 = vmatprep.subr.bf16.mxu0 0
  %2027 = vmatpush1.bf16.xpose.msra.mxu0 0
  %2028 = vmatprep.subr.bf16.mxu0 0
  %2029 = vmatpush1.bf16.xpose.msra.mxu0 0
  %2030 = vmatprep.subr.bf16.mxu0 0
  %2031 = vmatpush1.bf16.xpose.msra.mxu0 0
  %2032 = vmatprep.mubr.bf16.mxu0 0
  %2033 = vmatmul.mubr.bf16.gmra.mrb[0].mxu0 %v1989
  %v2034 = vpop.f32.mrb[0].mxu0
  %v2035 = vadd.f32 %v77, %v2034
  %v2036 = vpop.f32.mrb[0].mxu0
  %v2037 = vpop.f32.mrb[0].mxu0
  %v2038 = vadd.f32 %v78, %v2037
  %v2039 = vpop.f32.mrb[0].mxu0
  %2040 = vmatprep.mubr.bf16.mxu0 0
  %2041 = vmatmul.mubr.bf16.gmra.mrb[0].mxu0 %v1992
  %v2042 = vpop.f32.mrb[0].mxu0
  %v2043 = vadd.f32 %v79, %v2042
  %v2044 = vpop.f32.mrb[0].mxu0
  %v2045 = vpop.f32.mrb[0].mxu0
  %v2046 = vadd.f32 %v80, %v2045
  %v2047 = vpop.f32.mrb[0].mxu0
  %2048 = vdwg.mxu0
  %v2049 = vsel %vm179, %v2035, -inf
  %2050 = vmax.xlane.f32.xlu0 %v2049
  %v2051 = vpop.xlane.xlu0 %2050
  %v2052 = vsel %vm179, %v2038, -inf
  %2053 = vmax.xlane.f32.xlu0 %v2052
  %v2054 = vpop.xlane.xlu0 %2053
  %v2055 = vsel %vm179, %v2043, -inf
  %2056 = vmax.xlane.f32.xlu0 %v2055
  %v2057 = vpop.xlane.xlu0 %2056
  %v2058 = vsel %vm179, %v2046, -inf
  %2059 = vmax.xlane.f32.xlu0 %v2058
  %v2060 = vpop.xlane.xlu0 %2059
  %v2061 = vsub.f32 %v2035, %v2051
  %v2062 = vsub.f32 %v2038, %v2054
  %v2063 = vsub.f32 %v2043, %v2057
  %v2064 = vsub.f32 %v2046, %v2060
  %v2065 = vmul.f32 %v2061, 1.442695
  %v2066 = vpow.pop %v2065
  %v2067 = vmul.f32 %v2062, 1.442695
  %v2068 = vpow.pop %v2067
  %v2069 = vmul.f32 %v2063, 1.442695
  %v2070 = vpow.pop %v2069
  %v2071 = vmul.f32 %v2064, 1.442695
  %v2072 = vpow.pop %v2071
  %v2073 = vsel %vm179, %v2066, 0.0
  %2074 = vadd.xlane.f32.xlu0 %v2073
  %v2075 = vpop.xlane.xlu0 %2074
  %v2076 = vsel %vm179, %v2068, 0.0
  %2077 = vadd.xlane.f32.xlu0 %v2076
  %v2078 = vpop.xlane.xlu0 %2077
  %v2079 = vsel %vm179, %v2070, 0.0
  %2080 = vadd.xlane.f32.xlu0 %v2079
  %v2081 = vpop.xlane.xlu0 %2080
  %v2082 = vsel %vm179, %v2072, 0.0
  %2083 = vadd.xlane.f32.xlu0 %v2082
  %v2084 = vpop.xlane.xlu0 %2083
  %v2085 = vrcp.pop %v2075
  %v2086 = vrcp.pop %v2078
  %v2087 = vrcp.pop %v2081
  %v2088 = vrcp.pop %v2084
  %v2089 = vmul.f32 %v2066, %v2085
  %v2090 = vmul.f32 %v2068, %v2086
  %v2091 = vmul.f32 %v2070, %v2087
  %v2092 = vmul.f32 %v2072, %v2088
  %v2093 = vpack.c.bf16 %v2090, %v2089
  %v2094 = vpack.c.bf16 %v2092, %v2091
  %v2095 = vmul.bf16 %v1984, %v496
  %v2096 = vmul.bf16 %v1985, %v496
  %v2097 = vmul.bf16 %v1980, %v614
  %v2098 = vmul.bf16 %v1981, %v614
  %v2100 = vsel %vm179, %v2097, 0
  %v2103 = vsel %vm179, %v2098, 0
  %2105 = vmatprep.subr.bf16.mxu0 0
  %2106 = vmatpush1.bf16.xpose.msra.mxu0 %v1995
  %2107 = vmatprep.subr.bf16.mxu0 0
  %2108 = vmatpush1.bf16.xpose.msra.mxu0 %v1998
  %2109 = vmatprep.subr.bf16.mxu0 0
  %2110 = vmatpush1.bf16.xpose.msra.mxu0 0
  %2111 = vmatprep.subr.bf16.mxu0 0
  %2112 = vmatpush1.bf16.xpose.msra.mxu0 0
  %2113 = vmatprep.subr.bf16.mxu0 0
  %2114 = vmatpush1.bf16.xpose.msra.mxu0 0
  %2115 = vmatprep.subr.bf16.mxu0 0
  %2116 = vmatpush1.bf16.xpose.msra.mxu0 0
  %2117 = vmatprep.subr.bf16.mxu0 0
  %2118 = vmatpush1.bf16.xpose.msra.mxu0 0
  %2119 = vmatprep.subr.bf16.mxu0 0
  %2120 = vmatpush1.bf16.xpose.msra.mxu0 0
  %2121 = vmatprep.subr.bf16.mxu0 0
  %2122 = vmatpush1.bf16.xpose.msra.mxu0 0
  %2123 = vmatprep.subr.bf16.mxu0 0
  %2124 = vmatpush1.bf16.xpose.msra.mxu0 0
  %2125 = vmatprep.subr.bf16.mxu0 0
  %2126 = vmatpush1.bf16.xpose.msra.mxu0 0
  %2127 = vmatprep.subr.bf16.mxu0 0
  %2128 = vmatpush1.bf16.xpose.msra.mxu0 0
  %2129 = vmatprep.subr.bf16.mxu0 0
  %2130 = vmatpush1.bf16.xpose.msra.mxu0 0
  %2131 = vmatprep.subr.bf16.mxu0 0
  %2132 = vmatpush1.bf16.xpose.msra.mxu0 0
  %2133 = vmatprep.subr.bf16.mxu0 0
  %2134 = vmatpush1.bf16.xpose.msra.mxu0 0
  %2135 = vmatprep.subr.bf16.mxu0 0
  %2136 = vmatpush1.bf16.xpose.msra.mxu0 0
  %2137 = vmatprep.mubr.bf16.mxu0 0
  %2138 = vmatmul.mubr.bf16.gmra.mrb[0].mxu0 %v2100
  %v2139 = vpop.f32.mrb[0].mxu0
  %v2140 = vadd.f32 %v77, %v2139
  %v2141 = vpop.f32.mrb[0].mxu0
  %v2142 = vpop.f32.mrb[0].mxu0
  %v2143 = vadd.f32 %v78, %v2142
  %v2144 = vpop.f32.mrb[0].mxu0
  %2145 = vmatprep.mubr.bf16.mxu0 0
  %2146 = vmatmul.mubr.bf16.gmra.mrb[0].mxu0 %v2103
  %v2147 = vpop.f32.mrb[0].mxu0
  %v2148 = vadd.f32 %v79, %v2147
  %v2149 = vpop.f32.mrb[0].mxu0
  %v2150 = vpop.f32.mrb[0].mxu0
  %v2151 = vadd.f32 %v80, %v2150
  %v2152 = vpop.f32.mrb[0].mxu0
  %2153 = vdwg.mxu0
  %v2154 = vsel %vm179, %v2140, -inf
  %2155 = vmax.xlane.f32.xlu0 %v2154
  %v2156 = vpop.xlane.xlu0 %2155
  %v2157 = vsel %vm179, %v2143, -inf
  %2158 = vmax.xlane.f32.xlu0 %v2157
  %v2159 = vpop.xlane.xlu0 %2158
  %v2160 = vsel %vm179, %v2148, -inf
  %2161 = vmax.xlane.f32.xlu0 %v2160
  %v2162 = vpop.xlane.xlu0 %2161
  %v2163 = vsel %vm179, %v2151, -inf
  %2164 = vmax.xlane.f32.xlu0 %v2163
  %v2165 = vpop.xlane.xlu0 %2164
  %v2166 = vsub.f32 %v2140, %v2156
  %v2167 = vsub.f32 %v2143, %v2159
  %v2168 = vsub.f32 %v2148, %v2162
  %v2169 = vsub.f32 %v2151, %v2165
  %v2170 = vmul.f32 %v2166, 1.442695
  %v2171 = vpow.pop %v2170
  %v2172 = vmul.f32 %v2167, 1.442695
  %v2173 = vpow.pop %v2172
  %v2174 = vmul.f32 %v2168, 1.442695
  %v2175 = vpow.pop %v2174
  %v2176 = vmul.f32 %v2169, 1.442695
  %v2177 = vpow.pop %v2176
  %v2178 = vsel %vm179, %v2171, 0.0
  %2179 = vadd.xlane.f32.xlu0 %v2178
  %v2180 = vpop.xlane.xlu0 %2179
  %v2181 = vsel %vm179, %v2173, 0.0
  %2182 = vadd.xlane.f32.xlu0 %v2181
  %v2183 = vpop.xlane.xlu0 %2182
  %v2184 = vsel %vm179, %v2175, 0.0
  %2185 = vadd.xlane.f32.xlu0 %v2184
  %v2186 = vpop.xlane.xlu0 %2185
  %v2187 = vsel %vm179, %v2177, 0.0
  %2188 = vadd.xlane.f32.xlu0 %v2187
  %v2189 = vpop.xlane.xlu0 %2188
  %v2190 = vrcp.pop %v2180
  %v2191 = vrcp.pop %v2183
  %v2192 = vrcp.pop %v2186
  %v2193 = vrcp.pop %v2189
  %v2194 = vmul.f32 %v2171, %v2190
  %v2195 = vmul.f32 %v2173, %v2191
  %v2196 = vmul.f32 %v2175, %v2192
  %v2197 = vmul.f32 %v2177, %v2193
  %v2198 = vpack.c.bf16 %v2195, %v2194
  %v2199 = vpack.c.bf16 %v2197, %v2196
  %v2200 = vmul.bf16 %v1984, %v614
  %v2201 = vmul.bf16 %v1985, %v614
  %v2203 = vsel %vm179, %v2198, 0
  %v2206 = vsel %vm179, %v2199, 0
  %2208 = vmatprep.subr.bf16.mxu0 0
  %2209 = vmatpush1.bf16.msra.mxu0 %v2200
  %2210 = vmatprep.subr.bf16.mxu0 0
  %2211 = vmatpush1.bf16.msra.mxu0 %v2201
  %2212 = vmatprep.subr.bf16.mxu0 0
  %2213 = vmatpush1.bf16.msra.mxu0 0
  %2214 = vmatprep.subr.bf16.mxu0 0
  %2215 = vmatpush1.bf16.msra.mxu0 0
  %2216 = vmatprep.subr.bf16.mxu0 0
  %2217 = vmatpush1.bf16.msra.mxu0 0
  %2218 = vmatprep.subr.bf16.mxu0 0
  %2219 = vmatpush1.bf16.msra.mxu0 0
  %2220 = vmatprep.subr.bf16.mxu0 0
  %2221 = vmatpush1.bf16.msra.mxu0 0
  %2222 = vmatprep.subr.bf16.mxu0 0
  %2223 = vmatpush1.bf16.msra.mxu0 0
  %2224 = vmatprep.subr.bf16.mxu0 0
  %2225 = vmatpush1.bf16.msra.mxu0 0
  %2226 = vmatprep.subr.bf16.mxu0 0
  %2227 = vmatpush1.bf16.msra.mxu0 0
  %2228 = vmatprep.subr.bf16.mxu0 0
  %2229 = vmatpush1.bf16.msra.mxu0 0
  %2230 = vmatprep.subr.bf16.mxu0 0
  %2231 = vmatpush1.bf16.msra.mxu0 0
  %2232 = vmatprep.subr.bf16.mxu0 0
  %2233 = vmatpush1.bf16.msra.mxu0 0
  %2234 = vmatprep.subr.bf16.mxu0 0
  %2235 = vmatpush1.bf16.msra.mxu0 0
  %2236 = vmatprep.subr.bf16.mxu0 0
  %2237 = vmatpush1.bf16.msra.mxu0 0
  %2238 = vmatprep.subr.bf16.mxu0 0
  %2239 = vmatpush1.bf16.msra.mxu0 0
  %2240 = vmatprep.mubr.bf16.mxu0 0
  %2241 = vmatmul.mubr.bf16.gmra.mrb[0].mxu0 %v2203
  %v2242 = vpop.f32.mrb[0].mxu0
  %v2243 = vadd.f32 0.0, %v2242
  %v2244 = vpop.f32.mrb[0].mxu0
  %v2245 = vpop.f32.mrb[0].mxu0
  %v2246 = vadd.f32 0.0, %v2245
  %v2247 = vpop.f32.mrb[0].mxu0
  %2248 = vmatprep.mubr.bf16.mxu0 0
  %2249 = vmatmul.mubr.bf16.gmra.mrb[0].mxu0 %v2206
  %v2250 = vpop.f32.mrb[0].mxu0
  %v2251 = vadd.f32 0.0, %v2250
  %v2252 = vpop.f32.mrb[0].mxu0
  %v2253 = vpop.f32.mrb[0].mxu0
  %v2254 = vadd.f32 0.0, %v2253
  %v2255 = vpop.f32.mrb[0].mxu0
  %2256 = vdwg.mxu0
  %v2258 = vsel %vm179, %v2093, 0
  %v2261 = vsel %vm179, %v2094, 0
  %2263 = vmatprep.subr.bf16.mxu0 0
  %2264 = vmatpush1.bf16.msra.mxu0 %v2095
  %2265 = vmatprep.subr.bf16.mxu0 0
  %2266 = vmatpush1.bf16.msra.mxu0 %v2096
  %2267 = vmatprep.subr.bf16.mxu0 0
  %2268 = vmatpush1.bf16.msra.mxu0 0
  %2269 = vmatprep.subr.bf16.mxu0 0
  %2270 = vmatpush1.bf16.msra.mxu0 0
  %2271 = vmatprep.subr.bf16.mxu0 0
  %2272 = vmatpush1.bf16.msra.mxu0 0
  %2273 = vmatprep.subr.bf16.mxu0 0
  %2274 = vmatpush1.bf16.msra.mxu0 0
  %2275 = vmatprep.subr.bf16.mxu0 0
  %2276 = vmatpush1.bf16.msra.mxu0 0
  %2277 = vmatprep.subr.bf16.mxu0 0
  %2278 = vmatpush1.bf16.msra.mxu0 0
  %2279 = vmatprep.subr.bf16.mxu0 0
  %2280 = vmatpush1.bf16.msra.mxu0 0
  %2281 = vmatprep.subr.bf16.mxu0 0
  %2282 = vmatpush1.bf16.msra.mxu0 0
  %2283 = vmatprep.subr.bf16.mxu0 0
  %2284 = vmatpush1.bf16.msra.mxu0 0
  %2285 = vmatprep.subr.bf16.mxu0 0
  %2286 = vmatpush1.bf16.msra.mxu0 0
  %2287 = vmatprep.subr.bf16.mxu0 0
  %2288 = vmatpush1.bf16.msra.mxu0 0
  %2289 = vmatprep.subr.bf16.mxu0 0
  %2290 = vmatpush1.bf16.msra.mxu0 0
  %2291 = vmatprep.subr.bf16.mxu0 0
  %2292 = vmatpush1.bf16.msra.mxu0 0
  %2293 = vmatprep.subr.bf16.mxu0 0
  %2294 = vmatpush1.bf16.msra.mxu0 0
  %2295 = vmatprep.mubr.bf16.mxu0 0
  %2296 = vmatmul.mubr.bf16.gmra.mrb[0].mxu0 %v2258
  %v2297 = vpop.f32.mrb[0].mxu0
  %v2298 = vadd.f32 %v2243, %v2297
  %v2299 = vpop.f32.mrb[0].mxu0
  %v2300 = vpop.f32.mrb[0].mxu0
  %v2301 = vadd.f32 %v2246, %v2300
  %v2302 = vpop.f32.mrb[0].mxu0
  %2303 = vmatprep.mubr.bf16.mxu0 0
  %2304 = vmatmul.mubr.bf16.gmra.mrb[0].mxu0 %v2261
  %v2305 = vpop.f32.mrb[0].mxu0
  %v2306 = vadd.f32 %v2251, %v2305
  %v2307 = vpop.f32.mrb[0].mxu0
  %v2308 = vpop.f32.mrb[0].mxu0
  %v2309 = vadd.f32 %v2254, %v2308
  %v2310 = vpop.f32.mrb[0].mxu0
  %2311 = vdwg.mxu0
  %v2312 = vmul.bf16 %v1980, %v836
  %v2313 = vmul.bf16 %v1981, %v836
  %v2315 = vsel %vm179, %v2312, 0
  %v2318 = vsel %vm179, %v2313, 0
  %2320 = vmatprep.subr.bf16.mxu0 0
  %2321 = vmatpush1.bf16.xpose.msra.mxu0 %v1995
  %2322 = vmatprep.subr.bf16.mxu0 0
  %2323 = vmatpush1.bf16.xpose.msra.mxu0 %v1998
  %2324 = vmatprep.subr.bf16.mxu0 0
  %2325 = vmatpush1.bf16.xpose.msra.mxu0 0
  %2326 = vmatprep.subr.bf16.mxu0 0
  %2327 = vmatpush1.bf16.xpose.msra.mxu0 0
  %2328 = vmatprep.subr.bf16.mxu0 0
  %2329 = vmatpush1.bf16.xpose.msra.mxu0 0
  %2330 = vmatprep.subr.bf16.mxu0 0
  %2331 = vmatpush1.bf16.xpose.msra.mxu0 0
  %2332 = vmatprep.subr.bf16.mxu0 0
  %2333 = vmatpush1.bf16.xpose.msra.mxu0 0
  %2334 = vmatprep.subr.bf16.mxu0 0
  %2335 = vmatpush1.bf16.xpose.msra.mxu0 0
  %2336 = vmatprep.subr.bf16.mxu0 0
  %2337 = vmatpush1.bf16.xpose.msra.mxu0 0
  %2338 = vmatprep.subr.bf16.mxu0 0
  %2339 = vmatpush1.bf16.xpose.msra.mxu0 0
  %2340 = vmatprep.subr.bf16.mxu0 0
  %2341 = vmatpush1.bf16.xpose.msra.mxu0 0
  %2342 = vmatprep.subr.bf16.mxu0 0
  %2343 = vmatpush1.bf16.xpose.msra.mxu0 0
  %2344 = vmatprep.subr.bf16.mxu0 0
  %2345 = vmatpush1.bf16.xpose.msra.mxu0 0
  %2346 = vmatprep.subr.bf16.mxu0 0
  %2347 = vmatpush1.bf16.xpose.msra.mxu0 0
  %2348 = vmatprep.subr.bf16.mxu0 0
  %2349 = vmatpush1.bf16.xpose.msra.mxu0 0
  %2350 = vmatprep.subr.bf16.mxu0 0
  %2351 = vmatpush1.bf16.xpose.msra.mxu0 0
  %2352 = vmatprep.mubr.bf16.mxu0 0
  %2353 = vmatmul.mubr.bf16.gmra.mrb[0].mxu0 %v2315
  %v2354 = vpop.f32.mrb[0].mxu0
  %v2355 = vadd.f32 %v77, %v2354
  %v2356 = vpop.f32.mrb[0].mxu0
  %v2357 = vpop.f32.mrb[0].mxu0
  %v2358 = vadd.f32 %v78, %v2357
  %v2359 = vpop.f32.mrb[0].mxu0
  %2360 = vmatprep.mubr.bf16.mxu0 0
  %2361 = vmatmul.mubr.bf16.gmra.mrb[0].mxu0 %v2318
  %v2362 = vpop.f32.mrb[0].mxu0
  %v2363 = vadd.f32 %v79, %v2362
  %v2364 = vpop.f32.mrb[0].mxu0
  %v2365 = vpop.f32.mrb[0].mxu0
  %v2366 = vadd.f32 %v80, %v2365
  %v2367 = vpop.f32.mrb[0].mxu0
  %2368 = vdwg.mxu0
  %v2369 = vsel %vm179, %v2355, -inf
  %2370 = vmax.xlane.f32.xlu0 %v2369
  %v2371 = vpop.xlane.xlu0 %2370
  %v2372 = vsel %vm179, %v2358, -inf
  %2373 = vmax.xlane.f32.xlu0 %v2372
  %v2374 = vpop.xlane.xlu0 %2373
  %v2375 = vsel %vm179, %v2363, -inf
  %2376 = vmax.xlane.f32.xlu0 %v2375
  %v2377 = vpop.xlane.xlu0 %2376
  %v2378 = vsel %vm179, %v2366, -inf
  %2379 = vmax.xlane.f32.xlu0 %v2378
  %v2380 = vpop.xlane.xlu0 %2379
  %v2381 = vsub.f32 %v2355, %v2371
  %v2382 = vsub.f32 %v2358, %v2374
  %v2383 = vsub.f32 %v2363, %v2377
  %v2384 = vsub.f32 %v2366, %v2380
  %v2385 = vmul.f32 %v2381, 1.442695
  %v2386 = vpow.pop %v2385
  %v2387 = vmul.f32 %v2382, 1.442695
  %v2388 = vpow.pop %v2387
  %v2389 = vmul.f32 %v2383, 1.442695
  %v2390 = vpow.pop %v2389
  %v2391 = vmul.f32 %v2384, 1.442695
  %v2392 = vpow.pop %v2391
  %v2393 = vsel %vm179, %v2386, 0.0
  %2394 = vadd.xlane.f32.xlu0 %v2393
  %v2395 = vpop.xlane.xlu0 %2394
  %v2396 = vsel %vm179, %v2388, 0.0
  %2397 = vadd.xlane.f32.xlu0 %v2396
  %v2398 = vpop.xlane.xlu0 %2397
  %v2399 = vsel %vm179, %v2390, 0.0
  %2400 = vadd.xlane.f32.xlu0 %v2399
  %v2401 = vpop.xlane.xlu0 %2400
  %v2402 = vsel %vm179, %v2392, 0.0
  %2403 = vadd.xlane.f32.xlu0 %v2402
  %v2404 = vpop.xlane.xlu0 %2403
  %v2405 = vrcp.pop %v2395
  %v2406 = vrcp.pop %v2398
  %v2407 = vrcp.pop %v2401
  %v2408 = vrcp.pop %v2404
  %v2409 = vmul.f32 %v2386, %v2405
  %v2410 = vmul.f32 %v2388, %v2406
  %v2411 = vmul.f32 %v2390, %v2407
  %v2412 = vmul.f32 %v2392, %v2408
  %v2413 = vpack.c.bf16 %v2410, %v2409
  %v2414 = vpack.c.bf16 %v2412, %v2411
  %v2415 = vmul.bf16 %v1984, %v836
  %v2416 = vmul.bf16 %v1985, %v836
  %v2418 = vsel %vm179, %v2413, 0
  %v2421 = vsel %vm179, %v2414, 0
  %2423 = vmatprep.subr.bf16.mxu0 0
  %2424 = vmatpush1.bf16.msra.mxu0 %v2415
  %2425 = vmatprep.subr.bf16.mxu0 0
  %2426 = vmatpush1.bf16.msra.mxu0 %v2416
  %2427 = vmatprep.subr.bf16.mxu0 0
  %2428 = vmatpush1.bf16.msra.mxu0 0
  %2429 = vmatprep.subr.bf16.mxu0 0
  %2430 = vmatpush1.bf16.msra.mxu0 0
  %2431 = vmatprep.subr.bf16.mxu0 0
  %2432 = vmatpush1.bf16.msra.mxu0 0
  %2433 = vmatprep.subr.bf16.mxu0 0
  %2434 = vmatpush1.bf16.msra.mxu0 0
  %2435 = vmatprep.subr.bf16.mxu0 0
  %2436 = vmatpush1.bf16.msra.mxu0 0
  %2437 = vmatprep.subr.bf16.mxu0 0
  %2438 = vmatpush1.bf16.msra.mxu0 0
  %2439 = vmatprep.subr.bf16.mxu0 0
  %2440 = vmatpush1.bf16.msra.mxu0 0
  %2441 = vmatprep.subr.bf16.mxu0 0
  %2442 = vmatpush1.bf16.msra.mxu0 0
  %2443 = vmatprep.subr.bf16.mxu0 0
  %2444 = vmatpush1.bf16.msra.mxu0 0
  %2445 = vmatprep.subr.bf16.mxu0 0
  %2446 = vmatpush1.bf16.msra.mxu0 0
  %2447 = vmatprep.subr.bf16.mxu0 0
  %2448 = vmatpush1.bf16.msra.mxu0 0
  %2449 = vmatprep.subr.bf16.mxu0 0
  %2450 = vmatpush1.bf16.msra.mxu0 0
  %2451 = vmatprep.subr.bf16.mxu0 0
  %2452 = vmatpush1.bf16.msra.mxu0 0
  %2453 = vmatprep.subr.bf16.mxu0 0
  %2454 = vmatpush1.bf16.msra.mxu0 0
  %2455 = vmatprep.mubr.bf16.mxu0 0
  %2456 = vmatmul.mubr.bf16.gmra.mrb[0].mxu0 %v2418
  %v2457 = vpop.f32.mrb[0].mxu0
  %v2458 = vadd.f32 0.0, %v2457
  %v2459 = vpop.f32.mrb[0].mxu0
  %v2460 = vpop.f32.mrb[0].mxu0
  %v2461 = vadd.f32 0.0, %v2460
  %v2462 = vpop.f32.mrb[0].mxu0
  %2463 = vmatprep.mubr.bf16.mxu0 0
  %2464 = vmatmul.mubr.bf16.gmra.mrb[0].mxu0 %v2421
  %v2465 = vpop.f32.mrb[0].mxu0
  %v2466 = vadd.f32 0.0, %v2465
  %v2467 = vpop.f32.mrb[0].mxu0
  %v2468 = vpop.f32.mrb[0].mxu0
  %v2469 = vadd.f32 0.0, %v2468
  %v2470 = vpop.f32.mrb[0].mxu0
  %2471 = vdwg.mxu0
  %v2472 = vadd.f32 %v2298, %v2458
  %v2473 = vadd.f32 %v2301, %v2461
  %v2474 = vadd.f32 %v2306, %v2466
  %v2475 = vadd.f32 %v2309, %v2469
  %v2476 = vmul.bf16 %v1980, %v1007
  %v2477 = vmul.bf16 %v1981, %v1007
  %v2479 = vsel %vm179, %v2476, 0
  %v2482 = vsel %vm179, %v2477, 0
  %2484 = vmatprep.subr.bf16.mxu0 0
  %2485 = vmatpush1.bf16.xpose.msra.mxu0 %v1995
  %2486 = vmatprep.subr.bf16.mxu0 0
  %2487 = vmatpush1.bf16.xpose.msra.mxu0 %v1998
  %2488 = vmatprep.subr.bf16.mxu0 0
  %2489 = vmatpush1.bf16.xpose.msra.mxu0 0
  %2490 = vmatprep.subr.bf16.mxu0 0
  %2491 = vmatpush1.bf16.xpose.msra.mxu0 0
  %2492 = vmatprep.subr.bf16.mxu0 0
  %2493 = vmatpush1.bf16.xpose.msra.mxu0 0
  %2494 = vmatprep.subr.bf16.mxu0 0
  %2495 = vmatpush1.bf16.xpose.msra.mxu0 0
  %2496 = vmatprep.subr.bf16.mxu0 0
  %2497 = vmatpush1.bf16.xpose.msra.mxu0 0
  %2498 = vmatprep.subr.bf16.mxu0 0
  %2499 = vmatpush1.bf16.xpose.msra.mxu0 0
  %2500 = vmatprep.subr.bf16.mxu0 0
  %2501 = vmatpush1.bf16.xpose.msra.mxu0 0
  %2502 = vmatprep.subr.bf16.mxu0 0
  %2503 = vmatpush1.bf16.xpose.msra.mxu0 0
  %2504 = vmatprep.subr.bf16.mxu0 0
  %2505 = vmatpush1.bf16.xpose.msra.mxu0 0
  %2506 = vmatprep.subr.bf16.mxu0 0
  %2507 = vmatpush1.bf16.xpose.msra.mxu0 0
  %2508 = vmatprep.subr.bf16.mxu0 0
  %2509 = vmatpush1.bf16.xpose.msra.mxu0 0
  %2510 = vmatprep.subr.bf16.mxu0 0
  %2511 = vmatpush1.bf16.xpose.msra.mxu0 0
  %2512 = vmatprep.subr.bf16.mxu0 0
  %2513 = vmatpush1.bf16.xpose.msra.mxu0 0
  %2514 = vmatprep.subr.bf16.mxu0 0
  %2515 = vmatpush1.bf16.xpose.msra.mxu0 0
  %2516 = vmatprep.mubr.bf16.mxu0 0
  %2517 = vmatmul.mubr.bf16.gmra.mrb[0].mxu0 %v2479
  %v2518 = vpop.f32.mrb[0].mxu0
  %v2519 = vadd.f32 %v77, %v2518
  %v2520 = vpop.f32.mrb[0].mxu0
  %v2521 = vpop.f32.mrb[0].mxu0
  %v2522 = vadd.f32 %v78, %v2521
  %v2523 = vpop.f32.mrb[0].mxu0
  %2524 = vmatprep.mubr.bf16.mxu0 0
  %2525 = vmatmul.mubr.bf16.gmra.mrb[0].mxu0 %v2482
  %v2526 = vpop.f32.mrb[0].mxu0
  %v2527 = vadd.f32 %v79, %v2526
  %v2528 = vpop.f32.mrb[0].mxu0
  %v2529 = vpop.f32.mrb[0].mxu0
  %v2530 = vadd.f32 %v80, %v2529
  %v2531 = vpop.f32.mrb[0].mxu0
  %2532 = vdwg.mxu0
  %v2533 = vsel %vm179, %v2519, -inf
  %2534 = vmax.xlane.f32.xlu0 %v2533
  %v2535 = vpop.xlane.xlu0 %2534
  %v2536 = vsel %vm179, %v2522, -inf
  %2537 = vmax.xlane.f32.xlu0 %v2536
  %v2538 = vpop.xlane.xlu0 %2537
  %v2539 = vsel %vm179, %v2527, -inf
  %2540 = vmax.xlane.f32.xlu0 %v2539
  %v2541 = vpop.xlane.xlu0 %2540
  %v2542 = vsel %vm179, %v2530, -inf
  %2543 = vmax.xlane.f32.xlu0 %v2542
  %v2544 = vpop.xlane.xlu0 %2543
  %v2545 = vsub.f32 %v2519, %v2535
  %v2546 = vsub.f32 %v2522, %v2538
  %v2547 = vsub.f32 %v2527, %v2541
  %v2548 = vsub.f32 %v2530, %v2544
  %v2549 = vmul.f32 %v2545, 1.442695
  %v2550 = vpow.pop %v2549
  %v2551 = vmul.f32 %v2546, 1.442695
  %v2552 = vpow.pop %v2551
  %v2553 = vmul.f32 %v2547, 1.442695
  %v2554 = vpow.pop %v2553
  %v2555 = vmul.f32 %v2548, 1.442695
  %v2556 = vpow.pop %v2555
  %v2557 = vsel %vm179, %v2550, 0.0
  %2558 = vadd.xlane.f32.xlu0 %v2557
  %v2559 = vpop.xlane.xlu0 %2558
  %v2560 = vsel %vm179, %v2552, 0.0
  %2561 = vadd.xlane.f32.xlu0 %v2560
  %v2562 = vpop.xlane.xlu0 %2561
  %v2563 = vsel %vm179, %v2554, 0.0
  %2564 = vadd.xlane.f32.xlu0 %v2563
  %v2565 = vpop.xlane.xlu0 %2564
  %v2566 = vsel %vm179, %v2556, 0.0
  %2567 = vadd.xlane.f32.xlu0 %v2566
  %v2568 = vpop.xlane.xlu0 %2567
  %v2569 = vrcp.pop %v2559
  %v2570 = vrcp.pop %v2562
  %v2571 = vrcp.pop %v2565
  %v2572 = vrcp.pop %v2568
  %v2573 = vmul.f32 %v2550, %v2569
  %v2574 = vmul.f32 %v2552, %v2570
  %v2575 = vmul.f32 %v2554, %v2571
  %v2576 = vmul.f32 %v2556, %v2572
  %v2577 = vpack.c.bf16 %v2574, %v2573
  %v2578 = vpack.c.bf16 %v2576, %v2575
  %v2579 = vmul.bf16 %v1984, %v1007
  %v2580 = vmul.bf16 %v1985, %v1007
  %v2582 = vsel %vm179, %v2577, 0
  %v2585 = vsel %vm179, %v2578, 0
  %2587 = vmatprep.subr.bf16.mxu0 0
  %2588 = vmatpush1.bf16.msra.mxu0 %v2579
  %2589 = vmatprep.subr.bf16.mxu0 0
  %2590 = vmatpush1.bf16.msra.mxu0 %v2580
  %2591 = vmatprep.subr.bf16.mxu0 0
  %2592 = vmatpush1.bf16.msra.mxu0 0
  %2593 = vmatprep.subr.bf16.mxu0 0
  %2594 = vmatpush1.bf16.msra.mxu0 0
  %2595 = vmatprep.subr.bf16.mxu0 0
  %2596 = vmatpush1.bf16.msra.mxu0 0
  %2597 = vmatprep.subr.bf16.mxu0 0
  %2598 = vmatpush1.bf16.msra.mxu0 0
  %2599 = vmatprep.subr.bf16.mxu0 0
  %2600 = vmatpush1.bf16.msra.mxu0 0
  %2601 = vmatprep.subr.bf16.mxu0 0
  %2602 = vmatpush1.bf16.msra.mxu0 0
  %2603 = vmatprep.subr.bf16.mxu0 0
  %2604 = vmatpush1.bf16.msra.mxu0 0
  %2605 = vmatprep.subr.bf16.mxu0 0
  %2606 = vmatpush1.bf16.msra.mxu0 0
  %2607 = vmatprep.subr.bf16.mxu0 0
  %2608 = vmatpush1.bf16.msra.mxu0 0
  %2609 = vmatprep.subr.bf16.mxu0 0
  %2610 = vmatpush1.bf16.msra.mxu0 0
  %2611 = vmatprep.subr.bf16.mxu0 0
  %2612 = vmatpush1.bf16.msra.mxu0 0
  %2613 = vmatprep.subr.bf16.mxu0 0
  %2614 = vmatpush1.bf16.msra.mxu0 0
  %2615 = vmatprep.subr.bf16.mxu0 0
  %2616 = vmatpush1.bf16.msra.mxu0 0
  %2617 = vmatprep.subr.bf16.mxu0 0
  %2618 = vmatpush1.bf16.msra.mxu0 0
  %2619 = vmatprep.mubr.bf16.mxu0 0
  %2620 = vmatmul.mubr.bf16.gmra.mrb[0].mxu0 %v2582
  %v2621 = vpop.f32.mrb[0].mxu0
  %v2622 = vadd.f32 0.0, %v2621
  %v2623 = vpop.f32.mrb[0].mxu0
  %v2624 = vpop.f32.mrb[0].mxu0
  %v2625 = vadd.f32 0.0, %v2624
  %v2626 = vpop.f32.mrb[0].mxu0
  %2627 = vmatprep.mubr.bf16.mxu0 0
  %2628 = vmatmul.mubr.bf16.gmra.mrb[0].mxu0 %v2585
  %v2629 = vpop.f32.mrb[0].mxu0
  %v2630 = vadd.f32 0.0, %v2629
  %v2631 = vpop.f32.mrb[0].mxu0
  %v2632 = vpop.f32.mrb[0].mxu0
  %v2633 = vadd.f32 0.0, %v2632
  %v2634 = vpop.f32.mrb[0].mxu0
  %2635 = vdwg.mxu0
  %v2636 = vadd.f32 %v2472, %v2622
  %v2637 = vadd.f32 %v2473, %v2625
  %v2638 = vadd.f32 %v2474, %v2630
  %v2639 = vadd.f32 %v2475, %v2633
  %v2640 = vpack.c.bf16 %v2637, %v2636
  %v2641 = vpack.c.bf16 %v2639, %v2638
  %s2642 = scalar_lea.vmem %s17, 16
  %v2643 = vld [vmem:[%s2642] sm:$0xf]
  %v2644 = vld [vmem:[%s2642 + $0x4] sm:$0xf]
  %v2645 = vld [vmem:[%s2642 + $0x8] sm:$0xf]
  %v2646 = vld [vmem:[%s2642 + $0xc] sm:$0xf]
  %s2647 = scalar_lea.vmem %s18, 1
  %v2648 = vld [vmem:[%s2647] sm:$0x1]
  %v2650 = vlaneseq
  %v2651 = vshrl.u32 %v2650, 7
  %v2652 = vsub.s32 0, %v2651
  %v2653 = vrot.slane %v2648, %v2652
  %v2659 = vunpack.c.l.b16 %v2643
  %v2660 = vunpack.c.l.b16 %v2644
  %v2661 = vunpack.c.l.b16 %v2645
  %v2662 = vunpack.c.l.b16 %v2646
  %v2663 = vpack.c.b16 %v2660, %v2659
  %v2664 = vpack.c.b16 %v2662, %v2661
  %v2668 = vsel %vm179, %v2640, 0
  %v2671 = vsel %vm179, %v2641, 0
  %2673 = vmatprep.subr.bf16.mxu0 0
  %2674 = vmatpush1.bf16.msra.mxu0 %v2663
  %2675 = vmatprep.subr.bf16.mxu0 0
  %2676 = vmatpush1.bf16.msra.mxu0 %v2664
  %2677 = vmatprep.subr.bf16.mxu0 0
  %2678 = vmatpush1.bf16.msra.mxu0 0
  %2679 = vmatprep.subr.bf16.mxu0 0
  %2680 = vmatpush1.bf16.msra.mxu0 0
  %2681 = vmatprep.subr.bf16.mxu0 0
  %2682 = vmatpush1.bf16.msra.mxu0 0
  %2683 = vmatprep.subr.bf16.mxu0 0
  %2684 = vmatpush1.bf16.msra.mxu0 0
  %2685 = vmatprep.subr.bf16.mxu0 0
  %2686 = vmatpush1.bf16.msra.mxu0 0
  %2687 = vmatprep.subr.bf16.mxu0 0
  %2688 = vmatpush1.bf16.msra.mxu0 0
  %2689 = vmatprep.subr.bf16.mxu0 0
  %2690 = vmatpush1.bf16.msra.mxu0 0
  %2691 = vmatprep.subr.bf16.mxu0 0
  %2692 = vmatpush1.bf16.msra.mxu0 0
  %2693 = vmatprep.subr.bf16.mxu0 0
  %2694 = vmatpush1.bf16.msra.mxu0 0
  %2695 = vmatprep.subr.bf16.mxu0 0
  %2696 = vmatpush1.bf16.msra.mxu0 0
  %2697 = vmatprep.subr.bf16.mxu0 0
  %2698 = vmatpush1.bf16.msra.mxu0 0
  %2699 = vmatprep.subr.bf16.mxu0 0
  %2700 = vmatpush1.bf16.msra.mxu0 0
  %2701 = vmatprep.subr.bf16.mxu0 0
  %2702 = vmatpush1.bf16.msra.mxu0 0
  %2703 = vmatprep.subr.bf16.mxu0 0
  %2704 = vmatpush1.bf16.msra.mxu0 0
  %2705 = vmatprep.mubr.bf16.mxu0 0
  %2706 = vmatmul.mubr.bf16.gmra.mrb[0].mxu0 %v2668
  %v2707 = vpop.f32.mrb[0].mxu0
  %v2708 = vadd.f32 %v2653, %v2707
  %v2709 = vpop.f32.mrb[0].mxu0
  %v2710 = vpop.f32.mrb[0].mxu0
  %v2711 = vadd.f32 %v2653, %v2710
  %v2712 = vpop.f32.mrb[0].mxu0
  %2713 = vmatprep.mubr.bf16.mxu0 0
  %2714 = vmatmul.mubr.bf16.gmra.mrb[0].mxu0 %v2671
  %v2715 = vpop.f32.mrb[0].mxu0
  %v2716 = vadd.f32 %v2653, %v2715
  %v2717 = vpop.f32.mrb[0].mxu0
  %v2718 = vpop.f32.mrb[0].mxu0
  %v2719 = vadd.f32 %v2653, %v2718
  %v2720 = vpop.f32.mrb[0].mxu0
  %2721 = vdwg.mxu0
  %v2722 = vadd.f32 %v1662, %v2708
  %v2723 = vadd.f32 %v1663, %v2711
  %v2724 = vadd.f32 %v1664, %v2716
  %v2725 = vadd.f32 %v1665, %v2719
  %s2726 = scalar_lea.vmem %s10, 6
  %v2727 = vld [vmem:[%s2726] sm:$0x1]
  %s2728 = scalar_lea.vmem %s10, 7
  %v2729 = vld [vmem:[%s2728] sm:$0x1]
  %v2730 = vsel %vm179, %v2722, 0.0
  %2731 = vadd.xlane.f32.xlu0 %v2730
  %v2732 = vpop.xlane.xlu0 %2731
  %v2733 = vsel %vm179, %v2723, 0.0
  %2734 = vadd.xlane.f32.xlu0 %v2733
  %v2735 = vpop.xlane.xlu0 %2734
  %v2736 = vsel %vm179, %v2724, 0.0
  %2737 = vadd.xlane.f32.xlu0 %v2736
  %v2738 = vpop.xlane.xlu0 %2737
  %v2739 = vsel %vm179, %v2725, 0.0
  %2740 = vadd.xlane.f32.xlu0 %v2739
  %v2741 = vpop.xlane.xlu0 %2740
  %v2742 = vmul.f32 %v2732, 0.03125
  %v2743 = vmul.f32 %v2735, 0.03125
  %v2744 = vmul.f32 %v2738, 0.03125
  %v2745 = vmul.f32 %v2741, 0.03125
  %v2746 = vmul.f32 %v2722, %v2722
  %v2747 = vmul.f32 %v2723, %v2723
  %v2748 = vmul.f32 %v2724, %v2724
  %v2749 = vmul.f32 %v2725, %v2725
  %v2750 = vsel %vm179, %v2746, 0.0
  %2751 = vadd.xlane.f32.xlu0 %v2750
  %v2752 = vpop.xlane.xlu0 %2751
  %v2753 = vsel %vm179, %v2747, 0.0
  %2754 = vadd.xlane.f32.xlu0 %v2753
  %v2755 = vpop.xlane.xlu0 %2754
  %v2756 = vsel %vm179, %v2748, 0.0
  %2757 = vadd.xlane.f32.xlu0 %v2756
  %v2758 = vpop.xlane.xlu0 %2757
  %v2759 = vsel %vm179, %v2749, 0.0
  %2760 = vadd.xlane.f32.xlu0 %v2759
  %v2761 = vpop.xlane.xlu0 %2760
  %v2762 = vmul.f32 %v2752, 0.03125
  %v2763 = vmul.f32 %v2755, 0.03125
  %v2764 = vmul.f32 %v2758, 0.03125
  %v2765 = vmul.f32 %v2761, 0.03125
  %v2766 = vmul.f32 %v2742, %v2742
  %v2767 = vmul.f32 %v2743, %v2743
  %v2768 = vmul.f32 %v2744, %v2744
  %v2769 = vmul.f32 %v2745, %v2745
  %v2770 = vsub.f32 %v2762, %v2766
  %v2771 = vsub.f32 %v2763, %v2767
  %v2772 = vsub.f32 %v2764, %v2768
  %v2773 = vsub.f32 %v2765, %v2769
  %v2774 = vsub.f32 %v2722, %v2742
  %v2775 = vsub.f32 %v2723, %v2743
  %v2776 = vsub.f32 %v2724, %v2744
  %v2777 = vsub.f32 %v2725, %v2745
  %v2778 = vadd.f32 %v2770, 1e-05
  %v2779 = vadd.f32 %v2771, 1e-05
  %v2780 = vadd.f32 %v2772, 1e-05
  %v2781 = vadd.f32 %v2773, 1e-05
  %v2782 = vrsqrt.pop %v2778
  %v2783 = vrsqrt.pop %v2779
  %v2784 = vrsqrt.pop %v2780
  %v2785 = vrsqrt.pop %v2781
  %v2786 = vmul.f32 %v2774, %v2782
  %v2787 = vmul.f32 %v2775, %v2783
  %v2788 = vmul.f32 %v2776, %v2784
  %v2789 = vmul.f32 %v2777, %v2785
  %v2791 = vlaneseq
  %v2792 = vshrl.u32 %v2791, 7
  %v2793 = vsub.s32 0, %v2792
  %v2794 = vrot.slane %v2727, %v2793
  %v2796 = vmul.f32 %v2786, %v2794
  %v2797 = vmul.f32 %v2787, %v2794
  %v2798 = vmul.f32 %v2788, %v2794
  %v2799 = vmul.f32 %v2789, %v2794
  %v2801 = vlaneseq
  %v2802 = vshrl.u32 %v2801, 7
  %v2803 = vsub.s32 0, %v2802
  %v2804 = vrot.slane %v2729, %v2803
  %v2806 = vadd.f32 %v2796, %v2804
  %v2807 = vadd.f32 %v2797, %v2804
  %v2808 = vadd.f32 %v2798, %v2804
  %v2809 = vadd.f32 %v2799, %v2804
  %v2810 = vpack.c.bf16 %v2807, %v2806
  %v2811 = vpack.c.bf16 %v2809, %v2808
  %s2812 = scalar_lea.vmem %s19, 16
  %v2813 = vld [vmem:[%s2812] sm:$0xf]
  %v2814 = vld [vmem:[%s2812 + $0x4] sm:$0xf]
  %v2815 = vld [vmem:[%s2812 + $0x8] sm:$0xf]
  %v2816 = vld [vmem:[%s2812 + $0xc] sm:$0xf]
  %s2817 = scalar_lea.vmem %s20, 1
  %v2818 = vld [vmem:[%s2817] sm:$0x1]
  %v2820 = vlaneseq
  %v2821 = vshrl.u32 %v2820, 7
  %v2822 = vsub.s32 0, %v2821
  %v2823 = vrot.slane %v2818, %v2822
  %v2829 = vunpack.c.l.b16 %v2813
  %v2830 = vunpack.c.l.b16 %v2814
  %v2831 = vunpack.c.l.b16 %v2815
  %v2832 = vunpack.c.l.b16 %v2816
  %v2833 = vpack.c.b16 %v2830, %v2829
  %v2834 = vpack.c.b16 %v2832, %v2831
  %v2838 = vsel %vm179, %v2810, 0
  %v2841 = vsel %vm179, %v2811, 0
  %2843 = vmatprep.subr.bf16.mxu0 0
  %2844 = vmatpush1.bf16.msra.mxu0 %v2833
  %2845 = vmatprep.subr.bf16.mxu0 0
  %2846 = vmatpush1.bf16.msra.mxu0 %v2834
  %2847 = vmatprep.subr.bf16.mxu0 0
  %2848 = vmatpush1.bf16.msra.mxu0 0
  %2849 = vmatprep.subr.bf16.mxu0 0
  %2850 = vmatpush1.bf16.msra.mxu0 0
  %2851 = vmatprep.subr.bf16.mxu0 0
  %2852 = vmatpush1.bf16.msra.mxu0 0
  %2853 = vmatprep.subr.bf16.mxu0 0
  %2854 = vmatpush1.bf16.msra.mxu0 0
  %2855 = vmatprep.subr.bf16.mxu0 0
  %2856 = vmatpush1.bf16.msra.mxu0 0
  %2857 = vmatprep.subr.bf16.mxu0 0
  %2858 = vmatpush1.bf16.msra.mxu0 0
  %2859 = vmatprep.subr.bf16.mxu0 0
  %2860 = vmatpush1.bf16.msra.mxu0 0
  %2861 = vmatprep.subr.bf16.mxu0 0
  %2862 = vmatpush1.bf16.msra.mxu0 0
  %2863 = vmatprep.subr.bf16.mxu0 0
  %2864 = vmatpush1.bf16.msra.mxu0 0
  %2865 = vmatprep.subr.bf16.mxu0 0
  %2866 = vmatpush1.bf16.msra.mxu0 0
  %2867 = vmatprep.subr.bf16.mxu0 0
  %2868 = vmatpush1.bf16.msra.mxu0 0
  %2869 = vmatprep.subr.bf16.mxu0 0
  %2870 = vmatpush1.bf16.msra.mxu0 0
  %2871 = vmatprep.subr.bf16.mxu0 0
  %2872 = vmatpush1.bf16.msra.mxu0 0
  %2873 = vmatprep.subr.bf16.mxu0 0
  %2874 = vmatpush1.bf16.msra.mxu0 0
  %2875 = vmatprep.mubr.bf16.mxu0 0
  %2876 = vmatmul.mubr.bf16.gmra.mrb[0].mxu0 %v2838
  %v2877 = vpop.f32.mrb[0].mxu0
  %v2878 = vadd.f32 %v2823, %v2877
  %v2879 = vpop.f32.mrb[0].mxu0
  %v2880 = vpop.f32.mrb[0].mxu0
  %v2881 = vadd.f32 %v2823, %v2880
  %v2882 = vpop.f32.mrb[0].mxu0
  %2883 = vmatprep.mubr.bf16.mxu0 0
  %2884 = vmatmul.mubr.bf16.gmra.mrb[0].mxu0 %v2841
  %v2885 = vpop.f32.mrb[0].mxu0
  %v2886 = vadd.f32 %v2823, %v2885
  %v2887 = vpop.f32.mrb[0].mxu0
  %v2888 = vpop.f32.mrb[0].mxu0
  %v2889 = vadd.f32 %v2823, %v2888
  %v2890 = vpop.f32.mrb[0].mxu0
  %2891 = vdwg.mxu0
  %v2892 = vmul.f32 %v2878, %v2878
  %v2893 = vmul.f32 %v2881, %v2881
  %v2894 = vmul.f32 %v2886, %v2886
  %v2895 = vmul.f32 %v2889, %v2889
  %v2896 = vmul.f32 %v2878, %v2892
  %v2897 = vmul.f32 %v2881, %v2893
  %v2898 = vmul.f32 %v2886, %v2894
  %v2899 = vmul.f32 %v2889, %v2895
  %v2900 = vmul.f32 %v2896, 0.044715
  %v2901 = vmul.f32 %v2897, 0.044715
  %v2902 = vmul.f32 %v2898, 0.044715
  %v2903 = vmul.f32 %v2899, 0.044715
  %v2904 = vadd.f32 %v2878, %v2900
  %v2905 = vadd.f32 %v2881, %v2901
  %v2906 = vadd.f32 %v2886, %v2902
  %v2907 = vadd.f32 %v2889, %v2903
  %v2908 = vmul.f32 %v2904, 0.7978846
  %v2909 = vmul.f32 %v2905, 0.7978846
  %v2910 = vmul.f32 %v2906, 0.7978846
  %v2911 = vmul.f32 %v2907, 0.7978846
  %v2912 = vtanh.pop %v2908
  %v2913 = vtanh.pop %v2909
  %v2914 = vtanh.pop %v2910
  %v2915 = vtanh.pop %v2911
  %v2916 = vadd.f32 %v2912, 1.0
  %v2917 = vadd.f32 %v2913, 1.0
  %v2918 = vadd.f32 %v2914, 1.0
  %v2919 = vadd.f32 %v2915, 1.0
  %v2920 = vmul.f32 %v2916, 0.5
  %v2921 = vmul.f32 %v2917, 0.5
  %v2922 = vmul.f32 %v2918, 0.5
  %v2923 = vmul.f32 %v2919, 0.5
  %v2924 = vmul.f32 %v2878, %v2920
  %v2925 = vmul.f32 %v2881, %v2921
  %v2926 = vmul.f32 %v2886, %v2922
  %v2927 = vmul.f32 %v2889, %v2923
  %v2928 = vpack.c.bf16 %v2925, %v2924
  %v2929 = vpack.c.bf16 %v2927, %v2926
  %s2930 = scalar_lea.vmem %s21, 64
  %v2931 = vld [vmem:[%s2930] sm:$0xf]
  %v2932 = vld [vmem:[%s2930 + $0x4] sm:$0xf]
  %v2933 = vld [vmem:[%s2930 + $0x8] sm:$0xf]
  %v2934 = vld [vmem:[%s2930 + $0xc] sm:$0xf]
  %v2935 = vld [vmem:[%s2930 + $0x10] sm:$0xf]
  %v2936 = vld [vmem:[%s2930 + $0x14] sm:$0xf]
  %v2937 = vld [vmem:[%s2930 + $0x18] sm:$0xf]
  %v2938 = vld [vmem:[%s2930 + $0x1c] sm:$0xf]
  %v2939 = vld [vmem:[%s2930 + $0x20] sm:$0xf]
  %v2940 = vld [vmem:[%s2930 + $0x24] sm:$0xf]
  %v2941 = vld [vmem:[%s2930 + $0x28] sm:$0xf]
  %v2942 = vld [vmem:[%s2930 + $0x2c] sm:$0xf]
  %v2943 = vld [vmem:[%s2930 + $0x30] sm:$0xf]
  %v2944 = vld [vmem:[%s2930 + $0x34] sm:$0xf]
  %v2945 = vld [vmem:[%s2930 + $0x38] sm:$0xf]
  %v2946 = vld [vmem:[%s2930 + $0x3c] sm:$0xf]
  %s2947 = scalar_lea.vmem %s22, 1
  %v2948 = vld [vmem:[%s2947] sm:$0x1]
  %v2950 = vlaneseq
  %v2951 = vshrl.u32 %v2950, 7
  %v2952 = vsub.s32 0, %v2951
  %v2953 = vrot.slane %v2948, %v2952
  %v2971 = vunpack.c.l.b16 %v2931
  %v2972 = vunpack.c.l.b16 %v2932
  %v2973 = vunpack.c.l.b16 %v2933
  %v2974 = vunpack.c.l.b16 %v2934
  %v2975 = vunpack.c.l.b16 %v2935
  %v2976 = vunpack.c.l.b16 %v2936
  %v2977 = vunpack.c.l.b16 %v2937
  %v2978 = vunpack.c.l.b16 %v2938
  %v2979 = vunpack.c.l.b16 %v2939
  %v2980 = vunpack.c.l.b16 %v2940
  %v2981 = vunpack.c.l.b16 %v2941
  %v2982 = vunpack.c.l.b16 %v2942
  %v2983 = vunpack.c.l.b16 %v2943
  %v2984 = vunpack.c.l.b16 %v2944
  %v2985 = vunpack.c.l.b16 %v2945
  %v2986 = vunpack.c.l.b16 %v2946
  %v2987 = vpack.c.b16 %v2972, %v2971
  %v2988 = vpack.c.b16 %v2974, %v2973
  %v2989 = vpack.c.b16 %v2976, %v2975
  %v2990 = vpack.c.b16 %v2978, %v2977
  %v2991 = vpack.c.b16 %v2980, %v2979
  %v2992 = vpack.c.b16 %v2982, %v2981
  %v2993 = vpack.c.b16 %v2984, %v2983
  %v2994 = vpack.c.b16 %v2986, %v2985
  %3003 = vmatprep.subr.bf16.mxu0 0
  %3004 = vmatpush1.bf16.msra.mxu0 %v2987
  %3005 = vmatprep.subr.bf16.mxu0 0
  %3006 = vmatpush1.bf16.msra.mxu0 %v2988
  %3007 = vmatprep.subr.bf16.mxu0 0
  %3008 = vmatpush1.bf16.msra.mxu0 %v2989
  %3009 = vmatprep.subr.bf16.mxu0 0
  %3010 = vmatpush1.bf16.msra.mxu0 %v2990
  %3011 = vmatprep.subr.bf16.mxu0 0
  %3012 = vmatpush1.bf16.msra.mxu0 %v2991
  %3013 = vmatprep.subr.bf16.mxu0 0
  %3014 = vmatpush1.bf16.msra.mxu0 %v2992
  %3015 = vmatprep.subr.bf16.mxu0 0
  %3016 = vmatpush1.bf16.msra.mxu0 %v2993
  %3017 = vmatprep.subr.bf16.mxu0 0
  %3018 = vmatpush1.bf16.msra.mxu0 %v2994
  %3019 = vmatprep.subr.bf16.mxu0 0
  %3020 = vmatpush1.bf16.msra.mxu0 0
  %3021 = vmatprep.subr.bf16.mxu0 0
  %3022 = vmatpush1.bf16.msra.mxu0 0
  %3023 = vmatprep.subr.bf16.mxu0 0
  %3024 = vmatpush1.bf16.msra.mxu0 0
  %3025 = vmatprep.subr.bf16.mxu0 0
  %3026 = vmatpush1.bf16.msra.mxu0 0
  %3027 = vmatprep.subr.bf16.mxu0 0
  %3028 = vmatpush1.bf16.msra.mxu0 0
  %3029 = vmatprep.subr.bf16.mxu0 0
  %3030 = vmatpush1.bf16.msra.mxu0 0
  %3031 = vmatprep.subr.bf16.mxu0 0
  %3032 = vmatpush1.bf16.msra.mxu0 0
  %3033 = vmatprep.subr.bf16.mxu0 0
  %3034 = vmatpush1.bf16.msra.mxu0 0
  %3035 = vmatprep.mubr.bf16.mxu0 0
  %3036 = vmatmul.mubr.bf16.gmra.mrb[0].mxu0 %v2928
  %v3037 = vpop.f32.mrb[0].mxu0
  %v3038 = vadd.f32 %v2953, %v3037
  %v3039 = vpop.f32.mrb[0].mxu0
  %v3040 = vpop.f32.mrb[0].mxu0
  %v3041 = vadd.f32 %v2953, %v3040
  %v3042 = vpop.f32.mrb[0].mxu0
  %3043 = vmatprep.mubr.bf16.mxu0 0
  %3044 = vmatmul.mubr.bf16.gmra.mrb[0].mxu0 %v2929
  %v3045 = vpop.f32.mrb[0].mxu0
  %v3046 = vadd.f32 %v2953, %v3045
  %v3047 = vpop.f32.mrb[0].mxu0
  %v3048 = vpop.f32.mrb[0].mxu0
  %v3049 = vadd.f32 %v2953, %v3048
  %v3050 = vpop.f32.mrb[0].mxu0
  %3051 = vdwg.mxu0
  %v3052 = vadd.f32 %v2722, %v3038
  %v3053 = vadd.f32 %v2723, %v3041
  %v3054 = vadd.f32 %v2724, %v3046
  %v3055 = vadd.f32 %v2725, %v3049
  %v3056 = vsel %vm179, %v3052, 0.0
  %3057 = vadd.xlane.f32.xlu0 %v3056
  %v3058 = vpop.xlane.xlu0 %3057
  %v3059 = vsel %vm179, %v3053, 0.0
  %3060 = vadd.xlane.f32.xlu0 %v3059
  %v3061 = vpop.xlane.xlu0 %3060
  %v3062 = vsel %vm179, %v3054, 0.0
  %3063 = vadd.xlane.f32.xlu0 %v3062
  %v3064 = vpop.xlane.xlu0 %3063
  %v3065 = vsel %vm179, %v3055, 0.0
  %3066 = vadd.xlane.f32.xlu0 %v3065
  %v3067 = vpop.xlane.xlu0 %3066
  %v3068 = vmul.f32 %v3058, 0.03125
  %v3069 = vmul.f32 %v3061, 0.03125
  %v3070 = vmul.f32 %v3064, 0.03125
  %v3071 = vmul.f32 %v3067, 0.03125
  %v3072 = vmul.f32 %v3052, %v3052
  %v3073 = vmul.f32 %v3053, %v3053
  %v3074 = vmul.f32 %v3054, %v3054
  %v3075 = vmul.f32 %v3055, %v3055
  %v3076 = vsel %vm179, %v3072, 0.0
  %3077 = vadd.xlane.f32.xlu0 %v3076
  %v3078 = vpop.xlane.xlu0 %3077
  %v3079 = vsel %vm179, %v3073, 0.0
  %3080 = vadd.xlane.f32.xlu0 %v3079
  %v3081 = vpop.xlane.xlu0 %3080
  %v3082 = vsel %vm179, %v3074, 0.0
  %3083 = vadd.xlane.f32.xlu0 %v3082
  %v3084 = vpop.xlane.xlu0 %3083
  %v3085 = vsel %vm179, %v3075, 0.0
  %3086 = vadd.xlane.f32.xlu0 %v3085
  %v3087 = vpop.xlane.xlu0 %3086
  %v3088 = vmul.f32 %v3078, 0.03125
  %v3089 = vmul.f32 %v3081, 0.03125
  %v3090 = vmul.f32 %v3084, 0.03125
  %v3091 = vmul.f32 %v3087, 0.03125
  %v3092 = vmul.f32 %v3068, %v3068
  %v3093 = vmul.f32 %v3069, %v3069
  %v3094 = vmul.f32 %v3070, %v3070
  %v3095 = vmul.f32 %v3071, %v3071
  %v3096 = vsub.f32 %v3088, %v3092
  %v3097 = vsub.f32 %v3089, %v3093
  %v3098 = vsub.f32 %v3090, %v3094
  %v3099 = vsub.f32 %v3091, %v3095
  %v3100 = vsub.f32 %v3052, %v3068
  %v3101 = vsub.f32 %v3053, %v3069
  %v3102 = vsub.f32 %v3054, %v3070
  %v3103 = vsub.f32 %v3055, %v3071
  %v3104 = vadd.f32 %v3096, 1e-05
  %v3105 = vadd.f32 %v3097, 1e-05
  %v3106 = vadd.f32 %v3098, 1e-05
  %v3107 = vadd.f32 %v3099, 1e-05
  %v3108 = vrsqrt.pop %v3104
  %v3109 = vrsqrt.pop %v3105
  %v3110 = vrsqrt.pop %v3106
  %v3111 = vrsqrt.pop %v3107
  %v3112 = vmul.f32 %v3100, %v3108
  %v3113 = vmul.f32 %v3101, %v3109
  %v3114 = vmul.f32 %v3102, %v3110
  %v3115 = vmul.f32 %v3103, %v3111
  %v3116 = vmul.f32 %v3112, %v1646
  %v3117 = vmul.f32 %v3113, %v1646
  %v3118 = vmul.f32 %v3114, %v1646
  %v3119 = vmul.f32 %v3115, %v1646
  %v3120 = vadd.f32 %v3116, %v1656
  %v3121 = vadd.f32 %v3117, %v1656
  %v3122 = vadd.f32 %v3118, %v1656
  %v3123 = vadd.f32 %v3119, %v1656
  %v3124 = vld [vmem:[%s8] sm:$0x1]
  %v3125 = vpack.c.bf16 %v3121, %v3120
  %v3126 = vpack.c.bf16 %v3123, %v3122
  %v3127 = vld [vmem:[#allocation2] sm:$0x1]
  %3129 = vset.pattern.permute.xlu0 0
  %3130 = vperm.xlu0 %3129, %v3127
  %v3131 = vpop.permute.xlu0 %3130
  %v3133 = vlaneseq
  %v3134 = vshrl.u32 %v3133, 7
  %v3135 = vsub.s32 0, %v3134
  %v3136 = vrot.slane %v3131, %v3135
  %v3138 = vsel %vm179, %v3124, 0
  %v3141 = vsel %vm179, %v3125, 0
  %v3144 = vsel %vm179, %v3126, 0
  %3146 = vmatprep.subr.bf16.mxu0 0
  %3147 = vmatpush1.bf16.xpose.msra.mxu0 %v3141
  %3148 = vmatprep.subr.bf16.mxu0 0
  %3149 = vmatpush1.bf16.xpose.msra.mxu0 %v3144
  %3150 = vmatprep.subr.bf16.mxu0 0
  %3151 = vmatpush1.bf16.xpose.msra.mxu0 0
  %3152 = vmatprep.subr.bf16.mxu0 0
  %3153 = vmatpush1.bf16.xpose.msra.mxu0 0
  %3154 = vmatprep.subr.bf16.mxu0 0
  %3155 = vmatpush1.bf16.xpose.msra.mxu0 0
  %3156 = vmatprep.subr.bf16.mxu0 0
  %3157 = vmatpush1.bf16.xpose.msra.mxu0 0
  %3158 = vmatprep.subr.bf16.mxu0 0
  %3159 = vmatpush1.bf16.xpose.msra.mxu0 0
  %3160 = vmatprep.subr.bf16.mxu0 0
  %3161 = vmatpush1.bf16.xpose.msra.mxu0 0
  %3162 = vmatprep.subr.bf16.mxu0 0
  %3163 = vmatpush1.bf16.xpose.msra.mxu0 0
  %3164 = vmatprep.subr.bf16.mxu0 0
  %3165 = vmatpush1.bf16.xpose.msra.mxu0 0
  %3166 = vmatprep.subr.bf16.mxu0 0
  %3167 = vmatpush1.bf16.xpose.msra.mxu0 0
  %3168 = vmatprep.subr.bf16.mxu0 0
  %3169 = vmatpush1.bf16.xpose.msra.mxu0 0
  %3170 = vmatprep.subr.bf16.mxu0 0
  %3171 = vmatpush1.bf16.xpose.msra.mxu0 0
  %3172 = vmatprep.subr.bf16.mxu0 0
  %3173 = vmatpush1.bf16.xpose.msra.mxu0 0
  %3174 = vmatprep.subr.bf16.mxu0 0
  %3175 = vmatpush1.bf16.xpose.msra.mxu0 0
  %3176 = vmatprep.subr.bf16.mxu0 0
  %3177 = vmatpush1.bf16.xpose.msra.mxu0 0
  %3178 = vmatprep.mubr.bf16.mxu0 0
  %3179 = vmatmul.mubr.bf16.gmra.mrb[0].mxu0 %v3138
  %v3180 = vpop.f32.mrb[0].mxu0
  %v3181 = vadd.f32 %v3136, %v3180
  %v3182 = vpop.f32.mrb[0].mxu0
  %v3183 = vpop.f32.mrb[0].mxu0
  %v3184 = vpop.f32.mrb[0].mxu0
  %3185 = vdwg.mxu0
  %vm3186 = vcmask 253952
  %3187 = vst.msk [vmem:[%s23] sm:$0x1] %vm3186, %v3181
  %v3188 = vadd.f32 %v3120, %v166
  %v3189 = vadd.f32 %v3121, %v167
  %v3190 = vadd.f32 %v3122, %v168
  %v3191 = vadd.f32 %v3123, %v169
  %v3192 = vld [vmem:[%s10] sm:$0x1]
  %v3193 = vld [vmem:[%s177] sm:$0x1]
  %v3194 = vsel %vm179, %v3188, 0.0
  %3195 = vadd.xlane.f32.xlu0 %v3194
  %v3196 = vpop.xlane.xlu0 %3195
  %v3197 = vsel %vm179, %v3189, 0.0
  %3198 = vadd.xlane.f32.xlu0 %v3197
  %v3199 = vpop.xlane.xlu0 %3198
  %v3200 = vsel %vm179, %v3190, 0.0
  %3201 = vadd.xlane.f32.xlu0 %v3200
  %v3202 = vpop.xlane.xlu0 %3201
  %v3203 = vsel %vm179, %v3191, 0.0
  %3204 = vadd.xlane.f32.xlu0 %v3203
  %v3205 = vpop.xlane.xlu0 %3204
  %v3206 = vmul.f32 %v3196, 0.03125
  %v3207 = vmul.f32 %v3199, 0.03125
  %v3208 = vmul.f32 %v3202, 0.03125
  %v3209 = vmul.f32 %v3205, 0.03125
  %v3210 = vmul.f32 %v3188, %v3188
  %v3211 = vmul.f32 %v3189, %v3189
  %v3212 = vmul.f32 %v3190, %v3190
  %v3213 = vmul.f32 %v3191, %v3191
  %v3214 = vsel %vm179, %v3210, 0.0
  %3215 = vadd.xlane.f32.xlu0 %v3214
  %v3216 = vpop.xlane.xlu0 %3215
  %v3217 = vsel %vm179, %v3211, 0.0
  %3218 = vadd.xlane.f32.xlu0 %v3217
  %v3219 = vpop.xlane.xlu0 %3218
  %v3220 = vsel %vm179, %v3212, 0.0
  %3221 = vadd.xlane.f32.xlu0 %v3220
  %v3222 = vpop.xlane.xlu0 %3221
  %v3223 = vsel %vm179, %v3213, 0.0
  %3224 = vadd.xlane.f32.xlu0 %v3223
  %v3225 = vpop.xlane.xlu0 %3224
  %v3226 = vmul.f32 %v3216, 0.03125
  %v3227 = vmul.f32 %v3219, 0.03125
  %v3228 = vmul.f32 %v3222, 0.03125
  %v3229 = vmul.f32 %v3225, 0.03125
  %v3230 = vmul.f32 %v3206, %v3206
  %v3231 = vmul.f32 %v3207, %v3207
  %v3232 = vmul.f32 %v3208, %v3208
  %v3233 = vmul.f32 %v3209, %v3209
  %v3234 = vsub.f32 %v3226, %v3230
  %v3235 = vsub.f32 %v3227, %v3231
  %v3236 = vsub.f32 %v3228, %v3232
  %v3237 = vsub.f32 %v3229, %v3233
  %v3238 = vsub.f32 %v3188, %v3206
  %v3239 = vsub.f32 %v3189, %v3207
  %v3240 = vsub.f32 %v3190, %v3208
  %v3241 = vsub.f32 %v3191, %v3209
  %v3242 = vadd.f32 %v3234, 1e-05
  %v3243 = vadd.f32 %v3235, 1e-05
  %v3244 = vadd.f32 %v3236, 1e-05
  %v3245 = vadd.f32 %v3237, 1e-05
  %v3246 = vrsqrt.pop %v3242
  %v3247 = vrsqrt.pop %v3243
  %v3248 = vrsqrt.pop %v3244
  %v3249 = vrsqrt.pop %v3245
  %v3250 = vmul.f32 %v3238, %v3246
  %v3251 = vmul.f32 %v3239, %v3247
  %v3252 = vmul.f32 %v3240, %v3248
  %v3253 = vmul.f32 %v3241, %v3249
  %v3255 = vlaneseq
  %v3256 = vshrl.u32 %v3255, 7
  %v3257 = vsub.s32 0, %v3256
  %v3258 = vrot.slane %v3192, %v3257
  %v3260 = vmul.f32 %v3250, %v3258
  %v3261 = vmul.f32 %v3251, %v3258
  %v3262 = vmul.f32 %v3252, %v3258
  %v3263 = vmul.f32 %v3253, %v3258
  %v3265 = vlaneseq
  %v3266 = vshrl.u32 %v3265, 7
  %v3267 = vsub.s32 0, %v3266
  %v3268 = vrot.slane %v3193, %v3267
  %v3270 = vadd.f32 %v3260, %v3268
  %v3271 = vadd.f32 %v3261, %v3268
  %v3272 = vadd.f32 %v3262, %v3268
  %v3273 = vadd.f32 %v3263, %v3268
  %v3274 = vpack.c.bf16 %v3271, %v3270
  %v3275 = vpack.c.bf16 %v3273, %v3272
  %v3276 = vld [vmem:[%s11] sm:$0xf]
  %v3277 = vld [vmem:[%s11 + $0x4] sm:$0xf]
  %v3278 = vld [vmem:[%s11 + $0x8] sm:$0xf]
  %v3279 = vld [vmem:[%s11 + $0xc] sm:$0xf]
  %v3280 = vld [vmem:[%s14] sm:$0x1]
  %v3282 = vlaneseq
  %v3283 = vshrl.u32 %v3282, 7
  %v3284 = vsub.s32 0, %v3283
  %v3285 = vrot.slane %v3280, %v3284
  %v3291 = vunpack.c.l.b16 %v3276
  %v3292 = vunpack.c.l.b16 %v3277
  %v3293 = vunpack.c.l.b16 %v3278
  %v3294 = vunpack.c.l.b16 %v3279
  %v3295 = vpack.c.b16 %v3292, %v3291
  %v3296 = vpack.c.b16 %v3294, %v3293
  %v3300 = vsel %vm179, %v3274, 0
  %v3303 = vsel %vm179, %v3275, 0
  %3305 = vmatprep.subr.bf16.mxu0 0
  %3306 = vmatpush1.bf16.msra.mxu0 %v3295
  %3307 = vmatprep.subr.bf16.mxu0 0
  %3308 = vmatpush1.bf16.msra.mxu0 %v3296
  %3309 = vmatprep.subr.bf16.mxu0 0
  %3310 = vmatpush1.bf16.msra.mxu0 0
  %3311 = vmatprep.subr.bf16.mxu0 0
  %3312 = vmatpush1.bf16.msra.mxu0 0
  %3313 = vmatprep.subr.bf16.mxu0 0
  %3314 = vmatpush1.bf16.msra.mxu0 0
  %3315 = vmatprep.subr.bf16.mxu0 0
  %3316 = vmatpush1.bf16.msra.mxu0 0
  %3317 = vmatprep.subr.bf16.mxu0 0
  %3318 = vmatpush1.bf16.msra.mxu0 0
  %3319 = vmatprep.subr.bf16.mxu0 0
  %3320 = vmatpush1.bf16.msra.mxu0 0
  %3321 = vmatprep.subr.bf16.mxu0 0
  %3322 = vmatpush1.bf16.msra.mxu0 0
  %3323 = vmatprep.subr.bf16.mxu0 0
  %3324 = vmatpush1.bf16.msra.mxu0 0
  %3325 = vmatprep.subr.bf16.mxu0 0
  %3326 = vmatpush1.bf16.msra.mxu0 0
  %3327 = vmatprep.subr.bf16.mxu0 0
  %3328 = vmatpush1.bf16.msra.mxu0 0
  %3329 = vmatprep.subr.bf16.mxu0 0
  %3330 = vmatpush1.bf16.msra.mxu0 0
  %3331 = vmatprep.subr.bf16.mxu0 0
  %3332 = vmatpush1.bf16.msra.mxu0 0
  %3333 = vmatprep.subr.bf16.mxu0 0
  %3334 = vmatpush1.bf16.msra.mxu0 0
  %3335 = vmatprep.subr.bf16.mxu0 0
  %3336 = vmatpush1.bf16.msra.mxu0 0
  %3337 = vmatprep.mubr.bf16.mxu0 0
  %3338 = vmatmul.mubr.bf16.gmra.mrb[0].mxu0 %v3300
  %v3339 = vpop.f32.mrb[0].mxu0
  %v3340 = vadd.f32 %v3285, %v3339
  %v3341 = vpop.f32.mrb[0].mxu0
  %v3342 = vpop.f32.mrb[0].mxu0
  %v3343 = vadd.f32 %v3285, %v3342
  %v3344 = vpop.f32.mrb[0].mxu0
  %3345 = vmatprep.mubr.bf16.mxu0 0
  %3346 = vmatmul.mubr.bf16.gmra.mrb[0].mxu0 %v3303
  %v3347 = vpop.f32.mrb[0].mxu0
  %v3348 = vadd.f32 %v3285, %v3347
  %v3349 = vpop.f32.mrb[0].mxu0
  %v3350 = vpop.f32.mrb[0].mxu0
  %v3351 = vadd.f32 %v3285, %v3350
  %v3352 = vpop.f32.mrb[0].mxu0
  %3353 = vdwg.mxu0
  %v3354 = vld [vmem:[%s12] sm:$0xf]
  %v3355 = vld [vmem:[%s12 + $0x4] sm:$0xf]
  %v3356 = vld [vmem:[%s12 + $0x8] sm:$0xf]
  %v3357 = vld [vmem:[%s12 + $0xc] sm:$0xf]
  %v3358 = vld [vmem:[%s15] sm:$0x1]
  %v3360 = vlaneseq
  %v3361 = vshrl.u32 %v3360, 7
  %v3362 = vsub.s32 0, %v3361
  %v3363 = vrot.slane %v3358, %v3362
  %v3369 = vunpack.c.l.b16 %v3354
  %v3370 = vunpack.c.l.b16 %v3355
  %v3371 = vunpack.c.l.b16 %v3356
  %v3372 = vunpack.c.l.b16 %v3357
  %v3373 = vpack.c.b16 %v3370, %v3369
  %v3374 = vpack.c.b16 %v3372, %v3371
  %3377 = vmatprep.subr.bf16.mxu0 0
  %3378 = vmatpush1.bf16.msra.mxu0 %v3373
  %3379 = vmatprep.subr.bf16.mxu0 0
  %3380 = vmatpush1.bf16.msra.mxu0 %v3374
  %3381 = vmatprep.subr.bf16.mxu0 0
  %3382 = vmatpush1.bf16.msra.mxu0 0
  %3383 = vmatprep.subr.bf16.mxu0 0
  %3384 = vmatpush1.bf16.msra.mxu0 0
  %3385 = vmatprep.subr.bf16.mxu0 0
  %3386 = vmatpush1.bf16.msra.mxu0 0
  %3387 = vmatprep.subr.bf16.mxu0 0
  %3388 = vmatpush1.bf16.msra.mxu0 0
  %3389 = vmatprep.subr.bf16.mxu0 0
  %3390 = vmatpush1.bf16.msra.mxu0 0
  %3391 = vmatprep.subr.bf16.mxu0 0
  %3392 = vmatpush1.bf16.msra.mxu0 0
  %3393 = vmatprep.subr.bf16.mxu0 0
  %3394 = vmatpush1.bf16.msra.mxu0 0
  %3395 = vmatprep.subr.bf16.mxu0 0
  %3396 = vmatpush1.bf16.msra.mxu0 0
  %3397 = vmatprep.subr.bf16.mxu0 0
  %3398 = vmatpush1.bf16.msra.mxu0 0
  %3399 = vmatprep.subr.bf16.mxu0 0
  %3400 = vmatpush1.bf16.msra.mxu0 0
  %3401 = vmatprep.subr.bf16.mxu0 0
  %3402 = vmatpush1.bf16.msra.mxu0 0
  %3403 = vmatprep.subr.bf16.mxu0 0
  %3404 = vmatpush1.bf16.msra.mxu0 0
  %3405 = vmatprep.subr.bf16.mxu0 0
  %3406 = vmatpush1.bf16.msra.mxu0 0
  %3407 = vmatprep.subr.bf16.mxu0 0
  %3408 = vmatpush1.bf16.msra.mxu0 0
  %3409 = vmatprep.mubr.bf16.mxu0 0
  %3410 = vmatmul.mubr.bf16.gmra.mrb[0].mxu0 %v3300
  %v3411 = vpop.f32.mrb[0].mxu0
  %v3412 = vadd.f32 %v3363, %v3411
  %v3413 = vpop.f32.mrb[0].mxu0
  %v3414 = vpop.f32.mrb[0].mxu0
  %v3415 = vadd.f32 %v3363, %v3414
  %v3416 = vpop.f32.mrb[0].mxu0
  %3417 = vmatprep.mubr.bf16.mxu0 0
  %3418 = vmatmul.mubr.bf16.gmra.mrb[0].mxu0 %v3303
  %v3419 = vpop.f32.mrb[0].mxu0
  %v3420 = vadd.f32 %v3363, %v3419
  %v3421 = vpop.f32.mrb[0].mxu0
  %v3422 = vpop.f32.mrb[0].mxu0
  %v3423 = vadd.f32 %v3363, %v3422
  %v3424 = vpop.f32.mrb[0].mxu0
  %3425 = vdwg.mxu0
  %v3426 = vld [vmem:[%s13] sm:$0xf]
  %v3427 = vld [vmem:[%s13 + $0x4] sm:$0xf]
  %v3428 = vld [vmem:[%s13 + $0x8] sm:$0xf]
  %v3429 = vld [vmem:[%s13 + $0xc] sm:$0xf]
  %v3430 = vld [vmem:[%s16] sm:$0x1]
  %v3432 = vlaneseq
  %v3433 = vshrl.u32 %v3432, 7
  %v3434 = vsub.s32 0, %v3433
  %v3435 = vrot.slane %v3430, %v3434
  %v3441 = vunpack.c.l.b16 %v3426
  %v3442 = vunpack.c.l.b16 %v3427
  %v3443 = vunpack.c.l.b16 %v3428
  %v3444 = vunpack.c.l.b16 %v3429
  %v3445 = vpack.c.b16 %v3442, %v3441
  %v3446 = vpack.c.b16 %v3444, %v3443
  %3449 = vmatprep.subr.bf16.mxu0 0
  %3450 = vmatpush1.bf16.msra.mxu0 %v3445
  %3451 = vmatprep.subr.bf16.mxu0 0
  %3452 = vmatpush1.bf16.msra.mxu0 %v3446
  %3453 = vmatprep.subr.bf16.mxu0 0
  %3454 = vmatpush1.bf16.msra.mxu0 0
  %3455 = vmatprep.subr.bf16.mxu0 0
  %3456 = vmatpush1.bf16.msra.mxu0 0
  %3457 = vmatprep.subr.bf16.mxu0 0
  %3458 = vmatpush1.bf16.msra.mxu0 0
  %3459 = vmatprep.subr.bf16.mxu0 0
  %3460 = vmatpush1.bf16.msra.mxu0 0
  %3461 = vmatprep.subr.bf16.mxu0 0
  %3462 = vmatpush1.bf16.msra.mxu0 0
  %3463 = vmatprep.subr.bf16.mxu0 0
  %3464 = vmatpush1.bf16.msra.mxu0 0
  %3465 = vmatprep.subr.bf16.mxu0 0
  %3466 = vmatpush1.bf16.msra.mxu0 0
  %3467 = vmatprep.subr.bf16.mxu0 0
  %3468 = vmatpush1.bf16.msra.mxu0 0
  %3469 = vmatprep.subr.bf16.mxu0 0
  %3470 = vmatpush1.bf16.msra.mxu0 0
  %3471 = vmatprep.subr.bf16.mxu0 0
  %3472 = vmatpush1.bf16.msra.mxu0 0
  %3473 = vmatprep.subr.bf16.mxu0 0
  %3474 = vmatpush1.bf16.msra.mxu0 0
  %3475 = vmatprep.subr.bf16.mxu0 0
  %3476 = vmatpush1.bf16.msra.mxu0 0
  %3477 = vmatprep.subr.bf16.mxu0 0
  %3478 = vmatpush1.bf16.msra.mxu0 0
  %3479 = vmatprep.subr.bf16.mxu0 0
  %3480 = vmatpush1.bf16.msra.mxu0 0
  %3481 = vmatprep.mubr.bf16.mxu0 0
  %3482 = vmatmul.mubr.bf16.gmra.mrb[0].mxu0 %v3300
  %v3483 = vpop.f32.mrb[0].mxu0
  %v3484 = vadd.f32 %v3435, %v3483
  %v3485 = vpop.f32.mrb[0].mxu0
  %v3486 = vpop.f32.mrb[0].mxu0
  %v3487 = vadd.f32 %v3435, %v3486
  %v3488 = vpop.f32.mrb[0].mxu0
  %3489 = vmatprep.mubr.bf16.mxu0 0
  %3490 = vmatmul.mubr.bf16.gmra.mrb[0].mxu0 %v3303
  %v3491 = vpop.f32.mrb[0].mxu0
  %v3492 = vadd.f32 %v3435, %v3491
  %v3493 = vpop.f32.mrb[0].mxu0
  %v3494 = vpop.f32.mrb[0].mxu0
  %v3495 = vadd.f32 %v3435, %v3494
  %v3496 = vpop.f32.mrb[0].mxu0
  %3497 = vdwg.mxu0
  %v3498 = vpack.c.bf16 %v3343, %v3340
  %v3499 = vpack.c.bf16 %v3351, %v3348
  %v3500 = vpack.c.bf16 %v3415, %v3412
  %v3501 = vpack.c.bf16 %v3423, %v3420
  %v3502 = vpack.c.bf16 %v3487, %v3484
  %v3503 = vpack.c.bf16 %v3495, %v3492
  %v3504 = vmul.bf16 %v3498, %v496
  %v3505 = vmul.bf16 %v3499, %v496
  %v3507 = vsel %vm179, %v3504, 0
  %v3510 = vsel %vm179, %v3505, 0
  %v3513 = vsel %vm179, %v3500, 0
  %v3516 = vsel %vm179, %v3501, 0
  %3518 = vmatprep.subr.bf16.mxu0 0
  %3519 = vmatpush1.bf16.xpose.msra.mxu0 %v3513
  %3520 = vmatprep.subr.bf16.mxu0 0
  %3521 = vmatpush1.bf16.xpose.msra.mxu0 %v3516
  %3522 = vmatprep.subr.bf16.mxu0 0
  %3523 = vmatpush1.bf16.xpose.msra.mxu0 0
  %3524 = vmatprep.subr.bf16.mxu0 0
  %3525 = vmatpush1.bf16.xpose.msra.mxu0 0
  %3526 = vmatprep.subr.bf16.mxu0 0
  %3527 = vmatpush1.bf16.xpose.msra.mxu0 0
  %3528 = vmatprep.subr.bf16.mxu0 0
  %3529 = vmatpush1.bf16.xpose.msra.mxu0 0
  %3530 = vmatprep.subr.bf16.mxu0 0
  %3531 = vmatpush1.bf16.xpose.msra.mxu0 0
  %3532 = vmatprep.subr.bf16.mxu0 0
  %3533 = vmatpush1.bf16.xpose.msra.mxu0 0
  %3534 = vmatprep.subr.bf16.mxu0 0
  %3535 = vmatpush1.bf16.xpose.msra.mxu0 0
  %3536 = vmatprep.subr.bf16.mxu0 0
  %3537 = vmatpush1.bf16.xpose.msra.mxu0 0
  %3538 = vmatprep.subr.bf16.mxu0 0
  %3539 = vmatpush1.bf16.xpose.msra.mxu0 0
  %3540 = vmatprep.subr.bf16.mxu0 0
  %3541 = vmatpush1.bf16.xpose.msra.mxu0 0
  %3542 = vmatprep.subr.bf16.mxu0 0
  %3543 = vmatpush1.bf16.xpose.msra.mxu0 0
  %3544 = vmatprep.subr.bf16.mxu0 0
  %3545 = vmatpush1.bf16.xpose.msra.mxu0 0
  %3546 = vmatprep.subr.bf16.mxu0 0
  %3547 = vmatpush1.bf16.xpose.msra.mxu0 0
  %3548 = vmatprep.subr.bf16.mxu0 0
  %3549 = vmatpush1.bf16.xpose.msra.mxu0 0
  %3550 = vmatprep.mubr.bf16.mxu0 0
  %3551 = vmatmul.mubr.bf16.gmra.mrb[0].mxu0 %v3507
  %v3552 = vpop.f32.mrb[0].mxu0
  %v3553 = vadd.f32 %v77, %v3552
  %v3554 = vpop.f32.mrb[0].mxu0
  %v3555 = vpop.f32.mrb[0].mxu0
  %v3556 = vadd.f32 %v78, %v3555
  %v3557 = vpop.f32.mrb[0].mxu0
  %3558 = vmatprep.mubr.bf16.mxu0 0
  %3559 = vmatmul.mubr.bf16.gmra.mrb[0].mxu0 %v3510
  %v3560 = vpop.f32.mrb[0].mxu0
  %v3561 = vadd.f32 %v79, %v3560
  %v3562 = vpop.f32.mrb[0].mxu0
  %v3563 = vpop.f32.mrb[0].mxu0
  %v3564 = vadd.f32 %v80, %v3563
  %v3565 = vpop.f32.mrb[0].mxu0
  %3566 = vdwg.mxu0
  %v3567 = vsel %vm179, %v3553, -inf
  %3568 = vmax.xlane.f32.xlu0 %v3567
  %v3569 = vpop.xlane.xlu0 %3568
  %v3570 = vsel %vm179, %v3556, -inf
  %3571 = vmax.xlane.f32.xlu0 %v3570
  %v3572 = vpop.xlane.xlu0 %3571
  %v3573 = vsel %vm179, %v3561, -inf
  %3574 = vmax.xlane.f32.xlu0 %v3573
  %v3575 = vpop.xlane.xlu0 %3574
  %v3576 = vsel %vm179, %v3564, -inf
  %3577 = vmax.xlane.f32.xlu0 %v3576
  %v3578 = vpop.xlane.xlu0 %3577
  %v3579 = vsub.f32 %v3553, %v3569
  %v3580 = vsub.f32 %v3556, %v3572
  %v3581 = vsub.f32 %v3561, %v3575
  %v3582 = vsub.f32 %v3564, %v3578
  %v3583 = vmul.f32 %v3579, 1.442695
  %v3584 = vpow.pop %v3583
  %v3585 = vmul.f32 %v3580, 1.442695
  %v3586 = vpow.pop %v3585
  %v3587 = vmul.f32 %v3581, 1.442695
  %v3588 = vpow.pop %v3587
  %v3589 = vmul.f32 %v3582, 1.442695
  %v3590 = vpow.pop %v3589
  %v3591 = vsel %vm179, %v3584, 0.0
  %3592 = vadd.xlane.f32.xlu0 %v3591
  %v3593 = vpop.xlane.xlu0 %3592
  %v3594 = vsel %vm179, %v3586, 0.0
  %3595 = vadd.xlane.f32.xlu0 %v3594
  %v3596 = vpop.xlane.xlu0 %3595
  %v3597 = vsel %vm179, %v3588, 0.0
  %3598 = vadd.xlane.f32.xlu0 %v3597
  %v3599 = vpop.xlane.xlu0 %3598
  %v3600 = vsel %vm179, %v3590, 0.0
  %3601 = vadd.xlane.f32.xlu0 %v3600
  %v3602 = vpop.xlane.xlu0 %3601
  %v3603 = vrcp.pop %v3593
  %v3604 = vrcp.pop %v3596
  %v3605 = vrcp.pop %v3599
  %v3606 = vrcp.pop %v3602
  %v3607 = vmul.f32 %v3584, %v3603
  %v3608 = vmul.f32 %v3586, %v3604
  %v3609 = vmul.f32 %v3588, %v3605
  %v3610 = vmul.f32 %v3590, %v3606
  %v3611 = vpack.c.bf16 %v3608, %v3607
  %v3612 = vpack.c.bf16 %v3610, %v3609
  %v3613 = vmul.bf16 %v3502, %v496
  %v3614 = vmul.bf16 %v3503, %v496
  %v3615 = vmul.bf16 %v3498, %v614
  %v3616 = vmul.bf16 %v3499, %v614
  %v3618 = vsel %vm179, %v3615, 0
  %v3621 = vsel %vm179, %v3616, 0
  %3623 = vmatprep.subr.bf16.mxu0 0
  %3624 = vmatpush1.bf16.xpose.msra.mxu0 %v3513
  %3625 = vmatprep.subr.bf16.mxu0 0
  %3626 = vmatpush1.bf16.xpose.msra.mxu0 %v3516
  %3627 = vmatprep.subr.bf16.mxu0 0
  %3628 = vmatpush1.bf16.xpose.msra.mxu0 0
  %3629 = vmatprep.subr.bf16.mxu0 0
  %3630 = vmatpush1.bf16.xpose.msra.mxu0 0
  %3631 = vmatprep.subr.bf16.mxu0 0
  %3632 = vmatpush1.bf16.xpose.msra.mxu0 0
  %3633 = vmatprep.subr.bf16.mxu0 0
  %3634 = vmatpush1.bf16.xpose.msra.mxu0 0
  %3635 = vmatprep.subr.bf16.mxu0 0
  %3636 = vmatpush1.bf16.xpose.msra.mxu0 0
  %3637 = vmatprep.subr.bf16.mxu0 0
  %3638 = vmatpush1.bf16.xpose.msra.mxu0 0
  %3639 = vmatprep.subr.bf16.mxu0 0
  %3640 = vmatpush1.bf16.xpose.msra.mxu0 0
  %3641 = vmatprep.subr.bf16.mxu0 0
  %3642 = vmatpush1.bf16.xpose.msra.mxu0 0
  %3643 = vmatprep.subr.bf16.mxu0 0
  %3644 = vmatpush1.bf16.xpose.msra.mxu0 0
  %3645 = vmatprep.subr.bf16.mxu0 0
  %3646 = vmatpush1.bf16.xpose.msra.mxu0 0
  %3647 = vmatprep.subr.bf16.mxu0 0
  %3648 = vmatpush1.bf16.xpose.msra.mxu0 0
  %3649 = vmatprep.subr.bf16.mxu0 0
  %3650 = vmatpush1.bf16.xpose.msra.mxu0 0
  %3651 = vmatprep.subr.bf16.mxu0 0
  %3652 = vmatpush1.bf16.xpose.msra.mxu0 0
  %3653 = vmatprep.subr.bf16.mxu0 0
  %3654 = vmatpush1.bf16.xpose.msra.mxu0 0
  %3655 = vmatprep.mubr.bf16.mxu0 0
  %3656 = vmatmul.mubr.bf16.gmra.mrb[0].mxu0 %v3618
  %v3657 = vpop.f32.mrb[0].mxu0
  %v3658 = vadd.f32 %v77, %v3657
  %v3659 = vpop.f32.mrb[0].mxu0
  %v3660 = vpop.f32.mrb[0].mxu0
  %v3661 = vadd.f32 %v78, %v3660
  %v3662 = vpop.f32.mrb[0].mxu0
  %3663 = vmatprep.mubr.bf16.mxu0 0
  %3664 = vmatmul.mubr.bf16.gmra.mrb[0].mxu0 %v3621
  %v3665 = vpop.f32.mrb[0].mxu0
  %v3666 = vadd.f32 %v79, %v3665
  %v3667 = vpop.f32.mrb[0].mxu0
  %v3668 = vpop.f32.mrb[0].mxu0
  %v3669 = vadd.f32 %v80, %v3668
  %v3670 = vpop.f32.mrb[0].mxu0
  %3671 = vdwg.mxu0
  %v3672 = vsel %vm179, %v3658, -inf
  %3673 = vmax.xlane.f32.xlu0 %v3672
  %v3674 = vpop.xlane.xlu0 %3673
  %v3675 = vsel %vm179, %v3661, -inf
  %3676 = vmax.xlane.f32.xlu0 %v3675
  %v3677 = vpop.xlane.xlu0 %3676
  %v3678 = vsel %vm179, %v3666, -inf
  %3679 = vmax.xlane.f32.xlu0 %v3678
  %v3680 = vpop.xlane.xlu0 %3679
  %v3681 = vsel %vm179, %v3669, -inf
  %3682 = vmax.xlane.f32.xlu0 %v3681
  %v3683 = vpop.xlane.xlu0 %3682
  %v3684 = vsub.f32 %v3658, %v3674
  %v3685 = vsub.f32 %v3661, %v3677
  %v3686 = vsub.f32 %v3666, %v3680
  %v3687 = vsub.f32 %v3669, %v3683
  %v3688 = vmul.f32 %v3684, 1.442695
  %v3689 = vpow.pop %v3688
  %v3690 = vmul.f32 %v3685, 1.442695
  %v3691 = vpow.pop %v3690
  %v3692 = vmul.f32 %v3686, 1.442695
  %v3693 = vpow.pop %v3692
  %v3694 = vmul.f32 %v3687, 1.442695
  %v3695 = vpow.pop %v3694
  %v3696 = vsel %vm179, %v3689, 0.0
  %3697 = vadd.xlane.f32.xlu0 %v3696
  %v3698 = vpop.xlane.xlu0 %3697
  %v3699 = vsel %vm179, %v3691, 0.0
  %3700 = vadd.xlane.f32.xlu0 %v3699
  %v3701 = vpop.xlane.xlu0 %3700
  %v3702 = vsel %vm179, %v3693, 0.0
  %3703 = vadd.xlane.f32.xlu0 %v3702
  %v3704 = vpop.xlane.xlu0 %3703
  %v3705 = vsel %vm179, %v3695, 0.0
  %3706 = vadd.xlane.f32.xlu0 %v3705
  %v3707 = vpop.xlane.xlu0 %3706
  %v3708 = vrcp.pop %v3698
  %v3709 = vrcp.pop %v3701
  %v3710 = vrcp.pop %v3704
  %v3711 = vrcp.pop %v3707
  %v3712 = vmul.f32 %v3689, %v3708
  %v3713 = vmul.f32 %v3691, %v3709
  %v3714 = vmul.f32 %v3693, %v3710
  %v3715 = vmul.f32 %v3695, %v3711
  %v3716 = vpack.c.bf16 %v3713, %v3712
  %v3717 = vpack.c.bf16 %v3715, %v3714
  %v3718 = vmul.bf16 %v3502, %v614
  %v3719 = vmul.bf16 %v3503, %v614
  %v3721 = vsel %vm179, %v3716, 0
  %v3724 = vsel %vm179, %v3717, 0
  %3726 = vmatprep.subr.bf16.mxu0 0
  %3727 = vmatpush1.bf16.msra.mxu0 %v3718
  %3728 = vmatprep.subr.bf16.mxu0 0
  %3729 = vmatpush1.bf16.msra.mxu0 %v3719
  %3730 = vmatprep.subr.bf16.mxu0 0
  %3731 = vmatpush1.bf16.msra.mxu0 0
  %3732 = vmatprep.subr.bf16.mxu0 0
  %3733 = vmatpush1.bf16.msra.mxu0 0
  %3734 = vmatprep.subr.bf16.mxu0 0
  %3735 = vmatpush1.bf16.msra.mxu0 0
  %3736 = vmatprep.subr.bf16.mxu0 0
  %3737 = vmatpush1.bf16.msra.mxu0 0
  %3738 = vmatprep.subr.bf16.mxu0 0
  %3739 = vmatpush1.bf16.msra.mxu0 0
  %3740 = vmatprep.subr.bf16.mxu0 0
  %3741 = vmatpush1.bf16.msra.mxu0 0
  %3742 = vmatprep.subr.bf16.mxu0 0
  %3743 = vmatpush1.bf16.msra.mxu0 0
  %3744 = vmatprep.subr.bf16.mxu0 0
  %3745 = vmatpush1.bf16.msra.mxu0 0
  %3746 = vmatprep.subr.bf16.mxu0 0
  %3747 = vmatpush1.bf16.msra.mxu0 0
  %3748 = vmatprep.subr.bf16.mxu0 0
  %3749 = vmatpush1.bf16.msra.mxu0 0
  %3750 = vmatprep.subr.bf16.mxu0 0
  %3751 = vmatpush1.bf16.msra.mxu0 0
  %3752 = vmatprep.subr.bf16.mxu0 0
  %3753 = vmatpush1.bf16.msra.mxu0 0
  %3754 = vmatprep.subr.bf16.mxu0 0
  %3755 = vmatpush1.bf16.msra.mxu0 0
  %3756 = vmatprep.subr.bf16.mxu0 0
  %3757 = vmatpush1.bf16.msra.mxu0 0
  %3758 = vmatprep.mubr.bf16.mxu0 0
  %3759 = vmatmul.mubr.bf16.gmra.mrb[0].mxu0 %v3721
  %v3760 = vpop.f32.mrb[0].mxu0
  %v3761 = vadd.f32 0.0, %v3760
  %v3762 = vpop.f32.mrb[0].mxu0
  %v3763 = vpop.f32.mrb[0].mxu0
  %v3764 = vadd.f32 0.0, %v3763
  %v3765 = vpop.f32.mrb[0].mxu0
  %3766 = vmatprep.mubr.bf16.mxu0 0
  %3767 = vmatmul.mubr.bf16.gmra.mrb[0].mxu0 %v3724
  %v3768 = vpop.f32.mrb[0].mxu0
  %v3769 = vadd.f32 0.0, %v3768
  %v3770 = vpop.f32.mrb[0].mxu0
  %v3771 = vpop.f32.mrb[0].mxu0
  %v3772 = vadd.f32 0.0, %v3771
  %v3773 = vpop.f32.mrb[0].mxu0
  %3774 = vdwg.mxu0
  %v3776 = vsel %vm179, %v3611, 0
  %v3779 = vsel %vm179, %v3612, 0
  %3781 = vmatprep.subr.bf16.mxu0 0
  %3782 = vmatpush1.bf16.msra.mxu0 %v3613
  %3783 = vmatprep.subr.bf16.mxu0 0
  %3784 = vmatpush1.bf16.msra.mxu0 %v3614
  %3785 = vmatprep.subr.bf16.mxu0 0
  %3786 = vmatpush1.bf16.msra.mxu0 0
  %3787 = vmatprep.subr.bf16.mxu0 0
  %3788 = vmatpush1.bf16.msra.mxu0 0
  %3789 = vmatprep.subr.bf16.mxu0 0
  %3790 = vmatpush1.bf16.msra.mxu0 0
  %3791 = vmatprep.subr.bf16.mxu0 0
  %3792 = vmatpush1.bf16.msra.mxu0 0
  %3793 = vmatprep.subr.bf16.mxu0 0
  %3794 = vmatpush1.bf16.msra.mxu0 0
  %3795 = vmatprep.subr.bf16.mxu0 0
  %3796 = vmatpush1.bf16.msra.mxu0 0
  %3797 = vmatprep.subr.bf16.mxu0 0
  %3798 = vmatpush1.bf16.msra.mxu0 0
  %3799 = vmatprep.subr.bf16.mxu0 0
  %3800 = vmatpush1.bf16.msra.mxu0 0
  %3801 = vmatprep.subr.bf16.mxu0 0
  %3802 = vmatpush1.bf16.msra.mxu0 0
  %3803 = vmatprep.subr.bf16.mxu0 0
  %3804 = vmatpush1.bf16.msra.mxu0 0
  %3805 = vmatprep.subr.bf16.mxu0 0
  %3806 = vmatpush1.bf16.msra.mxu0 0
  %3807 = vmatprep.subr.bf16.mxu0 0
  %3808 = vmatpush1.bf16.msra.mxu0 0
  %3809 = vmatprep.subr.bf16.mxu0 0
  %3810 = vmatpush1.bf16.msra.mxu0 0
  %3811 = vmatprep.subr.bf16.mxu0 0
  %3812 = vmatpush1.bf16.msra.mxu0 0
  %3813 = vmatprep.mubr.bf16.mxu0 0
  %3814 = vmatmul.mubr.bf16.gmra.mrb[0].mxu0 %v3776
  %v3815 = vpop.f32.mrb[0].mxu0
  %v3816 = vadd.f32 %v3761, %v3815
  %v3817 = vpop.f32.mrb[0].mxu0
  %v3818 = vpop.f32.mrb[0].mxu0
  %v3819 = vadd.f32 %v3764, %v3818
  %v3820 = vpop.f32.mrb[0].mxu0
  %3821 = vmatprep.mubr.bf16.mxu0 0
  %3822 = vmatmul.mubr.bf16.gmra.mrb[0].mxu0 %v3779
  %v3823 = vpop.f32.mrb[0].mxu0
  %v3824 = vadd.f32 %v3769, %v3823
  %v3825 = vpop.f32.mrb[0].mxu0
  %v3826 = vpop.f32.mrb[0].mxu0
  %v3827 = vadd.f32 %v3772, %v3826
  %v3828 = vpop.f32.mrb[0].mxu0
  %3829 = vdwg.mxu0
  %v3830 = vmul.bf16 %v3498, %v836
  %v3831 = vmul.bf16 %v3499, %v836
  %v3833 = vsel %vm179, %v3830, 0
  %v3836 = vsel %vm179, %v3831, 0
  %3838 = vmatprep.subr.bf16.mxu0 0
  %3839 = vmatpush1.bf16.xpose.msra.mxu0 %v3513
  %3840 = vmatprep.subr.bf16.mxu0 0
  %3841 = vmatpush1.bf16.xpose.msra.mxu0 %v3516
  %3842 = vmatprep.subr.bf16.mxu0 0
  %3843 = vmatpush1.bf16.xpose.msra.mxu0 0
  %3844 = vmatprep.subr.bf16.mxu0 0
  %3845 = vmatpush1.bf16.xpose.msra.mxu0 0
  %3846 = vmatprep.subr.bf16.mxu0 0
  %3847 = vmatpush1.bf16.xpose.msra.mxu0 0
  %3848 = vmatprep.subr.bf16.mxu0 0
  %3849 = vmatpush1.bf16.xpose.msra.mxu0 0
  %3850 = vmatprep.subr.bf16.mxu0 0
  %3851 = vmatpush1.bf16.xpose.msra.mxu0 0
  %3852 = vmatprep.subr.bf16.mxu0 0
  %3853 = vmatpush1.bf16.xpose.msra.mxu0 0
  %3854 = vmatprep.subr.bf16.mxu0 0
  %3855 = vmatpush1.bf16.xpose.msra.mxu0 0
  %3856 = vmatprep.subr.bf16.mxu0 0
  %3857 = vmatpush1.bf16.xpose.msra.mxu0 0
  %3858 = vmatprep.subr.bf16.mxu0 0
  %3859 = vmatpush1.bf16.xpose.msra.mxu0 0
  %3860 = vmatprep.subr.bf16.mxu0 0
  %3861 = vmatpush1.bf16.xpose.msra.mxu0 0
  %3862 = vmatprep.subr.bf16.mxu0 0
  %3863 = vmatpush1.bf16.xpose.msra.mxu0 0
  %3864 = vmatprep.subr.bf16.mxu0 0
  %3865 = vmatpush1.bf16.xpose.msra.mxu0 0
  %3866 = vmatprep.subr.bf16.mxu0 0
  %3867 = vmatpush1.bf16.xpose.msra.mxu0 0
  %3868 = vmatprep.subr.bf16.mxu0 0
  %3869 = vmatpush1.bf16.xpose.msra.mxu0 0
  %3870 = vmatprep.mubr.bf16.mxu0 0
  %3871 = vmatmul.mubr.bf16.gmra.mrb[0].mxu0 %v3833
  %v3872 = vpop.f32.mrb[0].mxu0
  %v3873 = vadd.f32 %v77, %v3872
  %v3874 = vpop.f32.mrb[0].mxu0
  %v3875 = vpop.f32.mrb[0].mxu0
  %v3876 = vadd.f32 %v78, %v3875
  %v3877 = vpop.f32.mrb[0].mxu0
  %3878 = vmatprep.mubr.bf16.mxu0 0
  %3879 = vmatmul.mubr.bf16.gmra.mrb[0].mxu0 %v3836
  %v3880 = vpop.f32.mrb[0].mxu0
  %v3881 = vadd.f32 %v79, %v3880
  %v3882 = vpop.f32.mrb[0].mxu0
  %v3883 = vpop.f32.mrb[0].mxu0
  %v3884 = vadd.f32 %v80, %v3883
  %v3885 = vpop.f32.mrb[0].mxu0
  %3886 = vdwg.mxu0
  %v3887 = vsel %vm179, %v3873, -inf
  %3888 = vmax.xlane.f32.xlu0 %v3887
  %v3889 = vpop.xlane.xlu0 %3888
  %v3890 = vsel %vm179, %v3876, -inf
  %3891 = vmax.xlane.f32.xlu0 %v3890
  %v3892 = vpop.xlane.xlu0 %3891
  %v3893 = vsel %vm179, %v3881, -inf
  %3894 = vmax.xlane.f32.xlu0 %v3893
  %v3895 = vpop.xlane.xlu0 %3894
  %v3896 = vsel %vm179, %v3884, -inf
  %3897 = vmax.xlane.f32.xlu0 %v3896
  %v3898 = vpop.xlane.xlu0 %3897
  %v3899 = vsub.f32 %v3873, %v3889
  %v3900 = vsub.f32 %v3876, %v3892
  %v3901 = vsub.f32 %v3881, %v3895
  %v3902 = vsub.f32 %v3884, %v3898
  %v3903 = vmul.f32 %v3899, 1.442695
  %v3904 = vpow.pop %v3903
  %v3905 = vmul.f32 %v3900, 1.442695
  %v3906 = vpow.pop %v3905
  %v3907 = vmul.f32 %v3901, 1.442695
  %v3908 = vpow.pop %v3907
  %v3909 = vmul.f32 %v3902, 1.442695
  %v3910 = vpow.pop %v3909
  %v3911 = vsel %vm179, %v3904, 0.0
  %3912 = vadd.xlane.f32.xlu0 %v3911
  %v3913 = vpop.xlane.xlu0 %3912
  %v3914 = vsel %vm179, %v3906, 0.0
  %3915 = vadd.xlane.f32.xlu0 %v3914
  %v3916 = vpop.xlane.xlu0 %3915
  %v3917 = vsel %vm179, %v3908, 0.0
  %3918 = vadd.xlane.f32.xlu0 %v3917
  %v3919 = vpop.xlane.xlu0 %3918
  %v3920 = vsel %vm179, %v3910, 0.0
  %3921 = vadd.xlane.f32.xlu0 %v3920
  %v3922 = vpop.xlane.xlu0 %3921
  %v3923 = vrcp.pop %v3913
  %v3924 = vrcp.pop %v3916
  %v3925 = vrcp.pop %v3919
  %v3926 = vrcp.pop %v3922
  %v3927 = vmul.f32 %v3904, %v3923
  %v3928 = vmul.f32 %v3906, %v3924
  %v3929 = vmul.f32 %v3908, %v3925
  %v3930 = vmul.f32 %v3910, %v3926
  %v3931 = vpack.c.bf16 %v3928, %v3927
  %v3932 = vpack.c.bf16 %v3930, %v3929
  %v3933 = vmul.bf16 %v3502, %v836
  %v3934 = vmul.bf16 %v3503, %v836
  %v3936 = vsel %vm179, %v3931, 0
  %v3939 = vsel %vm179, %v3932, 0
  %3941 = vmatprep.subr.bf16.mxu0 0
  %3942 = vmatpush1.bf16.msra.mxu0 %v3933
  %3943 = vmatprep.subr.bf16.mxu0 0
  %3944 = vmatpush1.bf16.msra.mxu0 %v3934
  %3945 = vmatprep.subr.bf16.mxu0 0
  %3946 = vmatpush1.bf16.msra.mxu0 0
  %3947 = vmatprep.subr.bf16.mxu0 0
  %3948 = vmatpush1.bf16.msra.mxu0 0
  %3949 = vmatprep.subr.bf16.mxu0 0
  %3950 = vmatpush1.bf16.msra.mxu0 0
  %3951 = vmatprep.subr.bf16.mxu0 0
  %3952 = vmatpush1.bf16.msra.mxu0 0
  %3953 = vmatprep.subr.bf16.mxu0 0
  %3954 = vmatpush1.bf16.msra.mxu0 0
  %3955 = vmatprep.subr.bf16.mxu0 0
  %3956 = vmatpush1.bf16.msra.mxu0 0
  %3957 = vmatprep.subr.bf16.mxu0 0
  %3958 = vmatpush1.bf16.msra.mxu0 0
  %3959 = vmatprep.subr.bf16.mxu0 0
  %3960 = vmatpush1.bf16.msra.mxu0 0
  %3961 = vmatprep.subr.bf16.mxu0 0
  %3962 = vmatpush1.bf16.msra.mxu0 0
  %3963 = vmatprep.subr.bf16.mxu0 0
  %3964 = vmatpush1.bf16.msra.mxu0 0
  %3965 = vmatprep.subr.bf16.mxu0 0
  %3966 = vmatpush1.bf16.msra.mxu0 0
  %3967 = vmatprep.subr.bf16.mxu0 0
  %3968 = vmatpush1.bf16.msra.mxu0 0
  %3969 = vmatprep.subr.bf16.mxu0 0
  %3970 = vmatpush1.bf16.msra.mxu0 0
  %3971 = vmatprep.subr.bf16.mxu0 0
  %3972 = vmatpush1.bf16.msra.mxu0 0
  %3973 = vmatprep.mubr.bf16.mxu0 0
  %3974 = vmatmul.mubr.bf16.gmra.mrb[0].mxu0 %v3936
  %v3975 = vpop.f32.mrb[0].mxu0
  %v3976 = vadd.f32 0.0, %v3975
  %v3977 = vpop.f32.mrb[0].mxu0
  %v3978 = vpop.f32.mrb[0].mxu0
  %v3979 = vadd.f32 0.0, %v3978
  %v3980 = vpop.f32.mrb[0].mxu0
  %3981 = vmatprep.mubr.bf16.mxu0 0
  %3982 = vmatmul.mubr.bf16.gmra.mrb[0].mxu0 %v3939
  %v3983 = vpop.f32.mrb[0].mxu0
  %v3984 = vadd.f32 0.0, %v3983
  %v3985 = vpop.f32.mrb[0].mxu0
  %v3986 = vpop.f32.mrb[0].mxu0
  %v3987 = vadd.f32 0.0, %v3986
  %v3988 = vpop.f32.mrb[0].mxu0
  %3989 = vdwg.mxu0
  %v3990 = vadd.f32 %v3816, %v3976
  %v3991 = vadd.f32 %v3819, %v3979
  %v3992 = vadd.f32 %v3824, %v3984
  %v3993 = vadd.f32 %v3827, %v3987
  %v3994 = vmul.bf16 %v3498, %v1007
  %v3995 = vmul.bf16 %v3499, %v1007
  %v3997 = vsel %vm179, %v3994, 0
  %v4000 = vsel %vm179, %v3995, 0
  %4002 = vmatprep.subr.bf16.mxu0 0
  %4003 = vmatpush1.bf16.xpose.msra.mxu0 %v3513
  %4004 = vmatprep.subr.bf16.mxu0 0
  %4005 = vmatpush1.bf16.xpose.msra.mxu0 %v3516
  %4006 = vmatprep.subr.bf16.mxu0 0
  %4007 = vmatpush1.bf16.xpose.msra.mxu0 0
  %4008 = vmatprep.subr.bf16.mxu0 0
  %4009 = vmatpush1.bf16.xpose.msra.mxu0 0
  %4010 = vmatprep.subr.bf16.mxu0 0
  %4011 = vmatpush1.bf16.xpose.msra.mxu0 0
  %4012 = vmatprep.subr.bf16.mxu0 0
  %4013 = vmatpush1.bf16.xpose.msra.mxu0 0
  %4014 = vmatprep.subr.bf16.mxu0 0
  %4015 = vmatpush1.bf16.xpose.msra.mxu0 0
  %4016 = vmatprep.subr.bf16.mxu0 0
  %4017 = vmatpush1.bf16.xpose.msra.mxu0 0
  %4018 = vmatprep.subr.bf16.mxu0 0
  %4019 = vmatpush1.bf16.xpose.msra.mxu0 0
  %4020 = vmatprep.subr.bf16.mxu0 0
  %4021 = vmatpush1.bf16.xpose.msra.mxu0 0
  %4022 = vmatprep.subr.bf16.mxu0 0
  %4023 = vmatpush1.bf16.xpose.msra.mxu0 0
  %4024 = vmatprep.subr.bf16.mxu0 0
  %4025 = vmatpush1.bf16.xpose.msra.mxu0 0
  %4026 = vmatprep.subr.bf16.mxu0 0
  %4027 = vmatpush1.bf16.xpose.msra.mxu0 0
  %4028 = vmatprep.subr.bf16.mxu0 0
  %4029 = vmatpush1.bf16.xpose.msra.mxu0 0
  %4030 = vmatprep.subr.bf16.mxu0 0
  %4031 = vmatpush1.bf16.xpose.msra.mxu0 0
  %4032 = vmatprep.subr.bf16.mxu0 0
  %4033 = vmatpush1.bf16.xpose.msra.mxu0 0
  %4034 = vmatprep.mubr.bf16.mxu0 0
  %4035 = vmatmul.mubr.bf16.gmra.mrb[0].mxu0 %v3997
  %v4036 = vpop.f32.mrb[0].mxu0
  %v4037 = vadd.f32 %v77, %v4036
  %v4038 = vpop.f32.mrb[0].mxu0
  %v4039 = vpop.f32.mrb[0].mxu0
  %v4040 = vadd.f32 %v78, %v4039
  %v4041 = vpop.f32.mrb[0].mxu0
  %4042 = vmatprep.mubr.bf16.mxu0 0
  %4043 = vmatmul.mubr.bf16.gmra.mrb[0].mxu0 %v4000
  %v4044 = vpop.f32.mrb[0].mxu0
  %v4045 = vadd.f32 %v79, %v4044
  %v4046 = vpop.f32.mrb[0].mxu0
  %v4047 = vpop.f32.mrb[0].mxu0
  %v4048 = vadd.f32 %v80, %v4047
  %v4049 = vpop.f32.mrb[0].mxu0
  %4050 = vdwg.mxu0
  %v4051 = vsel %vm179, %v4037, -inf
  %4052 = vmax.xlane.f32.xlu0 %v4051
  %v4053 = vpop.xlane.xlu0 %4052
  %v4054 = vsel %vm179, %v4040, -inf
  %4055 = vmax.xlane.f32.xlu0 %v4054
  %v4056 = vpop.xlane.xlu0 %4055
  %v4057 = vsel %vm179, %v4045, -inf
  %4058 = vmax.xlane.f32.xlu0 %v4057
  %v4059 = vpop.xlane.xlu0 %4058
  %v4060 = vsel %vm179, %v4048, -inf
  %4061 = vmax.xlane.f32.xlu0 %v4060
  %v4062 = vpop.xlane.xlu0 %4061
  %v4063 = vsub.f32 %v4037, %v4053
  %v4064 = vsub.f32 %v4040, %v4056
  %v4065 = vsub.f32 %v4045, %v4059
  %v4066 = vsub.f32 %v4048, %v4062
  %v4067 = vmul.f32 %v4063, 1.442695
  %v4068 = vpow.pop %v4067
  %v4069 = vmul.f32 %v4064, 1.442695
  %v4070 = vpow.pop %v4069
  %v4071 = vmul.f32 %v4065, 1.442695
  %v4072 = vpow.pop %v4071
  %v4073 = vmul.f32 %v4066, 1.442695
  %v4074 = vpow.pop %v4073
  %v4075 = vsel %vm179, %v4068, 0.0
  %4076 = vadd.xlane.f32.xlu0 %v4075
  %v4077 = vpop.xlane.xlu0 %4076
  %v4078 = vsel %vm179, %v4070, 0.0
  %4079 = vadd.xlane.f32.xlu0 %v4078
  %v4080 = vpop.xlane.xlu0 %4079
  %v4081 = vsel %vm179, %v4072, 0.0
  %4082 = vadd.xlane.f32.xlu0 %v4081
  %v4083 = vpop.xlane.xlu0 %4082
  %v4084 = vsel %vm179, %v4074, 0.0
  %4085 = vadd.xlane.f32.xlu0 %v4084
  %v4086 = vpop.xlane.xlu0 %4085
  %v4087 = vrcp.pop %v4077
  %v4088 = vrcp.pop %v4080
  %v4089 = vrcp.pop %v4083
  %v4090 = vrcp.pop %v4086
  %v4091 = vmul.f32 %v4068, %v4087
  %v4092 = vmul.f32 %v4070, %v4088
  %v4093 = vmul.f32 %v4072, %v4089
  %v4094 = vmul.f32 %v4074, %v4090
  %v4095 = vpack.c.bf16 %v4092, %v4091
  %v4096 = vpack.c.bf16 %v4094, %v4093
  %v4097 = vmul.bf16 %v3502, %v1007
  %v4098 = vmul.bf16 %v3503, %v1007
  %v4100 = vsel %vm179, %v4095, 0
  %v4103 = vsel %vm179, %v4096, 0
  %4105 = vmatprep.subr.bf16.mxu0 0
  %4106 = vmatpush1.bf16.msra.mxu0 %v4097
  %4107 = vmatprep.subr.bf16.mxu0 0
  %4108 = vmatpush1.bf16.msra.mxu0 %v4098
  %4109 = vmatprep.subr.bf16.mxu0 0
  %4110 = vmatpush1.bf16.msra.mxu0 0
  %4111 = vmatprep.subr.bf16.mxu0 0
  %4112 = vmatpush1.bf16.msra.mxu0 0
  %4113 = vmatprep.subr.bf16.mxu0 0
  %4114 = vmatpush1.bf16.msra.mxu0 0
  %4115 = vmatprep.subr.bf16.mxu0 0
  %4116 = vmatpush1.bf16.msra.mxu0 0
  %4117 = vmatprep.subr.bf16.mxu0 0
  %4118 = vmatpush1.bf16.msra.mxu0 0
  %4119 = vmatprep.subr.bf16.mxu0 0
  %4120 = vmatpush1.bf16.msra.mxu0 0
  %4121 = vmatprep.subr.bf16.mxu0 0
  %4122 = vmatpush1.bf16.msra.mxu0 0
  %4123 = vmatprep.subr.bf16.mxu0 0
  %4124 = vmatpush1.bf16.msra.mxu0 0
  %4125 = vmatprep.subr.bf16.mxu0 0
  %4126 = vmatpush1.bf16.msra.mxu0 0
  %4127 = vmatprep.subr.bf16.mxu0 0
  %4128 = vmatpush1.bf16.msra.mxu0 0
  %4129 = vmatprep.subr.bf16.mxu0 0
  %4130 = vmatpush1.bf16.msra.mxu0 0
  %4131 = vmatprep.subr.bf16.mxu0 0
  %4132 = vmatpush1.bf16.msra.mxu0 0
  %4133 = vmatprep.subr.bf16.mxu0 0
  %4134 = vmatpush1.bf16.msra.mxu0 0
  %4135 = vmatprep.subr.bf16.mxu0 0
  %4136 = vmatpush1.bf16.msra.mxu0 0
  %4137 = vmatprep.mubr.bf16.mxu0 0
  %4138 = vmatmul.mubr.bf16.gmra.mrb[0].mxu0 %v4100
  %v4139 = vpop.f32.mrb[0].mxu0
  %v4140 = vadd.f32 0.0, %v4139
  %v4141 = vpop.f32.mrb[0].mxu0
  %v4142 = vpop.f32.mrb[0].mxu0
  %v4143 = vadd.f32 0.0, %v4142
  %v4144 = vpop.f32.mrb[0].mxu0
  %4145 = vmatprep.mubr.bf16.mxu0 0
  %4146 = vmatmul.mubr.bf16.gmra.mrb[0].mxu0 %v4103
  %v4147 = vpop.f32.mrb[0].mxu0
  %v4148 = vadd.f32 0.0, %v4147
  %v4149 = vpop.f32.mrb[0].mxu0
  %v4150 = vpop.f32.mrb[0].mxu0
  %v4151 = vadd.f32 0.0, %v4150
  %v4152 = vpop.f32.mrb[0].mxu0
  %4153 = vdwg.mxu0
  %v4154 = vadd.f32 %v3990, %v4140
  %v4155 = vadd.f32 %v3991, %v4143
  %v4156 = vadd.f32 %v3992, %v4148
  %v4157 = vadd.f32 %v3993, %v4151
  %v4158 = vpack.c.bf16 %v4155, %v4154
  %v4159 = vpack.c.bf16 %v4157, %v4156
  %v4160 = vld [vmem:[%s17] sm:$0xf]
  %v4161 = vld [vmem:[%s17 + $0x4] sm:$0xf]
  %v4162 = vld [vmem:[%s17 + $0x8] sm:$0xf]
  %v4163 = vld [vmem:[%s17 + $0xc] sm:$0xf]
  %v4164 = vld [vmem:[%s18] sm:$0x1]
  %v4166 = vlaneseq
  %v4167 = vshrl.u32 %v4166, 7
  %v4168 = vsub.s32 0, %v4167
  %v4169 = vrot.slane %v4164, %v4168
  %v4175 = vunpack.c.l.b16 %v4160
  %v4176 = vunpack.c.l.b16 %v4161
  %v4177 = vunpack.c.l.b16 %v4162
  %v4178 = vunpack.c.l.b16 %v4163
  %v4179 = vpack.c.b16 %v4176, %v4175
  %v4180 = vpack.c.b16 %v4178, %v4177
  %v4184 = vsel %vm179, %v4158, 0
  %v4187 = vsel %vm179, %v4159, 0
  %4189 = vmatprep.subr.bf16.mxu0 0
  %4190 = vmatpush1.bf16.msra.mxu0 %v4179
  %4191 = vmatprep.subr.bf16.mxu0 0
  %4192 = vmatpush1.bf16.msra.mxu0 %v4180
  %4193 = vmatprep.subr.bf16.mxu0 0
  %4194 = vmatpush1.bf16.msra.mxu0 0
  %4195 = vmatprep.subr.bf16.mxu0 0
  %4196 = vmatpush1.bf16.msra.mxu0 0
  %4197 = vmatprep.subr.bf16.mxu0 0
  %4198 = vmatpush1.bf16.msra.mxu0 0
  %4199 = vmatprep.subr.bf16.mxu0 0
  %4200 = vmatpush1.bf16.msra.mxu0 0
  %4201 = vmatprep.subr.bf16.mxu0 0
  %4202 = vmatpush1.bf16.msra.mxu0 0
  %4203 = vmatprep.subr.bf16.mxu0 0
  %4204 = vmatpush1.bf16.msra.mxu0 0
  %4205 = vmatprep.subr.bf16.mxu0 0
  %4206 = vmatpush1.bf16.msra.mxu0 0
  %4207 = vmatprep.subr.bf16.mxu0 0
  %4208 = vmatpush1.bf16.msra.mxu0 0
  %4209 = vmatprep.subr.bf16.mxu0 0
  %4210 = vmatpush1.bf16.msra.mxu0 0
  %4211 = vmatprep.subr.bf16.mxu0 0
  %4212 = vmatpush1.bf16.msra.mxu0 0
  %4213 = vmatprep.subr.bf16.mxu0 0
  %4214 = vmatpush1.bf16.msra.mxu0 0
  %4215 = vmatprep.subr.bf16.mxu0 0
  %4216 = vmatpush1.bf16.msra.mxu0 0
  %4217 = vmatprep.subr.bf16.mxu0 0
  %4218 = vmatpush1.bf16.msra.mxu0 0
  %4219 = vmatprep.subr.bf16.mxu0 0
  %4220 = vmatpush1.bf16.msra.mxu0 0
  %4221 = vmatprep.mubr.bf16.mxu0 0
  %4222 = vmatmul.mubr.bf16.gmra.mrb[0].mxu0 %v4184
  %v4223 = vpop.f32.mrb[0].mxu0
  %v4224 = vadd.f32 %v4169, %v4223
  %v4225 = vpop.f32.mrb[0].mxu0
  %v4226 = vpop.f32.mrb[0].mxu0
  %v4227 = vadd.f32 %v4169, %v4226
  %v4228 = vpop.f32.mrb[0].mxu0
  %4229 = vmatprep.mubr.bf16.mxu0 0
  %4230 = vmatmul.mubr.bf16.gmra.mrb[0].mxu0 %v4187
  %v4231 = vpop.f32.mrb[0].mxu0
  %v4232 = vadd.f32 %v4169, %v4231
  %v4233 = vpop.f32.mrb[0].mxu0
  %v4234 = vpop.f32.mrb[0].mxu0
  %v4235 = vadd.f32 %v4169, %v4234
  %v4236 = vpop.f32.mrb[0].mxu0
  %4237 = vdwg.mxu0
  %v4238 = vadd.f32 %v3188, %v4224
  %v4239 = vadd.f32 %v3189, %v4227
  %v4240 = vadd.f32 %v3190, %v4232
  %v4241 = vadd.f32 %v3191, %v4235
  %v4242 = vld [vmem:[%s1256] sm:$0x1]
  %v4243 = vld [vmem:[%s1258] sm:$0x1]
  %v4244 = vsel %vm179, %v4238, 0.0
  %4245 = vadd.xlane.f32.xlu0 %v4244
  %v4246 = vpop.xlane.xlu0 %4245
  %v4247 = vsel %vm179, %v4239, 0.0
  %4248 = vadd.xlane.f32.xlu0 %v4247
  %v4249 = vpop.xlane.xlu0 %4248
  %v4250 = vsel %vm179, %v4240, 0.0
  %4251 = vadd.xlane.f32.xlu0 %v4250
  %v4252 = vpop.xlane.xlu0 %4251
  %v4253 = vsel %vm179, %v4241, 0.0
  %4254 = vadd.xlane.f32.xlu0 %v4253
  %v4255 = vpop.xlane.xlu0 %4254
  %v4256 = vmul.f32 %v4246, 0.03125
  %v4257 = vmul.f32 %v4249, 0.03125
  %v4258 = vmul.f32 %v4252, 0.03125
  %v4259 = vmul.f32 %v4255, 0.03125
  %v4260 = vmul.f32 %v4238, %v4238
  %v4261 = vmul.f32 %v4239, %v4239
  %v4262 = vmul.f32 %v4240, %v4240
  %v4263 = vmul.f32 %v4241, %v4241
  %v4264 = vsel %vm179, %v4260, 0.0
  %4265 = vadd.xlane.f32.xlu0 %v4264
  %v4266 = vpop.xlane.xlu0 %4265
  %v4267 = vsel %vm179, %v4261, 0.0
  %4268 = vadd.xlane.f32.xlu0 %v4267
  %v4269 = vpop.xlane.xlu0 %4268
  %v4270 = vsel %vm179, %v4262, 0.0
  %4271 = vadd.xlane.f32.xlu0 %v4270
  %v4272 = vpop.xlane.xlu0 %4271
  %v4273 = vsel %vm179, %v4263, 0.0
  %4274 = vadd.xlane.f32.xlu0 %v4273
  %v4275 = vpop.xlane.xlu0 %4274
  %v4276 = vmul.f32 %v4266, 0.03125
  %v4277 = vmul.f32 %v4269, 0.03125
  %v4278 = vmul.f32 %v4272, 0.03125
  %v4279 = vmul.f32 %v4275, 0.03125
  %v4280 = vmul.f32 %v4256, %v4256
  %v4281 = vmul.f32 %v4257, %v4257
  %v4282 = vmul.f32 %v4258, %v4258
  %v4283 = vmul.f32 %v4259, %v4259
  %v4284 = vsub.f32 %v4276, %v4280
  %v4285 = vsub.f32 %v4277, %v4281
  %v4286 = vsub.f32 %v4278, %v4282
  %v4287 = vsub.f32 %v4279, %v4283
  %v4288 = vsub.f32 %v4238, %v4256
  %v4289 = vsub.f32 %v4239, %v4257
  %v4290 = vsub.f32 %v4240, %v4258
  %v4291 = vsub.f32 %v4241, %v4259
  %v4292 = vadd.f32 %v4284, 1e-05
  %v4293 = vadd.f32 %v4285, 1e-05
  %v4294 = vadd.f32 %v4286, 1e-05
  %v4295 = vadd.f32 %v4287, 1e-05
  %v4296 = vrsqrt.pop %v4292
  %v4297 = vrsqrt.pop %v4293
  %v4298 = vrsqrt.pop %v4294
  %v4299 = vrsqrt.pop %v4295
  %v4300 = vmul.f32 %v4288, %v4296
  %v4301 = vmul.f32 %v4289, %v4297
  %v4302 = vmul.f32 %v4290, %v4298
  %v4303 = vmul.f32 %v4291, %v4299
  %v4305 = vlaneseq
  %v4306 = vshrl.u32 %v4305, 7
  %v4307 = vsub.s32 0, %v4306
  %v4308 = vrot.slane %v4242, %v4307
  %v4310 = vmul.f32 %v4300, %v4308
  %v4311 = vmul.f32 %v4301, %v4308
  %v4312 = vmul.f32 %v4302, %v4308
  %v4313 = vmul.f32 %v4303, %v4308
  %v4315 = vlaneseq
  %v4316 = vshrl.u32 %v4315, 7
  %v4317 = vsub.s32 0, %v4316
  %v4318 = vrot.slane %v4243, %v4317
  %v4320 = vadd.f32 %v4310, %v4318
  %v4321 = vadd.f32 %v4311, %v4318
  %v4322 = vadd.f32 %v4312, %v4318
  %v4323 = vadd.f32 %v4313, %v4318
  %v4324 = vpack.c.bf16 %v4321, %v4320
  %v4325 = vpack.c.bf16 %v4323, %v4322
  %v4326 = vld [vmem:[%s19] sm:$0xf]
  %v4327 = vld [vmem:[%s19 + $0x4] sm:$0xf]
  %v4328 = vld [vmem:[%s19 + $0x8] sm:$0xf]
  %v4329 = vld [vmem:[%s19 + $0xc] sm:$0xf]
  %v4330 = vld [vmem:[%s20] sm:$0x1]
  %v4332 = vlaneseq
  %v4333 = vshrl.u32 %v4332, 7
  %v4334 = vsub.s32 0, %v4333
  %v4335 = vrot.slane %v4330, %v4334
  %v4341 = vunpack.c.l.b16 %v4326
  %v4342 = vunpack.c.l.b16 %v4327
  %v4343 = vunpack.c.l.b16 %v4328
  %v4344 = vunpack.c.l.b16 %v4329
  %v4345 = vpack.c.b16 %v4342, %v4341
  %v4346 = vpack.c.b16 %v4344, %v4343
  %v4350 = vsel %vm179, %v4324, 0
  %v4353 = vsel %vm179, %v4325, 0
  %4355 = vmatprep.subr.bf16.mxu0 0
  %4356 = vmatpush1.bf16.msra.mxu0 %v4345
  %4357 = vmatprep.subr.bf16.mxu0 0
  %4358 = vmatpush1.bf16.msra.mxu0 %v4346
  %4359 = vmatprep.subr.bf16.mxu0 0
  %4360 = vmatpush1.bf16.msra.mxu0 0
  %4361 = vmatprep.subr.bf16.mxu0 0
  %4362 = vmatpush1.bf16.msra.mxu0 0
  %4363 = vmatprep.subr.bf16.mxu0 0
  %4364 = vmatpush1.bf16.msra.mxu0 0
  %4365 = vmatprep.subr.bf16.mxu0 0
  %4366 = vmatpush1.bf16.msra.mxu0 0
  %4367 = vmatprep.subr.bf16.mxu0 0
  %4368 = vmatpush1.bf16.msra.mxu0 0
  %4369 = vmatprep.subr.bf16.mxu0 0
  %4370 = vmatpush1.bf16.msra.mxu0 0
  %4371 = vmatprep.subr.bf16.mxu0 0
  %4372 = vmatpush1.bf16.msra.mxu0 0
  %4373 = vmatprep.subr.bf16.mxu0 0
  %4374 = vmatpush1.bf16.msra.mxu0 0
  %4375 = vmatprep.subr.bf16.mxu0 0
  %4376 = vmatpush1.bf16.msra.mxu0 0
  %4377 = vmatprep.subr.bf16.mxu0 0
  %4378 = vmatpush1.bf16.msra.mxu0 0
  %4379 = vmatprep.subr.bf16.mxu0 0
  %4380 = vmatpush1.bf16.msra.mxu0 0
  %4381 = vmatprep.subr.bf16.mxu0 0
  %4382 = vmatpush1.bf16.msra.mxu0 0
  %4383 = vmatprep.subr.bf16.mxu0 0
  %4384 = vmatpush1.bf16.msra.mxu0 0
  %4385 = vmatprep.subr.bf16.mxu0 0
  %4386 = vmatpush1.bf16.msra.mxu0 0
  %4387 = vmatprep.mubr.bf16.mxu0 0
  %4388 = vmatmul.mubr.bf16.gmra.mrb[0].mxu0 %v4350
  %v4389 = vpop.f32.mrb[0].mxu0
  %v4390 = vadd.f32 %v4335, %v4389
  %v4391 = vpop.f32.mrb[0].mxu0
  %v4392 = vpop.f32.mrb[0].mxu0
  %v4393 = vadd.f32 %v4335, %v4392
  %v4394 = vpop.f32.mrb[0].mxu0
  %4395 = vmatprep.mubr.bf16.mxu0 0
  %4396 = vmatmul.mubr.bf16.gmra.mrb[0].mxu0 %v4353
  %v4397 = vpop.f32.mrb[0].mxu0
  %v4398 = vadd.f32 %v4335, %v4397
  %v4399 = vpop.f32.mrb[0].mxu0
  %v4400 = vpop.f32.mrb[0].mxu0
  %v4401 = vadd.f32 %v4335, %v4400
  %v4402 = vpop.f32.mrb[0].mxu0
  %4403 = vdwg.mxu0
  %v4404 = vmul.f32 %v4390, %v4390
  %v4405 = vmul.f32 %v4393, %v4393
  %v4406 = vmul.f32 %v4398, %v4398
  %v4407 = vmul.f32 %v4401, %v4401
  %v4408 = vmul.f32 %v4390, %v4404
  %v4409 = vmul.f32 %v4393, %v4405
  %v4410 = vmul.f32 %v4398, %v4406
  %v4411 = vmul.f32 %v4401, %v4407
  %v4412 = vmul.f32 %v4408, 0.044715
  %v4413 = vmul.f32 %v4409, 0.044715
  %v4414 = vmul.f32 %v4410, 0.044715
  %v4415 = vmul.f32 %v4411, 0.044715
  %v4416 = vadd.f32 %v4390, %v4412
  %v4417 = vadd.f32 %v4393, %v4413
  %v4418 = vadd.f32 %v4398, %v4414
  %v4419 = vadd.f32 %v4401, %v4415
  %v4420 = vmul.f32 %v4416, 0.7978846
  %v4421 = vmul.f32 %v4417, 0.7978846
  %v4422 = vmul.f32 %v4418, 0.7978846
  %v4423 = vmul.f32 %v4419, 0.7978846
  %v4424 = vtanh.pop %v4420
  %v4425 = vtanh.pop %v4421
  %v4426 = vtanh.pop %v4422
  %v4427 = vtanh.pop %v4423
  %v4428 = vadd.f32 %v4424, 1.0
  %v4429 = vadd.f32 %v4425, 1.0
  %v4430 = vadd.f32 %v4426, 1.0
  %v4431 = vadd.f32 %v4427, 1.0
  %v4432 = vmul.f32 %v4428, 0.5
  %v4433 = vmul.f32 %v4429, 0.5
  %v4434 = vmul.f32 %v4430, 0.5
  %v4435 = vmul.f32 %v4431, 0.5
  %v4436 = vmul.f32 %v4390, %v4432
  %v4437 = vmul.f32 %v4393, %v4433
  %v4438 = vmul.f32 %v4398, %v4434
  %v4439 = vmul.f32 %v4401, %v4435
  %v4440 = vpack.c.bf16 %v4437, %v4436
  %v4441 = vpack.c.bf16 %v4439, %v4438
  %v4442 = vld [vmem:[%s21] sm:$0xf]
  %v4443 = vld [vmem:[%s21 + $0x4] sm:$0xf]
  %v4444 = vld [vmem:[%s21 + $0x8] sm:$0xf]
  %v4445 = vld [vmem:[%s21 + $0xc] sm:$0xf]
  %v4446 = vld [vmem:[%s21 + $0x10] sm:$0xf]
  %v4447 = vld [vmem:[%s21 + $0x14] sm:$0xf]
  %v4448 = vld [vmem:[%s21 + $0x18] sm:$0xf]
  %v4449 = vld [vmem:[%s21 + $0x1c] sm:$0xf]
  %v4450 = vld [vmem:[%s21 + $0x20] sm:$0xf]
  %v4451 = vld [vmem:[%s21 + $0x24] sm:$0xf]
  %v4452 = vld [vmem:[%s21 + $0x28] sm:$0xf]
  %v4453 = vld [vmem:[%s21 + $0x2c] sm:$0xf]
  %v4454 = vld [vmem:[%s21 + $0x30] sm:$0xf]
  %v4455 = vld [vmem:[%s21 + $0x34] sm:$0xf]
  %v4456 = vld [vmem:[%s21 + $0x38] sm:$0xf]
  %v4457 = vld [vmem:[%s21 + $0x3c] sm:$0xf]
  %v4458 = vld [vmem:[%s22] sm:$0x1]
  %v4460 = vlaneseq
  %v4461 = vshrl.u32 %v4460, 7
  %v4462 = vsub.s32 0, %v4461
  %v4463 = vrot.slane %v4458, %v4462
  %v4481 = vunpack.c.l.b16 %v4442
  %v4482 = vunpack.c.l.b16 %v4443
  %v4483 = vunpack.c.l.b16 %v4444
  %v4484 = vunpack.c.l.b16 %v4445
  %v4485 = vunpack.c.l.b16 %v4446
  %v4486 = vunpack.c.l.b16 %v4447
  %v4487 = vunpack.c.l.b16 %v4448
  %v4488 = vunpack.c.l.b16 %v4449
  %v4489 = vunpack.c.l.b16 %v4450
  %v4490 = vunpack.c.l.b16 %v4451
  %v4491 = vunpack.c.l.b16 %v4452
  %v4492 = vunpack.c.l.b16 %v4453
  %v4493 = vunpack.c.l.b16 %v4454
  %v4494 = vunpack.c.l.b16 %v4455
  %v4495 = vunpack.c.l.b16 %v4456
  %v4496 = vunpack.c.l.b16 %v4457
  %v4497 = vpack.c.b16 %v4482, %v4481
  %v4498 = vpack.c.b16 %v4484, %v4483
  %v4499 = vpack.c.b16 %v4486, %v4485
  %v4500 = vpack.c.b16 %v4488, %v4487
  %v4501 = vpack.c.b16 %v4490, %v4489
  %v4502 = vpack.c.b16 %v4492, %v4491
  %v4503 = vpack.c.b16 %v4494, %v4493
  %v4504 = vpack.c.b16 %v4496, %v4495
  %4513 = vmatprep.subr.bf16.mxu0 0
  %4514 = vmatpush1.bf16.msra.mxu0 %v4497
  %4515 = vmatprep.subr.bf16.mxu0 0
  %4516 = vmatpush1.bf16.msra.mxu0 %v4498
  %4517 = vmatprep.subr.bf16.mxu0 0
  %4518 = vmatpush1.bf16.msra.mxu0 %v4499
  %4519 = vmatprep.subr.bf16.mxu0 0
  %4520 = vmatpush1.bf16.msra.mxu0 %v4500
  %4521 = vmatprep.subr.bf16.mxu0 0
  %4522 = vmatpush1.bf16.msra.mxu0 %v4501
  %4523 = vmatprep.subr.bf16.mxu0 0
  %4524 = vmatpush1.bf16.msra.mxu0 %v4502
  %4525 = vmatprep.subr.bf16.mxu0 0
  %4526 = vmatpush1.bf16.msra.mxu0 %v4503
  %4527 = vmatprep.subr.bf16.mxu0 0
  %4528 = vmatpush1.bf16.msra.mxu0 %v4504
  %4529 = vmatprep.subr.bf16.mxu0 0
  %4530 = vmatpush1.bf16.msra.mxu0 0
  %4531 = vmatprep.subr.bf16.mxu0 0
  %4532 = vmatpush1.bf16.msra.mxu0 0
  %4533 = vmatprep.subr.bf16.mxu0 0
  %4534 = vmatpush1.bf16.msra.mxu0 0
  %4535 = vmatprep.subr.bf16.mxu0 0
  %4536 = vmatpush1.bf16.msra.mxu0 0
  %4537 = vmatprep.subr.bf16.mxu0 0
  %4538 = vmatpush1.bf16.msra.mxu0 0
  %4539 = vmatprep.subr.bf16.mxu0 0
  %4540 = vmatpush1.bf16.msra.mxu0 0
  %4541 = vmatprep.subr.bf16.mxu0 0
  %4542 = vmatpush1.bf16.msra.mxu0 0
  %4543 = vmatprep.subr.bf16.mxu0 0
  %4544 = vmatpush1.bf16.msra.mxu0 0
  %4545 = vmatprep.mubr.bf16.mxu0 0
  %4546 = vmatmul.mubr.bf16.gmra.mrb[0].mxu0 %v4440
  %v4547 = vpop.f32.mrb[0].mxu0
  %v4548 = vadd.f32 %v4463, %v4547
  %v4549 = vpop.f32.mrb[0].mxu0
  %v4550 = vpop.f32.mrb[0].mxu0
  %v4551 = vadd.f32 %v4463, %v4550
  %v4552 = vpop.f32.mrb[0].mxu0
  %4553 = vmatprep.mubr.bf16.mxu0 0
  %4554 = vmatmul.mubr.bf16.gmra.mrb[0].mxu0 %v4441
  %v4555 = vpop.f32.mrb[0].mxu0
  %v4556 = vadd.f32 %v4463, %v4555
  %v4557 = vpop.f32.mrb[0].mxu0
  %v4558 = vpop.f32.mrb[0].mxu0
  %v4559 = vadd.f32 %v4463, %v4558
  %v4560 = vpop.f32.mrb[0].mxu0
  %4561 = vdwg.mxu0
  %v4562 = vadd.f32 %v4238, %v4548
  %v4563 = vadd.f32 %v4239, %v4551
  %v4564 = vadd.f32 %v4240, %v4556
  %v4565 = vadd.f32 %v4241, %v4559
  %v4566 = vsel %vm179, %v4562, 0.0
  %4567 = vadd.xlane.f32.xlu0 %v4566
  %v4568 = vpop.xlane.xlu0 %4567
  %v4569 = vsel %vm179, %v4563, 0.0
  %4570 = vadd.xlane.f32.xlu0 %v4569
  %v4571 = vpop.xlane.xlu0 %4570
  %v4572 = vsel %vm179, %v4564, 0.0
  %4573 = vadd.xlane.f32.xlu0 %v4572
  %v4574 = vpop.xlane.xlu0 %4573
  %v4575 = vsel %vm179, %v4565, 0.0
  %4576 = vadd.xlane.f32.xlu0 %v4575
  %v4577 = vpop.xlane.xlu0 %4576
  %v4578 = vmul.f32 %v4568, 0.03125
  %v4579 = vmul.f32 %v4571, 0.03125
  %v4580 = vmul.f32 %v4574, 0.03125
  %v4581 = vmul.f32 %v4577, 0.03125
  %v4582 = vmul.f32 %v4562, %v4562
  %v4583 = vmul.f32 %v4563, %v4563
  %v4584 = vmul.f32 %v4564, %v4564
  %v4585 = vmul.f32 %v4565, %v4565
  %v4586 = vsel %vm179, %v4582, 0.0
  %4587 = vadd.xlane.f32.xlu0 %v4586
  %v4588 = vpop.xlane.xlu0 %4587
  %v4589 = vsel %vm179, %v4583, 0.0
  %4590 = vadd.xlane.f32.xlu0 %v4589
  %v4591 = vpop.xlane.xlu0 %4590
  %v4592 = vsel %vm179, %v4584, 0.0
  %4593 = vadd.xlane.f32.xlu0 %v4592
  %v4594 = vpop.xlane.xlu0 %4593
  %v4595 = vsel %vm179, %v4585, 0.0
  %4596 = vadd.xlane.f32.xlu0 %v4595
  %v4597 = vpop.xlane.xlu0 %4596
  %v4598 = vmul.f32 %v4588, 0.03125
  %v4599 = vmul.f32 %v4591, 0.03125
  %v4600 = vmul.f32 %v4594, 0.03125
  %v4601 = vmul.f32 %v4597, 0.03125
  %v4602 = vmul.f32 %v4578, %v4578
  %v4603 = vmul.f32 %v4579, %v4579
  %v4604 = vmul.f32 %v4580, %v4580
  %v4605 = vmul.f32 %v4581, %v4581
  %v4606 = vsub.f32 %v4598, %v4602
  %v4607 = vsub.f32 %v4599, %v4603
  %v4608 = vsub.f32 %v4600, %v4604
  %v4609 = vsub.f32 %v4601, %v4605
  %v4610 = vsub.f32 %v4562, %v4578
  %v4611 = vsub.f32 %v4563, %v4579
  %v4612 = vsub.f32 %v4564, %v4580
  %v4613 = vsub.f32 %v4565, %v4581
  %v4614 = vadd.f32 %v4606, 1e-05
  %v4615 = vadd.f32 %v4607, 1e-05
  %v4616 = vadd.f32 %v4608, 1e-05
  %v4617 = vadd.f32 %v4609, 1e-05
  %v4618 = vrsqrt.pop %v4614
  %v4619 = vrsqrt.pop %v4615
  %v4620 = vrsqrt.pop %v4616
  %v4621 = vrsqrt.pop %v4617
  %v4622 = vmul.f32 %v4610, %v4618
  %v4623 = vmul.f32 %v4611, %v4619
  %v4624 = vmul.f32 %v4612, %v4620
  %v4625 = vmul.f32 %v4613, %v4621
  %v4626 = vmul.f32 %v4622, %v1646
  %v4627 = vmul.f32 %v4623, %v1646
  %v4628 = vmul.f32 %v4624, %v1646
  %v4629 = vmul.f32 %v4625, %v1646
  %v4630 = vadd.f32 %v4626, %v1656
  %v4631 = vadd.f32 %v4627, %v1656
  %v4632 = vadd.f32 %v4628, %v1656
  %v4633 = vadd.f32 %v4629, %v1656
  %v4634 = vld [vmem:[%s8] sm:$0x1]
  %v4635 = vpack.c.bf16 %v4631, %v4630
  %v4636 = vpack.c.bf16 %v4633, %v4632
  %v4637 = vld [vmem:[#allocation2] sm:$0x1]
  %4639 = vset.pattern.permute.xlu0 0
  %4640 = vperm.xlu0 %4639, %v4637
  %v4641 = vpop.permute.xlu0 %4640
  %v4643 = vlaneseq
  %v4644 = vshrl.u32 %v4643, 7
  %v4645 = vsub.s32 0, %v4644
  %v4646 = vrot.slane %v4641, %v4645
  %v4648 = vsel %vm179, %v4634, 0
  %v4651 = vsel %vm179, %v4635, 0
  %v4654 = vsel %vm179, %v4636, 0
  %4656 = vmatprep.subr.bf16.mxu0 0
  %4657 = vmatpush1.bf16.xpose.msra.mxu0 %v4651
  %4658 = vmatprep.subr.bf16.mxu0 0
  %4659 = vmatpush1.bf16.xpose.msra.mxu0 %v4654
  %4660 = vmatprep.subr.bf16.mxu0 0
  %4661 = vmatpush1.bf16.xpose.msra.mxu0 0
  %4662 = vmatprep.subr.bf16.mxu0 0
  %4663 = vmatpush1.bf16.xpose.msra.mxu0 0
  %4664 = vmatprep.subr.bf16.mxu0 0
  %4665 = vmatpush1.bf16.xpose.msra.mxu0 0
  %4666 = vmatprep.subr.bf16.mxu0 0
  %4667 = vmatpush1.bf16.xpose.msra.mxu0 0
  %4668 = vmatprep.subr.bf16.mxu0 0
  %4669 = vmatpush1.bf16.xpose.msra.mxu0 0
  %4670 = vmatprep.subr.bf16.mxu0 0
  %4671 = vmatpush1.bf16.xpose.msra.mxu0 0
  %4672 = vmatprep.subr.bf16.mxu0 0
  %4673 = vmatpush1.bf16.xpose.msra.mxu0 0
  %4674 = vmatprep.subr.bf16.mxu0 0
  %4675 = vmatpush1.bf16.xpose.msra.mxu0 0
  %4676 = vmatprep.subr.bf16.mxu0 0
  %4677 = vmatpush1.bf16.xpose.msra.mxu0 0
  %4678 = vmatprep.subr.bf16.mxu0 0
  %4679 = vmatpush1.bf16.xpose.msra.mxu0 0
  %4680 = vmatprep.subr.bf16.mxu0 0
  %4681 = vmatpush1.bf16.xpose.msra.mxu0 0
  %4682 = vmatprep.subr.bf16.mxu0 0
  %4683 = vmatpush1.bf16.xpose.msra.mxu0 0
  %4684 = vmatprep.subr.bf16.mxu0 0
  %4685 = vmatpush1.bf16.xpose.msra.mxu0 0
  %4686 = vmatprep.subr.bf16.mxu0 0
  %4687 = vmatpush1.bf16.xpose.msra.mxu0 0
  %4688 = vmatprep.mubr.bf16.mxu0 0
  %4689 = vmatmul.mubr.bf16.gmra.mrb[0].mxu0 %v4648
  %v4690 = vpop.f32.mrb[0].mxu0
  %v4691 = vadd.f32 %v4646, %v4690
  %v4692 = vpop.f32.mrb[0].mxu0
  %v4693 = vpop.f32.mrb[0].mxu0
  %v4694 = vpop.f32.mrb[0].mxu0
  %4695 = vdwg.mxu0
  %s4696 = scalar_lea.vmem %s23, 1
  %4697 = vst.msk [vmem:[%s4696] sm:$0x1] %vm3186, %v4691
  %v4698 = vadd.f32 %v4630, %v166
  %v4699 = vadd.f32 %v4631, %v167
  %v4700 = vadd.f32 %v4632, %v168
  %v4701 = vadd.f32 %v4633, %v169
  %v4702 = vld [vmem:[%s1666] sm:$0x1]
  %v4703 = vld [vmem:[%s1668] sm:$0x1]
  %v4704 = vsel %vm179, %v4698, 0.0
  %4705 = vadd.xlane.f32.xlu0 %v4704
  %v4706 = vpop.xlane.xlu0 %4705
  %v4707 = vsel %vm179, %v4699, 0.0
  %4708 = vadd.xlane.f32.xlu0 %v4707
  %v4709 = vpop.xlane.xlu0 %4708
  %v4710 = vsel %vm179, %v4700, 0.0
  %4711 = vadd.xlane.f32.xlu0 %v4710
  %v4712 = vpop.xlane.xlu0 %4711
  %v4713 = vsel %vm179, %v4701, 0.0
  %4714 = vadd.xlane.f32.xlu0 %v4713
  %v4715 = vpop.xlane.xlu0 %4714
  %v4716 = vmul.f32 %v4706, 0.03125
  %v4717 = vmul.f32 %v4709, 0.03125
  %v4718 = vmul.f32 %v4712, 0.03125
  %v4719 = vmul.f32 %v4715, 0.03125
  %v4720 = vmul.f32 %v4698, %v4698
  %v4721 = vmul.f32 %v4699, %v4699
  %v4722 = vmul.f32 %v4700, %v4700
  %v4723 = vmul.f32 %v4701, %v4701
  %v4724 = vsel %vm179, %v4720, 0.0
  %4725 = vadd.xlane.f32.xlu0 %v4724
  %v4726 = vpop.xlane.xlu0 %4725
  %v4727 = vsel %vm179, %v4721, 0.0
  %4728 = vadd.xlane.f32.xlu0 %v4727
  %v4729 = vpop.xlane.xlu0 %4728
  %v4730 = vsel %vm179, %v4722, 0.0
  %4731 = vadd.xlane.f32.xlu0 %v4730
  %v4732 = vpop.xlane.xlu0 %4731
  %v4733 = vsel %vm179, %v4723, 0.0
  %4734 = vadd.xlane.f32.xlu0 %v4733
  %v4735 = vpop.xlane.xlu0 %4734
  %v4736 = vmul.f32 %v4726, 0.03125
  %v4737 = vmul.f32 %v4729, 0.03125
  %v4738 = vmul.f32 %v4732, 0.03125
  %v4739 = vmul.f32 %v4735, 0.03125
  %v4740 = vmul.f32 %v4716, %v4716
  %v4741 = vmul.f32 %v4717, %v4717
  %v4742 = vmul.f32 %v4718, %v4718
  %v4743 = vmul.f32 %v4719, %v4719
  %v4744 = vsub.f32 %v4736, %v4740
  %v4745 = vsub.f32 %v4737, %v4741
  %v4746 = vsub.f32 %v4738, %v4742
  %v4747 = vsub.f32 %v4739, %v4743
  %v4748 = vsub.f32 %v4698, %v4716
  %v4749 = vsub.f32 %v4699, %v4717
  %v4750 = vsub.f32 %v4700, %v4718
  %v4751 = vsub.f32 %v4701, %v4719
  %v4752 = vadd.f32 %v4744, 1e-05
  %v4753 = vadd.f32 %v4745, 1e-05
  %v4754 = vadd.f32 %v4746, 1e-05
  %v4755 = vadd.f32 %v4747, 1e-05
  %v4756 = vrsqrt.pop %v4752
  %v4757 = vrsqrt.pop %v4753
  %v4758 = vrsqrt.pop %v4754
  %v4759 = vrsqrt.pop %v4755
  %v4760 = vmul.f32 %v4748, %v4756
  %v4761 = vmul.f32 %v4749, %v4757
  %v4762 = vmul.f32 %v4750, %v4758
  %v4763 = vmul.f32 %v4751, %v4759
  %v4765 = vlaneseq
  %v4766 = vshrl.u32 %v4765, 7
  %v4767 = vsub.s32 0, %v4766
  %v4768 = vrot.slane %v4702, %v4767
  %v4770 = vmul.f32 %v4760, %v4768
  %v4771 = vmul.f32 %v4761, %v4768
  %v4772 = vmul.f32 %v4762, %v4768
  %v4773 = vmul.f32 %v4763, %v4768
  %v4775 = vlaneseq
  %v4776 = vshrl.u32 %v4775, 7
  %v4777 = vsub.s32 0, %v4776
  %v4778 = vrot.slane %v4703, %v4777
  %v4780 = vadd.f32 %v4770, %v4778
  %v4781 = vadd.f32 %v4771, %v4778
  %v4782 = vadd.f32 %v4772, %v4778
  %v4783 = vadd.f32 %v4773, %v4778
  %v4784 = vpack.c.bf16 %v4781, %v4780
  %v4785 = vpack.c.bf16 %v4783, %v4782
  %v4786 = vld [vmem:[%s1752] sm:$0xf]
  %v4787 = vld [vmem:[%s1752 + $0x4] sm:$0xf]
  %v4788 = vld [vmem:[%s1752 + $0x8] sm:$0xf]
  %v4789 = vld [vmem:[%s1752 + $0xc] sm:$0xf]
  %v4790 = vld [vmem:[%s1757] sm:$0x1]
  %v4792 = vlaneseq
  %v4793 = vshrl.u32 %v4792, 7
  %v4794 = vsub.s32 0, %v4793
  %v4795 = vrot.slane %v4790, %v4794
  %v4801 = vunpack.c.l.b16 %v4786
  %v4802 = vunpack.c.l.b16 %v4787
  %v4803 = vunpack.c.l.b16 %v4788
  %v4804 = vunpack.c.l.b16 %v4789
  %v4805 = vpack.c.b16 %v4802, %v4801
  %v4806 = vpack.c.b16 %v4804, %v4803
  %v4810 = vsel %vm179, %v4784, 0
  %v4813 = vsel %vm179, %v4785, 0
  %4815 = vmatprep.subr.bf16.mxu0 0
  %4816 = vmatpush1.bf16.msra.mxu0 %v4805
  %4817 = vmatprep.subr.bf16.mxu0 0
  %4818 = vmatpush1.bf16.msra.mxu0 %v4806
  %4819 = vmatprep.subr.bf16.mxu0 0
  %4820 = vmatpush1.bf16.msra.mxu0 0
  %4821 = vmatprep.subr.bf16.mxu0 0
  %4822 = vmatpush1.bf16.msra.mxu0 0
  %4823 = vmatprep.subr.bf16.mxu0 0
  %4824 = vmatpush1.bf16.msra.mxu0 0
  %4825 = vmatprep.subr.bf16.mxu0 0
  %4826 = vmatpush1.bf16.msra.mxu0 0
  %4827 = vmatprep.subr.bf16.mxu0 0
  %4828 = vmatpush1.bf16.msra.mxu0 0
  %4829 = vmatprep.subr.bf16.mxu0 0
  %4830 = vmatpush1.bf16.msra.mxu0 0
  %4831 = vmatprep.subr.bf16.mxu0 0
  %4832 = vmatpush1.bf16.msra.mxu0 0
  %4833 = vmatprep.subr.bf16.mxu0 0
  %4834 = vmatpush1.bf16.msra.mxu0 0
  %4835 = vmatprep.subr.bf16.mxu0 0
  %4836 = vmatpush1.bf16.msra.mxu0 0
  %4837 = vmatprep.subr.bf16.mxu0 0
  %4838 = vmatpush1.bf16.msra.mxu0 0
  %4839 = vmatprep.subr.bf16.mxu0 0
  %4840 = vmatpush1.bf16.msra.mxu0 0
  %4841 = vmatprep.subr.bf16.mxu0 0
  %4842 = vmatpush1.bf16.msra.mxu0 0
  %4843 = vmatprep.subr.bf16.mxu0 0
  %4844 = vmatpush1.bf16.msra.mxu0 0
  %4845 = vmatprep.subr.bf16.mxu0 0
  %4846 = vmatpush1.bf16.msra.mxu0 0
  %4847 = vmatprep.mubr.bf16.mxu0 0
  %4848 = vmatmul.mubr.bf16.gmra.mrb[0].mxu0 %v4810
  %v4849 = vpop.f32.mrb[0].mxu0
  %v4850 = vadd.f32 %v4795, %v4849
  %v4851 = vpop.f32.mrb[0].mxu0
  %v4852 = vpop.f32.mrb[0].mxu0
  %v4853 = vadd.f32 %v4795, %v4852
  %v4854 = vpop.f32.mrb[0].mxu0
  %4855 = vmatprep.mubr.bf16.mxu0 0
  %4856 = vmatmul.mubr.bf16.gmra.mrb[0].mxu0 %v4813
  %v4857 = vpop.f32.mrb[0].mxu0
  %v4858 = vadd.f32 %v4795, %v4857
  %v4859 = vpop.f32.mrb[0].mxu0
  %v4860 = vpop.f32.mrb[0].mxu0
  %v4861 = vadd.f32 %v4795, %v4860
  %v4862 = vpop.f32.mrb[0].mxu0
  %4863 = vdwg.mxu0
  %v4864 = vld [vmem:[%s1832] sm:$0xf]
  %v4865 = vld [vmem:[%s1832 + $0x4] sm:$0xf]
  %v4866 = vld [vmem:[%s1832 + $0x8] sm:$0xf]
  %v4867 = vld [vmem:[%s1832 + $0xc] sm:$0xf]
  %v4868 = vld [vmem:[%s1837] sm:$0x1]
  %v4870 = vlaneseq
  %v4871 = vshrl.u32 %v4870, 7
  %v4872 = vsub.s32 0, %v4871
  %v4873 = vrot.slane %v4868, %v4872
  %v4879 = vunpack.c.l.b16 %v4864
  %v4880 = vunpack.c.l.b16 %v4865
  %v4881 = vunpack.c.l.b16 %v4866
  %v4882 = vunpack.c.l.b16 %v4867
  %v4883 = vpack.c.b16 %v4880, %v4879
  %v4884 = vpack.c.b16 %v4882, %v4881
  %4887 = vmatprep.subr.bf16.mxu0 0
  %4888 = vmatpush1.bf16.msra.mxu0 %v4883
  %4889 = vmatprep.subr.bf16.mxu0 0
  %4890 = vmatpush1.bf16.msra.mxu0 %v4884
  %4891 = vmatprep.subr.bf16.mxu0 0
  %4892 = vmatpush1.bf16.msra.mxu0 0
  %4893 = vmatprep.subr.bf16.mxu0 0
  %4894 = vmatpush1.bf16.msra.mxu0 0
  %4895 = vmatprep.subr.bf16.mxu0 0
  %4896 = vmatpush1.bf16.msra.mxu0 0
  %4897 = vmatprep.subr.bf16.mxu0 0
  %4898 = vmatpush1.bf16.msra.mxu0 0
  %4899 = vmatprep.subr.bf16.mxu0 0
  %4900 = vmatpush1.bf16.msra.mxu0 0
  %4901 = vmatprep.subr.bf16.mxu0 0
  %4902 = vmatpush1.bf16.msra.mxu0 0
  %4903 = vmatprep.subr.bf16.mxu0 0
  %4904 = vmatpush1.bf16.msra.mxu0 0
  %4905 = vmatprep.subr.bf16.mxu0 0
  %4906 = vmatpush1.bf16.msra.mxu0 0
  %4907 = vmatprep.subr.bf16.mxu0 0
  %4908 = vmatpush1.bf16.msra.mxu0 0
  %4909 = vmatprep.subr.bf16.mxu0 0
  %4910 = vmatpush1.bf16.msra.mxu0 0
  %4911 = vmatprep.subr.bf16.mxu0 0
  %4912 = vmatpush1.bf16.msra.mxu0 0
  %4913 = vmatprep.subr.bf16.mxu0 0
  %4914 = vmatpush1.bf16.msra.mxu0 0
  %4915 = vmatprep.subr.bf16.mxu0 0
  %4916 = vmatpush1.bf16.msra.mxu0 0
  %4917 = vmatprep.subr.bf16.mxu0 0
  %4918 = vmatpush1.bf16.msra.mxu0 0
  %4919 = vmatprep.mubr.bf16.mxu0 0
  %4920 = vmatmul.mubr.bf16.gmra.mrb[0].mxu0 %v4810
  %v4921 = vpop.f32.mrb[0].mxu0
  %v4922 = vadd.f32 %v4873, %v4921
  %v4923 = vpop.f32.mrb[0].mxu0
  %v4924 = vpop.f32.mrb[0].mxu0
  %v4925 = vadd.f32 %v4873, %v4924
  %v4926 = vpop.f32.mrb[0].mxu0
  %4927 = vmatprep.mubr.bf16.mxu0 0
  %4928 = vmatmul.mubr.bf16.gmra.mrb[0].mxu0 %v4813
  %v4929 = vpop.f32.mrb[0].mxu0
  %v4930 = vadd.f32 %v4873, %v4929
  %v4931 = vpop.f32.mrb[0].mxu0
  %v4932 = vpop.f32.mrb[0].mxu0
  %v4933 = vadd.f32 %v4873, %v4932
  %v4934 = vpop.f32.mrb[0].mxu0
  %4935 = vdwg.mxu0
  %v4936 = vld [vmem:[%s1906] sm:$0xf]
  %v4937 = vld [vmem:[%s1906 + $0x4] sm:$0xf]
  %v4938 = vld [vmem:[%s1906 + $0x8] sm:$0xf]
  %v4939 = vld [vmem:[%s1906 + $0xc] sm:$0xf]
  %v4940 = vld [vmem:[%s1911] sm:$0x1]
  %v4942 = vlaneseq
  %v4943 = vshrl.u32 %v4942, 7
  %v4944 = vsub.s32 0, %v4943
  %v4945 = vrot.slane %v4940, %v4944
  %v4951 = vunpack.c.l.b16 %v4936
  %v4952 = vunpack.c.l.b16 %v4937
  %v4953 = vunpack.c.l.b16 %v4938
  %v4954 = vunpack.c.l.b16 %v4939
  %v4955 = vpack.c.b16 %v4952, %v4951
  %v4956 = vpack.c.b16 %v4954, %v4953
  %4959 = vmatprep.subr.bf16.mxu0 0
  %4960 = vmatpush1.bf16.msra.mxu0 %v4955
  %4961 = vmatprep.subr.bf16.mxu0 0
  %4962 = vmatpush1.bf16.msra.mxu0 %v4956
  %4963 = vmatprep.subr.bf16.mxu0 0
  %4964 = vmatpush1.bf16.msra.mxu0 0
  %4965 = vmatprep.subr.bf16.mxu0 0
  %4966 = vmatpush1.bf16.msra.mxu0 0
  %4967 = vmatprep.subr.bf16.mxu0 0
  %4968 = vmatpush1.bf16.msra.mxu0 0
  %4969 = vmatprep.subr.bf16.mxu0 0
  %4970 = vmatpush1.bf16.msra.mxu0 0
  %4971 = vmatprep.subr.bf16.mxu0 0
  %4972 = vmatpush1.bf16.msra.mxu0 0
  %4973 = vmatprep.subr.bf16.mxu0 0
  %4974 = vmatpush1.bf16.msra.mxu0 0
  %4975 = vmatprep.subr.bf16.mxu0 0
  %4976 = vmatpush1.bf16.msra.mxu0 0
  %4977 = vmatprep.subr.bf16.mxu0 0
  %4978 = vmatpush1.bf16.msra.mxu0 0
  %4979 = vmatprep.subr.bf16.mxu0 0
  %4980 = vmatpush1.bf16.msra.mxu0 0
  %4981 = vmatprep.subr.bf16.mxu0 0
  %4982 = vmatpush1.bf16.msra.mxu0 0
  %4983 = vmatprep.subr.bf16.mxu0 0
  %4984 = vmatpush1.bf16.msra.mxu0 0
  %4985 = vmatprep.subr.bf16.mxu0 0
  %4986 = vmatpush1.bf16.msra.mxu0 0
  %4987 = vmatprep.subr.bf16.mxu0 0
  %4988 = vmatpush1.bf16.msra.mxu0 0
  %4989 = vmatprep.subr.bf16.mxu0 0
  %4990 = vmatpush1.bf16.msra.mxu0 0
  %4991 = vmatprep.mubr.bf16.mxu0 0
  %4992 = vmatmul.mubr.bf16.gmra.mrb[0].mxu0 %v4810
  %v4993 = vpop.f32.mrb[0].mxu0
  %v4994 = vadd.f32 %v4945, %v4993
  %v4995 = vpop.f32.mrb[0].mxu0
  %v4996 = vpop.f32.mrb[0].mxu0
  %v4997 = vadd.f32 %v4945, %v4996
  %v4998 = vpop.f32.mrb[0].mxu0
  %4999 = vmatprep.mubr.bf16.mxu0 0
  %5000 = vmatmul.mubr.bf16.gmra.mrb[0].mxu0 %v4813
  %v5001 = vpop.f32.mrb[0].mxu0
  %v5002 = vadd.f32 %v4945, %v5001
  %v5003 = vpop.f32.mrb[0].mxu0
  %v5004 = vpop.f32.mrb[0].mxu0
  %v5005 = vadd.f32 %v4945, %v5004
  %v5006 = vpop.f32.mrb[0].mxu0
  %5007 = vdwg.mxu0
  %v5008 = vpack.c.bf16 %v4853, %v4850
  %v5009 = vpack.c.bf16 %v4861, %v4858
  %v5010 = vpack.c.bf16 %v4925, %v4922
  %v5011 = vpack.c.bf16 %v4933, %v4930
  %v5012 = vpack.c.bf16 %v4997, %v4994
  %v5013 = vpack.c.bf16 %v5005, %v5002
  %v5014 = vmul.bf16 %v5008, %v496
  %v5015 = vmul.bf16 %v5009, %v496
  %v5017 = vsel %vm179, %v5014, 0
  %v5020 = vsel %vm179, %v5015, 0
  %v5023 = vsel %vm179, %v5010, 0
  %v5026 = vsel %vm179, %v5011, 0
  %5028 = vmatprep.subr.bf16.mxu0 0
  %5029 = vmatpush1.bf16.xpose.msra.mxu0 %v5023
  %5030 = vmatprep.subr.bf16.mxu0 0
  %5031 = vmatpush1.bf16.xpose.msra.mxu0 %v5026
  %5032 = vmatprep.subr.bf16.mxu0 0
  %5033 = vmatpush1.bf16.xpose.msra.mxu0 0
  %5034 = vmatprep.subr.bf16.mxu0 0
  %5035 = vmatpush1.bf16.xpose.msra.mxu0 0
  %5036 = vmatprep.subr.bf16.mxu0 0
  %5037 = vmatpush1.bf16.xpose.msra.mxu0 0
  %5038 = vmatprep.subr.bf16.mxu0 0
  %5039 = vmatpush1.bf16.xpose.msra.mxu0 0
  %5040 = vmatprep.subr.bf16.mxu0 0
  %5041 = vmatpush1.bf16.xpose.msra.mxu0 0
  %5042 = vmatprep.subr.bf16.mxu0 0
  %5043 = vmatpush1.bf16.xpose.msra.mxu0 0
  %5044 = vmatprep.subr.bf16.mxu0 0
  %5045 = vmatpush1.bf16.xpose.msra.mxu0 0
  %5046 = vmatprep.subr.bf16.mxu0 0
  %5047 = vmatpush1.bf16.xpose.msra.mxu0 0
  %5048 = vmatprep.subr.bf16.mxu0 0
  %5049 = vmatpush1.bf16.xpose.msra.mxu0 0
  %5050 = vmatprep.subr.bf16.mxu0 0
  %5051 = vmatpush1.bf16.xpose.msra.mxu0 0
  %5052 = vmatprep.subr.bf16.mxu0 0
  %5053 = vmatpush1.bf16.xpose.msra.mxu0 0
  %5054 = vmatprep.subr.bf16.mxu0 0
  %5055 = vmatpush1.bf16.xpose.msra.mxu0 0
  %5056 = vmatprep.subr.bf16.mxu0 0
  %5057 = vmatpush1.bf16.xpose.msra.mxu0 0
  %5058 = vmatprep.subr.bf16.mxu0 0
  %5059 = vmatpush1.bf16.xpose.msra.mxu0 0
  %5060 = vmatprep.mubr.bf16.mxu0 0
  %5061 = vmatmul.mubr.bf16.gmra.mrb[0].mxu0 %v5017
  %v5062 = vpop.f32.mrb[0].mxu0
  %v5063 = vadd.f32 %v77, %v5062
  %v5064 = vpop.f32.mrb[0].mxu0
  %v5065 = vpop.f32.mrb[0].mxu0
  %v5066 = vadd.f32 %v78, %v5065
  %v5067 = vpop.f32.mrb[0].mxu0
  %5068 = vmatprep.mubr.bf16.mxu0 0
  %5069 = vmatmul.mubr.bf16.gmra.mrb[0].mxu0 %v5020
  %v5070 = vpop.f32.mrb[0].mxu0
  %v5071 = vadd.f32 %v79, %v5070
  %v5072 = vpop.f32.mrb[0].mxu0
  %v5073 = vpop.f32.mrb[0].mxu0
  %v5074 = vadd.f32 %v80, %v5073
  %v5075 = vpop.f32.mrb[0].mxu0
  %5076 = vdwg.mxu0
  %v5077 = vsel %vm179, %v5063, -inf
  %5078 = vmax.xlane.f32.xlu0 %v5077
  %v5079 = vpop.xlane.xlu0 %5078
  %v5080 = vsel %vm179, %v5066, -inf
  %5081 = vmax.xlane.f32.xlu0 %v5080
  %v5082 = vpop.xlane.xlu0 %5081
  %v5083 = vsel %vm179, %v5071, -inf
  %5084 = vmax.xlane.f32.xlu0 %v5083
  %v5085 = vpop.xlane.xlu0 %5084
  %v5086 = vsel %vm179, %v5074, -inf
  %5087 = vmax.xlane.f32.xlu0 %v5086
  %v5088 = vpop.xlane.xlu0 %5087
  %v5089 = vsub.f32 %v5063, %v5079
  %v5090 = vsub.f32 %v5066, %v5082
  %v5091 = vsub.f32 %v5071, %v5085
  %v5092 = vsub.f32 %v5074, %v5088
  %v5093 = vmul.f32 %v5089, 1.442695
  %v5094 = vpow.pop %v5093
  %v5095 = vmul.f32 %v5090, 1.442695
  %v5096 = vpow.pop %v5095
  %v5097 = vmul.f32 %v5091, 1.442695
  %v5098 = vpow.pop %v5097
  %v5099 = vmul.f32 %v5092, 1.442695
  %v5100 = vpow.pop %v5099
  %v5101 = vsel %vm179, %v5094, 0.0
  %5102 = vadd.xlane.f32.xlu0 %v5101
  %v5103 = vpop.xlane.xlu0 %5102
  %v5104 = vsel %vm179, %v5096, 0.0
  %5105 = vadd.xlane.f32.xlu0 %v5104
  %v5106 = vpop.xlane.xlu0 %5105
  %v5107 = vsel %vm179, %v5098, 0.0
  %5108 = vadd.xlane.f32.xlu0 %v5107
  %v5109 = vpop.xlane.xlu0 %5108
  %v5110 = vsel %vm179, %v5100, 0.0
  %5111 = vadd.xlane.f32.xlu0 %v5110
  %v5112 = vpop.xlane.xlu0 %5111
  %v5113 = vrcp.pop %v5103
  %v5114 = vrcp.pop %v5106
  %v5115 = vrcp.pop %v5109
  %v5116 = vrcp.pop %v5112
  %v5117 = vmul.f32 %v5094, %v5113
  %v5118 = vmul.f32 %v5096, %v5114
  %v5119 = vmul.f32 %v5098, %v5115
  %v5120 = vmul.f32 %v5100, %v5116
  %v5121 = vpack.c.bf16 %v5118, %v5117
  %v5122 = vpack.c.bf16 %v5120, %v5119
  %v5123 = vmul.bf16 %v5012, %v496
  %v5124 = vmul.bf16 %v5013, %v496
  %v5125 = vmul.bf16 %v5008, %v614
  %v5126 = vmul.bf16 %v5009, %v614
  %v5128 = vsel %vm179, %v5125, 0
  %v5131 = vsel %vm179, %v5126, 0
  %5133 = vmatprep.subr.bf16.mxu0 0
  %5134 = vmatpush1.bf16.xpose.msra.mxu0 %v5023
  %5135 = vmatprep.subr.bf16.mxu0 0
  %5136 = vmatpush1.bf16.xpose.msra.mxu0 %v5026
  %5137 = vmatprep.subr.bf16.mxu0 0
  %5138 = vmatpush1.bf16.xpose.msra.mxu0 0
  %5139 = vmatprep.subr.bf16.mxu0 0
  %5140 = vmatpush1.bf16.xpose.msra.mxu0 0
  %5141 = vmatprep.subr.bf16.mxu0 0
  %5142 = vmatpush1.bf16.xpose.msra.mxu0 0
  %5143 = vmatprep.subr.bf16.mxu0 0
  %5144 = vmatpush1.bf16.xpose.msra.mxu0 0
  %5145 = vmatprep.subr.bf16.mxu0 0
  %5146 = vmatpush1.bf16.xpose.msra.mxu0 0
  %5147 = vmatprep.subr.bf16.mxu0 0
  %5148 = vmatpush1.bf16.xpose.msra.mxu0 0
  %5149 = vmatprep.subr.bf16.mxu0 0
  %5150 = vmatpush1.bf16.xpose.msra.mxu0 0
  %5151 = vmatprep.subr.bf16.mxu0 0
  %5152 = vmatpush1.bf16.xpose.msra.mxu0 0
  %5153 = vmatprep.subr.bf16.mxu0 0
  %5154 = vmatpush1.bf16.xpose.msra.mxu0 0
  %5155 = vmatprep.subr.bf16.mxu0 0
  %5156 = vmatpush1.bf16.xpose.msra.mxu0 0
  %5157 = vmatprep.subr.bf16.mxu0 0
  %5158 = vmatpush1.bf16.xpose.msra.mxu0 0
  %5159 = vmatprep.subr.bf16.mxu0 0
  %5160 = vmatpush1.bf16.xpose.msra.mxu0 0
  %5161 = vmatprep.subr.bf16.mxu0 0
  %5162 = vmatpush1.bf16.xpose.msra.mxu0 0
  %5163 = vmatprep.subr.bf16.mxu0 0
  %5164 = vmatpush1.bf16.xpose.msra.mxu0 0
  %5165 = vmatprep.mubr.bf16.mxu0 0
  %5166 = vmatmul.mubr.bf16.gmra.mrb[0].mxu0 %v5128
  %v5167 = vpop.f32.mrb[0].mxu0
  %v5168 = vadd.f32 %v77, %v5167
  %v5169 = vpop.f32.mrb[0].mxu0
  %v5170 = vpop.f32.mrb[0].mxu0
  %v5171 = vadd.f32 %v78, %v5170
  %v5172 = vpop.f32.mrb[0].mxu0
  %5173 = vmatprep.mubr.bf16.mxu0 0
  %5174 = vmatmul.mubr.bf16.gmra.mrb[0].mxu0 %v5131
  %v5175 = vpop.f32.mrb[0].mxu0
  %v5176 = vadd.f32 %v79, %v5175
  %v5177 = vpop.f32.mrb[0].mxu0
  %v5178 = vpop.f32.mrb[0].mxu0
  %v5179 = vadd.f32 %v80, %v5178
  %v5180 = vpop.f32.mrb[0].mxu0
  %5181 = vdwg.mxu0
  %v5182 = vsel %vm179, %v5168, -inf
  %5183 = vmax.xlane.f32.xlu0 %v5182
  %v5184 = vpop.xlane.xlu0 %5183
  %v5185 = vsel %vm179, %v5171, -inf
  %5186 = vmax.xlane.f32.xlu0 %v5185
  %v5187 = vpop.xlane.xlu0 %5186
  %v5188 = vsel %vm179, %v5176, -inf
  %5189 = vmax.xlane.f32.xlu0 %v5188
  %v5190 = vpop.xlane.xlu0 %5189
  %v5191 = vsel %vm179, %v5179, -inf
  %5192 = vmax.xlane.f32.xlu0 %v5191
  %v5193 = vpop.xlane.xlu0 %5192
  %v5194 = vsub.f32 %v5168, %v5184
  %v5195 = vsub.f32 %v5171, %v5187
  %v5196 = vsub.f32 %v5176, %v5190
  %v5197 = vsub.f32 %v5179, %v5193
  %v5198 = vmul.f32 %v5194, 1.442695
  %v5199 = vpow.pop %v5198
  %v5200 = vmul.f32 %v5195, 1.442695
  %v5201 = vpow.pop %v5200
  %v5202 = vmul.f32 %v5196, 1.442695
  %v5203 = vpow.pop %v5202
  %v5204 = vmul.f32 %v5197, 1.442695
  %v5205 = vpow.pop %v5204
  %v5206 = vsel %vm179, %v5199, 0.0
  %5207 = vadd.xlane.f32.xlu0 %v5206
  %v5208 = vpop.xlane.xlu0 %5207
  %v5209 = vsel %vm179, %v5201, 0.0
  %5210 = vadd.xlane.f32.xlu0 %v5209
  %v5211 = vpop.xlane.xlu0 %5210
  %v5212 = vsel %vm179, %v5203, 0.0
  %5213 = vadd.xlane.f32.xlu0 %v5212
  %v5214 = vpop.xlane.xlu0 %5213
  %v5215 = vsel %vm179, %v5205, 0.0
  %5216 = vadd.xlane.f32.xlu0 %v5215
  %v5217 = vpop.xlane.xlu0 %5216
  %v5218 = vrcp.pop %v5208
  %v5219 = vrcp.pop %v5211
  %v5220 = vrcp.pop %v5214
  %v5221 = vrcp.pop %v5217
  %v5222 = vmul.f32 %v5199, %v5218
  %v5223 = vmul.f32 %v5201, %v5219
  %v5224 = vmul.f32 %v5203, %v5220
  %v5225 = vmul.f32 %v5205, %v5221
  %v5226 = vpack.c.bf16 %v5223, %v5222
  %v5227 = vpack.c.bf16 %v5225, %v5224
  %v5228 = vmul.bf16 %v5012, %v614
  %v5229 = vmul.bf16 %v5013, %v614
  %v5231 = vsel %vm179, %v5226, 0
  %v5234 = vsel %vm179, %v5227, 0
  %5236 = vmatprep.subr.bf16.mxu0 0
  %5237 = vmatpush1.bf16.msra.mxu0 %v5228
  %5238 = vmatprep.subr.bf16.mxu0 0
  %5239 = vmatpush1.bf16.msra.mxu0 %v5229
  %5240 = vmatprep.subr.bf16.mxu0 0
  %5241 = vmatpush1.bf16.msra.mxu0 0
  %5242 = vmatprep.subr.bf16.mxu0 0
  %5243 = vmatpush1.bf16.msra.mxu0 0
  %5244 = vmatprep.subr.bf16.mxu0 0
  %5245 = vmatpush1.bf16.msra.mxu0 0
  %5246 = vmatprep.subr.bf16.mxu0 0
  %5247 = vmatpush1.bf16.msra.mxu0 0
  %5248 = vmatprep.subr.bf16.mxu0 0
  %5249 = vmatpush1.bf16.msra.mxu0 0
  %5250 = vmatprep.subr.bf16.mxu0 0
  %5251 = vmatpush1.bf16.msra.mxu0 0
  %5252 = vmatprep.subr.bf16.mxu0 0
  %5253 = vmatpush1.bf16.msra.mxu0 0
  %5254 = vmatprep.subr.bf16.mxu0 0
  %5255 = vmatpush1.bf16.msra.mxu0 0
  %5256 = vmatprep.subr.bf16.mxu0 0
  %5257 = vmatpush1.bf16.msra.mxu0 0
  %5258 = vmatprep.subr.bf16.mxu0 0
  %5259 = vmatpush1.bf16.msra.mxu0 0
  %5260 = vmatprep.subr.bf16.mxu0 0
  %5261 = vmatpush1.bf16.msra.mxu0 0
  %5262 = vmatprep.subr.bf16.mxu0 0
  %5263 = vmatpush1.bf16.msra.mxu0 0
  %5264 = vmatprep.subr.bf16.mxu0 0
  %5265 = vmatpush1.bf16.msra.mxu0 0
  %5266 = vmatprep.subr.bf16.mxu0 0
  %5267 = vmatpush1.bf16.msra.mxu0 0
  %5268 = vmatprep.mubr.bf16.mxu0 0
  %5269 = vmatmul.mubr.bf16.gmra.mrb[0].mxu0 %v5231
  %v5270 = vpop.f32.mrb[0].mxu0
  %v5271 = vadd.f32 0.0, %v5270
  %v5272 = vpop.f32.mrb[0].mxu0
  %v5273 = vpop.f32.mrb[0].mxu0
  %v5274 = vadd.f32 0.0, %v5273
  %v5275 = vpop.f32.mrb[0].mxu0
  %5276 = vmatprep.mubr.bf16.mxu0 0
  %5277 = vmatmul.mubr.bf16.gmra.mrb[0].mxu0 %v5234
  %v5278 = vpop.f32.mrb[0].mxu0
  %v5279 = vadd.f32 0.0, %v5278
  %v5280 = vpop.f32.mrb[0].mxu0
  %v5281 = vpop.f32.mrb[0].mxu0
  %v5282 = vadd.f32 0.0, %v5281
  %v5283 = vpop.f32.mrb[0].mxu0
  %5284 = vdwg.mxu0
  %v5286 = vsel %vm179, %v5121, 0
  %v5289 = vsel %vm179, %v5122, 0
  %5291 = vmatprep.subr.bf16.mxu0 0
  %5292 = vmatpush1.bf16.msra.mxu0 %v5123
  %5293 = vmatprep.subr.bf16.mxu0 0
  %5294 = vmatpush1.bf16.msra.mxu0 %v5124
  %5295 = vmatprep.subr.bf16.mxu0 0
  %5296 = vmatpush1.bf16.msra.mxu0 0
  %5297 = vmatprep.subr.bf16.mxu0 0
  %5298 = vmatpush1.bf16.msra.mxu0 0
  %5299 = vmatprep.subr.bf16.mxu0 0
  %5300 = vmatpush1.bf16.msra.mxu0 0
  %5301 = vmatprep.subr.bf16.mxu0 0
  %5302 = vmatpush1.bf16.msra.mxu0 0
  %5303 = vmatprep.subr.bf16.mxu0 0
  %5304 = vmatpush1.bf16.msra.mxu0 0
  %5305 = vmatprep.subr.bf16.mxu0 0
  %5306 = vmatpush1.bf16.msra.mxu0 0
  %5307 = vmatprep.subr.bf16.mxu0 0
  %5308 = vmatpush1.bf16.msra.mxu0 0
  %5309 = vmatprep.subr.bf16.mxu0 0
  %5310 = vmatpush1.bf16.msra.mxu0 0
  %5311 = vmatprep.subr.bf16.mxu0 0
  %5312 = vmatpush1.bf16.msra.mxu0 0
  %5313 = vmatprep.subr.bf16.mxu0 0
  %5314 = vmatpush1.bf16.msra.mxu0 0
  %5315 = vmatprep.subr.bf16.mxu0 0
  %5316 = vmatpush1.bf16.msra.mxu0 0
  %5317 = vmatprep.subr.bf16.mxu0 0
  %5318 = vmatpush1.bf16.msra.mxu0 0
  %5319 = vmatprep.subr.bf16.mxu0 0
  %5320 = vmatpush1.bf16.msra.mxu0 0
  %5321 = vmatprep.subr.bf16.mxu0 0
  %5322 = vmatpush1.bf16.msra.mxu0 0
  %5323 = vmatprep.mubr.bf16.mxu0 0
  %5324 = vmatmul.mubr.bf16.gmra.mrb[0].mxu0 %v5286
  %v5325 = vpop.f32.mrb[0].mxu0
  %v5326 = vadd.f32 %v5271, %v5325
  %v5327 = vpop.f32.mrb[0].mxu0
  %v5328 = vpop.f32.mrb[0].mxu0
  %v5329 = vadd.f32 %v5274, %v5328
  %v5330 = vpop.f32.mrb[0].mxu0
  %5331 = vmatprep.mubr.bf16.mxu0 0
  %5332 = vmatmul.mubr.bf16.gmra.mrb[0].mxu0 %v5289
  %v5333 = vpop.f32.mrb[0].mxu0
  %v5334 = vadd.f32 %v5279, %v5333
  %v5335 = vpop.f32.mrb[0].mxu0
  %v5336 = vpop.f32.mrb[0].mxu0
  %v5337 = vadd.f32 %v5282, %v5336
  %v5338 = vpop.f32.mrb[0].mxu0
  %5339 = vdwg.mxu0
  %v5340 = vmul.bf16 %v5008, %v836
  %v5341 = vmul.bf16 %v5009, %v836
  %v5343 = vsel %vm179, %v5340, 0
  %v5346 = vsel %vm179, %v5341, 0
  %5348 = vmatprep.subr.bf16.mxu0 0
  %5349 = vmatpush1.bf16.xpose.msra.mxu0 %v5023
  %5350 = vmatprep.subr.bf16.mxu0 0
  %5351 = vmatpush1.bf16.xpose.msra.mxu0 %v5026
  %5352 = vmatprep.subr.bf16.mxu0 0
  %5353 = vmatpush1.bf16.xpose.msra.mxu0 0
  %5354 = vmatprep.subr.bf16.mxu0 0
  %5355 = vmatpush1.bf16.xpose.msra.mxu0 0
  %5356 = vmatprep.subr.bf16.mxu0 0
  %5357 = vmatpush1.bf16.xpose.msra.mxu0 0
  %5358 = vmatprep.subr.bf16.mxu0 0
  %5359 = vmatpush1.bf16.xpose.msra.mxu0 0
  %5360 = vmatprep.subr.bf16.mxu0 0
  %5361 = vmatpush1.bf16.xpose.msra.mxu0 0
  %5362 = vmatprep.subr.bf16.mxu0 0
  %5363 = vmatpush1.bf16.xpose.msra.mxu0 0
  %5364 = vmatprep.subr.bf16.mxu0 0
  %5365 = vmatpush1.bf16.xpose.msra.mxu0 0
  %5366 = vmatprep.subr.bf16.mxu0 0
  %5367 = vmatpush1.bf16.xpose.msra.mxu0 0
  %5368 = vmatprep.subr.bf16.mxu0 0
  %5369 = vmatpush1.bf16.xpose.msra.mxu0 0
  %5370 = vmatprep.subr.bf16.mxu0 0
  %5371 = vmatpush1.bf16.xpose.msra.mxu0 0
  %5372 = vmatprep.subr.bf16.mxu0 0
  %5373 = vmatpush1.bf16.xpose.msra.mxu0 0
  %5374 = vmatprep.subr.bf16.mxu0 0
  %5375 = vmatpush1.bf16.xpose.msra.mxu0 0
  %5376 = vmatprep.subr.bf16.mxu0 0
  %5377 = vmatpush1.bf16.xpose.msra.mxu0 0
  %5378 = vmatprep.subr.bf16.mxu0 0
  %5379 = vmatpush1.bf16.xpose.msra.mxu0 0
  %5380 = vmatprep.mubr.bf16.mxu0 0
  %5381 = vmatmul.mubr.bf16.gmra.mrb[0].mxu0 %v5343
  %v5382 = vpop.f32.mrb[0].mxu0
  %v5383 = vadd.f32 %v77, %v5382
  %v5384 = vpop.f32.mrb[0].mxu0
  %v5385 = vpop.f32.mrb[0].mxu0
  %v5386 = vadd.f32 %v78, %v5385
  %v5387 = vpop.f32.mrb[0].mxu0
  %5388 = vmatprep.mubr.bf16.mxu0 0
  %5389 = vmatmul.mubr.bf16.gmra.mrb[0].mxu0 %v5346
  %v5390 = vpop.f32.mrb[0].mxu0
  %v5391 = vadd.f32 %v79, %v5390
  %v5392 = vpop.f32.mrb[0].mxu0
  %v5393 = vpop.f32.mrb[0].mxu0
  %v5394 = vadd.f32 %v80, %v5393
  %v5395 = vpop.f32.mrb[0].mxu0
  %5396 = vdwg.mxu0
  %v5397 = vsel %vm179, %v5383, -inf
  %5398 = vmax.xlane.f32.xlu0 %v5397
  %v5399 = vpop.xlane.xlu0 %5398
  %v5400 = vsel %vm179, %v5386, -inf
  %5401 = vmax.xlane.f32.xlu0 %v5400
  %v5402 = vpop.xlane.xlu0 %5401
  %v5403 = vsel %vm179, %v5391, -inf
  %5404 = vmax.xlane.f32.xlu0 %v5403
  %v5405 = vpop.xlane.xlu0 %5404
  %v5406 = vsel %vm179, %v5394, -inf
  %5407 = vmax.xlane.f32.xlu0 %v5406
  %v5408 = vpop.xlane.xlu0 %5407
  %v5409 = vsub.f32 %v5383, %v5399
  %v5410 = vsub.f32 %v5386, %v5402
  %v5411 = vsub.f32 %v5391, %v5405
  %v5412 = vsub.f32 %v5394, %v5408
  %v5413 = vmul.f32 %v5409, 1.442695
  %v5414 = vpow.pop %v5413
  %v5415 = vmul.f32 %v5410, 1.442695
  %v5416 = vpow.pop %v5415
  %v5417 = vmul.f32 %v5411, 1.442695
  %v5418 = vpow.pop %v5417
  %v5419 = vmul.f32 %v5412, 1.442695
  %v5420 = vpow.pop %v5419
  %v5421 = vsel %vm179, %v5414, 0.0
  %5422 = vadd.xlane.f32.xlu0 %v5421
  %v5423 = vpop.xlane.xlu0 %5422
  %v5424 = vsel %vm179, %v5416, 0.0
  %5425 = vadd.xlane.f32.xlu0 %v5424
  %v5426 = vpop.xlane.xlu0 %5425
  %v5427 = vsel %vm179, %v5418, 0.0
  %5428 = vadd.xlane.f32.xlu0 %v5427
  %v5429 = vpop.xlane.xlu0 %5428
  %v5430 = vsel %vm179, %v5420, 0.0
  %5431 = vadd.xlane.f32.xlu0 %v5430
  %v5432 = vpop.xlane.xlu0 %5431
  %v5433 = vrcp.pop %v5423
  %v5434 = vrcp.pop %v5426
  %v5435 = vrcp.pop %v5429
  %v5436 = vrcp.pop %v5432
  %v5437 = vmul.f32 %v5414, %v5433
  %v5438 = vmul.f32 %v5416, %v5434
  %v5439 = vmul.f32 %v5418, %v5435
  %v5440 = vmul.f32 %v5420, %v5436
  %v5441 = vpack.c.bf16 %v5438, %v5437
  %v5442 = vpack.c.bf16 %v5440, %v5439
  %v5443 = vmul.bf16 %v5012, %v836
  %v5444 = vmul.bf16 %v5013, %v836
  %v5446 = vsel %vm179, %v5441, 0
  %v5449 = vsel %vm179, %v5442, 0
  %5451 = vmatprep.subr.bf16.mxu0 0
  %5452 = vmatpush1.bf16.msra.mxu0 %v5443
  %5453 = vmatprep.subr.bf16.mxu0 0
  %5454 = vmatpush1.bf16.msra.mxu0 %v5444
  %5455 = vmatprep.subr.bf16.mxu0 0
  %5456 = vmatpush1.bf16.msra.mxu0 0
  %5457 = vmatprep.subr.bf16.mxu0 0
  %5458 = vmatpush1.bf16.msra.mxu0 0
  %5459 = vmatprep.subr.bf16.mxu0 0
  %5460 = vmatpush1.bf16.msra.mxu0 0
  %5461 = vmatprep.subr.bf16.mxu0 0
  %5462 = vmatpush1.bf16.msra.mxu0 0
  %5463 = vmatprep.subr.bf16.mxu0 0
  %5464 = vmatpush1.bf16.msra.mxu0 0
  %5465 = vmatprep.subr.bf16.mxu0 0
  %5466 = vmatpush1.bf16.msra.mxu0 0
  %5467 = vmatprep.subr.bf16.mxu0 0
  %5468 = vmatpush1.bf16.msra.mxu0 0
  %5469 = vmatprep.subr.bf16.mxu0 0
  %5470 = vmatpush1.bf16.msra.mxu0 0
  %5471 = vmatprep.subr.bf16.mxu0 0
  %5472 = vmatpush1.bf16.msra.mxu0 0
  %5473 = vmatprep.subr.bf16.mxu0 0
  %5474 = vmatpush1.bf16.msra.mxu0 0
  %5475 = vmatprep.subr.bf16.mxu0 0
  %5476 = vmatpush1.bf16.msra.mxu0 0
  %5477 = vmatprep.subr.bf16.mxu0 0
  %5478 = vmatpush1.bf16.msra.mxu0 0
  %5479 = vmatprep.subr.bf16.mxu0 0
  %5480 = vmatpush1.bf16.msra.mxu0 0
  %5481 = vmatprep.subr.bf16.mxu0 0
  %5482 = vmatpush1.bf16.msra.mxu0 0
  %5483 = vmatprep.mubr.bf16.mxu0 0
  %5484 = vmatmul.mubr.bf16.gmra.mrb[0].mxu0 %v5446
  %v5485 = vpop.f32.mrb[0].mxu0
  %v5486 = vadd.f32 0.0, %v5485
  %v5487 = vpop.f32.mrb[0].mxu0
  %v5488 = vpop.f32.mrb[0].mxu0
  %v5489 = vadd.f32 0.0, %v5488
  %v5490 = vpop.f32.mrb[0].mxu0
  %5491 = vmatprep.mubr.bf16.mxu0 0
  %5492 = vmatmul.mubr.bf16.gmra.mrb[0].mxu0 %v5449
  %v5493 = vpop.f32.mrb[0].mxu0
  %v5494 = vadd.f32 0.0, %v5493
  %v5495 = vpop.f32.mrb[0].mxu0
  %v5496 = vpop.f32.mrb[0].mxu0
  %v5497 = vadd.f32 0.0, %v5496
  %v5498 = vpop.f32.mrb[0].mxu0
  %5499 = vdwg.mxu0
  %v5500 = vadd.f32 %v5326, %v5486
  %v5501 = vadd.f32 %v5329, %v5489
  %v5502 = vadd.f32 %v5334, %v5494
  %v5503 = vadd.f32 %v5337, %v5497
  %v5504 = vmul.bf16 %v5008, %v1007
  %v5505 = vmul.bf16 %v5009, %v1007
  %v5507 = vsel %vm179, %v5504, 0
  %v5510 = vsel %vm179, %v5505, 0
  %5512 = vmatprep.subr.bf16.mxu0 0
  %5513 = vmatpush1.bf16.xpose.msra.mxu0 %v5023
  %5514 = vmatprep.subr.bf16.mxu0 0
  %5515 = vmatpush1.bf16.xpose.msra.mxu0 %v5026
  %5516 = vmatprep.subr.bf16.mxu0 0
  %5517 = vmatpush1.bf16.xpose.msra.mxu0 0
  %5518 = vmatprep.subr.bf16.mxu0 0
  %5519 = vmatpush1.bf16.xpose.msra.mxu0 0
  %5520 = vmatprep.subr.bf16.mxu0 0
  %5521 = vmatpush1.bf16.xpose.msra.mxu0 0
  %5522 = vmatprep.subr.bf16.mxu0 0
  %5523 = vmatpush1.bf16.xpose.msra.mxu0 0
  %5524 = vmatprep.subr.bf16.mxu0 0
  %5525 = vmatpush1.bf16.xpose.msra.mxu0 0
  %5526 = vmatprep.subr.bf16.mxu0 0
  %5527 = vmatpush1.bf16.xpose.msra.mxu0 0
  %5528 = vmatprep.subr.bf16.mxu0 0
  %5529 = vmatpush1.bf16.xpose.msra.mxu0 0
  %5530 = vmatprep.subr.bf16.mxu0 0
  %5531 = vmatpush1.bf16.xpose.msra.mxu0 0
  %5532 = vmatprep.subr.bf16.mxu0 0
  %5533 = vmatpush1.bf16.xpose.msra.mxu0 0
  %5534 = vmatprep.subr.bf16.mxu0 0
  %5535 = vmatpush1.bf16.xpose.msra.mxu0 0
  %5536 = vmatprep.subr.bf16.mxu0 0
  %5537 = vmatpush1.bf16.xpose.msra.mxu0 0
  %5538 = vmatprep.subr.bf16.mxu0 0
  %5539 = vmatpush1.bf16.xpose.msra.mxu0 0
  %5540 = vmatprep.subr.bf16.mxu0 0
  %5541 = vmatpush1.bf16.xpose.msra.mxu0 0
  %5542 = vmatprep.subr.bf16.mxu0 0
  %5543 = vmatpush1.bf16.xpose.msra.mxu0 0
  %5544 = vmatprep.mubr.bf16.mxu0 0
  %5545 = vmatmul.mubr.bf16.gmra.mrb[0].mxu0 %v5507
  %v5546 = vpop.f32.mrb[0].mxu0
  %v5547 = vadd.f32 %v77, %v5546
  %v5548 = vpop.f32.mrb[0].mxu0
  %v5549 = vpop.f32.mrb[0].mxu0
  %v5550 = vadd.f32 %v78, %v5549
  %v5551 = vpop.f32.mrb[0].mxu0
  %5552 = vmatprep.mubr.bf16.mxu0 0
  %5553 = vmatmul.mubr.bf16.gmra.mrb[0].mxu0 %v5510
  %v5554 = vpop.f32.mrb[0].mxu0
  %v5555 = vadd.f32 %v79, %v5554
  %v5556 = vpop.f32.mrb[0].mxu0
  %v5557 = vpop.f32.mrb[0].mxu0
  %v5558 = vadd.f32 %v80, %v5557
  %v5559 = vpop.f32.mrb[0].mxu0
  %5560 = vdwg.mxu0
  %v5561 = vsel %vm179, %v5547, -inf
  %5562 = vmax.xlane.f32.xlu0 %v5561
  %v5563 = vpop.xlane.xlu0 %5562
  %v5564 = vsel %vm179, %v5550, -inf
  %5565 = vmax.xlane.f32.xlu0 %v5564
  %v5566 = vpop.xlane.xlu0 %5565
  %v5567 = vsel %vm179, %v5555, -inf
  %5568 = vmax.xlane.f32.xlu0 %v5567
  %v5569 = vpop.xlane.xlu0 %5568
  %v5570 = vsel %vm179, %v5558, -inf
  %5571 = vmax.xlane.f32.xlu0 %v5570
  %v5572 = vpop.xlane.xlu0 %5571
  %v5573 = vsub.f32 %v5547, %v5563
  %v5574 = vsub.f32 %v5550, %v5566
  %v5575 = vsub.f32 %v5555, %v5569
  %v5576 = vsub.f32 %v5558, %v5572
  %v5577 = vmul.f32 %v5573, 1.442695
  %v5578 = vpow.pop %v5577
  %v5579 = vmul.f32 %v5574, 1.442695
  %v5580 = vpow.pop %v5579
  %v5581 = vmul.f32 %v5575, 1.442695
  %v5582 = vpow.pop %v5581
  %v5583 = vmul.f32 %v5576, 1.442695
  %v5584 = vpow.pop %v5583
  %v5585 = vsel %vm179, %v5578, 0.0
  %5586 = vadd.xlane.f32.xlu0 %v5585
  %v5587 = vpop.xlane.xlu0 %5586
  %v5588 = vsel %vm179, %v5580, 0.0
  %5589 = vadd.xlane.f32.xlu0 %v5588
  %v5590 = vpop.xlane.xlu0 %5589
  %v5591 = vsel %vm179, %v5582, 0.0
  %5592 = vadd.xlane.f32.xlu0 %v5591
  %v5593 = vpop.xlane.xlu0 %5592
  %v5594 = vsel %vm179, %v5584, 0.0
  %5595 = vadd.xlane.f32.xlu0 %v5594
  %v5596 = vpop.xlane.xlu0 %5595
  %v5597 = vrcp.pop %v5587
  %v5598 = vrcp.pop %v5590
  %v5599 = vrcp.pop %v5593
  %v5600 = vrcp.pop %v5596
  %v5601 = vmul.f32 %v5578, %v5597
  %v5602 = vmul.f32 %v5580, %v5598
  %v5603 = vmul.f32 %v5582, %v5599
  %v5604 = vmul.f32 %v5584, %v5600
  %v5605 = vpack.c.bf16 %v5602, %v5601
  %v5606 = vpack.c.bf16 %v5604, %v5603
  %v5607 = vmul.bf16 %v5012, %v1007
  %v5608 = vmul.bf16 %v5013, %v1007
  %v5610 = vsel %vm179, %v5605, 0
  %v5613 = vsel %vm179, %v5606, 0
  %5615 = vmatprep.subr.bf16.mxu0 0
  %5616 = vmatpush1.bf16.msra.mxu0 %v5607
  %5617 = vmatprep.subr.bf16.mxu0 0
  %5618 = vmatpush1.bf16.msra.mxu0 %v5608
  %5619 = vmatprep.subr.bf16.mxu0 0
  %5620 = vmatpush1.bf16.msra.mxu0 0
  %5621 = vmatprep.subr.bf16.mxu0 0
  %5622 = vmatpush1.bf16.msra.mxu0 0
  %5623 = vmatprep.subr.bf16.mxu0 0
  %5624 = vmatpush1.bf16.msra.mxu0 0
  %5625 = vmatprep.subr.bf16.mxu0 0
  %5626 = vmatpush1.bf16.msra.mxu0 0
  %5627 = vmatprep.subr.bf16.mxu0 0
  %5628 = vmatpush1.bf16.msra.mxu0 0
  %5629 = vmatprep.subr.bf16.mxu0 0
  %5630 = vmatpush1.bf16.msra.mxu0 0
  %5631 = vmatprep.subr.bf16.mxu0 0
  %5632 = vmatpush1.bf16.msra.mxu0 0
  %5633 = vmatprep.subr.bf16.mxu0 0
  %5634 = vmatpush1.bf16.msra.mxu0 0
  %5635 = vmatprep.subr.bf16.mxu0 0
  %5636 = vmatpush1.bf16.msra.mxu0 0
  %5637 = vmatprep.subr.bf16.mxu0 0
  %5638 = vmatpush1.bf16.msra.mxu0 0
  %5639 = vmatprep.subr.bf16.mxu0 0
  %5640 = vmatpush1.bf16.msra.mxu0 0
  %5641 = vmatprep.subr.bf16.mxu0 0
  %5642 = vmatpush1.bf16.msra.mxu0 0
  %5643 = vmatprep.subr.bf16.mxu0 0
  %5644 = vmatpush1.bf16.msra.mxu0 0
  %5645 = vmatprep.subr.bf16.mxu0 0
  %5646 = vmatpush1.bf16.msra.mxu0 0
  %5647 = vmatprep.mubr.bf16.mxu0 0
  %5648 = vmatmul.mubr.bf16.gmra.mrb[0].mxu0 %v5610
  %v5649 = vpop.f32.mrb[0].mxu0
  %v5650 = vadd.f32 0.0, %v5649
  %v5651 = vpop.f32.mrb[0].mxu0
  %v5652 = vpop.f32.mrb[0].mxu0
  %v5653 = vadd.f32 0.0, %v5652
  %v5654 = vpop.f32.mrb[0].mxu0
  %5655 = vmatprep.mubr.bf16.mxu0 0
  %5656 = vmatmul.mubr.bf16.gmra.mrb[0].mxu0 %v5613
  %v5657 = vpop.f32.mrb[0].mxu0
  %v5658 = vadd.f32 0.0, %v5657
  %v5659 = vpop.f32.mrb[0].mxu0
  %v5660 = vpop.f32.mrb[0].mxu0
  %v5661 = vadd.f32 0.0, %v5660
  %v5662 = vpop.f32.mrb[0].mxu0
  %5663 = vdwg.mxu0
  %v5664 = vadd.f32 %v5500, %v5650
  %v5665 = vadd.f32 %v5501, %v5653
  %v5666 = vadd.f32 %v5502, %v5658
  %v5667 = vadd.f32 %v5503, %v5661
  %v5668 = vpack.c.bf16 %v5665, %v5664
  %v5669 = vpack.c.bf16 %v5667, %v5666
  %v5670 = vld [vmem:[%s2642] sm:$0xf]
  %v5671 = vld [vmem:[%s2642 + $0x4] sm:$0xf]
  %v5672 = vld [vmem:[%s2642 + $0x8] sm:$0xf]
  %v5673 = vld [vmem:[%s2642 + $0xc] sm:$0xf]
  %v5674 = vld [vmem:[%s2647] sm:$0x1]
  %v5676 = vlaneseq
  %v5677 = vshrl.u32 %v5676, 7
  %v5678 = vsub.s32 0, %v5677
  %v5679 = vrot.slane %v5674, %v5678
  %v5685 = vunpack.c.l.b16 %v5670
  %v5686 = vunpack.c.l.b16 %v5671
  %v5687 = vunpack.c.l.b16 %v5672
  %v5688 = vunpack.c.l.b16 %v5673
  %v5689 = vpack.c.b16 %v5686, %v5685
  %v5690 = vpack.c.b16 %v5688, %v5687
  %v5694 = vsel %vm179, %v5668, 0
  %v5697 = vsel %vm179, %v5669, 0
  %5699 = vmatprep.subr.bf16.mxu0 0
  %5700 = vmatpush1.bf16.msra.mxu0 %v5689
  %5701 = vmatprep.subr.bf16.mxu0 0
  %5702 = vmatpush1.bf16.msra.mxu0 %v5690
  %5703 = vmatprep.subr.bf16.mxu0 0
  %5704 = vmatpush1.bf16.msra.mxu0 0
  %5705 = vmatprep.subr.bf16.mxu0 0
  %5706 = vmatpush1.bf16.msra.mxu0 0
  %5707 = vmatprep.subr.bf16.mxu0 0
  %5708 = vmatpush1.bf16.msra.mxu0 0
  %5709 = vmatprep.subr.bf16.mxu0 0
  %5710 = vmatpush1.bf16.msra.mxu0 0
  %5711 = vmatprep.subr.bf16.mxu0 0
  %5712 = vmatpush1.bf16.msra.mxu0 0
  %5713 = vmatprep.subr.bf16.mxu0 0
  %5714 = vmatpush1.bf16.msra.mxu0 0
  %5715 = vmatprep.subr.bf16.mxu0 0
  %5716 = vmatpush1.bf16.msra.mxu0 0
  %5717 = vmatprep.subr.bf16.mxu0 0
  %5718 = vmatpush1.bf16.msra.mxu0 0
  %5719 = vmatprep.subr.bf16.mxu0 0
  %5720 = vmatpush1.bf16.msra.mxu0 0
  %5721 = vmatprep.subr.bf16.mxu0 0
  %5722 = vmatpush1.bf16.msra.mxu0 0
  %5723 = vmatprep.subr.bf16.mxu0 0
  %5724 = vmatpush1.bf16.msra.mxu0 0
  %5725 = vmatprep.subr.bf16.mxu0 0
  %5726 = vmatpush1.bf16.msra.mxu0 0
  %5727 = vmatprep.subr.bf16.mxu0 0
  %5728 = vmatpush1.bf16.msra.mxu0 0
  %5729 = vmatprep.subr.bf16.mxu0 0
  %5730 = vmatpush1.bf16.msra.mxu0 0
  %5731 = vmatprep.mubr.bf16.mxu0 0
  %5732 = vmatmul.mubr.bf16.gmra.mrb[0].mxu0 %v5694
  %v5733 = vpop.f32.mrb[0].mxu0
  %v5734 = vadd.f32 %v5679, %v5733
  %v5735 = vpop.f32.mrb[0].mxu0
  %v5736 = vpop.f32.mrb[0].mxu0
  %v5737 = vadd.f32 %v5679, %v5736
  %v5738 = vpop.f32.mrb[0].mxu0
  %5739 = vmatprep.mubr.bf16.mxu0 0
  %5740 = vmatmul.mubr.bf16.gmra.mrb[0].mxu0 %v5697
  %v5741 = vpop.f32.mrb[0].mxu0
  %v5742 = vadd.f32 %v5679, %v5741
  %v5743 = vpop.f32.mrb[0].mxu0
  %v5744 = vpop.f32.mrb[0].mxu0
  %v5745 = vadd.f32 %v5679, %v5744
  %v5746 = vpop.f32.mrb[0].mxu0
  %5747 = vdwg.mxu0
  %v5748 = vadd.f32 %v4698, %v5734
  %v5749 = vadd.f32 %v4699, %v5737
  %v5750 = vadd.f32 %v4700, %v5742
  %v5751 = vadd.f32 %v4701, %v5745
  %v5752 = vld [vmem:[%s2726] sm:$0x1]
  %v5753 = vld [vmem:[%s2728] sm:$0x1]
  %v5754 = vsel %vm179, %v5748, 0.0
  %5755 = vadd.xlane.f32.xlu0 %v5754
  %v5756 = vpop.xlane.xlu0 %5755
  %v5757 = vsel %vm179, %v5749, 0.0
  %5758 = vadd.xlane.f32.xlu0 %v5757
  %v5759 = vpop.xlane.xlu0 %5758
  %v5760 = vsel %vm179, %v5750, 0.0
  %5761 = vadd.xlane.f32.xlu0 %v5760
  %v5762 = vpop.xlane.xlu0 %5761
  %v5763 = vsel %vm179, %v5751, 0.0
  %5764 = vadd.xlane.f32.xlu0 %v5763
  %v5765 = vpop.xlane.xlu0 %5764
  %v5766 = vmul.f32 %v5756, 0.03125
  %v5767 = vmul.f32 %v5759, 0.03125
  %v5768 = vmul.f32 %v5762, 0.03125
  %v5769 = vmul.f32 %v5765, 0.03125
  %v5770 = vmul.f32 %v5748, %v5748
  %v5771 = vmul.f32 %v5749, %v5749
  %v5772 = vmul.f32 %v5750, %v5750
  %v5773 = vmul.f32 %v5751, %v5751
  %v5774 = vsel %vm179, %v5770, 0.0
  %5775 = vadd.xlane.f32.xlu0 %v5774
  %v5776 = vpop.xlane.xlu0 %5775
  %v5777 = vsel %vm179, %v5771, 0.0
  %5778 = vadd.xlane.f32.xlu0 %v5777
  %v5779 = vpop.xlane.xlu0 %5778
  %v5780 = vsel %vm179, %v5772, 0.0
  %5781 = vadd.xlane.f32.xlu0 %v5780
  %v5782 = vpop.xlane.xlu0 %5781
  %v5783 = vsel %vm179, %v5773, 0.0
  %5784 = vadd.xlane.f32.xlu0 %v5783
  %v5785 = vpop.xlane.xlu0 %5784
  %v5786 = vmul.f32 %v5776, 0.03125
  %v5787 = vmul.f32 %v5779, 0.03125
  %v5788 = vmul.f32 %v5782, 0.03125
  %v5789 = vmul.f32 %v5785, 0.03125
  %v5790 = vmul.f32 %v5766, %v5766
  %v5791 = vmul.f32 %v5767, %v5767
  %v5792 = vmul.f32 %v5768, %v5768
  %v5793 = vmul.f32 %v5769, %v5769
  %v5794 = vsub.f32 %v5786, %v5790
  %v5795 = vsub.f32 %v5787, %v5791
  %v5796 = vsub.f32 %v5788, %v5792
  %v5797 = vsub.f32 %v5789, %v5793
  %v5798 = vsub.f32 %v5748, %v5766
  %v5799 = vsub.f32 %v5749, %v5767
  %v5800 = vsub.f32 %v5750, %v5768
  %v5801 = vsub.f32 %v5751, %v5769
  %v5802 = vadd.f32 %v5794, 1e-05
  %v5803 = vadd.f32 %v5795, 1e-05
  %v5804 = vadd.f32 %v5796, 1e-05
  %v5805 = vadd.f32 %v5797, 1e-05
  %v5806 = vrsqrt.pop %v5802
  %v5807 = vrsqrt.pop %v5803
  %v5808 = vrsqrt.pop %v5804
  %v5809 = vrsqrt.pop %v5805
  %v5810 = vmul.f32 %v5798, %v5806
  %v5811 = vmul.f32 %v5799, %v5807
  %v5812 = vmul.f32 %v5800, %v5808
  %v5813 = vmul.f32 %v5801, %v5809
  %v5815 = vlaneseq
  %v5816 = vshrl.u32 %v5815, 7
  %v5817 = vsub.s32 0, %v5816
  %v5818 = vrot.slane %v5752, %v5817
  %v5820 = vmul.f32 %v5810, %v5818
  %v5821 = vmul.f32 %v5811, %v5818
  %v5822 = vmul.f32 %v5812, %v5818
  %v5823 = vmul.f32 %v5813, %v5818
  %v5825 = vlaneseq
  %v5826 = vshrl.u32 %v5825, 7
  %v5827 = vsub.s32 0, %v5826
  %v5828 = vrot.slane %v5753, %v5827
  %v5830 = vadd.f32 %v5820, %v5828
  %v5831 = vadd.f32 %v5821, %v5828
  %v5832 = vadd.f32 %v5822, %v5828
  %v5833 = vadd.f32 %v5823, %v5828
  %v5834 = vpack.c.bf16 %v5831, %v5830
  %v5835 = vpack.c.bf16 %v5833, %v5832
  %v5836 = vld [vmem:[%s2812] sm:$0xf]
  %v5837 = vld [vmem:[%s2812 + $0x4] sm:$0xf]
  %v5838 = vld [vmem:[%s2812 + $0x8] sm:$0xf]
  %v5839 = vld [vmem:[%s2812 + $0xc] sm:$0xf]
  %v5840 = vld [vmem:[%s2817] sm:$0x1]
  %v5842 = vlaneseq
  %v5843 = vshrl.u32 %v5842, 7
  %v5844 = vsub.s32 0, %v5843
  %v5845 = vrot.slane %v5840, %v5844
  %v5851 = vunpack.c.l.b16 %v5836
  %v5852 = vunpack.c.l.b16 %v5837
  %v5853 = vunpack.c.l.b16 %v5838
  %v5854 = vunpack.c.l.b16 %v5839
  %v5855 = vpack.c.b16 %v5852, %v5851
  %v5856 = vpack.c.b16 %v5854, %v5853
  %v5860 = vsel %vm179, %v5834, 0
  %v5863 = vsel %vm179, %v5835, 0
  %5865 = vmatprep.subr.bf16.mxu0 0
  %5866 = vmatpush1.bf16.msra.mxu0 %v5855
  %5867 = vmatprep.subr.bf16.mxu0 0
  %5868 = vmatpush1.bf16.msra.mxu0 %v5856
  %5869 = vmatprep.subr.bf16.mxu0 0
  %5870 = vmatpush1.bf16.msra.mxu0 0
  %5871 = vmatprep.subr.bf16.mxu0 0
  %5872 = vmatpush1.bf16.msra.mxu0 0
  %5873 = vmatprep.subr.bf16.mxu0 0
  %5874 = vmatpush1.bf16.msra.mxu0 0
  %5875 = vmatprep.subr.bf16.mxu0 0
  %5876 = vmatpush1.bf16.msra.mxu0 0
  %5877 = vmatprep.subr.bf16.mxu0 0
  %5878 = vmatpush1.bf16.msra.mxu0 0
  %5879 = vmatprep.subr.bf16.mxu0 0
  %5880 = vmatpush1.bf16.msra.mxu0 0
  %5881 = vmatprep.subr.bf16.mxu0 0
  %5882 = vmatpush1.bf16.msra.mxu0 0
  %5883 = vmatprep.subr.bf16.mxu0 0
  %5884 = vmatpush1.bf16.msra.mxu0 0
  %5885 = vmatprep.subr.bf16.mxu0 0
  %5886 = vmatpush1.bf16.msra.mxu0 0
  %5887 = vmatprep.subr.bf16.mxu0 0
  %5888 = vmatpush1.bf16.msra.mxu0 0
  %5889 = vmatprep.subr.bf16.mxu0 0
  %5890 = vmatpush1.bf16.msra.mxu0 0
  %5891 = vmatprep.subr.bf16.mxu0 0
  %5892 = vmatpush1.bf16.msra.mxu0 0
  %5893 = vmatprep.subr.bf16.mxu0 0
  %5894 = vmatpush1.bf16.msra.mxu0 0
  %5895 = vmatprep.subr.bf16.mxu0 0
  %5896 = vmatpush1.bf16.msra.mxu0 0
  %5897 = vmatprep.mubr.bf16.mxu0 0
  %5898 = vmatmul.mubr.bf16.gmra.mrb[0].mxu0 %v5860
  %v5899 = vpop.f32.mrb[0].mxu0
  %v5900 = vadd.f32 %v5845, %v5899
  %v5901 = vpop.f32.mrb[0].mxu0
  %v5902 = vpop.f32.mrb[0].mxu0
  %v5903 = vadd.f32 %v5845, %v5902
  %v5904 = vpop.f32.mrb[0].mxu0
  %5905 = vmatprep.mubr.bf16.mxu0 0
  %5906 = vmatmul.mubr.bf16.gmra.mrb[0].mxu0 %v5863
  %v5907 = vpop.f32.mrb[0].mxu0
  %v5908 = vadd.f32 %v5845, %v5907
  %v5909 = vpop.f32.mrb[0].mxu0
  %v5910 = vpop.f32.mrb[0].mxu0
  %v5911 = vadd.f32 %v5845, %v5910
  %v5912 = vpop.f32.mrb[0].mxu0
  %5913 = vdwg.mxu0
  %v5914 = vmul.f32 %v5900, %v5900
  %v5915 = vmul.f32 %v5903, %v5903
  %v5916 = vmul.f32 %v5908, %v5908
  %v5917 = vmul.f32 %v5911, %v5911
  %v5918 = vmul.f32 %v5900, %v5914
  %v5919 = vmul.f32 %v5903, %v5915
  %v5920 = vmul.f32 %v5908, %v5916
  %v5921 = vmul.f32 %v5911, %v5917
  %v5922 = vmul.f32 %v5918, 0.044715
  %v5923 = vmul.f32 %v5919, 0.044715
  %v5924 = vmul.f32 %v5920, 0.044715
  %v5925 = vmul.f32 %v5921, 0.044715
  %v5926 = vadd.f32 %v5900, %v5922
  %v5927 = vadd.f32 %v5903, %v5923
  %v5928 = vadd.f32 %v5908, %v5924
  %v5929 = vadd.f32 %v5911, %v5925
  %v5930 = vmul.f32 %v5926, 0.7978846
  %v5931 = vmul.f32 %v5927, 0.7978846
  %v5932 = vmul.f32 %v5928, 0.7978846
  %v5933 = vmul.f32 %v5929, 0.7978846
  %v5934 = vtanh.pop %v5930
  %v5935 = vtanh.pop %v5931
  %v5936 = vtanh.pop %v5932
  %v5937 = vtanh.pop %v5933
  %v5938 = vadd.f32 %v5934, 1.0
  %v5939 = vadd.f32 %v5935, 1.0
  %v5940 = vadd.f32 %v5936, 1.0
  %v5941 = vadd.f32 %v5937, 1.0
  %v5942 = vmul.f32 %v5938, 0.5
  %v5943 = vmul.f32 %v5939, 0.5
  %v5944 = vmul.f32 %v5940, 0.5
  %v5945 = vmul.f32 %v5941, 0.5
  %v5946 = vmul.f32 %v5900, %v5942
  %v5947 = vmul.f32 %v5903, %v5943
  %v5948 = vmul.f32 %v5908, %v5944
  %v5949 = vmul.f32 %v5911, %v5945
  %v5950 = vpack.c.bf16 %v5947, %v5946
  %v5951 = vpack.c.bf16 %v5949, %v5948
  %v5952 = vld [vmem:[%s2930] sm:$0xf]
  %v5953 = vld [vmem:[%s2930 + $0x4] sm:$0xf]
  %v5954 = vld [vmem:[%s2930 + $0x8] sm:$0xf]
  %v5955 = vld [vmem:[%s2930 + $0xc] sm:$0xf]
  %v5956 = vld [vmem:[%s2930 + $0x10] sm:$0xf]
  %v5957 = vld [vmem:[%s2930 + $0x14] sm:$0xf]
  %v5958 = vld [vmem:[%s2930 + $0x18] sm:$0xf]
  %v5959 = vld [vmem:[%s2930 + $0x1c] sm:$0xf]
  %v5960 = vld [vmem:[%s2930 + $0x20] sm:$0xf]
  %v5961 = vld [vmem:[%s2930 + $0x24] sm:$0xf]
  %v5962 = vld [vmem:[%s2930 + $0x28] sm:$0xf]
  %v5963 = vld [vmem:[%s2930 + $0x2c] sm:$0xf]
  %v5964 = vld [vmem:[%s2930 + $0x30] sm:$0xf]
  %v5965 = vld [vmem:[%s2930 + $0x34] sm:$0xf]
  %v5966 = vld [vmem:[%s2930 + $0x38] sm:$0xf]
  %v5967 = vld [vmem:[%s2930 + $0x3c] sm:$0xf]
  %v5968 = vld [vmem:[%s2947] sm:$0x1]
  %v5970 = vlaneseq
  %v5971 = vshrl.u32 %v5970, 7
  %v5972 = vsub.s32 0, %v5971
  %v5973 = vrot.slane %v5968, %v5972
  %v5991 = vunpack.c.l.b16 %v5952
  %v5992 = vunpack.c.l.b16 %v5953
  %v5993 = vunpack.c.l.b16 %v5954
  %v5994 = vunpack.c.l.b16 %v5955
  %v5995 = vunpack.c.l.b16 %v5956
  %v5996 = vunpack.c.l.b16 %v5957
  %v5997 = vunpack.c.l.b16 %v5958
  %v5998 = vunpack.c.l.b16 %v5959
  %v5999 = vunpack.c.l.b16 %v5960
  %v6000 = vunpack.c.l.b16 %v5961
  %v6001 = vunpack.c.l.b16 %v5962
  %v6002 = vunpack.c.l.b16 %v5963
  %v6003 = vunpack.c.l.b16 %v5964
  %v6004 = vunpack.c.l.b16 %v5965
  %v6005 = vunpack.c.l.b16 %v5966
  %v6006 = vunpack.c.l.b16 %v5967
  %v6007 = vpack.c.b16 %v5992, %v5991
  %v6008 = vpack.c.b16 %v5994, %v5993
  %v6009 = vpack.c.b16 %v5996, %v5995
  %v6010 = vpack.c.b16 %v5998, %v5997
  %v6011 = vpack.c.b16 %v6000, %v5999
  %v6012 = vpack.c.b16 %v6002, %v6001
  %v6013 = vpack.c.b16 %v6004, %v6003
  %v6014 = vpack.c.b16 %v6006, %v6005
  %6023 = vmatprep.subr.bf16.mxu0 0
  %6024 = vmatpush1.bf16.msra.mxu0 %v6007
  %6025 = vmatprep.subr.bf16.mxu0 0
  %6026 = vmatpush1.bf16.msra.mxu0 %v6008
  %6027 = vmatprep.subr.bf16.mxu0 0
  %6028 = vmatpush1.bf16.msra.mxu0 %v6009
  %6029 = vmatprep.subr.bf16.mxu0 0
  %6030 = vmatpush1.bf16.msra.mxu0 %v6010
  %6031 = vmatprep.subr.bf16.mxu0 0
  %6032 = vmatpush1.bf16.msra.mxu0 %v6011
  %6033 = vmatprep.subr.bf16.mxu0 0
  %6034 = vmatpush1.bf16.msra.mxu0 %v6012
  %6035 = vmatprep.subr.bf16.mxu0 0
  %6036 = vmatpush1.bf16.msra.mxu0 %v6013
  %6037 = vmatprep.subr.bf16.mxu0 0
  %6038 = vmatpush1.bf16.msra.mxu0 %v6014
  %6039 = vmatprep.subr.bf16.mxu0 0
  %6040 = vmatpush1.bf16.msra.mxu0 0
  %6041 = vmatprep.subr.bf16.mxu0 0
  %6042 = vmatpush1.bf16.msra.mxu0 0
  %6043 = vmatprep.subr.bf16.mxu0 0
  %6044 = vmatpush1.bf16.msra.mxu0 0
  %6045 = vmatprep.subr.bf16.mxu0 0
  %6046 = vmatpush1.bf16.msra.mxu0 0
  %6047 = vmatprep.subr.bf16.mxu0 0
  %6048 = vmatpush1.bf16.msra.mxu0 0
  %6049 = vmatprep.subr.bf16.mxu0 0
  %6050 = vmatpush1.bf16.msra.mxu0 0
  %6051 = vmatprep.subr.bf16.mxu0 0
  %6052 = vmatpush1.bf16.msra.mxu0 0
  %6053 = vmatprep.subr.bf16.mxu0 0
  %6054 = vmatpush1.bf16.msra.mxu0 0
  %6055 = vmatprep.mubr.bf16.mxu0 0
  %6056 = vmatmul.mubr.bf16.gmra.mrb[0].mxu0 %v5950
  %v6057 = vpop.f32.mrb[0].mxu0
  %v6058 = vadd.f32 %v5973, %v6057
  %v6059 = vpop.f32.mrb[0].mxu0
  %v6060 = vpop.f32.mrb[0].mxu0
  %v6061 = vadd.f32 %v5973, %v6060
  %v6062 = vpop.f32.mrb[0].mxu0
  %6063 = vmatprep.mubr.bf16.mxu0 0
  %6064 = vmatmul.mubr.bf16.gmra.mrb[0].mxu0 %v5951
  %v6065 = vpop.f32.mrb[0].mxu0
  %v6066 = vadd.f32 %v5973, %v6065
  %v6067 = vpop.f32.mrb[0].mxu0
  %v6068 = vpop.f32.mrb[0].mxu0
  %v6069 = vadd.f32 %v5973, %v6068
  %v6070 = vpop.f32.mrb[0].mxu0
  %6071 = vdwg.mxu0
  %v6072 = vadd.f32 %v5748, %v6058
  %v6073 = vadd.f32 %v5749, %v6061
  %v6074 = vadd.f32 %v5750, %v6066
  %v6075 = vadd.f32 %v5751, %v6069
  %v6076 = vsel %vm179, %v6072, 0.0
  %6077 = vadd.xlane.f32.xlu0 %v6076
  %v6078 = vpop.xlane.xlu0 %6077
  %v6079 = vsel %vm179, %v6073, 0.0
  %6080 = vadd.xlane.f32.xlu0 %v6079
  %v6081 = vpop.xlane.xlu0 %6080
  %v6082 = vsel %vm179, %v6074, 0.0
  %6083 = vadd.xlane.f32.xlu0 %v6082
  %v6084 = vpop.xlane.xlu0 %6083
  %v6085 = vsel %vm179, %v6075, 0.0
  %6086 = vadd.xlane.f32.xlu0 %v6085
  %v6087 = vpop.xlane.xlu0 %6086
  %v6088 = vmul.f32 %v6078, 0.03125
  %v6089 = vmul.f32 %v6081, 0.03125
  %v6090 = vmul.f32 %v6084, 0.03125
  %v6091 = vmul.f32 %v6087, 0.03125
  %v6092 = vmul.f32 %v6072, %v6072
  %v6093 = vmul.f32 %v6073, %v6073
  %v6094 = vmul.f32 %v6074, %v6074
  %v6095 = vmul.f32 %v6075, %v6075
  %v6096 = vsel %vm179, %v6092, 0.0
  %6097 = vadd.xlane.f32.xlu0 %v6096
  %v6098 = vpop.xlane.xlu0 %6097
  %v6099 = vsel %vm179, %v6093, 0.0
  %6100 = vadd.xlane.f32.xlu0 %v6099
  %v6101 = vpop.xlane.xlu0 %6100
  %v6102 = vsel %vm179, %v6094, 0.0
  %6103 = vadd.xlane.f32.xlu0 %v6102
  %v6104 = vpop.xlane.xlu0 %6103
  %v6105 = vsel %vm179, %v6095, 0.0
  %6106 = vadd.xlane.f32.xlu0 %v6105
  %v6107 = vpop.xlane.xlu0 %6106
  %v6108 = vmul.f32 %v6098, 0.03125
  %v6109 = vmul.f32 %v6101, 0.03125
  %v6110 = vmul.f32 %v6104, 0.03125
  %v6111 = vmul.f32 %v6107, 0.03125
  %v6112 = vmul.f32 %v6088, %v6088
  %v6113 = vmul.f32 %v6089, %v6089
  %v6114 = vmul.f32 %v6090, %v6090
  %v6115 = vmul.f32 %v6091, %v6091
  %v6116 = vsub.f32 %v6108, %v6112
  %v6117 = vsub.f32 %v6109, %v6113
  %v6118 = vsub.f32 %v6110, %v6114
  %v6119 = vsub.f32 %v6111, %v6115
  %v6120 = vsub.f32 %v6072, %v6088
  %v6121 = vsub.f32 %v6073, %v6089
  %v6122 = vsub.f32 %v6074, %v6090
  %v6123 = vsub.f32 %v6075, %v6091
  %v6124 = vadd.f32 %v6116, 1e-05
  %v6125 = vadd.f32 %v6117, 1e-05
  %v6126 = vadd.f32 %v6118, 1e-05
  %v6127 = vadd.f32 %v6119, 1e-05
  %v6128 = vrsqrt.pop %v6124
  %v6129 = vrsqrt.pop %v6125
  %v6130 = vrsqrt.pop %v6126
  %v6131 = vrsqrt.pop %v6127
  %v6132 = vmul.f32 %v6120, %v6128
  %v6133 = vmul.f32 %v6121, %v6129
  %v6134 = vmul.f32 %v6122, %v6130
  %v6135 = vmul.f32 %v6123, %v6131
  %v6136 = vmul.f32 %v6132, %v1646
  %v6137 = vmul.f32 %v6133, %v1646
  %v6138 = vmul.f32 %v6134, %v1646
  %v6139 = vmul.f32 %v6135, %v1646
  %v6140 = vadd.f32 %v6136, %v1656
  %v6141 = vadd.f32 %v6137, %v1656
  %v6142 = vadd.f32 %v6138, %v1656
  %v6143 = vadd.f32 %v6139, %v1656
  %v6144 = vld [vmem:[%s8] sm:$0x1]
  %v6145 = vpack.c.bf16 %v6141, %v6140
  %v6146 = vpack.c.bf16 %v6143, %v6142
  %v6147 = vld [vmem:[#allocation2] sm:$0x1]
  %6149 = vset.pattern.permute.xlu0 0
  %6150 = vperm.xlu0 %6149, %v6147
  %v6151 = vpop.permute.xlu0 %6150
  %v6153 = vlaneseq
  %v6154 = vshrl.u32 %v6153, 7
  %v6155 = vsub.s32 0, %v6154
  %v6156 = vrot.slane %v6151, %v6155
  %v6158 = vsel %vm179, %v6144, 0
  %v6161 = vsel %vm179, %v6145, 0
  %v6164 = vsel %vm179, %v6146, 0
  %6166 = vmatprep.subr.bf16.mxu0 0
  %6167 = vmatpush1.bf16.xpose.msra.mxu0 %v6161
  %6168 = vmatprep.subr.bf16.mxu0 0
  %6169 = vmatpush1.bf16.xpose.msra.mxu0 %v6164
  %6170 = vmatprep.subr.bf16.mxu0 0
  %6171 = vmatpush1.bf16.xpose.msra.mxu0 0
  %6172 = vmatprep.subr.bf16.mxu0 0
  %6173 = vmatpush1.bf16.xpose.msra.mxu0 0
  %6174 = vmatprep.subr.bf16.mxu0 0
  %6175 = vmatpush1.bf16.xpose.msra.mxu0 0
  %6176 = vmatprep.subr.bf16.mxu0 0
  %6177 = vmatpush1.bf16.xpose.msra.mxu0 0
  %6178 = vmatprep.subr.bf16.mxu0 0
  %6179 = vmatpush1.bf16.xpose.msra.mxu0 0
  %6180 = vmatprep.subr.bf16.mxu0 0
  %6181 = vmatpush1.bf16.xpose.msra.mxu0 0
  %6182 = vmatprep.subr.bf16.mxu0 0
  %6183 = vmatpush1.bf16.xpose.msra.mxu0 0
  %6184 = vmatprep.subr.bf16.mxu0 0
  %6185 = vmatpush1.bf16.xpose.msra.mxu0 0
  %6186 = vmatprep.subr.bf16.mxu0 0
  %6187 = vmatpush1.bf16.xpose.msra.mxu0 0
  %6188 = vmatprep.subr.bf16.mxu0 0
  %6189 = vmatpush1.bf16.xpose.msra.mxu0 0
  %6190 = vmatprep.subr.bf16.mxu0 0
  %6191 = vmatpush1.bf16.xpose.msra.mxu0 0
  %6192 = vmatprep.subr.bf16.mxu0 0
  %6193 = vmatpush1.bf16.xpose.msra.mxu0 0
  %6194 = vmatprep.subr.bf16.mxu0 0
  %6195 = vmatpush1.bf16.xpose.msra.mxu0 0
  %6196 = vmatprep.subr.bf16.mxu0 0
  %6197 = vmatpush1.bf16.xpose.msra.mxu0 0
  %6198 = vmatprep.mubr.bf16.mxu0 0
  %6199 = vmatmul.mubr.bf16.gmra.mrb[0].mxu0 %v6158
  %v6200 = vpop.f32.mrb[0].mxu0
  %v6201 = vadd.f32 %v6156, %v6200
  %v6202 = vpop.f32.mrb[0].mxu0
  %v6203 = vpop.f32.mrb[0].mxu0
  %v6204 = vpop.f32.mrb[0].mxu0
  %6205 = vdwg.mxu0
  %s6206 = scalar_lea.vmem %s23, 2
  %6207 = vst.msk [vmem:[%s6206] sm:$0x1] %vm3186, %v6201
  // Predicated region
  $region94: #{forward_looped_ab.1} parent=0 // pred_check
    _
  $region95: #{forward_looped_ab.1} parent=0 // pred_check_branch
    %6209 = sbr.rel (0) target = $region97
  $region96: #{forward_looped_ab.1} parent=0 // pred_region
    _
  $region97: #{forward_looped_ab.1} parent=0 // pred_fallthru
    _
  // Predicated region
  $region98: #{forward_looped_ab.1} parent=0 // pred_check
    _
  $region99: #{forward_looped_ab.1} parent=0 // pred_check_branch
    %6211 = sbr.rel (0) target = $region101
  $region100: #{forward_looped_ab.1} parent=0 // pred_region
    _
  $region101: #{forward_looped_ab.1} parent=0 // pred_fallthru
    _

</llo_original>
